<compile_context>
chip_gen: v5e
topology: v5e:2x2
jax: 0.10.0
libtpu: 0.0.40
codegen_flags: <defaults>
</compile_context>

<pallas_src>
import functools

import numpy as np

import jax
import jax.numpy as jnp
from jax.experimental import pallas as pl
from jax.experimental.pallas import tpu as pltpu

EXPANSION = 4
BN_EPS = 1e-5
LANES = 128


# ---------------------------------------------------------------------------
# small helpers
# ---------------------------------------------------------------------------
def _round_up(n, m):
    return (n + m - 1) // m * m


def _pick_tile(dim, cap, base=LANES):
    """Largest multiple of `base` that divides `dim` and is <= cap."""
    best = base
    t = base
    while t <= min(cap, dim):
        if dim % t == 0:
            best = t
        t += base
    return best


def _largest_divisor(n, cap):
    for d in range(min(n, cap), 0, -1):
        if n % d == 0:
            return d
    return 1


def _pad2d(a, rows, cols):
    r, c = a.shape
    if r == rows and c == cols:
        return a
    return jnp.pad(a, ((0, rows - r), (0, cols - c)))


def _pad_vec(v, n):
    if v.shape[0] == n:
        return v
    return jnp.pad(v, (0, n - v.shape[0]))


def _fold_bn(gamma, beta, mean, var, eps=BN_EPS):
    scale = gamma / jnp.sqrt(var + eps)
    shift = beta - mean * scale
    return scale.astype(jnp.float32), shift.astype(jnp.float32)


@functools.lru_cache(maxsize=None)
def _vmem_budget_bytes():
    """Per-generation VMEM budget: ~3/4 of physical, capped at 96 MiB.

    v5e/v6e (128 MiB physical) -> 96 MiB, v7x (64 MiB per TC) -> 48 MiB.
    """
    cap = 64 * 1024 * 1024
    try:
        info = pltpu.get_tpu_info()
        cap = int(getattr(info, "vmem_capacity_bytes", cap))
    except Exception:
        pass
    return int(min(cap * 3 // 4, 96 * 1024 * 1024))


def _default_tm():
    # Larger resident M tiles where VMEM allows (amortize per-step overhead,
    # cut weight re-reads); stay at 512 on the 64-MiB v7x part.
    return 1024 if _vmem_budget_bytes() >= 80 * 1024 * 1024 else 512


# ---------------------------------------------------------------------------
# Kernel 1: fused tiled matmul
#   out = act( x @ w * scale + shift [+ xs @ ws * sscale + sshift] [+ res] )
# ---------------------------------------------------------------------------
def _mm_bn_kernel(x_ref, w_ref, scale_ref, shift_ref, *rest,
                  nk, relu, has_sc, has_res):
    idx = 0
    if has_sc:
        xs_ref, ws_ref, sscale_ref, sshift_ref = rest[0:4]
        idx = 4
    if has_res:
        res_ref = rest[idx]
        idx += 1
    o_ref = rest[idx]
    acc_ref = rest[idx + 1]

    k = pl.program_id(2)

    @pl.when(k == 0)
    def _init():
        acc_ref[...] = jnp.zeros_like(acc_ref)

    acc_ref[...] += jnp.dot(x_ref[...], w_ref[...],
                            preferred_element_type=jnp.float32)

    @pl.when(k == nk - 1)
    def _epilogue():
        out = acc_ref[...] * scale_ref[...] + shift_ref[...]
        if has_sc:
            # Downsample 1x1-conv shortcut: full-K matmul done once in the
            # epilogue, so the main path keeps its own (full-width) tk and no
            # idle/predicated K steps are needed.
            sc = jnp.dot(xs_ref[...], ws_ref[...],
                         preferred_element_type=jnp.float32)
            out = out + sc * sscale_ref[...] + sshift_ref[...]
        if has_res:
            out = out + res_ref[...].astype(jnp.float32)
        if relu:
            out = jnp.maximum(out, 0.0)
        o_ref[...] = out.astype(o_ref.dtype)


def fused_matmul(x, w, scale, shift, *, shortcut=None, residual=None,
                 relu=True, out_dtype=jnp.bfloat16,
                 tm_target=None, tn_cap=512, tk_cap=512):
    """x: (M, K), w: (K, N) with K, N multiples of 128.  scale/shift: (N,).

    shortcut = (xs, ws, sscale, sshift) fuses a second (downsample) matmul
    into the same output tile's epilogue.  residual adds a pre-computed tensor.
    """
    M, K = x.shape
    Kw, Nn = w.shape
    assert K == Kw and K % LANES == 0 and Nn % LANES == 0

    if tm_target is None:
        tm_target = _default_tm()
    tm = tm_target if M >= tm_target else _round_up(M, 8)
    Mp = _round_up(M, tm)
    tn = _pick_tile(Nn, tn_cap)       # large tn -> fewer activation re-reads
    tk = _pick_tile(K, tk_cap)
    nk = K // tk

    mm_dtype = jnp.bfloat16
    xb = _pad2d(x.astype(mm_dtype), Mp, K)
    wb = w.astype(mm_dtype)
    scale2d = scale.reshape(1, Nn).astype(jnp.float32)
    shift2d = shift.reshape(1, Nn).astype(jnp.float32)

    in_specs = [
        pl.BlockSpec((tm, tk), lambda i, j, k: (i, k)),
        pl.BlockSpec((tk, tn), lambda i, j, k: (k, j)),
        pl.BlockSpec((1, tn), lambda i, j, k: (0, j)),
        pl.BlockSpec((1, tn), lambda i, j, k: (0, j)),
    ]
    call_args = [xb, wb, scale2d, shift2d]
    flops = 2 * Mp * Nn * K
    bytes_accessed = (Mp * K + K * Nn) * 2 + Mp * Nn * np.dtype(out_dtype).itemsize

    if shortcut is not None:
        xs, ws, sscale, sshift = shortcut
        Ks = xs.shape[1]
        assert xs.shape[0] == M and ws.shape == (Ks, Nn) and Ks % LANES == 0
        xsb = _pad2d(xs.astype(mm_dtype), Mp, Ks)
        wsb = ws.astype(mm_dtype)
        in_specs += [
            pl.BlockSpec((tm, Ks), lambda i, j, k: (i, 0)),
            pl.BlockSpec((Ks, tn), lambda i, j, k: (0, j)),
            pl.BlockSpec((1, tn), lambda i, j, k: (0, j)),
            pl.BlockSpec((1, tn), lambda i, j, k: (0, j)),
        ]
        call_args += [xsb, wsb,
                      sscale.reshape(1, Nn).astype(jnp.float32),
                      sshift.reshape(1, Nn).astype(jnp.float32)]
        flops += 2 * Mp * Nn * Ks
        bytes_accessed += (Mp * Ks + Ks * Nn) * 2

    if residual is not None:
        assert residual.shape == (M, Nn)
        resb = _pad2d(residual.astype(mm_dtype), Mp, Nn)
        in_specs.append(pl.BlockSpec((tm, tn), lambda i, j, k: (i, j)))
        call_args.append(resb)
        bytes_accessed += Mp * Nn * 2

    kern = functools.partial(_mm_bn_kernel, nk=nk, relu=relu,
                             has_sc=shortcut is not None,
                             has_res=residual is not None)

    out = pl.pallas_call(
        kern,
        out_shape=jax.ShapeDtypeStruct((Mp, Nn), out_dtype),
        grid=(Mp // tm, Nn // tn, nk),
        in_specs=in_specs,
        out_specs=pl.BlockSpec((tm, tn), lambda i, j, k: (i, j)),
        scratch_shapes=[pltpu.VMEM((tm, tn), jnp.float32)],
        compiler_params=pltpu.CompilerParams(
            dimension_semantics=("parallel", "parallel", "arbitrary"),
            vmem_limit_bytes=_vmem_budget_bytes()),
        cost_estimate=pl.CostEstimate(flops=flops, transcendentals=0,
                                      bytes_accessed=bytes_accessed),
    )(*call_args)
    return out if Mp == M else out[:M]


# ---------------------------------------------------------------------------
# Kernel 2: 3x3 conv (stride, pad=1) + BN + ReLU.
# The UNPADDED image is DMA'd once per batch element and staged into a
# zero-haloed VMEM buffer inside the kernel (spatial padding never hits HBM);
# 9 shifted-window matmuls accumulate into a VMEM f32 accumulator.
# ---------------------------------------------------------------------------
def _conv3x3_kernel(x_ref, w_ref, scale_ref, shift_ref, o_ref,
                    stage_ref, acc_ref, *, stride, th, wo, h_in, w_in, relu):
    h = pl.program_id(1)
    j = pl.program_id(2)

    # Stage once per batch element (grid order: n outer, h/j inner; only the
    # batch axis is megacore-parallel so every core sees h==0, j==0 first).
    @pl.when((h == 0) & (j == 0))
    def _stage():
        stage_ref[...] = jnp.zeros_like(stage_ref)
        stage_ref[pl.ds(1, h_in), pl.ds(1, w_in), :] = x_ref[...]

    cp = stage_ref.shape[-1]
    h0 = pl.multiple_of(h * th, th)

    def tap(t):
        ky, kx = divmod(t, 3)
        if stride == 1:
            win = stage_ref[pl.ds(h0 + ky, th), pl.ds(kx, wo), :]
        else:
            # TODO(synk): for stride=2, pre-split rows/cols into even/odd
            # phases at staging time so these become unstrided vector loads.
            win = stage_ref[pl.ds(h0 * stride + ky, th, stride=stride),
                            pl.ds(kx, wo, stride=stride), :]
        return jnp.dot(win.reshape(th * wo, cp), w_ref[t],
                       preferred_element_type=jnp.float32)

    acc_ref[...] = tap(0)
    for t in range(1, 9):
        acc_ref[...] += tap(t)

    out = acc_ref[...] * scale_ref[...] + shift_ref[...]
    if relu:
        out = jnp.maximum(out, 0.0)
    o_ref[...] = out.reshape(o_ref.shape).astype(o_ref.dtype)


def conv3x3_bn_relu(x, w9, scale, shift, *, stride,
                    out_dtype=jnp.bfloat16, tn_cap=512):
    """x: (N, H, W, Cp) channel-padded NHWC (no spatial pad).  w9: (9, Cp, Cop)."""
    N, H, W, Cp = x.shape
    _, _, Cop = w9.shape
    assert Cp % LANES == 0 and Cop % LANES == 0
    Ho = (H - 1) // stride + 1
    Wo = (W - 1) // stride + 1
    tn = _pick_tile(Cop, tn_cap)
    # TODO(synk): for 7x7 tail stages, fold the batch dim into the matmul M
    # tile (and pad Wo to a multiple of 8) to avoid sub-8-row tiles/stores.
    th = _largest_divisor(Ho, max(1, 2048 // Wo))

    kern = functools.partial(_conv3x3_kernel, stride=stride, th=th, wo=Wo,
                             h_in=H, w_in=W, relu=True)
    flops = 2 * N * Ho * Wo * 9 * Cp * Cop
    bytes_accessed = ((N * H * W * Cp + 9 * Cp * Cop) * 2
                      + N * Ho * Wo * Cop * np.dtype(out_dtype).itemsize)

    return pl.pallas_call(
        kern,
        out_shape=jax.ShapeDtypeStruct((N, Ho, Wo, Cop), out_dtype),
        grid=(N, Ho // th, Cop // tn),
        in_specs=[
            pl.BlockSpec((None, H, W, Cp), lambda n, h, j: (n, 0, 0, 0)),
            pl.BlockSpec((9, Cp, tn), lambda n, h, j: (0, 0, j)),
            pl.BlockSpec((1, tn), lambda n, h, j: (0, j)),
            pl.BlockSpec((1, tn), lambda n, h, j: (0, j)),
        ],
        out_specs=pl.BlockSpec((None, th, Wo, tn), lambda n, h, j: (n, h, 0, j)),
        scratch_shapes=[pltpu.VMEM((H + 2, W + 2, Cp), jnp.bfloat16),
                        pltpu.VMEM((th * Wo, tn), jnp.float32)],
        compiler_params=pltpu.CompilerParams(
            # Staging guard needs each image's (h, j) steps in-order on one
            # core, so only the batch axis is megacore-parallel.
            dimension_semantics=("parallel", "arbitrary", "arbitrary"),
            vmem_limit_bytes=_vmem_budget_bytes()),
        cost_estimate=pl.CostEstimate(flops=flops, transcendentals=0,
                                      bytes_accessed=bytes_accessed),
    )(x.astype(jnp.bfloat16), w9.astype(jnp.bfloat16),
      scale.reshape(1, Cop).astype(jnp.float32),
      shift.reshape(1, Cop).astype(jnp.float32))


# ---------------------------------------------------------------------------
# Bottleneck forward
# ---------------------------------------------------------------------------
def bottleneck_forward(x_nchw, p, stride, compute_dtype=jnp.bfloat16):
    N, Cin, H, W = x_nchw.shape
    planes = p["w1"].shape[0]
    out_c = EXPANSION * planes

    Cin_p = _round_up(Cin, LANES)
    Pp = _round_up(planes, LANES)
    Op = _round_up(out_c, LANES)

    # Channels-last layout: channels on lanes, spatial on sublanes.
    # TODO(synk): keep activations NHWC with padded channels end-to-end in a
    # full network to avoid these per-block boundary transposes / pads.
    x_nhwc = jnp.transpose(x_nchw, (0, 2, 3, 1)).astype(compute_dtype)
    x_nhwc = jnp.pad(x_nhwc, ((0, 0), (0, 0), (0, 0), (0, Cin_p - Cin)))
    M1 = N * H * W

    # --- conv1 (1x1) + bn1 + relu -------------------------------------------
    w1 = jnp.transpose(p["w1"].reshape(planes, Cin), (1, 0))
    w1 = _pad2d(w1, Cin_p, Pp)
    s1, b1 = _fold_bn(*p["bn1"])
    y1 = fused_matmul(x_nhwc.reshape(M1, Cin_p), w1,
                      _pad_vec(s1, Pp), _pad_vec(b1, Pp),
                      relu=True, out_dtype=compute_dtype)
    y1 = y1.reshape(N, H, W, Pp)

    # --- conv2 (3x3, stride, pad=1) + bn2 + relu (halo padded in-kernel) -----
    w2 = jnp.transpose(p["w2"], (2, 3, 1, 0)).reshape(9, planes, planes)
    w2 = jnp.pad(w2, ((0, 0), (0, Pp - planes), (0, Pp - planes)))
    s2, b2 = _fold_bn(*p["bn2"])
    y2 = conv3x3_bn_relu(y1, w2, _pad_vec(s2, Pp), _pad_vec(b2, Pp),
                         stride=stride, out_dtype=compute_dtype)
    _, Ho, Wo, _ = y2.shape
    M2 = N * Ho * Wo
    y2_2d = y2.reshape(M2, Pp)

    # --- conv3 (1x1) + bn3 + shortcut + relu (bf16 writeback) ----------------
    w3 = jnp.transpose(p["w3"].reshape(out_c, planes), (1, 0))
    w3 = _pad2d(w3, Pp, Op)
    s3, b3 = _fold_bn(*p["bn3"])

    if stride != 1 or Cin != out_c:
        # Downsample shortcut: its 1x1-conv matmul is fused into the conv3
        # kernel's epilogue (full-K, own contraction depth).
        # TODO(synk): fold the strided spatial subsample into the xs BlockSpec
        # index_map instead of a wrapper slice.
        xs = x_nhwc if stride == 1 else x_nhwc[:, ::stride, ::stride, :]
        xs2d = xs.reshape(M2, Cin_p)
        ws = jnp.transpose(p["ws"].reshape(out_c, Cin), (1, 0))
        ws = _pad2d(ws, Cin_p, Op)
        ss, bs = _fold_bn(*p["bns"])
        y3 = fused_matmul(y2_2d, w3, _pad_vec(s3, Op), _pad_vec(b3, Op),
                          shortcut=(xs2d, ws, _pad_vec(ss, Op), _pad_vec(bs, Op)),
                          relu=True, out_dtype=compute_dtype)
    else:
        res = x_nhwc.reshape(M2, Cin_p)   # identity path: Cin == out_c here
        y3 = fused_matmul(y2_2d, w3, _pad_vec(s3, Op), _pad_vec(b3, Op),
                          residual=res, relu=True, out_dtype=compute_dtype)

    out = y3 if Op == out_c else y3[:, :out_c]
    out = out.reshape(N, Ho, Wo, out_c)
    return jnp.transpose(out, (0, 3, 1, 2)).astype(jnp.float32)  # back to NCHW


# ---------------------------------------------------------------------------
# Pure-JAX reference (lax.conv) for correctness checking
# ---------------------------------------------------------------------------
def ref_bottleneck(x, p, stride, eps=BN_EPS):
    def conv(x, w, s=1, pad=0):
        return jax.lax.conv_general_dilated(
            x, w, (s, s), [(pad, pad), (pad, pad)],
            dimension_numbers=("NCHW", "OIHW", "NCHW"))

    def bn(x, params):
        g, b, m, v = params
        g, b, m, v = (a[None, :, None, None] for a in (g, b, m, v))
        return (x - m) / jnp.sqrt(v + eps) * g + b

    out = jax.nn.relu(bn(conv(x, p["w1"]), p["bn1"]))
    out = jax.nn.relu(bn(conv(out, p["w2"], stride, 1), p["bn2"]))
    out = bn(conv(out, p["w3"]), p["bn3"])
    out_c = p["w3"].shape[0]
    if stride != 1 or x.shape[1] != out_c:
        sc = bn(conv(x, p["ws"], stride), p["bns"])
    else:
        sc = x
    return jax.nn.relu(out + sc)


# ---------------------------------------------------------------------------
# Deterministic parameter construction + run
# ---------------------------------------------------------------------------
def _bn_params(k, c):
    k1, k2, k3, k4 = jax.random.split(k, 4)
    gamma = 1.0 + 0.1 * jax.random.normal(k1, (c,), jnp.float32)
    beta = 0.1 * jax.random.normal(k2, (c,), jnp.float32)
    mean = 0.1 * jax.random.normal(k3, (c,), jnp.float32)
    var = jax.random.uniform(k4, (c,), jnp.float32, minval=0.5, maxval=1.5)
    return (gamma, beta, mean, var)


if __name__ == "__main__":
    key = jax.random.PRNGKey(0)
    N, in_planes, H, W = 2, 4, 16, 16
    planes, stride = 4, 1
    out_c = EXPANSION * planes

    ks = jax.random.split(key, 10)
    params = {
        "w1": 0.2 * jax.random.normal(ks[0], (planes, in_planes, 1, 1), jnp.float32),
        "bn1": _bn_params(ks[1], planes),
        "w2": 0.2 * jax.random.normal(ks[2], (planes, planes, 3, 3), jnp.float32),
        "bn2": _bn_params(ks[3], planes),
        "w3": 0.2 * jax.random.normal(ks[4], (out_c, planes, 1, 1), jnp.float32),
        "bn3": _bn_params(ks[5], out_c),
        "ws": 0.2 * jax.random.normal(ks[6], (out_c, in_planes, 1, 1), jnp.float32),
        "bns": _bn_params(ks[7], out_c),
    }
    x = jax.random.normal(ks[8], (N, in_planes, H, W), jnp.float32)

    fwd = jax.jit(functools.partial(bottleneck_forward, stride=stride))
    out = jax.block_until_ready(fwd(x, params))

    ref = ref_bottleneck(x, params, stride)
    assert out.shape == ref.shape == (N, out_c, H, W), out.shape
    # bf16 matmul inputs -> compare with a relative-to-max tolerance.
    rel_err = float(jnp.max(jnp.abs(out - ref))) / max(
        float(jnp.max(jnp.abs(ref))), 1e-6)
    assert rel_err < 4e-2, rel_err

    print("KERNEL_OK")
</pallas_src>

<mosaic_0001>
module attributes {stable_mosaic.version = 11 : i64} {
  func.func @_mm_bn_kernel(%arg0: i32, %arg1: i32, %arg2: i32, %arg3: memref<512x128xbf16, #tpu.memory_space<vmem>>, %arg4: memref<128x128xbf16, #tpu.memory_space<vmem>>, %arg5: memref<1x128xf32, #tpu.memory_space<vmem>>, %arg6: memref<1x128xf32, #tpu.memory_space<vmem>>, %arg7: memref<512x128xbf16, #tpu.memory_space<vmem>>, %arg8: memref<512x128xf32, #tpu.memory_space<vmem>>) attributes {dimension_semantics = [#tpu.dimension_semantics<parallel>, #tpu.dimension_semantics<parallel>, #tpu.dimension_semantics<arbitrary>], iteration_bounds = array<i64: 1, 1, 1>, scalar_prefetch = 0 : i64, scratch_operands = 1 : i64, tpu.core_type = #tpu.core_type<tc>, window_params = [{transform_indices = @transform_0, window_bounds = array<i64: 512, 128>}, {transform_indices = @transform_1, window_bounds = array<i64: 128, 128>}, {transform_indices = @transform_2, window_bounds = array<i64: 1, 128>}, {transform_indices = @transform_3, window_bounds = array<i64: 1, 128>}, {transform_indices = @transform_4, window_bounds = array<i64: 512, 128>}]} {
    %c0_i32 = arith.constant 0 : i32
    %0 = arith.cmpi eq, %arg2, %c0_i32 : i32
    %1 = arith.extui %0 : i1 to i32
    %c0_i32_0 = arith.constant 0 : i32
    %2 = arith.cmpi ne, %1, %c0_i32_0 : i32
    scf.if %2 {
      %cst_10 = arith.constant 0.000000e+00 : f32
      %12 = vector.broadcast %cst_10 : f32 to vector<512x128xf32>
      %c0_11 = arith.constant 0 : index
      %c0_12 = arith.constant 0 : index
      %13 = vector.load %arg8[%c0_11, %c0_12] : memref<512x128xf32, #tpu.memory_space<vmem>>, vector<512x128xf32>
      tpu.vector_store %arg8[%c0_11, %c0_12], %12 {strides = array<i32>} : memref<512x128xf32, #tpu.memory_space<vmem>>, vector<512x128xf32>,
    } else {
    }
    %c0 = arith.constant 0 : index
    %c0_1 = arith.constant 0 : index
    %3 = vector.load %arg8[%c0, %c0_1] : memref<512x128xf32, #tpu.memory_space<vmem>>, vector<512x128xf32>
    %c0_2 = arith.constant 0 : index
    %c0_3 = arith.constant 0 : index
    %4 = vector.load %arg3[%c0_2, %c0_3] : memref<512x128xbf16, #tpu.memory_space<vmem>>, vector<512x128xbf16>
    %c0_4 = arith.constant 0 : index
    %c0_5 = arith.constant 0 : index
    %5 = vector.load %arg4[%c0_4, %c0_5] : memref<128x128xbf16, #tpu.memory_space<vmem>>, vector<128x128xbf16>
    %cst = arith.constant dense<0.000000e+00> : vector<512x128xf32>
    %6 = tpu.matmul %4, %5, %cst {dimension_numbers = #tpu.dot_dimension_numbers<[1], [0], [0], [1], [0, 0, 1, 1], [], []>} : vector<512x128xbf16>, vector<128x128xbf16>, vector<512x128xf32> -> vector<512x128xf32>
    %7 = arith.addf %3, %6 : vector<512x128xf32>
    %c0_6 = arith.constant 0 : index
    %c0_7 = arith.constant 0 : index
    %8 = vector.load %arg8[%c0_6, %c0_7] : memref<512x128xf32, #tpu.memory_space<vmem>>, vector<512x128xf32>
    tpu.vector_store %arg8[%c0_6, %c0_7], %7 {strides = array<i32>} : memref<512x128xf32, #tpu.memory_space<vmem>>, vector<512x128xf32>,
    %c0_i32_8 = arith.constant 0 : i32
    %9 = arith.cmpi eq, %arg2, %c0_i32_8 : i32
    %10 = arith.extui %9 : i1 to i32
    %c0_i32_9 = arith.constant 0 : i32
    %11 = arith.cmpi ne, %10, %c0_i32_9 : i32
    scf.if %11 {
      %c0_10 = arith.constant 0 : index
      %c0_11 = arith.constant 0 : index
      %12 = vector.load %arg8[%c0_10, %c0_11] : memref<512x128xf32, #tpu.memory_space<vmem>>, vector<512x128xf32>
      %c0_12 = arith.constant 0 : index
      %c0_13 = arith.constant 0 : index
      %13 = vector.load %arg5[%c0_12, %c0_13] : memref<1x128xf32, #tpu.memory_space<vmem>>, vector<1x128xf32>
      %14 = vector.broadcast %13 : vector<1x128xf32> to vector<512x128xf32>
      %15 = arith.mulf %12, %14 : vector<512x128xf32>
      %c0_14 = arith.constant 0 : index
      %c0_15 = arith.constant 0 : index
      %16 = vector.load %arg6[%c0_14, %c0_15] : memref<1x128xf32, #tpu.memory_space<vmem>>, vector<1x128xf32>
      %17 = vector.broadcast %16 : vector<1x128xf32> to vector<512x128xf32>
      %18 = arith.addf %15, %17 : vector<512x128xf32>
      %cst_16 = arith.constant 0.000000e+00 : f32
      %19 = vector.broadcast %cst_16 : f32 to vector<512x128xf32>
      %20 = arith.maximumf %18, %19 : vector<512x128xf32>
      %21 = arith.truncf %20 : vector<512x128xf32> to vector<512x128xbf16>
      %c0_17 = arith.constant 0 : index
      %c0_18 = arith.constant 0 : index
      %22 = vector.load %arg7[%c0_17, %c0_18] : memref<512x128xbf16, #tpu.memory_space<vmem>>, vector<512x128xbf16>
      tpu.vector_store %arg7[%c0_17, %c0_18], %21 {strides = array<i32>} : memref<512x128xbf16, #tpu.memory_space<vmem>>, vector<512x128xbf16>,
    } else {
    }
    return
  }
  func.func @transform_0(%arg0: i32, %arg1: i32, %arg2: i32) -> (i32, i32) {
    %c0_i32 = arith.constant 0 : i32
    return %arg0, %arg2 : i32, i32
  }
  func.func @transform_1(%arg0: i32, %arg1: i32, %arg2: i32) -> (i32, i32) {
    %c0_i32 = arith.constant 0 : i32
    return %arg2, %arg1 : i32, i32
  }
  func.func @transform_2(%arg0: i32, %arg1: i32, %arg2: i32) -> (i32, i32) {
    %c0_i32 = arith.constant 0 : i32
    %c0_i32_0 = arith.constant 0 : i32
    return %c0_i32, %arg1 : i32, i32
  }
  func.func @transform_3(%arg0: i32, %arg1: i32, %arg2: i32) -> (i32, i32) {
    %c0_i32 = arith.constant 0 : i32
    %c0_i32_0 = arith.constant 0 : i32
    return %c0_i32, %arg1 : i32, i32
  }
  func.func @transform_4(%arg0: i32, %arg1: i32, %arg2: i32) -> (i32, i32) {
    %c0_i32 = arith.constant 0 : i32
    return %arg0, %arg1 : i32, i32
  }
}

module attributes {stable_mosaic.version = 11 : i64} {
  func.func @_conv3x3_kernel(%arg0: i32, %arg1: i32, %arg2: i32, %arg3: memref<1x16x16x128xbf16, #tpu.memory_space<vmem>>, %arg4: memref<9x128x128xbf16, #tpu.memory_space<vmem>>, %arg5: memref<1x128xf32, #tpu.memory_space<vmem>>, %arg6: memref<1x128xf32, #tpu.memory_space<vmem>>, %arg7: memref<1x16x16x128xbf16, #tpu.memory_space<vmem>>, %arg8: memref<18x18x128xbf16, #tpu.memory_space<vmem>>, %arg9: memref<256x128xf32, #tpu.memory_space<vmem>>) attributes {dimension_semantics = [#tpu.dimension_semantics<parallel>, #tpu.dimension_semantics<arbitrary>, #tpu.dimension_semantics<arbitrary>], iteration_bounds = array<i64: 2, 1, 1>, scalar_prefetch = 0 : i64, scratch_operands = 2 : i64, tpu.core_type = #tpu.core_type<tc>, window_params = [{transform_indices = @transform_0, window_bounds = array<i64: 1, 16, 16, 128>}, {transform_indices = @transform_1, window_bounds = array<i64: 9, 128, 128>}, {transform_indices = @transform_2, window_bounds = array<i64: 1, 128>}, {transform_indices = @transform_3, window_bounds = array<i64: 1, 128>}, {transform_indices = @transform_4, window_bounds = array<i64: 1, 16, 16, 128>}]} {
    %c0_i32 = arith.constant 0 : i32
    %0 = arith.cmpi eq, %arg1, %c0_i32 : i32
    %c0_i32_0 = arith.constant 0 : i32
    %1 = arith.cmpi eq, %arg2, %c0_i32_0 : i32
    %2 = arith.andi %0, %1 : i1
    %3 = arith.extui %2 : i1 to i32
    %c0_i32_1 = arith.constant 0 : i32
    %4 = arith.cmpi ne, %3, %c0_i32_1 : i32
    scf.if %4 {
      %cst_98 = arith.constant 0.000000e+00 : bf16
      %109 = vector.broadcast %cst_98 : bf16 to vector<18x18x128xbf16>
      %c0_99 = arith.constant 0 : index
      %c0_100 = arith.constant 0 : index
      %c0_101 = arith.constant 0 : index
      %110 = vector.load %arg8[%c0_99, %c0_100, %c0_101] : memref<18x18x128xbf16, #tpu.memory_space<vmem>>, vector<18x18x128xbf16>
      tpu.vector_store %arg8[%c0_99, %c0_100, %c0_101], %109 {strides = array<i32>} : memref<18x18x128xbf16, #tpu.memory_space<vmem>>, vector<18x18x128xbf16>,
      %c0_102 = arith.constant 0 : index
      %c0_103 = arith.constant 0 : index
      %c0_104 = arith.constant 0 : index
      %c0_105 = arith.constant 0 : index
      %111 = vector.load %arg3[%c0_102, %c0_103, %c0_104, %c0_105] : memref<1x16x16x128xbf16, #tpu.memory_space<vmem>>, vector<1x16x16x128xbf16>
      %112 = vector.shape_cast %111 : vector<1x16x16x128xbf16> to vector<16x16x128xbf16>
      %c1_106 = arith.constant 1 : index
      %c1_107 = arith.constant 1 : index
      %c0_108 = arith.constant 0 : index
      %113 = vector.load %arg8[%c1_106, %c1_107, %c0_108] : memref<18x18x128xbf16, #tpu.memory_space<vmem>>, vector<16x16x128xbf16>
      tpu.vector_store %arg8[%c1_106, %c1_107, %c0_108], %112 {strides = array<i32>} : memref<18x18x128xbf16, #tpu.memory_space<vmem>>, vector<16x16x128xbf16>,
    } else {
    }
    %c16_i32 = arith.constant 16 : i32
    %5 = arith.muli %arg1, %c16_i32 : i32
    %6 = tpu.assume_multiple %5, 16 : i32
    %c0_i32_2 = arith.constant 0 : i32
    %7 = arith.addi %6, %c0_i32_2 : i32
    %8 = arith.index_cast %7 : i32 to index
    %c0 = arith.constant 0 : index
    %c0_3 = arith.constant 0 : index
    %9 = vector.load %arg8[%8, %c0, %c0_3] : memref<18x18x128xbf16, #tpu.memory_space<vmem>>, vector<16x16x128xbf16>
    %10 = vector.shape_cast %9 : vector<16x16x128xbf16> to vector<256x128xbf16>
    %c0_4 = arith.constant 0 : index
    %c0_5 = arith.constant 0 : index
    %c0_6 = arith.constant 0 : index
    %11 = vector.load %arg4[%c0_4, %c0_5, %c0_6] : memref<9x128x128xbf16, #tpu.memory_space<vmem>>, vector<1x128x128xbf16>
    %12 = vector.shape_cast %11 : vector<1x128x128xbf16> to vector<128x128xbf16>
    %cst = arith.constant dense<0.000000e+00> : vector<256x128xf32>
    %13 = tpu.matmul %10, %12, %cst {dimension_numbers = #tpu.dot_dimension_numbers<[1], [0], [0], [1], [0, 0, 1, 1], [], []>} : vector<256x128xbf16>, vector<128x128xbf16>, vector<256x128xf32> -> vector<256x128xf32>
    %c0_7 = arith.constant 0 : index
    %c0_8 = arith.constant 0 : index
    %14 = vector.load %arg9[%c0_7, %c0_8] : memref<256x128xf32, #tpu.memory_space<vmem>>, vector<256x128xf32>
    tpu.vector_store %arg9[%c0_7, %c0_8], %13 {strides = array<i32>} : memref<256x128xf32, #tpu.memory_space<vmem>>, vector<256x128xf32>,
    %c0_9 = arith.constant 0 : index
    %c0_10 = arith.constant 0 : index
    %15 = vector.load %arg9[%c0_9, %c0_10] : memref<256x128xf32, #tpu.memory_space<vmem>>, vector<256x128xf32>
    %c0_i32_11 = arith.constant 0 : i32
    %16 = arith.addi %6, %c0_i32_11 : i32
    %17 = arith.index_cast %16 : i32 to index
    %c1 = arith.constant 1 : index
    %c0_12 = arith.constant 0 : index
    %18 = vector.load %arg8[%17, %c1, %c0_12] : memref<18x18x128xbf16, #tpu.memory_space<vmem>>, vector<16x16x128xbf16>
    %19 = vector.shape_cast %18 : vector<16x16x128xbf16> to vector<256x128xbf16>
    %c1_13 = arith.constant 1 : index
    %c0_14 = arith.constant 0 : index
    %c0_15 = arith.constant 0 : index
    %20 = vector.load %arg4[%c1_13, %c0_14, %c0_15] : memref<9x128x128xbf16, #tpu.memory_space<vmem>>, vector<1x128x128xbf16>
    %21 = vector.shape_cast %20 : vector<1x128x128xbf16> to vector<128x128xbf16>
    %cst_16 = arith.constant dense<0.000000e+00> : vector<256x128xf32>
    %22 = tpu.matmul %19, %21, %cst_16 {dimension_numbers = #tpu.dot_dimension_numbers<[1], [0], [0], [1], [0, 0, 1, 1], [], []>} : vector<256x128xbf16>, vector<128x128xbf16>, vector<256x128xf32> -> vector<256x128xf32>
    %23 = arith.addf %15, %22 : vector<256x128xf32>
    %c0_17 = arith.constant 0 : index
    %c0_18 = arith.constant 0 : index
    %24 = vector.load %arg9[%c0_17, %c0_18] : memref<256x128xf32, #tpu.memory_space<vmem>>, vector<256x128xf32>
    tpu.vector_store %arg9[%c0_17, %c0_18], %23 {strides = array<i32>} : memref<256x128xf32, #tpu.memory_space<vmem>>, vector<256x128xf32>,
    %c0_19 = arith.constant 0 : index
    %c0_20 = arith.constant 0 : index
    %25 = vector.load %arg9[%c0_19, %c0_20] : memref<256x128xf32, #tpu.memory_space<vmem>>, vector<256x128xf32>
    %c0_i32_21 = arith.constant 0 : i32
    %26 = arith.addi %6, %c0_i32_21 : i32
    %27 = arith.index_cast %26 : i32 to index
    %c2 = arith.constant 2 : index
    %c0_22 = arith.constant 0 : index
    %28 = vector.load %arg8[%27, %c2, %c0_22] : memref<18x18x128xbf16, #tpu.memory_space<vmem>>, vector<16x16x128xbf16>
    %29 = vector.shape_cast %28 : vector<16x16x128xbf16> to vector<256x128xbf16>
    %c2_23 = arith.constant 2 : index
    %c0_24 = arith.constant 0 : index
    %c0_25 = arith.constant 0 : index
    %30 = vector.load %arg4[%c2_23, %c0_24, %c0_25] : memref<9x128x128xbf16, #tpu.memory_space<vmem>>, vector<1x128x128xbf16>
    %31 = vector.shape_cast %30 : vector<1x128x128xbf16> to vector<128x128xbf16>
    %cst_26 = arith.constant dense<0.000000e+00> : vector<256x128xf32>
    %32 = tpu.matmul %29, %31, %cst_26 {dimension_numbers = #tpu.dot_dimension_numbers<[1], [0], [0], [1], [0, 0, 1, 1], [], []>} : vector<256x128xbf16>, vector<128x128xbf16>, vector<256x128xf32> -> vector<256x128xf32>
    %33 = arith.addf %25, %32 : vector<256x128xf32>
    %c0_27 = arith.constant 0 : index
    %c0_28 = arith.constant 0 : index
    %34 = vector.load %arg9[%c0_27, %c0_28] : memref<256x128xf32, #tpu.memory_space<vmem>>, vector<256x128xf32>
    tpu.vector_store %arg9[%c0_27, %c0_28], %33 {strides = array<i32>} : memref<256x128xf32, #tpu.memory_space<vmem>>, vector<256x128xf32>,
    %c0_29 = arith.constant 0 : index
    %c0_30 = arith.constant 0 : index
    %35 = vector.load %arg9[%c0_29, %c0_30] : memref<256x128xf32, #tpu.memory_space<vmem>>, vector<256x128xf32>
    %c1_i32 = arith.constant 1 : i32
    %36 = arith.addi %6, %c1_i32 : i32
    %37 = arith.index_cast %36 : i32 to index
    %c0_31 = arith.constant 0 : index
    %c0_32 = arith.constant 0 : index
    %38 = vector.load %arg8[%37, %c0_31, %c0_32] : memref<18x18x128xbf16, #tpu.memory_space<vmem>>, vector<16x16x128xbf16>
    %39 = vector.shape_cast %38 : vector<16x16x128xbf16> to vector<256x128xbf16>
    %c3 = arith.constant 3 : index
    %c0_33 = arith.constant 0 : index
    %c0_34 = arith.constant 0 : index
    %40 = vector.load %arg4[%c3, %c0_33, %c0_34] : memref<9x128x128xbf16, #tpu.memory_space<vmem>>, vector<1x128x128xbf16>
    %41 = vector.shape_cast %40 : vector<1x128x128xbf16> to vector<128x128xbf16>
    %cst_35 = arith.constant dense<0.000000e+00> : vector<256x128xf32>
    %42 = tpu.matmul %39, %41, %cst_35 {dimension_numbers = #tpu.dot_dimension_numbers<[1], [0], [0], [1], [0, 0, 1, 1], [], []>} : vector<256x128xbf16>, vector<128x128xbf16>, vector<256x128xf32> -> vector<256x128xf32>
    %43 = arith.addf %35, %42 : vector<256x128xf32>
    %c0_36 = arith.constant 0 : index
    %c0_37 = arith.constant 0 : index
    %44 = vector.load %arg9[%c0_36, %c0_37] : memref<256x128xf32, #tpu.memory_space<vmem>>, vector<256x128xf32>
    tpu.vector_store %arg9[%c0_36, %c0_37], %43 {strides = array<i32>} : memref<256x128xf32, #tpu.memory_space<vmem>>, vector<256x128xf32>,
    %c0_38 = arith.constant 0 : index
    %c0_39 = arith.constant 0 : index
    %45 = vector.load %arg9[%c0_38, %c0_39] : memref<256x128xf32, #tpu.memory_space<vmem>>, vector<256x128xf32>
    %c1_i32_40 = arith.constant 1 : i32
    %46 = arith.addi %6, %c1_i32_40 : i32
    %47 = arith.index_cast %46 : i32 to index
    %c1_41 = arith.constant 1 : index
    %c0_42 = arith.constant 0 : index
    %48 = vector.load %arg8[%47, %c1_41, %c0_42] : memref<18x18x128xbf16, #tpu.memory_space<vmem>>, vector<16x16x128xbf16>
    %49 = vector.shape_cast %48 : vector<16x16x128xbf16> to vector<256x128xbf16>
    %c4 = arith.constant 4 : index
    %c0_43 = arith.constant 0 : index
    %c0_44 = arith.constant 0 : index
    %50 = vector.load %arg4[%c4, %c0_43, %c0_44] : memref<9x128x128xbf16, #tpu.memory_space<vmem>>, vector<1x128x128xbf16>
    %51 = vector.shape_cast %50 : vector<1x128x128xbf16> to vector<128x128xbf16>
    %cst_45 = arith.constant dense<0.000000e+00> : vector<256x128xf32>
    %52 = tpu.matmul %49, %51, %cst_45 {dimension_numbers = #tpu.dot_dimension_numbers<[1], [0], [0], [1], [0, 0, 1, 1], [], []>} : vector<256x128xbf16>, vector<128x128xbf16>, vector<256x128xf32> -> vector<256x128xf32>
    %53 = arith.addf %45, %52 : vector<256x128xf32>
    %c0_46 = arith.constant 0 : index
    %c0_47 = arith.constant 0 : index
    %54 = vector.load %arg9[%c0_46, %c0_47] : memref<256x128xf32, #tpu.memory_space<vmem>>, vector<256x128xf32>
    tpu.vector_store %arg9[%c0_46, %c0_47], %53 {strides = array<i32>} : memref<256x128xf32, #tpu.memory_space<vmem>>, vector<256x128xf32>,
    %c0_48 = arith.constant 0 : index
    %c0_49 = arith.constant 0 : index
    %55 = vector.load %arg9[%c0_48, %c0_49] : memref<256x128xf32, #tpu.memory_space<vmem>>, vector<256x128xf32>
    %c1_i32_50 = arith.constant 1 : i32
    %56 = arith.addi %6, %c1_i32_50 : i32
    %57 = arith.index_cast %56 : i32 to index
    %c2_51 = arith.constant 2 : index
    %c0_52 = arith.constant 0 : index
    %58 = vector.load %arg8[%57, %c2_51, %c0_52] : memref<18x18x128xbf16, #tpu.memory_space<vmem>>, vector<16x16x128xbf16>
    %59 = vector.shape_cast %58 : vector<16x16x128xbf16> to vector<256x128xbf16>
    %c5 = arith.constant 5 : index
    %c0_53 = arith.constant 0 : index
    %c0_54 = arith.constant 0 : index
    %60 = vector.load %arg4[%c5, %c0_53, %c0_54] : memref<9x128x128xbf16, #tpu.memory_space<vmem>>, vector<1x128x128xbf16>
    %61 = vector.shape_cast %60 : vector<1x128x128xbf16> to vector<128x128xbf16>
    %cst_55 = arith.constant dense<0.000000e+00> : vector<256x128xf32>
    %62 = tpu.matmul %59, %61, %cst_55 {dimension_numbers = #tpu.dot_dimension_numbers<[1], [0], [0], [1], [0, 0, 1, 1], [], []>} : vector<256x128xbf16>, vector<128x128xbf16>, vector<256x128xf32> -> vector<256x128xf32>
    %63 = arith.addf %55, %62 : vector<256x128xf32>
    %c0_56 = arith.constant 0 : index
    %c0_57 = arith.constant 0 : index
    %64 = vector.load %arg9[%c0_56, %c0_57] : memref<256x128xf32, #tpu.memory_space<vmem>>, vector<256x128xf32>
    tpu.vector_store %arg9[%c0_56, %c0_57], %63 {strides = array<i32>} : memref<256x128xf32, #tpu.memory_space<vmem>>, vector<256x128xf32>,
    %c0_58 = arith.constant 0 : index
    %c0_59 = arith.constant 0 : index
    %65 = vector.load %arg9[%c0_58, %c0_59] : memref<256x128xf32, #tpu.memory_space<vmem>>, vector<256x128xf32>
    %c2_i32 = arith.constant 2 : i32
    %66 = arith.addi %6, %c2_i32 : i32
    %67 = arith.index_cast %66 : i32 to index
    %c0_60 = arith.constant 0 : index
    %c0_61 = arith.constant 0 : index
    %68 = vector.load %arg8[%67, %c0_60, %c0_61] : memref<18x18x128xbf16, #tpu.memory_space<vmem>>, vector<16x16x128xbf16>
    %69 = vector.shape_cast %68 : vector<16x16x128xbf16> to vector<256x128xbf16>
    %c6 = arith.constant 6 : index
    %c0_62 = arith.constant 0 : index
    %c0_63 = arith.constant 0 : index
    %70 = vector.load %arg4[%c6, %c0_62, %c0_63] : memref<9x128x128xbf16, #tpu.memory_space<vmem>>, vector<1x128x128xbf16>
    %71 = vector.shape_cast %70 : vector<1x128x128xbf16> to vector<128x128xbf16>
    %cst_64 = arith.constant dense<0.000000e+00> : vector<256x128xf32>
    %72 = tpu.matmul %69, %71, %cst_64 {dimension_numbers = #tpu.dot_dimension_numbers<[1], [0], [0], [1], [0, 0, 1, 1], [], []>} : vector<256x128xbf16>, vector<128x128xbf16>, vector<256x128xf32> -> vector<256x128xf32>
    %73 = arith.addf %65, %72 : vector<256x128xf32>
    %c0_65 = arith.constant 0 : index
    %c0_66 = arith.constant 0 : index
    %74 = vector.load %arg9[%c0_65, %c0_66] : memref<256x128xf32, #tpu.memory_space<vmem>>, vector<256x128xf32>
    tpu.vector_store %arg9[%c0_65, %c0_66], %73 {strides = array<i32>} : memref<256x128xf32, #tpu.memory_space<vmem>>, vector<256x128xf32>,
    %c0_67 = arith.constant 0 : index
    %c0_68 = arith.constant 0 : index
    %75 = vector.load %arg9[%c0_67, %c0_68] : memref<256x128xf32, #tpu.memory_space<vmem>>, vector<256x128xf32>
    %c2_i32_69 = arith.constant 2 : i32
    %76 = arith.addi %6, %c2_i32_69 : i32
    %77 = arith.index_cast %76 : i32 to index
    %c1_70 = arith.constant 1 : index
    %c0_71 = arith.constant 0 : index
    %78 = vector.load %arg8[%77, %c1_70, %c0_71] : memref<18x18x128xbf16, #tpu.memory_space<vmem>>, vector<16x16x128xbf16>
    %79 = vector.shape_cast %78 : vector<16x16x128xbf16> to vector<256x128xbf16>
    %c7 = arith.constant 7 : index
    %c0_72 = arith.constant 0 : index
    %c0_73 = arith.constant 0 : index
    %80 = vector.load %arg4[%c7, %c0_72, %c0_73] : memref<9x128x128xbf16, #tpu.memory_space<vmem>>, vector<1x128x128xbf16>
    %81 = vector.shape_cast %80 : vector<1x128x128xbf16> to vector<128x128xbf16>
    %cst_74 = arith.constant dense<0.000000e+00> : vector<256x128xf32>
    %82 = tpu.matmul %79, %81, %cst_74 {dimension_numbers = #tpu.dot_dimension_numbers<[1], [0], [0], [1], [0, 0, 1, 1], [], []>} : vector<256x128xbf16>, vector<128x128xbf16>, vector<256x128xf32> -> vector<256x128xf32>
    %83 = arith.addf %75, %82 : vector<256x128xf32>
    %c0_75 = arith.constant 0 : index
    %c0_76 = arith.constant 0 : index
    %84 = vector.load %arg9[%c0_75, %c0_76] : memref<256x128xf32, #tpu.memory_space<vmem>>, vector<256x128xf32>
    tpu.vector_store %arg9[%c0_75, %c0_76], %83 {strides = array<i32>} : memref<256x128xf32, #tpu.memory_space<vmem>>, vector<256x128xf32>,
    %c0_77 = arith.constant 0 : index
    %c0_78 = arith.constant 0 : index
    %85 = vector.load %arg9[%c0_77, %c0_78] : memref<256x128xf32, #tpu.memory_space<vmem>>, vector<256x128xf32>
    %c2_i32_79 = arith.constant 2 : i32
    %86 = arith.addi %6, %c2_i32_79 : i32
    %87 = arith.index_cast %86 : i32 to index
    %c2_80 = arith.constant 2 : index
    %c0_81 = arith.constant 0 : index
    %88 = vector.load %arg8[%87, %c2_80, %c0_81] : memref<18x18x128xbf16, #tpu.memory_space<vmem>>, vector<16x16x128xbf16>
    %89 = vector.shape_cast %88 : vector<16x16x128xbf16> to vector<256x128xbf16>
    %c8 = arith.constant 8 : index
    %c0_82 = arith.constant 0 : index
    %c0_83 = arith.constant 0 : index
    %90 = vector.load %arg4[%c8, %c0_82, %c0_83] : memref<9x128x128xbf16, #tpu.memory_space<vmem>>, vector<1x128x128xbf16>
    %91 = vector.shape_cast %90 : vector<1x128x128xbf16> to vector<128x128xbf16>
    %cst_84 = arith.constant dense<0.000000e+00> : vector<256x128xf32>
    %92 = tpu.matmul %89, %91, %cst_84 {dimension_numbers = #tpu.dot_dimension_numbers<[1], [0], [0], [1], [0, 0, 1, 1], [], []>} : vector<256x128xbf16>, vector<128x128xbf16>, vector<256x128xf32> -> vector<256x128xf32>
    %93 = arith.addf %85, %92 : vector<256x128xf32>
    %c0_85 = arith.constant 0 : index
    %c0_86 = arith.constant 0 : index
    %94 = vector.load %arg9[%c0_85, %c0_86] : memref<256x128xf32, #tpu.memory_space<vmem>>, vector<256x128xf32>
    tpu.vector_store %arg9[%c0_85, %c0_86], %93 {strides = array<i32>} : memref<256x128xf32, #tpu.memory_space<vmem>>, vector<256x128xf32>,
    %c0_87 = arith.constant 0 : index
    %c0_88 = arith.constant 0 : index
    %95 = vector.load %arg9[%c0_87, %c0_88] : memref<256x128xf32, #tpu.memory_space<vmem>>, vector<256x128xf32>
    %c0_89 = arith.constant 0 : index
    %c0_90 = arith.constant 0 : index
    %96 = vector.load %arg5[%c0_89, %c0_90] : memref<1x128xf32, #tpu.memory_space<vmem>>, vector<1x128xf32>
    %97 = vector.broadcast %96 : vector<1x128xf32> to vector<256x128xf32>
    %98 = arith.mulf %95, %97 : vector<256x128xf32>
    %c0_91 = arith.constant 0 : index
    %c0_92 = arith.constant 0 : index
    %99 = vector.load %arg6[%c0_91, %c0_92] : memref<1x128xf32, #tpu.memory_space<vmem>>, vector<1x128xf32>
    %100 = vector.broadcast %99 : vector<1x128xf32> to vector<256x128xf32>
    %101 = arith.addf %98, %100 : vector<256x128xf32>
    %cst_93 = arith.constant 0.000000e+00 : f32
    %102 = vector.broadcast %cst_93 : f32 to vector<256x128xf32>
    %103 = arith.maximumf %101, %102 : vector<256x128xf32>
    %104 = vector.shape_cast %103 : vector<256x128xf32> to vector<16x16x128xf32>
    %105 = arith.truncf %104 : vector<16x16x128xf32> to vector<16x16x128xbf16>
    %c0_94 = arith.constant 0 : index
    %c0_95 = arith.constant 0 : index
    %c0_96 = arith.constant 0 : index
    %c0_97 = arith.constant 0 : index
    %106 = vector.load %arg7[%c0_94, %c0_95, %c0_96, %c0_97] : memref<1x16x16x128xbf16, #tpu.memory_space<vmem>>, vector<1x16x16x128xbf16>
    %107 = vector.shape_cast %106 : vector<1x16x16x128xbf16> to vector<16x16x128xbf16>
    %108 = vector.shape_cast %105 : vector<16x16x128xbf16> to vector<1x16x16x128xbf16>
    tpu.vector_store %arg7[%c0_94, %c0_95, %c0_96, %c0_97], %108 {strides = array<i32>} : memref<1x16x16x128xbf16, #tpu.memory_space<vmem>>, vector<1x16x16x128xbf16>,
    return
  }
  func.func @transform_0(%arg0: i32, %arg1: i32, %arg2: i32) -> (i32, i32, i32, i32) {
    %c0_i32 = arith.constant 0 : i32
    %c0_i32_0 = arith.constant 0 : i32
    %c0_i32_1 = arith.constant 0 : i32
    %c0_i32_2 = arith.constant 0 : i32
    return %arg0, %c0_i32, %c0_i32_0, %c0_i32_1 : i32, i32, i32, i32
  }
  func.func @transform_1(%arg0: i32, %arg1: i32, %arg2: i32) -> (i32, i32, i32) {
    %c0_i32 = arith.constant 0 : i32
    %c0_i32_0 = arith.constant 0 : i32
    %c0_i32_1 = arith.constant 0 : i32
    return %c0_i32, %c0_i32_0, %arg2 : i32, i32, i32
  }
  func.func @transform_2(%arg0: i32, %arg1: i32, %arg2: i32) -> (i32, i32) {
    %c0_i32 = arith.constant 0 : i32
    %c0_i32_0 = arith.constant 0 : i32
    return %c0_i32, %arg2 : i32, i32
  }
  func.func @transform_3(%arg0: i32, %arg1: i32, %arg2: i32) -> (i32, i32) {
    %c0_i32 = arith.constant 0 : i32
    %c0_i32_0 = arith.constant 0 : i32
    return %c0_i32, %arg2 : i32, i32
  }
  func.func @transform_4(%arg0: i32, %arg1: i32, %arg2: i32) -> (i32, i32, i32, i32) {
    %c0_i32 = arith.constant 0 : i32
    %c0_i32_0 = arith.constant 0 : i32
    return %arg0, %arg1, %c0_i32, %arg2 : i32, i32, i32, i32
  }
}

module attributes {stable_mosaic.version = 11 : i64} {
  func.func @_mm_bn_kernel(%arg0: i32, %arg1: i32, %arg2: i32, %arg3: memref<512x128xbf16, #tpu.memory_space<vmem>>, %arg4: memref<128x128xbf16, #tpu.memory_space<vmem>>, %arg5: memref<1x128xf32, #tpu.memory_space<vmem>>, %arg6: memref<1x128xf32, #tpu.memory_space<vmem>>, %arg7: memref<512x128xbf16, #tpu.memory_space<vmem>>, %arg8: memref<128x128xbf16, #tpu.memory_space<vmem>>, %arg9: memref<1x128xf32, #tpu.memory_space<vmem>>, %arg10: memref<1x128xf32, #tpu.memory_space<vmem>>, %arg11: memref<512x128xbf16, #tpu.memory_space<vmem>>, %arg12: memref<512x128xf32, #tpu.memory_space<vmem>>) attributes {dimension_semantics = [#tpu.dimension_semantics<parallel>, #tpu.dimension_semantics<parallel>, #tpu.dimension_semantics<arbitrary>], iteration_bounds = array<i64: 1, 1, 1>, scalar_prefetch = 0 : i64, scratch_operands = 1 : i64, tpu.core_type = #tpu.core_type<tc>, window_params = [{transform_indices = @transform_0, window_bounds = array<i64: 512, 128>}, {transform_indices = @transform_1, window_bounds = array<i64: 128, 128>}, {transform_indices = @transform_2, window_bounds = array<i64: 1, 128>}, {transform_indices = @transform_3, window_bounds = array<i64: 1, 128>}, {transform_indices = @transform_4, window_bounds = array<i64: 512, 128>}, {transform_indices = @transform_5, window_bounds = array<i64: 128, 128>}, {transform_indices = @transform_6, window_bounds = array<i64: 1, 128>}, {transform_indices = @transform_7, window_bounds = array<i64: 1, 128>}, {transform_indices = @transform_8, window_bounds = array<i64: 512, 128>}]} {
    %c0_i32 = arith.constant 0 : i32
    %0 = arith.cmpi eq, %arg2, %c0_i32 : i32
    %1 = arith.extui %0 : i1 to i32
    %c0_i32_0 = arith.constant 0 : i32
    %2 = arith.cmpi ne, %1, %c0_i32_0 : i32
    scf.if %2 {
      %cst_10 = arith.constant 0.000000e+00 : f32
      %12 = vector.broadcast %cst_10 : f32 to vector<512x128xf32>
      %c0_11 = arith.constant 0 : index
      %c0_12 = arith.constant 0 : index
      %13 = vector.load %arg12[%c0_11, %c0_12] : memref<512x128xf32, #tpu.memory_space<vmem>>, vector<512x128xf32>
      tpu.vector_store %arg12[%c0_11, %c0_12], %12 {strides = array<i32>} : memref<512x128xf32, #tpu.memory_space<vmem>>, vector<512x128xf32>,
    } else {
    }
    %c0 = arith.constant 0 : index
    %c0_1 = arith.constant 0 : index
    %3 = vector.load %arg12[%c0, %c0_1] : memref<512x128xf32, #tpu.memory_space<vmem>>, vector<512x128xf32>
    %c0_2 = arith.constant 0 : index
    %c0_3 = arith.constant 0 : index
    %4 = vector.load %arg3[%c0_2, %c0_3] : memref<512x128xbf16, #tpu.memory_space<vmem>>, vector<512x128xbf16>
    %c0_4 = arith.constant 0 : index
    %c0_5 = arith.constant 0 : index
    %5 = vector.load %arg4[%c0_4, %c0_5] : memref<128x128xbf16, #tpu.memory_space<vmem>>, vector<128x128xbf16>
    %cst = arith.constant dense<0.000000e+00> : vector<512x128xf32>
    %6 = tpu.matmul %4, %5, %cst {dimension_numbers = #tpu.dot_dimension_numbers<[1], [0], [0], [1], [0, 0, 1, 1], [], []>} : vector<512x128xbf16>, vector<128x128xbf16>, vector<512x128xf32> -> vector<512x128xf32>
    %7 = arith.addf %3, %6 : vector<512x128xf32>
    %c0_6 = arith.constant 0 : index
    %c0_7 = arith.constant 0 : index
    %8 = vector.load %arg12[%c0_6, %c0_7] : memref<512x128xf32, #tpu.memory_space<vmem>>, vector<512x128xf32>
    tpu.vector_store %arg12[%c0_6, %c0_7], %7 {strides = array<i32>} : memref<512x128xf32, #tpu.memory_space<vmem>>, vector<512x128xf32>,
    %c0_i32_8 = arith.constant 0 : i32
    %9 = arith.cmpi eq, %arg2, %c0_i32_8 : i32
    %10 = arith.extui %9 : i1 to i32
    %c0_i32_9 = arith.constant 0 : i32
    %11 = arith.cmpi ne, %10, %c0_i32_9 : i32
    scf.if %11 {
      %c0_10 = arith.constant 0 : index
      %c0_11 = arith.constant 0 : index
      %12 = vector.load %arg12[%c0_10, %c0_11] : memref<512x128xf32, #tpu.memory_space<vmem>>, vector<512x128xf32>
      %c0_12 = arith.constant 0 : index
      %c0_13 = arith.constant 0 : index
      %13 = vector.load %arg5[%c0_12, %c0_13] : memref<1x128xf32, #tpu.memory_space<vmem>>, vector<1x128xf32>
      %14 = vector.broadcast %13 : vector<1x128xf32> to vector<512x128xf32>
      %15 = arith.mulf %12, %14 : vector<512x128xf32>
      %c0_14 = arith.constant 0 : index
      %c0_15 = arith.constant 0 : index
      %16 = vector.load %arg6[%c0_14, %c0_15] : memref<1x128xf32, #tpu.memory_space<vmem>>, vector<1x128xf32>
      %17 = vector.broadcast %16 : vector<1x128xf32> to vector<512x128xf32>
      %18 = arith.addf %15, %17 : vector<512x128xf32>
      %c0_16 = arith.constant 0 : index
      %c0_17 = arith.constant 0 : index
      %19 = vector.load %arg7[%c0_16, %c0_17] : memref<512x128xbf16, #tpu.memory_space<vmem>>, vector<512x128xbf16>
      %c0_18 = arith.constant 0 : index
      %c0_19 = arith.constant 0 : index
      %20 = vector.load %arg8[%c0_18, %c0_19] : memref<128x128xbf16, #tpu.memory_space<vmem>>, vector<128x128xbf16>
      %cst_20 = arith.constant dense<0.000000e+00> : vector<512x128xf32>
      %21 = tpu.matmul %19, %20, %cst_20 {dimension_numbers = #tpu.dot_dimension_numbers<[1], [0], [0], [1], [0, 0, 1, 1], [], []>} : vector<512x128xbf16>, vector<128x128xbf16>, vector<512x128xf32> -> vector<512x128xf32>
      %c0_21 = arith.constant 0 : index
      %c0_22 = arith.constant 0 : index
      %22 = vector.load %arg9[%c0_21, %c0_22] : memref<1x128xf32, #tpu.memory_space<vmem>>, vector<1x128xf32>
      %23 = vector.broadcast %22 : vector<1x128xf32> to vector<512x128xf32>
      %24 = arith.mulf %21, %23 : vector<512x128xf32>
      %25 = arith.addf %18, %24 : vector<512x128xf32>
      %c0_23 = arith.constant 0 : index
      %c0_24 = arith.constant 0 : index
      %26 = vector.load %arg10[%c0_23, %c0_24] : memref<1x128xf32, #tpu.memory_space<vmem>>, vector<1x128xf32>
      %27 = vector.broadcast %26 : vector<1x128xf32> to vector<512x128xf32>
      %28 = arith.addf %25, %27 : vector<512x128xf32>
      %cst_25 = arith.constant 0.000000e+00 : f32
      %29 = vector.broadcast %cst_25 : f32 to vector<512x128xf32>
      %30 = arith.maximumf %28, %29 : vector<512x128xf32>
      %31 = arith.truncf %30 : vector<512x128xf32> to vector<512x128xbf16>
      %c0_26 = arith.constant 0 : index
      %c0_27 = arith.constant 0 : index
      %32 = vector.load %arg11[%c0_26, %c0_27] : memref<512x128xbf16, #tpu.memory_space<vmem>>, vector<512x128xbf16>
      tpu.vector_store %arg11[%c0_26, %c0_27], %31 {strides = array<i32>} : memref<512x128xbf16, #tpu.memory_space<vmem>>, vector<512x128xbf16>,
    } else {
    }
    return
  }
  func.func @transform_0(%arg0: i32, %arg1: i32, %arg2: i32) -> (i32, i32) {
    %c0_i32 = arith.constant 0 : i32
    return %arg0, %arg2 : i32, i32
  }
  func.func @transform_1(%arg0: i32, %arg1: i32, %arg2: i32) -> (i32, i32) {
    %c0_i32 = arith.constant 0 : i32
    return %arg2, %arg1 : i32, i32
  }
  func.func @transform_2(%arg0: i32, %arg1: i32, %arg2: i32) -> (i32, i32) {
    %c0_i32 = arith.constant 0 : i32
    %c0_i32_0 = arith.constant 0 : i32
    return %c0_i32, %arg1 : i32, i32
  }
  func.func @transform_3(%arg0: i32, %arg1: i32, %arg2: i32) -> (i32, i32) {
    %c0_i32 = arith.constant 0 : i32
    %c0_i32_0 = arith.constant 0 : i32
    return %c0_i32, %arg1 : i32, i32
  }
  func.func @transform_4(%arg0: i32, %arg1: i32, %arg2: i32) -> (i32, i32) {
    %c0_i32 = arith.constant 0 : i32
    %c0_i32_0 = arith.constant 0 : i32
    return %arg0, %c0_i32 : i32, i32
  }
  func.func @transform_5(%arg0: i32, %arg1: i32, %arg2: i32) -> (i32, i32) {
    %c0_i32 = arith.constant 0 : i32
    %c0_i32_0 = arith.constant 0 : i32
    return %c0_i32, %arg1 : i32, i32
  }
  func.func @transform_6(%arg0: i32, %arg1: i32, %arg2: i32) -> (i32, i32) {
    %c0_i32 = arith.constant 0 : i32
    %c0_i32_0 = arith.constant 0 : i32
    return %c0_i32, %arg1 : i32, i32
  }
  func.func @transform_7(%arg0: i32, %arg1: i32, %arg2: i32) -> (i32, i32) {
    %c0_i32 = arith.constant 0 : i32
    %c0_i32_0 = arith.constant 0 : i32
    return %c0_i32, %arg1 : i32, i32
  }
  func.func @transform_8(%arg0: i32, %arg1: i32, %arg2: i32) -> (i32, i32) {
    %c0_i32 = arith.constant 0 : i32
    return %arg0, %arg1 : i32, i32
  }
}

</mosaic_0001>

<llo_original>
// kernel: bottleneck_forward.3
$region0: #{bottleneck_forward.3}
  #allocation0 [shape = 'u32[]', space=smem, size = 0x4, offset = 0x4, fixed_abs, tag = 'smem constant byte address 0x4 - core index']
  #allocation1 [shape = 'u32[72,128]{1,0:T(1,128)}', space=vmem, size = 0x9000, scoped, tag = 'internal scratch']
  #allocation2 [shape = 'f32[512,128]{1,0:T(8,128)}', space=vmem, size = 0x40000, scoped, tag = 'scratch operand']
  %s0 = inlined_call_operand.vmem [shape: bf16[512,128], index: 0, kind: input, shape index: {}]
  %s1 = inlined_call_operand.vmem [shape: bf16[128,128], index: 1, kind: input, shape index: {}]
  %s2 = inlined_call_operand.vmem [shape: f32[1,128], index: 2, kind: input, shape index: {}]
  %s3 = inlined_call_operand.vmem [shape: f32[1,128], index: 3, kind: input, shape index: {}]
  %s4 = inlined_call_operand.vmem [shape: bf16[512,128], index: 4, kind: output, shape index: {}]
  %s5 = sld [smem:[#allocation0]]
  $region34: #{bottleneck_forward.3} parent=0
    _
  %s7 = ssub.s32 1, %s5
  %s8 = scalar_select 0, %s7, %s5
  // Predicated region
  $region2: #{bottleneck_forward.3} parent=0 // pred_check
    _
  $region3: #{bottleneck_forward.3} parent=0 // pred_check_branch
    %10 = sbr.rel (0) target = $region5
  $region4: #{bottleneck_forward.3} parent=0 // pred_region
    _
  $region5: #{bottleneck_forward.3} parent=0 // pred_fallthru
    _
  // Predicated region
  $region6: #{bottleneck_forward.3} parent=0 // pred_check
    _
  $region7: #{bottleneck_forward.3} parent=0 // pred_check_branch
    %12 = sbr.rel (0) target = $region9
  $region8: #{bottleneck_forward.3} parent=0 // pred_region
    _
  $region9: #{bottleneck_forward.3} parent=0 // pred_fallthru
    _
  // Predicated region
  $region10: #{bottleneck_forward.3} parent=0 // pred_check
    _
  $region11: #{bottleneck_forward.3} parent=0 // pred_check_branch
    %14 = sbr.rel (0) target = $region13
  $region12: #{bottleneck_forward.3} parent=0 // pred_region
    _
  $region13: #{bottleneck_forward.3} parent=0 // pred_fallthru
    _
  // Predicated region
  $region14: #{bottleneck_forward.3} parent=0 // pred_check
    _
  $region15: #{bottleneck_forward.3} parent=0 // pred_check_branch
    %16 = sbr.rel (0) target = $region17
  $region16: #{bottleneck_forward.3} parent=0 // pred_region
    _
  $region17: #{bottleneck_forward.3} parent=0 // pred_fallthru
    _
  %p17 = scmp.eq.s32.totalorder 0, 0
  // Predicated region
  $region18: #{bottleneck_forward.3} parent=0 // pred_check
    %p18 = pneg %p17
  $region19: #{bottleneck_forward.3} parent=0 // pred_check_branch
    %20 = sbr.rel (%p18) target = $region21
  $region20: #{bottleneck_forward.3} parent=0 // pred_region
    %21 = vst [vmem:[#allocation2] sm:$0xff] 0.0
    %22 = vst [vmem:[#allocation2 + $0x8] sm:$0xff] 0.0
    %23 = vst [vmem:[#allocation2 + $0x10] sm:$0xff] 0.0
    %24 = vst [vmem:[#allocation2 + $0x18] sm:$0xff] 0.0
    %25 = vst [vmem:[#allocation2 + $0x20] sm:$0xff] 0.0
    %26 = vst [vmem:[#allocation2 + $0x28] sm:$0xff] 0.0
    %27 = vst [vmem:[#allocation2 + $0x30] sm:$0xff] 0.0
    %28 = vst [vmem:[#allocation2 + $0x38] sm:$0xff] 0.0
    %29 = vst [vmem:[#allocation2 + $0x40] sm:$0xff] 0.0
    %30 = vst [vmem:[#allocation2 + $0x48] sm:$0xff] 0.0
    %31 = vst [vmem:[#allocation2 + $0x50] sm:$0xff] 0.0
    %32 = vst [vmem:[#allocation2 + $0x58] sm:$0xff] 0.0
    %33 = vst [vmem:[#allocation2 + $0x60] sm:$0xff] 0.0
    %34 = vst [vmem:[#allocation2 + $0x68] sm:$0xff] 0.0
    %35 = vst [vmem:[#allocation2 + $0x70] sm:$0xff] 0.0
    %36 = vst [vmem:[#allocation2 + $0x78] sm:$0xff] 0.0
    %37 = vst [vmem:[#allocation2 + $0x80] sm:$0xff] 0.0
    %38 = vst [vmem:[#allocation2 + $0x88] sm:$0xff] 0.0
    %39 = vst [vmem:[#allocation2 + $0x90] sm:$0xff] 0.0
    %40 = vst [vmem:[#allocation2 + $0x98] sm:$0xff] 0.0
    %41 = vst [vmem:[#allocation2 + $0xa0] sm:$0xff] 0.0
    %42 = vst [vmem:[#allocation2 + $0xa8] sm:$0xff] 0.0
    %43 = vst [vmem:[#allocation2 + $0xb0] sm:$0xff] 0.0
    %44 = vst [vmem:[#allocation2 + $0xb8] sm:$0xff] 0.0
    %45 = vst [vmem:[#allocation2 + $0xc0] sm:$0xff] 0.0
    %46 = vst [vmem:[#allocation2 + $0xc8] sm:$0xff] 0.0
    %47 = vst [vmem:[#allocation2 + $0xd0] sm:$0xff] 0.0
    %48 = vst [vmem:[#allocation2 + $0xd8] sm:$0xff] 0.0
    %49 = vst [vmem:[#allocation2 + $0xe0] sm:$0xff] 0.0
    %50 = vst [vmem:[#allocation2 + $0xe8] sm:$0xff] 0.0
    %51 = vst [vmem:[#allocation2 + $0xf0] sm:$0xff] 0.0
    %52 = vst [vmem:[#allocation2 + $0xf8] sm:$0xff] 0.0
    %53 = vst [vmem:[#allocation2 + $0x100] sm:$0xff] 0.0
    %54 = vst [vmem:[#allocation2 + $0x108] sm:$0xff] 0.0
    %55 = vst [vmem:[#allocation2 + $0x110] sm:$0xff] 0.0
    %56 = vst [vmem:[#allocation2 + $0x118] sm:$0xff] 0.0
    %57 = vst [vmem:[#allocation2 + $0x120] sm:$0xff] 0.0
    %58 = vst [vmem:[#allocation2 + $0x128] sm:$0xff] 0.0
    %59 = vst [vmem:[#allocation2 + $0x130] sm:$0xff] 0.0
    %60 = vst [vmem:[#allocation2 + $0x138] sm:$0xff] 0.0
    %61 = vst [vmem:[#allocation2 + $0x140] sm:$0xff] 0.0
    %62 = vst [vmem:[#allocation2 + $0x148] sm:$0xff] 0.0
    %63 = vst [vmem:[#allocation2 + $0x150] sm:$0xff] 0.0
    %64 = vst [vmem:[#allocation2 + $0x158] sm:$0xff] 0.0
    %65 = vst [vmem:[#allocation2 + $0x160] sm:$0xff] 0.0
    %66 = vst [vmem:[#allocation2 + $0x168] sm:$0xff] 0.0
    %67 = vst [vmem:[#allocation2 + $0x170] sm:$0xff] 0.0
    %68 = vst [vmem:[#allocation2 + $0x178] sm:$0xff] 0.0
    %69 = vst [vmem:[#allocation2 + $0x180] sm:$0xff] 0.0
    %70 = vst [vmem:[#allocation2 + $0x188] sm:$0xff] 0.0
    %71 = vst [vmem:[#allocation2 + $0x190] sm:$0xff] 0.0
    %72 = vst [vmem:[#allocation2 + $0x198] sm:$0xff] 0.0
    %73 = vst [vmem:[#allocation2 + $0x1a0] sm:$0xff] 0.0
    %74 = vst [vmem:[#allocation2 + $0x1a8] sm:$0xff] 0.0
    %75 = vst [vmem:[#allocation2 + $0x1b0] sm:$0xff] 0.0
    %76 = vst [vmem:[#allocation2 + $0x1b8] sm:$0xff] 0.0
    %77 = vst [vmem:[#allocation2 + $0x1c0] sm:$0xff] 0.0
    %78 = vst [vmem:[#allocation2 + $0x1c8] sm:$0xff] 0.0
    %79 = vst [vmem:[#allocation2 + $0x1d0] sm:$0xff] 0.0
    %80 = vst [vmem:[#allocation2 + $0x1d8] sm:$0xff] 0.0
    %81 = vst [vmem:[#allocation2 + $0x1e0] sm:$0xff] 0.0
    %82 = vst [vmem:[#allocation2 + $0x1e8] sm:$0xff] 0.0
    %83 = vst [vmem:[#allocation2 + $0x1f0] sm:$0xff] 0.0
    %84 = vst [vmem:[#allocation2 + $0x1f8] sm:$0xff] 0.0
  $region21: #{bottleneck_forward.3} parent=0 // pred_fallthru
    _
  %v85 = vld [vmem:[#allocation2] sm:$0xff]
  %v86 = vld [vmem:[#allocation2 + $0x8] sm:$0xff]
  %v87 = vld [vmem:[#allocation2 + $0x10] sm:$0xff]
  %v88 = vld [vmem:[#allocation2 + $0x18] sm:$0xff]
  %v89 = vld [vmem:[#allocation2 + $0x20] sm:$0xff]
  %v90 = vld [vmem:[#allocation2 + $0x28] sm:$0xff]
  %v91 = vld [vmem:[#allocation2 + $0x30] sm:$0xff]
  %v92 = vld [vmem:[#allocation2 + $0x38] sm:$0xff]
  %v93 = vld [vmem:[#allocation2 + $0x40] sm:$0xff]
  %v94 = vld [vmem:[#allocation2 + $0x48] sm:$0xff]
  %v95 = vld [vmem:[#allocation2 + $0x50] sm:$0xff]
  %v96 = vld [vmem:[#allocation2 + $0x58] sm:$0xff]
  %v97 = vld [vmem:[#allocation2 + $0x60] sm:$0xff]
  %v98 = vld [vmem:[#allocation2 + $0x68] sm:$0xff]
  %v99 = vld [vmem:[#allocation2 + $0x70] sm:$0xff]
  %v100 = vld [vmem:[#allocation2 + $0x78] sm:$0xff]
  %v101 = vld [vmem:[#allocation2 + $0x80] sm:$0xff]
  %v102 = vld [vmem:[#allocation2 + $0x88] sm:$0xff]
  %v103 = vld [vmem:[#allocation2 + $0x90] sm:$0xff]
  %v104 = vld [vmem:[#allocation2 + $0x98] sm:$0xff]
  %v105 = vld [vmem:[#allocation2 + $0xa0] sm:$0xff]
  %v106 = vld [vmem:[#allocation2 + $0xa8] sm:$0xff]
  %v107 = vld [vmem:[#allocation2 + $0xb0] sm:$0xff]
  %v108 = vld [vmem:[#allocation2 + $0xb8] sm:$0xff]
  %v109 = vld [vmem:[#allocation2 + $0xc0] sm:$0xff]
  %v110 = vld [vmem:[#allocation2 + $0xc8] sm:$0xff]
  %v111 = vld [vmem:[#allocation2 + $0xd0] sm:$0xff]
  %v112 = vld [vmem:[#allocation2 + $0xd8] sm:$0xff]
  %v113 = vld [vmem:[#allocation2 + $0xe0] sm:$0xff]
  %v114 = vld [vmem:[#allocation2 + $0xe8] sm:$0xff]
  %v115 = vld [vmem:[#allocation2 + $0xf0] sm:$0xff]
  %v116 = vld [vmem:[#allocation2 + $0xf8] sm:$0xff]
  %v117 = vld [vmem:[#allocation2 + $0x100] sm:$0xff]
  %v118 = vld [vmem:[#allocation2 + $0x108] sm:$0xff]
  %v119 = vld [vmem:[#allocation2 + $0x110] sm:$0xff]
  %v120 = vld [vmem:[#allocation2 + $0x118] sm:$0xff]
  %v121 = vld [vmem:[#allocation2 + $0x120] sm:$0xff]
  %v122 = vld [vmem:[#allocation2 + $0x128] sm:$0xff]
  %v123 = vld [vmem:[#allocation2 + $0x130] sm:$0xff]
  %v124 = vld [vmem:[#allocation2 + $0x138] sm:$0xff]
  %v125 = vld [vmem:[#allocation2 + $0x140] sm:$0xff]
  %v126 = vld [vmem:[#allocation2 + $0x148] sm:$0xff]
  %v127 = vld [vmem:[#allocation2 + $0x150] sm:$0xff]
  %v128 = vld [vmem:[#allocation2 + $0x158] sm:$0xff]
  %v129 = vld [vmem:[#allocation2 + $0x160] sm:$0xff]
  %v130 = vld [vmem:[#allocation2 + $0x168] sm:$0xff]
  %v131 = vld [vmem:[#allocation2 + $0x170] sm:$0xff]
  %v132 = vld [vmem:[#allocation2 + $0x178] sm:$0xff]
  %v133 = vld [vmem:[#allocation2 + $0x180] sm:$0xff]
  %v134 = vld [vmem:[#allocation2 + $0x188] sm:$0xff]
  %v135 = vld [vmem:[#allocation2 + $0x190] sm:$0xff]
  %v136 = vld [vmem:[#allocation2 + $0x198] sm:$0xff]
  %v137 = vld [vmem:[#allocation2 + $0x1a0] sm:$0xff]
  %v138 = vld [vmem:[#allocation2 + $0x1a8] sm:$0xff]
  %v139 = vld [vmem:[#allocation2 + $0x1b0] sm:$0xff]
  %v140 = vld [vmem:[#allocation2 + $0x1b8] sm:$0xff]
  %v141 = vld [vmem:[#allocation2 + $0x1c0] sm:$0xff]
  %v142 = vld [vmem:[#allocation2 + $0x1c8] sm:$0xff]
  %v143 = vld [vmem:[#allocation2 + $0x1d0] sm:$0xff]
  %v144 = vld [vmem:[#allocation2 + $0x1d8] sm:$0xff]
  %v145 = vld [vmem:[#allocation2 + $0x1e0] sm:$0xff]
  %v146 = vld [vmem:[#allocation2 + $0x1e8] sm:$0xff]
  %v147 = vld [vmem:[#allocation2 + $0x1f0] sm:$0xff]
  %v148 = vld [vmem:[#allocation2 + $0x1f8] sm:$0xff]
  %v149 = vld [vmem:[%s0] sm:$0xf]
  %v150 = vld [vmem:[%s0 + $0x4] sm:$0xf]
  %v151 = vld [vmem:[%s0 + $0x8] sm:$0xf]
  %v152 = vld [vmem:[%s0 + $0xc] sm:$0xf]
  %v153 = vld [vmem:[%s0 + $0x10] sm:$0xf]
  %v154 = vld [vmem:[%s0 + $0x14] sm:$0xf]
  %v155 = vld [vmem:[%s0 + $0x18] sm:$0xf]
  %v156 = vld [vmem:[%s0 + $0x1c] sm:$0xf]
  %v157 = vld [vmem:[%s0 + $0x20] sm:$0xf]
  %v158 = vld [vmem:[%s0 + $0x24] sm:$0xf]
  %v159 = vld [vmem:[%s0 + $0x28] sm:$0xf]
  %v160 = vld [vmem:[%s0 + $0x2c] sm:$0xf]
  %v161 = vld [vmem:[%s0 + $0x30] sm:$0xf]
  %v162 = vld [vmem:[%s0 + $0x34] sm:$0xf]
  %v163 = vld [vmem:[%s0 + $0x38] sm:$0xf]
  %v164 = vld [vmem:[%s0 + $0x3c] sm:$0xf]
  %v165 = vld [vmem:[%s0 + $0x40] sm:$0xf]
  %v166 = vld [vmem:[%s0 + $0x44] sm:$0xf]
  %v167 = vld [vmem:[%s0 + $0x48] sm:$0xf]
  %v168 = vld [vmem:[%s0 + $0x4c] sm:$0xf]
  %v169 = vld [vmem:[%s0 + $0x50] sm:$0xf]
  %v170 = vld [vmem:[%s0 + $0x54] sm:$0xf]
  %v171 = vld [vmem:[%s0 + $0x58] sm:$0xf]
  %v172 = vld [vmem:[%s0 + $0x5c] sm:$0xf]
  %v173 = vld [vmem:[%s0 + $0x60] sm:$0xf]
  %v174 = vld [vmem:[%s0 + $0x64] sm:$0xf]
  %v175 = vld [vmem:[%s0 + $0x68] sm:$0xf]
  %v176 = vld [vmem:[%s0 + $0x6c] sm:$0xf]
  %v177 = vld [vmem:[%s0 + $0x70] sm:$0xf]
  %v178 = vld [vmem:[%s0 + $0x74] sm:$0xf]
  %v179 = vld [vmem:[%s0 + $0x78] sm:$0xf]
  %v180 = vld [vmem:[%s0 + $0x7c] sm:$0xf]
  %v181 = vld [vmem:[%s0 + $0x80] sm:$0xf]
  %v182 = vld [vmem:[%s0 + $0x84] sm:$0xf]
  %v183 = vld [vmem:[%s0 + $0x88] sm:$0xf]
  %v184 = vld [vmem:[%s0 + $0x8c] sm:$0xf]
  %v185 = vld [vmem:[%s0 + $0x90] sm:$0xf]
  %v186 = vld [vmem:[%s0 + $0x94] sm:$0xf]
  %v187 = vld [vmem:[%s0 + $0x98] sm:$0xf]
  %v188 = vld [vmem:[%s0 + $0x9c] sm:$0xf]
  %v189 = vld [vmem:[%s0 + $0xa0] sm:$0xf]
  %v190 = vld [vmem:[%s0 + $0xa4] sm:$0xf]
  %v191 = vld [vmem:[%s0 + $0xa8] sm:$0xf]
  %v192 = vld [vmem:[%s0 + $0xac] sm:$0xf]
  %v193 = vld [vmem:[%s0 + $0xb0] sm:$0xf]
  %v194 = vld [vmem:[%s0 + $0xb4] sm:$0xf]
  %v195 = vld [vmem:[%s0 + $0xb8] sm:$0xf]
  %v196 = vld [vmem:[%s0 + $0xbc] sm:$0xf]
  %v197 = vld [vmem:[%s0 + $0xc0] sm:$0xf]
  %v198 = vld [vmem:[%s0 + $0xc4] sm:$0xf]
  %v199 = vld [vmem:[%s0 + $0xc8] sm:$0xf]
  %v200 = vld [vmem:[%s0 + $0xcc] sm:$0xf]
  %v201 = vld [vmem:[%s0 + $0xd0] sm:$0xf]
  %v202 = vld [vmem:[%s0 + $0xd4] sm:$0xf]
  %v203 = vld [vmem:[%s0 + $0xd8] sm:$0xf]
  %v204 = vld [vmem:[%s0 + $0xdc] sm:$0xf]
  %v205 = vld [vmem:[%s0 + $0xe0] sm:$0xf]
  %v206 = vld [vmem:[%s0 + $0xe4] sm:$0xf]
  %v207 = vld [vmem:[%s0 + $0xe8] sm:$0xf]
  %v208 = vld [vmem:[%s0 + $0xec] sm:$0xf]
  %v209 = vld [vmem:[%s0 + $0xf0] sm:$0xf]
  %v210 = vld [vmem:[%s0 + $0xf4] sm:$0xf]
  %v211 = vld [vmem:[%s0 + $0xf8] sm:$0xf]
  %v212 = vld [vmem:[%s0 + $0xfc] sm:$0xf]
  %v213 = vld [vmem:[%s1] sm:$0xf]
  %v214 = vld [vmem:[%s1 + $0x4] sm:$0xf]
  %v215 = vld [vmem:[%s1 + $0x8] sm:$0xf]
  %v216 = vld [vmem:[%s1 + $0xc] sm:$0xf]
  %v217 = vld [vmem:[%s1 + $0x10] sm:$0xf]
  %v218 = vld [vmem:[%s1 + $0x14] sm:$0xf]
  %v219 = vld [vmem:[%s1 + $0x18] sm:$0xf]
  %v220 = vld [vmem:[%s1 + $0x1c] sm:$0xf]
  %v221 = vld [vmem:[%s1 + $0x20] sm:$0xf]
  %v222 = vld [vmem:[%s1 + $0x24] sm:$0xf]
  %v223 = vld [vmem:[%s1 + $0x28] sm:$0xf]
  %v224 = vld [vmem:[%s1 + $0x2c] sm:$0xf]
  %v225 = vld [vmem:[%s1 + $0x30] sm:$0xf]
  %v226 = vld [vmem:[%s1 + $0x34] sm:$0xf]
  %v227 = vld [vmem:[%s1 + $0x38] sm:$0xf]
  %v228 = vld [vmem:[%s1 + $0x3c] sm:$0xf]
  %v293 = vunpack.c.l.b16 %v149
  %v294 = vunpack.c.l.b16 %v150
  %v295 = vunpack.c.l.b16 %v151
  %v296 = vunpack.c.l.b16 %v152
  %v297 = vunpack.c.l.b16 %v153
  %v298 = vunpack.c.l.b16 %v154
  %v299 = vunpack.c.l.b16 %v155
  %v300 = vunpack.c.l.b16 %v156
  %v301 = vunpack.c.l.b16 %v157
  %v302 = vunpack.c.l.b16 %v158
  %v303 = vunpack.c.l.b16 %v159
  %v304 = vunpack.c.l.b16 %v160
  %v305 = vunpack.c.l.b16 %v161
  %v306 = vunpack.c.l.b16 %v162
  %v307 = vunpack.c.l.b16 %v163
  %v308 = vunpack.c.l.b16 %v164
  %v309 = vunpack.c.l.b16 %v165
  %v310 = vunpack.c.l.b16 %v166
  %v311 = vunpack.c.l.b16 %v167
  %v312 = vunpack.c.l.b16 %v168
  %v313 = vunpack.c.l.b16 %v169
  %v314 = vunpack.c.l.b16 %v170
  %v315 = vunpack.c.l.b16 %v171
  %v316 = vunpack.c.l.b16 %v172
  %v317 = vunpack.c.l.b16 %v173
  %v318 = vunpack.c.l.b16 %v174
  %v319 = vunpack.c.l.b16 %v175
  %v320 = vunpack.c.l.b16 %v176
  %v321 = vunpack.c.l.b16 %v177
  %v322 = vunpack.c.l.b16 %v178
  %v323 = vunpack.c.l.b16 %v179
  %v324 = vunpack.c.l.b16 %v180
  %v325 = vunpack.c.l.b16 %v181
  %v326 = vunpack.c.l.b16 %v182
  %v327 = vunpack.c.l.b16 %v183
  %v328 = vunpack.c.l.b16 %v184
  %v329 = vunpack.c.l.b16 %v185
  %v330 = vunpack.c.l.b16 %v186
  %v331 = vunpack.c.l.b16 %v187
  %v332 = vunpack.c.l.b16 %v188
  %v333 = vunpack.c.l.b16 %v189
  %v334 = vunpack.c.l.b16 %v190
  %v335 = vunpack.c.l.b16 %v191
  %v336 = vunpack.c.l.b16 %v192
  %v337 = vunpack.c.l.b16 %v193
  %v338 = vunpack.c.l.b16 %v194
  %v339 = vunpack.c.l.b16 %v195
  %v340 = vunpack.c.l.b16 %v196
  %v341 = vunpack.c.l.b16 %v197
  %v342 = vunpack.c.l.b16 %v198
  %v343 = vunpack.c.l.b16 %v199
  %v344 = vunpack.c.l.b16 %v200
  %v345 = vunpack.c.l.b16 %v201
  %v346 = vunpack.c.l.b16 %v202
  %v347 = vunpack.c.l.b16 %v203
  %v348 = vunpack.c.l.b16 %v204
  %v349 = vunpack.c.l.b16 %v205
  %v350 = vunpack.c.l.b16 %v206
  %v351 = vunpack.c.l.b16 %v207
  %v352 = vunpack.c.l.b16 %v208
  %v353 = vunpack.c.l.b16 %v209
  %v354 = vunpack.c.l.b16 %v210
  %v355 = vunpack.c.l.b16 %v211
  %v356 = vunpack.c.l.b16 %v212
  %v357 = vpack.c.b16 %v294, %v293
  %v358 = vpack.c.b16 %v296, %v295
  %v359 = vpack.c.b16 %v298, %v297
  %v360 = vpack.c.b16 %v300, %v299
  %v361 = vpack.c.b16 %v302, %v301
  %v362 = vpack.c.b16 %v304, %v303
  %v363 = vpack.c.b16 %v306, %v305
  %v364 = vpack.c.b16 %v308, %v307
  %v365 = vpack.c.b16 %v310, %v309
  %v366 = vpack.c.b16 %v312, %v311
  %v367 = vpack.c.b16 %v314, %v313
  %v368 = vpack.c.b16 %v316, %v315
  %v369 = vpack.c.b16 %v318, %v317
  %v370 = vpack.c.b16 %v320, %v319
  %v371 = vpack.c.b16 %v322, %v321
  %v372 = vpack.c.b16 %v324, %v323
  %v373 = vpack.c.b16 %v326, %v325
  %v374 = vpack.c.b16 %v328, %v327
  %v375 = vpack.c.b16 %v330, %v329
  %v376 = vpack.c.b16 %v332, %v331
  %v377 = vpack.c.b16 %v334, %v333
  %v378 = vpack.c.b16 %v336, %v335
  %v379 = vpack.c.b16 %v338, %v337
  %v380 = vpack.c.b16 %v340, %v339
  %v381 = vpack.c.b16 %v342, %v341
  %v382 = vpack.c.b16 %v344, %v343
  %v383 = vpack.c.b16 %v346, %v345
  %v384 = vpack.c.b16 %v348, %v347
  %v385 = vpack.c.b16 %v350, %v349
  %v386 = vpack.c.b16 %v352, %v351
  %v387 = vpack.c.b16 %v354, %v353
  %v388 = vpack.c.b16 %v356, %v355
  %v437 = vunpack.c.l.b16 %v213
  %v438 = vunpack.c.l.b16 %v214
  %v439 = vunpack.c.l.b16 %v215
  %v440 = vunpack.c.l.b16 %v216
  %v441 = vunpack.c.l.b16 %v217
  %v442 = vunpack.c.l.b16 %v218
  %v443 = vunpack.c.l.b16 %v219
  %v444 = vunpack.c.l.b16 %v220
  %v445 = vunpack.c.l.b16 %v221
  %v446 = vunpack.c.l.b16 %v222
  %v447 = vunpack.c.l.b16 %v223
  %v448 = vunpack.c.l.b16 %v224
  %v449 = vunpack.c.l.b16 %v225
  %v450 = vunpack.c.l.b16 %v226
  %v451 = vunpack.c.l.b16 %v227
  %v452 = vunpack.c.l.b16 %v228
  %v453 = vpack.c.b16 %v438, %v437
  %v454 = vpack.c.b16 %v440, %v439
  %v455 = vpack.c.b16 %v442, %v441
  %v456 = vpack.c.b16 %v444, %v443
  %v457 = vpack.c.b16 %v446, %v445
  %v458 = vpack.c.b16 %v448, %v447
  %v459 = vpack.c.b16 %v450, %v449
  %v460 = vpack.c.b16 %v452, %v451
  %469 = vmatpush.bf16.msra.mxu0 %v460
  %470 = vmatpush.bf16.msra.mxu0 %v459
  %471 = vmatpush.bf16.msra.mxu0 %v458
  %472 = vmatpush.bf16.msra.mxu0 %v457
  %473 = vmatpush.bf16.msra.mxu0 %v456
  %474 = vmatpush.bf16.msra.mxu0 %v455
  %475 = vmatpush.bf16.msra.mxu0 %v454
  %476 = vmatpush.bf16.msra.mxu0 %v453
  %477 = vmatmul.bf16.gmra.mxu0 %v357
  %v478 = vpop.f32.mrf.mxu0
  %v479 = vadd.f32 0.0, %v478
  %v480 = vpop.f32.mrf.mxu0
  %v481 = vadd.f32 0.0, %v480
  %482 = vmatmul.bf16.gmra.mxu0 %v358
  %v483 = vpop.f32.mrf.mxu0
  %v484 = vadd.f32 0.0, %v483
  %v485 = vpop.f32.mrf.mxu0
  %v486 = vadd.f32 0.0, %v485
  %487 = vmatmul.bf16.gmra.mxu0 %v359
  %v488 = vpop.f32.mrf.mxu0
  %v489 = vadd.f32 0.0, %v488
  %v490 = vpop.f32.mrf.mxu0
  %v491 = vadd.f32 0.0, %v490
  %492 = vmatmul.bf16.gmra.mxu0 %v360
  %v493 = vpop.f32.mrf.mxu0
  %v494 = vadd.f32 0.0, %v493
  %v495 = vpop.f32.mrf.mxu0
  %v496 = vadd.f32 0.0, %v495
  %497 = vmatmul.bf16.gmra.mxu0 %v361
  %v498 = vpop.f32.mrf.mxu0
  %v499 = vadd.f32 0.0, %v498
  %v500 = vpop.f32.mrf.mxu0
  %v501 = vadd.f32 0.0, %v500
  %502 = vmatmul.bf16.gmra.mxu0 %v362
  %v503 = vpop.f32.mrf.mxu0
  %v504 = vadd.f32 0.0, %v503
  %v505 = vpop.f32.mrf.mxu0
  %v506 = vadd.f32 0.0, %v505
  %507 = vmatmul.bf16.gmra.mxu0 %v363
  %v508 = vpop.f32.mrf.mxu0
  %v509 = vadd.f32 0.0, %v508
  %v510 = vpop.f32.mrf.mxu0
  %v511 = vadd.f32 0.0, %v510
  %512 = vmatmul.bf16.gmra.mxu0 %v364
  %v513 = vpop.f32.mrf.mxu0
  %v514 = vadd.f32 0.0, %v513
  %v515 = vpop.f32.mrf.mxu0
  %v516 = vadd.f32 0.0, %v515
  %517 = vmatmul.bf16.gmra.mxu0 %v365
  %v518 = vpop.f32.mrf.mxu0
  %v519 = vadd.f32 0.0, %v518
  %v520 = vpop.f32.mrf.mxu0
  %v521 = vadd.f32 0.0, %v520
  %522 = vmatmul.bf16.gmra.mxu0 %v366
  %v523 = vpop.f32.mrf.mxu0
  %v524 = vadd.f32 0.0, %v523
  %v525 = vpop.f32.mrf.mxu0
  %v526 = vadd.f32 0.0, %v525
  %527 = vmatmul.bf16.gmra.mxu0 %v367
  %v528 = vpop.f32.mrf.mxu0
  %v529 = vadd.f32 0.0, %v528
  %v530 = vpop.f32.mrf.mxu0
  %v531 = vadd.f32 0.0, %v530
  %532 = vmatmul.bf16.gmra.mxu0 %v368
  %v533 = vpop.f32.mrf.mxu0
  %v534 = vadd.f32 0.0, %v533
  %v535 = vpop.f32.mrf.mxu0
  %v536 = vadd.f32 0.0, %v535
  %537 = vmatmul.bf16.gmra.mxu0 %v369
  %v538 = vpop.f32.mrf.mxu0
  %v539 = vadd.f32 0.0, %v538
  %v540 = vpop.f32.mrf.mxu0
  %v541 = vadd.f32 0.0, %v540
  %542 = vmatmul.bf16.gmra.mxu0 %v370
  %v543 = vpop.f32.mrf.mxu0
  %v544 = vadd.f32 0.0, %v543
  %v545 = vpop.f32.mrf.mxu0
  %v546 = vadd.f32 0.0, %v545
  %547 = vmatmul.bf16.gmra.mxu0 %v371
  %v548 = vpop.f32.mrf.mxu0
  %v549 = vadd.f32 0.0, %v548
  %v550 = vpop.f32.mrf.mxu0
  %v551 = vadd.f32 0.0, %v550
  %552 = vmatmul.bf16.gmra.mxu0 %v372
  %v553 = vpop.f32.mrf.mxu0
  %v554 = vadd.f32 0.0, %v553
  %v555 = vpop.f32.mrf.mxu0
  %v556 = vadd.f32 0.0, %v555
  %557 = vmatmul.bf16.gmra.mxu0 %v373
  %v558 = vpop.f32.mrf.mxu0
  %v559 = vadd.f32 0.0, %v558
  %v560 = vpop.f32.mrf.mxu0
  %v561 = vadd.f32 0.0, %v560
  %562 = vmatmul.bf16.gmra.mxu0 %v374
  %v563 = vpop.f32.mrf.mxu0
  %v564 = vadd.f32 0.0, %v563
  %v565 = vpop.f32.mrf.mxu0
  %v566 = vadd.f32 0.0, %v565
  %567 = vmatmul.bf16.gmra.mxu0 %v375
  %v568 = vpop.f32.mrf.mxu0
  %v569 = vadd.f32 0.0, %v568
  %v570 = vpop.f32.mrf.mxu0
  %v571 = vadd.f32 0.0, %v570
  %572 = vmatmul.bf16.gmra.mxu0 %v376
  %v573 = vpop.f32.mrf.mxu0
  %v574 = vadd.f32 0.0, %v573
  %v575 = vpop.f32.mrf.mxu0
  %v576 = vadd.f32 0.0, %v575
  %577 = vmatmul.bf16.gmra.mxu0 %v377
  %v578 = vpop.f32.mrf.mxu0
  %v579 = vadd.f32 0.0, %v578
  %v580 = vpop.f32.mrf.mxu0
  %v581 = vadd.f32 0.0, %v580
  %582 = vmatmul.bf16.gmra.mxu0 %v378
  %v583 = vpop.f32.mrf.mxu0
  %v584 = vadd.f32 0.0, %v583
  %v585 = vpop.f32.mrf.mxu0
  %v586 = vadd.f32 0.0, %v585
  %587 = vmatmul.bf16.gmra.mxu0 %v379
  %v588 = vpop.f32.mrf.mxu0
  %v589 = vadd.f32 0.0, %v588
  %v590 = vpop.f32.mrf.mxu0
  %v591 = vadd.f32 0.0, %v590
  %592 = vmatmul.bf16.gmra.mxu0 %v380
  %v593 = vpop.f32.mrf.mxu0
  %v594 = vadd.f32 0.0, %v593
  %v595 = vpop.f32.mrf.mxu0
  %v596 = vadd.f32 0.0, %v595
  %597 = vmatmul.bf16.gmra.mxu0 %v381
  %v598 = vpop.f32.mrf.mxu0
  %v599 = vadd.f32 0.0, %v598
  %v600 = vpop.f32.mrf.mxu0
  %v601 = vadd.f32 0.0, %v600
  %602 = vmatmul.bf16.gmra.mxu0 %v382
  %v603 = vpop.f32.mrf.mxu0
  %v604 = vadd.f32 0.0, %v603
  %v605 = vpop.f32.mrf.mxu0
  %v606 = vadd.f32 0.0, %v605
  %607 = vmatmul.bf16.gmra.mxu0 %v383
  %v608 = vpop.f32.mrf.mxu0
  %v609 = vadd.f32 0.0, %v608
  %v610 = vpop.f32.mrf.mxu0
  %v611 = vadd.f32 0.0, %v610
  %612 = vmatmul.bf16.gmra.mxu0 %v384
  %v613 = vpop.f32.mrf.mxu0
  %v614 = vadd.f32 0.0, %v613
  %v615 = vpop.f32.mrf.mxu0
  %v616 = vadd.f32 0.0, %v615
  %617 = vmatmul.bf16.gmra.mxu0 %v385
  %v618 = vpop.f32.mrf.mxu0
  %v619 = vadd.f32 0.0, %v618
  %v620 = vpop.f32.mrf.mxu0
  %v621 = vadd.f32 0.0, %v620
  %622 = vmatmul.bf16.gmra.mxu0 %v386
  %v623 = vpop.f32.mrf.mxu0
  %v624 = vadd.f32 0.0, %v623
  %v625 = vpop.f32.mrf.mxu0
  %v626 = vadd.f32 0.0, %v625
  %627 = vmatmul.bf16.gmra.mxu0 %v387
  %v628 = vpop.f32.mrf.mxu0
  %v629 = vadd.f32 0.0, %v628
  %v630 = vpop.f32.mrf.mxu0
  %v631 = vadd.f32 0.0, %v630
  %632 = vmatmul.bf16.gmra.mxu0 %v388
  %v633 = vpop.f32.mrf.mxu0
  %v634 = vadd.f32 0.0, %v633
  %v635 = vpop.f32.mrf.mxu0
  %v636 = vadd.f32 0.0, %v635
  %637 = vdwg.mxu0
  %v638 = vadd.f32 %v85, %v479
  %v639 = vadd.f32 %v86, %v481
  %v640 = vadd.f32 %v87, %v484
  %v641 = vadd.f32 %v88, %v486
  %v642 = vadd.f32 %v89, %v489
  %v643 = vadd.f32 %v90, %v491
  %v644 = vadd.f32 %v91, %v494
  %v645 = vadd.f32 %v92, %v496
  %v646 = vadd.f32 %v93, %v499
  %v647 = vadd.f32 %v94, %v501
  %v648 = vadd.f32 %v95, %v504
  %v649 = vadd.f32 %v96, %v506
  %v650 = vadd.f32 %v97, %v509
  %v651 = vadd.f32 %v98, %v511
  %v652 = vadd.f32 %v99, %v514
  %v653 = vadd.f32 %v100, %v516
  %v654 = vadd.f32 %v101, %v519
  %v655 = vadd.f32 %v102, %v521
  %v656 = vadd.f32 %v103, %v524
  %v657 = vadd.f32 %v104, %v526
  %v658 = vadd.f32 %v105, %v529
  %v659 = vadd.f32 %v106, %v531
  %v660 = vadd.f32 %v107, %v534
  %v661 = vadd.f32 %v108, %v536
  %v662 = vadd.f32 %v109, %v539
  %v663 = vadd.f32 %v110, %v541
  %v664 = vadd.f32 %v111, %v544
  %v665 = vadd.f32 %v112, %v546
  %v666 = vadd.f32 %v113, %v549
  %v667 = vadd.f32 %v114, %v551
  %v668 = vadd.f32 %v115, %v554
  %v669 = vadd.f32 %v116, %v556
  %v670 = vadd.f32 %v117, %v559
  %v671 = vadd.f32 %v118, %v561
  %v672 = vadd.f32 %v119, %v564
  %v673 = vadd.f32 %v120, %v566
  %v674 = vadd.f32 %v121, %v569
  %v675 = vadd.f32 %v122, %v571
  %v676 = vadd.f32 %v123, %v574
  %v677 = vadd.f32 %v124, %v576
  %v678 = vadd.f32 %v125, %v579
  %v679 = vadd.f32 %v126, %v581
  %v680 = vadd.f32 %v127, %v584
  %v681 = vadd.f32 %v128, %v586
  %v682 = vadd.f32 %v129, %v589
  %v683 = vadd.f32 %v130, %v591
  %v684 = vadd.f32 %v131, %v594
  %v685 = vadd.f32 %v132, %v596
  %v686 = vadd.f32 %v133, %v599
  %v687 = vadd.f32 %v134, %v601
  %v688 = vadd.f32 %v135, %v604
  %v689 = vadd.f32 %v136, %v606
  %v690 = vadd.f32 %v137, %v609
  %v691 = vadd.f32 %v138, %v611
  %v692 = vadd.f32 %v139, %v614
  %v693 = vadd.f32 %v140, %v616
  %v694 = vadd.f32 %v141, %v619
  %v695 = vadd.f32 %v142, %v621
  %v696 = vadd.f32 %v143, %v624
  %v697 = vadd.f32 %v144, %v626
  %v698 = vadd.f32 %v145, %v629
  %v699 = vadd.f32 %v146, %v631
  %v700 = vadd.f32 %v147, %v634
  %v701 = vadd.f32 %v148, %v636
  %702 = vst [vmem:[#allocation2] sm:$0xff] %v638
  %703 = vst [vmem:[#allocation2 + $0x8] sm:$0xff] %v639
  %704 = vst [vmem:[#allocation2 + $0x10] sm:$0xff] %v640
  %705 = vst [vmem:[#allocation2 + $0x18] sm:$0xff] %v641
  %706 = vst [vmem:[#allocation2 + $0x20] sm:$0xff] %v642
  %707 = vst [vmem:[#allocation2 + $0x28] sm:$0xff] %v643
  %708 = vst [vmem:[#allocation2 + $0x30] sm:$0xff] %v644
  %709 = vst [vmem:[#allocation2 + $0x38] sm:$0xff] %v645
  %710 = vst [vmem:[#allocation2 + $0x40] sm:$0xff] %v646
  %711 = vst [vmem:[#allocation2 + $0x48] sm:$0xff] %v647
  %712 = vst [vmem:[#allocation2 + $0x50] sm:$0xff] %v648
  %713 = vst [vmem:[#allocation2 + $0x58] sm:$0xff] %v649
  %714 = vst [vmem:[#allocation2 + $0x60] sm:$0xff] %v650
  %715 = vst [vmem:[#allocation2 + $0x68] sm:$0xff] %v651
  %716 = vst [vmem:[#allocation2 + $0x70] sm:$0xff] %v652
  %717 = vst [vmem:[#allocation2 + $0x78] sm:$0xff] %v653
  %718 = vst [vmem:[#allocation2 + $0x80] sm:$0xff] %v654
  %719 = vst [vmem:[#allocation2 + $0x88] sm:$0xff] %v655
  %720 = vst [vmem:[#allocation2 + $0x90] sm:$0xff] %v656
  %721 = vst [vmem:[#allocation2 + $0x98] sm:$0xff] %v657
  %722 = vst [vmem:[#allocation2 + $0xa0] sm:$0xff] %v658
  %723 = vst [vmem:[#allocation2 + $0xa8] sm:$0xff] %v659
  %724 = vst [vmem:[#allocation2 + $0xb0] sm:$0xff] %v660
  %725 = vst [vmem:[#allocation2 + $0xb8] sm:$0xff] %v661
  %726 = vst [vmem:[#allocation2 + $0xc0] sm:$0xff] %v662
  %727 = vst [vmem:[#allocation2 + $0xc8] sm:$0xff] %v663
  %728 = vst [vmem:[#allocation2 + $0xd0] sm:$0xff] %v664
  %729 = vst [vmem:[#allocation2 + $0xd8] sm:$0xff] %v665
  %730 = vst [vmem:[#allocation2 + $0xe0] sm:$0xff] %v666
  %731 = vst [vmem:[#allocation2 + $0xe8] sm:$0xff] %v667
  %732 = vst [vmem:[#allocation2 + $0xf0] sm:$0xff] %v668
  %733 = vst [vmem:[#allocation2 + $0xf8] sm:$0xff] %v669
  %734 = vst [vmem:[#allocation2 + $0x100] sm:$0xff] %v670
  %735 = vst [vmem:[#allocation2 + $0x108] sm:$0xff] %v671
  %736 = vst [vmem:[#allocation2 + $0x110] sm:$0xff] %v672
  %737 = vst [vmem:[#allocation2 + $0x118] sm:$0xff] %v673
  %738 = vst [vmem:[#allocation2 + $0x120] sm:$0xff] %v674
  %739 = vst [vmem:[#allocation2 + $0x128] sm:$0xff] %v675
  %740 = vst [vmem:[#allocation2 + $0x130] sm:$0xff] %v676
  %741 = vst [vmem:[#allocation2 + $0x138] sm:$0xff] %v677
  %742 = vst [vmem:[#allocation2 + $0x140] sm:$0xff] %v678
  %743 = vst [vmem:[#allocation2 + $0x148] sm:$0xff] %v679
  %744 = vst [vmem:[#allocation2 + $0x150] sm:$0xff] %v680
  %745 = vst [vmem:[#allocation2 + $0x158] sm:$0xff] %v681
  %746 = vst [vmem:[#allocation2 + $0x160] sm:$0xff] %v682
  %747 = vst [vmem:[#allocation2 + $0x168] sm:$0xff] %v683
  %748 = vst [vmem:[#allocation2 + $0x170] sm:$0xff] %v684
  %749 = vst [vmem:[#allocation2 + $0x178] sm:$0xff] %v685
  %750 = vst [vmem:[#allocation2 + $0x180] sm:$0xff] %v686
  %751 = vst [vmem:[#allocation2 + $0x188] sm:$0xff] %v687
  %752 = vst [vmem:[#allocation2 + $0x190] sm:$0xff] %v688
  %753 = vst [vmem:[#allocation2 + $0x198] sm:$0xff] %v689
  %754 = vst [vmem:[#allocation2 + $0x1a0] sm:$0xff] %v690
  %755 = vst [vmem:[#allocation2 + $0x1a8] sm:$0xff] %v691
  %756 = vst [vmem:[#allocation2 + $0x1b0] sm:$0xff] %v692
  %757 = vst [vmem:[#allocation2 + $0x1b8] sm:$0xff] %v693
  %758 = vst [vmem:[#allocation2 + $0x1c0] sm:$0xff] %v694
  %759 = vst [vmem:[#allocation2 + $0x1c8] sm:$0xff] %v695
  %760 = vst [vmem:[#allocation2 + $0x1d0] sm:$0xff] %v696
  %761 = vst [vmem:[#allocation2 + $0x1d8] sm:$0xff] %v697
  %762 = vst [vmem:[#allocation2 + $0x1e0] sm:$0xff] %v698
  %763 = vst [vmem:[#allocation2 + $0x1e8] sm:$0xff] %v699
  %764 = vst [vmem:[#allocation2 + $0x1f0] sm:$0xff] %v700
  %765 = vst [vmem:[#allocation2 + $0x1f8] sm:$0xff] %v701
  // Predicated region
  $region22: #{bottleneck_forward.3} parent=0 // pred_check
    %p766 = pneg %p17
  $region23: #{bottleneck_forward.3} parent=0 // pred_check_branch
    %768 = sbr.rel (%p766) target = $region25
  $region24: #{bottleneck_forward.3} parent=0 // pred_region
    %v769 = vld [vmem:[#allocation2] sm:$0xff]
    %v770 = vld [vmem:[#allocation2 + $0x8] sm:$0xff]
    %v771 = vld [vmem:[#allocation2 + $0x10] sm:$0xff]
    %v772 = vld [vmem:[#allocation2 + $0x18] sm:$0xff]
    %v773 = vld [vmem:[#allocation2 + $0x20] sm:$0xff]
    %v774 = vld [vmem:[#allocation2 + $0x28] sm:$0xff]
    %v775 = vld [vmem:[#allocation2 + $0x30] sm:$0xff]
    %v776 = vld [vmem:[#allocation2 + $0x38] sm:$0xff]
    %v777 = vld [vmem:[#allocation2 + $0x40] sm:$0xff]
    %v778 = vld [vmem:[#allocation2 + $0x48] sm:$0xff]
    %v779 = vld [vmem:[#allocation2 + $0x50] sm:$0xff]
    %v780 = vld [vmem:[#allocation2 + $0x58] sm:$0xff]
    %v781 = vld [vmem:[#allocation2 + $0x60] sm:$0xff]
    %v782 = vld [vmem:[#allocation2 + $0x68] sm:$0xff]
    %v783 = vld [vmem:[#allocation2 + $0x70] sm:$0xff]
    %v784 = vld [vmem:[#allocation2 + $0x78] sm:$0xff]
    %v785 = vld [vmem:[#allocation2 + $0x80] sm:$0xff]
    %v786 = vld [vmem:[#allocation2 + $0x88] sm:$0xff]
    %v787 = vld [vmem:[#allocation2 + $0x90] sm:$0xff]
    %v788 = vld [vmem:[#allocation2 + $0x98] sm:$0xff]
    %v789 = vld [vmem:[#allocation2 + $0xa0] sm:$0xff]
    %v790 = vld [vmem:[#allocation2 + $0xa8] sm:$0xff]
    %v791 = vld [vmem:[#allocation2 + $0xb0] sm:$0xff]
    %v792 = vld [vmem:[#allocation2 + $0xb8] sm:$0xff]
    %v793 = vld [vmem:[#allocation2 + $0xc0] sm:$0xff]
    %v794 = vld [vmem:[#allocation2 + $0xc8] sm:$0xff]
    %v795 = vld [vmem:[#allocation2 + $0xd0] sm:$0xff]
    %v796 = vld [vmem:[#allocation2 + $0xd8] sm:$0xff]
    %v797 = vld [vmem:[#allocation2 + $0xe0] sm:$0xff]
    %v798 = vld [vmem:[#allocation2 + $0xe8] sm:$0xff]
    %v799 = vld [vmem:[#allocation2 + $0xf0] sm:$0xff]
    %v800 = vld [vmem:[#allocation2 + $0xf8] sm:$0xff]
    %v801 = vld [vmem:[#allocation2 + $0x100] sm:$0xff]
    %v802 = vld [vmem:[#allocation2 + $0x108] sm:$0xff]
    %v803 = vld [vmem:[#allocation2 + $0x110] sm:$0xff]
    %v804 = vld [vmem:[#allocation2 + $0x118] sm:$0xff]
    %v805 = vld [vmem:[#allocation2 + $0x120] sm:$0xff]
    %v806 = vld [vmem:[#allocation2 + $0x128] sm:$0xff]
    %v807 = vld [vmem:[#allocation2 + $0x130] sm:$0xff]
    %v808 = vld [vmem:[#allocation2 + $0x138] sm:$0xff]
    %v809 = vld [vmem:[#allocation2 + $0x140] sm:$0xff]
    %v810 = vld [vmem:[#allocation2 + $0x148] sm:$0xff]
    %v811 = vld [vmem:[#allocation2 + $0x150] sm:$0xff]
    %v812 = vld [vmem:[#allocation2 + $0x158] sm:$0xff]
    %v813 = vld [vmem:[#allocation2 + $0x160] sm:$0xff]
    %v814 = vld [vmem:[#allocation2 + $0x168] sm:$0xff]
    %v815 = vld [vmem:[#allocation2 + $0x170] sm:$0xff]
    %v816 = vld [vmem:[#allocation2 + $0x178] sm:$0xff]
    %v817 = vld [vmem:[#allocation2 + $0x180] sm:$0xff]
    %v818 = vld [vmem:[#allocation2 + $0x188] sm:$0xff]
    %v819 = vld [vmem:[#allocation2 + $0x190] sm:$0xff]
    %v820 = vld [vmem:[#allocation2 + $0x198] sm:$0xff]
    %v821 = vld [vmem:[#allocation2 + $0x1a0] sm:$0xff]
    %v822 = vld [vmem:[#allocation2 + $0x1a8] sm:$0xff]
    %v823 = vld [vmem:[#allocation2 + $0x1b0] sm:$0xff]
    %v824 = vld [vmem:[#allocation2 + $0x1b8] sm:$0xff]
    %v825 = vld [vmem:[#allocation2 + $0x1c0] sm:$0xff]
    %v826 = vld [vmem:[#allocation2 + $0x1c8] sm:$0xff]
    %v827 = vld [vmem:[#allocation2 + $0x1d0] sm:$0xff]
    %v828 = vld [vmem:[#allocation2 + $0x1d8] sm:$0xff]
    %v829 = vld [vmem:[#allocation2 + $0x1e0] sm:$0xff]
    %v830 = vld [vmem:[#allocation2 + $0x1e8] sm:$0xff]
    %v831 = vld [vmem:[#allocation2 + $0x1f0] sm:$0xff]
    %v832 = vld [vmem:[#allocation2 + $0x1f8] sm:$0xff]
    %v833 = vld [vmem:[%s2] sm:$0x1]
    %v835 = vperm.slane %v833, 0
    %v837 = vmul.f32 %v769, %v835
    %v838 = vmul.f32 %v770, %v835
    %v839 = vmul.f32 %v771, %v835
    %v840 = vmul.f32 %v772, %v835
    %v841 = vmul.f32 %v773, %v835
    %v842 = vmul.f32 %v774, %v835
    %v843 = vmul.f32 %v775, %v835
    %v844 = vmul.f32 %v776, %v835
    %v845 = vmul.f32 %v777, %v835
    %v846 = vmul.f32 %v778, %v835
    %v847 = vmul.f32 %v779, %v835
    %v848 = vmul.f32 %v780, %v835
    %v849 = vmul.f32 %v781, %v835
    %v850 = vmul.f32 %v782, %v835
    %v851 = vmul.f32 %v783, %v835
    %v852 = vmul.f32 %v784, %v835
    %v853 = vmul.f32 %v785, %v835
    %v854 = vmul.f32 %v786, %v835
    %v855 = vmul.f32 %v787, %v835
    %v856 = vmul.f32 %v788, %v835
    %v857 = vmul.f32 %v789, %v835
    %v858 = vmul.f32 %v790, %v835
    %v859 = vmul.f32 %v791, %v835
    %v860 = vmul.f32 %v792, %v835
    %v861 = vmul.f32 %v793, %v835
    %v862 = vmul.f32 %v794, %v835
    %v863 = vmul.f32 %v795, %v835
    %v864 = vmul.f32 %v796, %v835
    %v865 = vmul.f32 %v797, %v835
    %v866 = vmul.f32 %v798, %v835
    %v867 = vmul.f32 %v799, %v835
    %v868 = vmul.f32 %v800, %v835
    %v869 = vmul.f32 %v801, %v835
    %v870 = vmul.f32 %v802, %v835
    %v871 = vmul.f32 %v803, %v835
    %v872 = vmul.f32 %v804, %v835
    %v873 = vmul.f32 %v805, %v835
    %v874 = vmul.f32 %v806, %v835
    %v875 = vmul.f32 %v807, %v835
    %v876 = vmul.f32 %v808, %v835
    %v877 = vmul.f32 %v809, %v835
    %v878 = vmul.f32 %v810, %v835
    %v879 = vmul.f32 %v811, %v835
    %v880 = vmul.f32 %v812, %v835
    %v881 = vmul.f32 %v813, %v835
    %v882 = vmul.f32 %v814, %v835
    %v883 = vmul.f32 %v815, %v835
    %v884 = vmul.f32 %v816, %v835
    %v885 = vmul.f32 %v817, %v835
    %v886 = vmul.f32 %v818, %v835
    %v887 = vmul.f32 %v819, %v835
    %v888 = vmul.f32 %v820, %v835
    %v889 = vmul.f32 %v821, %v835
    %v890 = vmul.f32 %v822, %v835
    %v891 = vmul.f32 %v823, %v835
    %v892 = vmul.f32 %v824, %v835
    %v893 = vmul.f32 %v825, %v835
    %v894 = vmul.f32 %v826, %v835
    %v895 = vmul.f32 %v827, %v835
    %v896 = vmul.f32 %v828, %v835
    %v897 = vmul.f32 %v829, %v835
    %v898 = vmul.f32 %v830, %v835
    %v899 = vmul.f32 %v831, %v835
    %v900 = vmul.f32 %v832, %v835
    %v901 = vld [vmem:[%s3] sm:$0x1]
    %v903 = vperm.slane %v901, 0
    %v905 = vadd.f32 %v837, %v903
    %v906 = vadd.f32 %v838, %v903
    %v907 = vadd.f32 %v839, %v903
    %v908 = vadd.f32 %v840, %v903
    %v909 = vadd.f32 %v841, %v903
    %v910 = vadd.f32 %v842, %v903
    %v911 = vadd.f32 %v843, %v903
    %v912 = vadd.f32 %v844, %v903
    %v913 = vadd.f32 %v845, %v903
    %v914 = vadd.f32 %v846, %v903
    %v915 = vadd.f32 %v847, %v903
    %v916 = vadd.f32 %v848, %v903
    %v917 = vadd.f32 %v849, %v903
    %v918 = vadd.f32 %v850, %v903
    %v919 = vadd.f32 %v851, %v903
    %v920 = vadd.f32 %v852, %v903
    %v921 = vadd.f32 %v853, %v903
    %v922 = vadd.f32 %v854, %v903
    %v923 = vadd.f32 %v855, %v903
    %v924 = vadd.f32 %v856, %v903
    %v925 = vadd.f32 %v857, %v903
    %v926 = vadd.f32 %v858, %v903
    %v927 = vadd.f32 %v859, %v903
    %v928 = vadd.f32 %v860, %v903
    %v929 = vadd.f32 %v861, %v903
    %v930 = vadd.f32 %v862, %v903
    %v931 = vadd.f32 %v863, %v903
    %v932 = vadd.f32 %v864, %v903
    %v933 = vadd.f32 %v865, %v903
    %v934 = vadd.f32 %v866, %v903
    %v935 = vadd.f32 %v867, %v903
    %v936 = vadd.f32 %v868, %v903
    %v937 = vadd.f32 %v869, %v903
    %v938 = vadd.f32 %v870, %v903
    %v939 = vadd.f32 %v871, %v903
    %v940 = vadd.f32 %v872, %v903
    %v941 = vadd.f32 %v873, %v903
    %v942 = vadd.f32 %v874, %v903
    %v943 = vadd.f32 %v875, %v903
    %v944 = vadd.f32 %v876, %v903
    %v945 = vadd.f32 %v877, %v903
    %v946 = vadd.f32 %v878, %v903
    %v947 = vadd.f32 %v879, %v903
    %v948 = vadd.f32 %v880, %v903
    %v949 = vadd.f32 %v881, %v903
    %v950 = vadd.f32 %v882, %v903
    %v951 = vadd.f32 %v883, %v903
    %v952 = vadd.f32 %v884, %v903
    %v953 = vadd.f32 %v885, %v903
    %v954 = vadd.f32 %v886, %v903
    %v955 = vadd.f32 %v887, %v903
    %v956 = vadd.f32 %v888, %v903
    %v957 = vadd.f32 %v889, %v903
    %v958 = vadd.f32 %v890, %v903
    %v959 = vadd.f32 %v891, %v903
    %v960 = vadd.f32 %v892, %v903
    %v961 = vadd.f32 %v893, %v903
    %v962 = vadd.f32 %v894, %v903
    %v963 = vadd.f32 %v895, %v903
    %v964 = vadd.f32 %v896, %v903
    %v965 = vadd.f32 %v897, %v903
    %v966 = vadd.f32 %v898, %v903
    %v967 = vadd.f32 %v899, %v903
    %v968 = vadd.f32 %v900, %v903
    %v969 = vmax.f32 %v905, 0.0
    %v970 = vmax.f32 %v906, 0.0
    %v971 = vmax.f32 %v907, 0.0
    %v972 = vmax.f32 %v908, 0.0
    %v973 = vmax.f32 %v909, 0.0
    %v974 = vmax.f32 %v910, 0.0
    %v975 = vmax.f32 %v911, 0.0
    %v976 = vmax.f32 %v912, 0.0
    %v977 = vmax.f32 %v913, 0.0
    %v978 = vmax.f32 %v914, 0.0
    %v979 = vmax.f32 %v915, 0.0
    %v980 = vmax.f32 %v916, 0.0
    %v981 = vmax.f32 %v917, 0.0
    %v982 = vmax.f32 %v918, 0.0
    %v983 = vmax.f32 %v919, 0.0
    %v984 = vmax.f32 %v920, 0.0
    %v985 = vmax.f32 %v921, 0.0
    %v986 = vmax.f32 %v922, 0.0
    %v987 = vmax.f32 %v923, 0.0
    %v988 = vmax.f32 %v924, 0.0
    %v989 = vmax.f32 %v925, 0.0
    %v990 = vmax.f32 %v926, 0.0
    %v991 = vmax.f32 %v927, 0.0
    %v992 = vmax.f32 %v928, 0.0
    %v993 = vmax.f32 %v929, 0.0
    %v994 = vmax.f32 %v930, 0.0
    %v995 = vmax.f32 %v931, 0.0
    %v996 = vmax.f32 %v932, 0.0
    %v997 = vmax.f32 %v933, 0.0
    %v998 = vmax.f32 %v934, 0.0
    %v999 = vmax.f32 %v935, 0.0
    %v1000 = vmax.f32 %v936, 0.0
    %v1001 = vmax.f32 %v937, 0.0
    %v1002 = vmax.f32 %v938, 0.0
    %v1003 = vmax.f32 %v939, 0.0
    %v1004 = vmax.f32 %v940, 0.0
    %v1005 = vmax.f32 %v941, 0.0
    %v1006 = vmax.f32 %v942, 0.0
    %v1007 = vmax.f32 %v943, 0.0
    %v1008 = vmax.f32 %v944, 0.0
    %v1009 = vmax.f32 %v945, 0.0
    %v1010 = vmax.f32 %v946, 0.0
    %v1011 = vmax.f32 %v947, 0.0
    %v1012 = vmax.f32 %v948, 0.0
    %v1013 = vmax.f32 %v949, 0.0
    %v1014 = vmax.f32 %v950, 0.0
    %v1015 = vmax.f32 %v951, 0.0
    %v1016 = vmax.f32 %v952, 0.0
    %v1017 = vmax.f32 %v953, 0.0
    %v1018 = vmax.f32 %v954, 0.0
    %v1019 = vmax.f32 %v955, 0.0
    %v1020 = vmax.f32 %v956, 0.0
    %v1021 = vmax.f32 %v957, 0.0
    %v1022 = vmax.f32 %v958, 0.0
    %v1023 = vmax.f32 %v959, 0.0
    %v1024 = vmax.f32 %v960, 0.0
    %v1025 = vmax.f32 %v961, 0.0
    %v1026 = vmax.f32 %v962, 0.0
    %v1027 = vmax.f32 %v963, 0.0
    %v1028 = vmax.f32 %v964, 0.0
    %v1029 = vmax.f32 %v965, 0.0
    %v1030 = vmax.f32 %v966, 0.0
    %v1031 = vmax.f32 %v967, 0.0
    %v1032 = vmax.f32 %v968, 0.0
    %v1033 = vpack.c.bf16 %v969, %v969
    %v1034 = vpack.c.bf16 %v970, %v970
    %v1035 = vpack.c.bf16 %v971, %v971
    %v1036 = vpack.c.bf16 %v972, %v972
    %v1037 = vpack.c.bf16 %v973, %v973
    %v1038 = vpack.c.bf16 %v974, %v974
    %v1039 = vpack.c.bf16 %v975, %v975
    %v1040 = vpack.c.bf16 %v976, %v976
    %v1041 = vpack.c.bf16 %v977, %v977
    %v1042 = vpack.c.bf16 %v978, %v978
    %v1043 = vpack.c.bf16 %v979, %v979
    %v1044 = vpack.c.bf16 %v980, %v980
    %v1045 = vpack.c.bf16 %v981, %v981
    %v1046 = vpack.c.bf16 %v982, %v982
    %v1047 = vpack.c.bf16 %v983, %v983
    %v1048 = vpack.c.bf16 %v984, %v984
    %v1049 = vpack.c.bf16 %v985, %v985
    %v1050 = vpack.c.bf16 %v986, %v986
    %v1051 = vpack.c.bf16 %v987, %v987
    %v1052 = vpack.c.bf16 %v988, %v988
    %v1053 = vpack.c.bf16 %v989, %v989
    %v1054 = vpack.c.bf16 %v990, %v990
    %v1055 = vpack.c.bf16 %v991, %v991
    %v1056 = vpack.c.bf16 %v992, %v992
    %v1057 = vpack.c.bf16 %v993, %v993
    %v1058 = vpack.c.bf16 %v994, %v994
    %v1059 = vpack.c.bf16 %v995, %v995
    %v1060 = vpack.c.bf16 %v996, %v996
    %v1061 = vpack.c.bf16 %v997, %v997
    %v1062 = vpack.c.bf16 %v998, %v998
    %v1063 = vpack.c.bf16 %v999, %v999
    %v1064 = vpack.c.bf16 %v1000, %v1000
    %v1065 = vpack.c.bf16 %v1001, %v1001
    %v1066 = vpack.c.bf16 %v1002, %v1002
    %v1067 = vpack.c.bf16 %v1003, %v1003
    %v1068 = vpack.c.bf16 %v1004, %v1004
    %v1069 = vpack.c.bf16 %v1005, %v1005
    %v1070 = vpack.c.bf16 %v1006, %v1006
    %v1071 = vpack.c.bf16 %v1007, %v1007
    %v1072 = vpack.c.bf16 %v1008, %v1008
    %v1073 = vpack.c.bf16 %v1009, %v1009
    %v1074 = vpack.c.bf16 %v1010, %v1010
    %v1075 = vpack.c.bf16 %v1011, %v1011
    %v1076 = vpack.c.bf16 %v1012, %v1012
    %v1077 = vpack.c.bf16 %v1013, %v1013
    %v1078 = vpack.c.bf16 %v1014, %v1014
    %v1079 = vpack.c.bf16 %v1015, %v1015
    %v1080 = vpack.c.bf16 %v1016, %v1016
    %v1081 = vpack.c.bf16 %v1017, %v1017
    %v1082 = vpack.c.bf16 %v1018, %v1018
    %v1083 = vpack.c.bf16 %v1019, %v1019
    %v1084 = vpack.c.bf16 %v1020, %v1020
    %v1085 = vpack.c.bf16 %v1021, %v1021
    %v1086 = vpack.c.bf16 %v1022, %v1022
    %v1087 = vpack.c.bf16 %v1023, %v1023
    %v1088 = vpack.c.bf16 %v1024, %v1024
    %v1089 = vpack.c.bf16 %v1025, %v1025
    %v1090 = vpack.c.bf16 %v1026, %v1026
    %v1091 = vpack.c.bf16 %v1027, %v1027
    %v1092 = vpack.c.bf16 %v1028, %v1028
    %v1093 = vpack.c.bf16 %v1029, %v1029
    %v1094 = vpack.c.bf16 %v1030, %v1030
    %v1095 = vpack.c.bf16 %v1031, %v1031
    %v1096 = vpack.c.bf16 %v1032, %v1032
    %1097 = vst [vmem:[%s4] sm:$0xf] %v1033
    %1098 = vst [vmem:[%s4 + $0x4] sm:$0xf] %v1034
    %1099 = vst [vmem:[%s4 + $0x8] sm:$0xf] %v1035
    %1100 = vst [vmem:[%s4 + $0xc] sm:$0xf] %v1036
    %1101 = vst [vmem:[%s4 + $0x10] sm:$0xf] %v1037
    %1102 = vst [vmem:[%s4 + $0x14] sm:$0xf] %v1038
    %1103 = vst [vmem:[%s4 + $0x18] sm:$0xf] %v1039
    %1104 = vst [vmem:[%s4 + $0x1c] sm:$0xf] %v1040
    %1105 = vst [vmem:[%s4 + $0x20] sm:$0xf] %v1041
    %1106 = vst [vmem:[%s4 + $0x24] sm:$0xf] %v1042
    %1107 = vst [vmem:[%s4 + $0x28] sm:$0xf] %v1043
    %1108 = vst [vmem:[%s4 + $0x2c] sm:$0xf] %v1044
    %1109 = vst [vmem:[%s4 + $0x30] sm:$0xf] %v1045
    %1110 = vst [vmem:[%s4 + $0x34] sm:$0xf] %v1046
    %1111 = vst [vmem:[%s4 + $0x38] sm:$0xf] %v1047
    %1112 = vst [vmem:[%s4 + $0x3c] sm:$0xf] %v1048
    %1113 = vst [vmem:[%s4 + $0x40] sm:$0xf] %v1049
    %1114 = vst [vmem:[%s4 + $0x44] sm:$0xf] %v1050
    %1115 = vst [vmem:[%s4 + $0x48] sm:$0xf] %v1051
    %1116 = vst [vmem:[%s4 + $0x4c] sm:$0xf] %v1052
    %1117 = vst [vmem:[%s4 + $0x50] sm:$0xf] %v1053
    %1118 = vst [vmem:[%s4 + $0x54] sm:$0xf] %v1054
    %1119 = vst [vmem:[%s4 + $0x58] sm:$0xf] %v1055
    %1120 = vst [vmem:[%s4 + $0x5c] sm:$0xf] %v1056
    %1121 = vst [vmem:[%s4 + $0x60] sm:$0xf] %v1057
    %1122 = vst [vmem:[%s4 + $0x64] sm:$0xf] %v1058
    %1123 = vst [vmem:[%s4 + $0x68] sm:$0xf] %v1059
    %1124 = vst [vmem:[%s4 + $0x6c] sm:$0xf] %v1060
    %1125 = vst [vmem:[%s4 + $0x70] sm:$0xf] %v1061
    %1126 = vst [vmem:[%s4 + $0x74] sm:$0xf] %v1062
    %1127 = vst [vmem:[%s4 + $0x78] sm:$0xf] %v1063
    %1128 = vst [vmem:[%s4 + $0x7c] sm:$0xf] %v1064
    %1129 = vst [vmem:[%s4 + $0x80] sm:$0xf] %v1065
    %1130 = vst [vmem:[%s4 + $0x84] sm:$0xf] %v1066
    %1131 = vst [vmem:[%s4 + $0x88] sm:$0xf] %v1067
    %1132 = vst [vmem:[%s4 + $0x8c] sm:$0xf] %v1068
    %1133 = vst [vmem:[%s4 + $0x90] sm:$0xf] %v1069
    %1134 = vst [vmem:[%s4 + $0x94] sm:$0xf] %v1070
    %1135 = vst [vmem:[%s4 + $0x98] sm:$0xf] %v1071
    %1136 = vst [vmem:[%s4 + $0x9c] sm:$0xf] %v1072
    %1137 = vst [vmem:[%s4 + $0xa0] sm:$0xf] %v1073
    %1138 = vst [vmem:[%s4 + $0xa4] sm:$0xf] %v1074
    %1139 = vst [vmem:[%s4 + $0xa8] sm:$0xf] %v1075
    %1140 = vst [vmem:[%s4 + $0xac] sm:$0xf] %v1076
    %1141 = vst [vmem:[%s4 + $0xb0] sm:$0xf] %v1077
    %1142 = vst [vmem:[%s4 + $0xb4] sm:$0xf] %v1078
    %1143 = vst [vmem:[%s4 + $0xb8] sm:$0xf] %v1079
    %1144 = vst [vmem:[%s4 + $0xbc] sm:$0xf] %v1080
    %1145 = vst [vmem:[%s4 + $0xc0] sm:$0xf] %v1081
    %1146 = vst [vmem:[%s4 + $0xc4] sm:$0xf] %v1082
    %1147 = vst [vmem:[%s4 + $0xc8] sm:$0xf] %v1083
    %1148 = vst [vmem:[%s4 + $0xcc] sm:$0xf] %v1084
    %1149 = vst [vmem:[%s4 + $0xd0] sm:$0xf] %v1085
    %1150 = vst [vmem:[%s4 + $0xd4] sm:$0xf] %v1086
    %1151 = vst [vmem:[%s4 + $0xd8] sm:$0xf] %v1087
    %1152 = vst [vmem:[%s4 + $0xdc] sm:$0xf] %v1088
    %1153 = vst [vmem:[%s4 + $0xe0] sm:$0xf] %v1089
    %1154 = vst [vmem:[%s4 + $0xe4] sm:$0xf] %v1090
    %1155 = vst [vmem:[%s4 + $0xe8] sm:$0xf] %v1091
    %1156 = vst [vmem:[%s4 + $0xec] sm:$0xf] %v1092
    %1157 = vst [vmem:[%s4 + $0xf0] sm:$0xf] %v1093
    %1158 = vst [vmem:[%s4 + $0xf4] sm:$0xf] %v1094
    %1159 = vst [vmem:[%s4 + $0xf8] sm:$0xf] %v1095
    %1160 = vst [vmem:[%s4 + $0xfc] sm:$0xf] %v1096
  $region25: #{bottleneck_forward.3} parent=0 // pred_fallthru
    _
  // Predicated region
  $region26: #{bottleneck_forward.3} parent=0 // pred_check
    _
  $region27: #{bottleneck_forward.3} parent=0 // pred_check_branch
    %1162 = sbr.rel (0) target = $region29
  $region28: #{bottleneck_forward.3} parent=0 // pred_region
    _
  $region29: #{bottleneck_forward.3} parent=0 // pred_fallthru
    _
  // Predicated region
  $region30: #{bottleneck_forward.3} parent=0 // pred_check
    _
  $region31: #{bottleneck_forward.3} parent=0 // pred_check_branch
    %1164 = sbr.rel (0) target = $region33
  $region32: #{bottleneck_forward.3} parent=0 // pred_region
    _
  $region33: #{bottleneck_forward.3} parent=0 // pred_fallthru
    _

// kernel: bottleneck_forward.5
$region0: #{bottleneck_forward.5}
  #allocation0 [shape = 'u32[]', space=smem, size = 0x4, offset = 0x4, fixed_abs, tag = 'smem constant byte address 0x4 - core index']
  #allocation1 [shape = 'u32[72,128]{1,0:T(1,128)}', space=vmem, size = 0x9000, scoped, tag = 'internal scratch']
  #allocation2 [shape = 'f32[512,128]{1,0:T(8,128)}', space=vmem, size = 0x40000, scoped, tag = 'scratch operand']
  %s0 = inlined_call_operand.vmem [shape: bf16[512,128], index: 0, kind: input, shape index: {}]
  %s1 = inlined_call_operand.vmem [shape: bf16[128,128], index: 1, kind: input, shape index: {}]
  %s2 = inlined_call_operand.vmem [shape: f32[1,128], index: 2, kind: input, shape index: {}]
  %s3 = inlined_call_operand.vmem [shape: f32[1,128], index: 3, kind: input, shape index: {}]
  %s4 = inlined_call_operand.vmem [shape: bf16[512,128], index: 4, kind: input, shape index: {}]
  %s5 = inlined_call_operand.vmem [shape: bf16[128,128], index: 5, kind: input, shape index: {}]
  %s6 = inlined_call_operand.vmem [shape: f32[1,128], index: 6, kind: input, shape index: {}]
  %s7 = inlined_call_operand.vmem [shape: f32[1,128], index: 7, kind: input, shape index: {}]
  %s8 = inlined_call_operand.vmem [shape: bf16[512,128], index: 8, kind: output, shape index: {}]
  %s9 = sld [smem:[#allocation0]]
  $region50: #{bottleneck_forward.5} parent=0
    _
  %s11 = ssub.s32 1, %s9
  %s12 = scalar_select 0, %s11, %s9
  // Predicated region
  $region2: #{bottleneck_forward.5} parent=0 // pred_check
    _
  $region3: #{bottleneck_forward.5} parent=0 // pred_check_branch
    %14 = sbr.rel (0) target = $region5
  $region4: #{bottleneck_forward.5} parent=0 // pred_region
    _
  $region5: #{bottleneck_forward.5} parent=0 // pred_fallthru
    _
  // Predicated region
  $region6: #{bottleneck_forward.5} parent=0 // pred_check
    _
  $region7: #{bottleneck_forward.5} parent=0 // pred_check_branch
    %16 = sbr.rel (0) target = $region9
  $region8: #{bottleneck_forward.5} parent=0 // pred_region
    _
  $region9: #{bottleneck_forward.5} parent=0 // pred_fallthru
    _
  // Predicated region
  $region10: #{bottleneck_forward.5} parent=0 // pred_check
    _
  $region11: #{bottleneck_forward.5} parent=0 // pred_check_branch
    %18 = sbr.rel (0) target = $region13
  $region12: #{bottleneck_forward.5} parent=0 // pred_region
    _
  $region13: #{bottleneck_forward.5} parent=0 // pred_fallthru
    _
  // Predicated region
  $region14: #{bottleneck_forward.5} parent=0 // pred_check
    _
  $region15: #{bottleneck_forward.5} parent=0 // pred_check_branch
    %20 = sbr.rel (0) target = $region17
  $region16: #{bottleneck_forward.5} parent=0 // pred_region
    _
  $region17: #{bottleneck_forward.5} parent=0 // pred_fallthru
    _
  // Predicated region
  $region18: #{bottleneck_forward.5} parent=0 // pred_check
    _
  $region19: #{bottleneck_forward.5} parent=0 // pred_check_branch
    %22 = sbr.rel (0) target = $region21
  $region20: #{bottleneck_forward.5} parent=0 // pred_region
    _
  $region21: #{bottleneck_forward.5} parent=0 // pred_fallthru
    _
  // Predicated region
  $region22: #{bottleneck_forward.5} parent=0 // pred_check
    _
  $region23: #{bottleneck_forward.5} parent=0 // pred_check_branch
    %24 = sbr.rel (0) target = $region25
  $region24: #{bottleneck_forward.5} parent=0 // pred_region
    _
  $region25: #{bottleneck_forward.5} parent=0 // pred_fallthru
    _
  // Predicated region
  $region26: #{bottleneck_forward.5} parent=0 // pred_check
    _
  $region27: #{bottleneck_forward.5} parent=0 // pred_check_branch
    %26 = sbr.rel (0) target = $region29
  $region28: #{bottleneck_forward.5} parent=0 // pred_region
    _
  $region29: #{bottleneck_forward.5} parent=0 // pred_fallthru
    _
  // Predicated region
  $region30: #{bottleneck_forward.5} parent=0 // pred_check
    _
  $region31: #{bottleneck_forward.5} parent=0 // pred_check_branch
    %28 = sbr.rel (0) target = $region33
  $region32: #{bottleneck_forward.5} parent=0 // pred_region
    _
  $region33: #{bottleneck_forward.5} parent=0 // pred_fallthru
    _
  %p29 = scmp.eq.s32.totalorder 0, 0
  // Predicated region
  $region34: #{bottleneck_forward.5} parent=0 // pred_check
    %p30 = pneg %p29
  $region35: #{bottleneck_forward.5} parent=0 // pred_check_branch
    %32 = sbr.rel (%p30) target = $region37
  $region36: #{bottleneck_forward.5} parent=0 // pred_region
    %33 = vst [vmem:[#allocation2] sm:$0xff] 0.0
    %34 = vst [vmem:[#allocation2 + $0x8] sm:$0xff] 0.0
    %35 = vst [vmem:[#allocation2 + $0x10] sm:$0xff] 0.0
    %36 = vst [vmem:[#allocation2 + $0x18] sm:$0xff] 0.0
    %37 = vst [vmem:[#allocation2 + $0x20] sm:$0xff] 0.0
    %38 = vst [vmem:[#allocation2 + $0x28] sm:$0xff] 0.0
    %39 = vst [vmem:[#allocation2 + $0x30] sm:$0xff] 0.0
    %40 = vst [vmem:[#allocation2 + $0x38] sm:$0xff] 0.0
    %41 = vst [vmem:[#allocation2 + $0x40] sm:$0xff] 0.0
    %42 = vst [vmem:[#allocation2 + $0x48] sm:$0xff] 0.0
    %43 = vst [vmem:[#allocation2 + $0x50] sm:$0xff] 0.0
    %44 = vst [vmem:[#allocation2 + $0x58] sm:$0xff] 0.0
    %45 = vst [vmem:[#allocation2 + $0x60] sm:$0xff] 0.0
    %46 = vst [vmem:[#allocation2 + $0x68] sm:$0xff] 0.0
    %47 = vst [vmem:[#allocation2 + $0x70] sm:$0xff] 0.0
    %48 = vst [vmem:[#allocation2 + $0x78] sm:$0xff] 0.0
    %49 = vst [vmem:[#allocation2 + $0x80] sm:$0xff] 0.0
    %50 = vst [vmem:[#allocation2 + $0x88] sm:$0xff] 0.0
    %51 = vst [vmem:[#allocation2 + $0x90] sm:$0xff] 0.0
    %52 = vst [vmem:[#allocation2 + $0x98] sm:$0xff] 0.0
    %53 = vst [vmem:[#allocation2 + $0xa0] sm:$0xff] 0.0
    %54 = vst [vmem:[#allocation2 + $0xa8] sm:$0xff] 0.0
    %55 = vst [vmem:[#allocation2 + $0xb0] sm:$0xff] 0.0
    %56 = vst [vmem:[#allocation2 + $0xb8] sm:$0xff] 0.0
    %57 = vst [vmem:[#allocation2 + $0xc0] sm:$0xff] 0.0
    %58 = vst [vmem:[#allocation2 + $0xc8] sm:$0xff] 0.0
    %59 = vst [vmem:[#allocation2 + $0xd0] sm:$0xff] 0.0
    %60 = vst [vmem:[#allocation2 + $0xd8] sm:$0xff] 0.0
    %61 = vst [vmem:[#allocation2 + $0xe0] sm:$0xff] 0.0
    %62 = vst [vmem:[#allocation2 + $0xe8] sm:$0xff] 0.0
    %63 = vst [vmem:[#allocation2 + $0xf0] sm:$0xff] 0.0
    %64 = vst [vmem:[#allocation2 + $0xf8] sm:$0xff] 0.0
    %65 = vst [vmem:[#allocation2 + $0x100] sm:$0xff] 0.0
    %66 = vst [vmem:[#allocation2 + $0x108] sm:$0xff] 0.0
    %67 = vst [vmem:[#allocation2 + $0x110] sm:$0xff] 0.0
    %68 = vst [vmem:[#allocation2 + $0x118] sm:$0xff] 0.0
    %69 = vst [vmem:[#allocation2 + $0x120] sm:$0xff] 0.0
    %70 = vst [vmem:[#allocation2 + $0x128] sm:$0xff] 0.0
    %71 = vst [vmem:[#allocation2 + $0x130] sm:$0xff] 0.0
    %72 = vst [vmem:[#allocation2 + $0x138] sm:$0xff] 0.0
    %73 = vst [vmem:[#allocation2 + $0x140] sm:$0xff] 0.0
    %74 = vst [vmem:[#allocation2 + $0x148] sm:$0xff] 0.0
    %75 = vst [vmem:[#allocation2 + $0x150] sm:$0xff] 0.0
    %76 = vst [vmem:[#allocation2 + $0x158] sm:$0xff] 0.0
    %77 = vst [vmem:[#allocation2 + $0x160] sm:$0xff] 0.0
    %78 = vst [vmem:[#allocation2 + $0x168] sm:$0xff] 0.0
    %79 = vst [vmem:[#allocation2 + $0x170] sm:$0xff] 0.0
    %80 = vst [vmem:[#allocation2 + $0x178] sm:$0xff] 0.0
    %81 = vst [vmem:[#allocation2 + $0x180] sm:$0xff] 0.0
    %82 = vst [vmem:[#allocation2 + $0x188] sm:$0xff] 0.0
    %83 = vst [vmem:[#allocation2 + $0x190] sm:$0xff] 0.0
    %84 = vst [vmem:[#allocation2 + $0x198] sm:$0xff] 0.0
    %85 = vst [vmem:[#allocation2 + $0x1a0] sm:$0xff] 0.0
    %86 = vst [vmem:[#allocation2 + $0x1a8] sm:$0xff] 0.0
    %87 = vst [vmem:[#allocation2 + $0x1b0] sm:$0xff] 0.0
    %88 = vst [vmem:[#allocation2 + $0x1b8] sm:$0xff] 0.0
    %89 = vst [vmem:[#allocation2 + $0x1c0] sm:$0xff] 0.0
    %90 = vst [vmem:[#allocation2 + $0x1c8] sm:$0xff] 0.0
    %91 = vst [vmem:[#allocation2 + $0x1d0] sm:$0xff] 0.0
    %92 = vst [vmem:[#allocation2 + $0x1d8] sm:$0xff] 0.0
    %93 = vst [vmem:[#allocation2 + $0x1e0] sm:$0xff] 0.0
    %94 = vst [vmem:[#allocation2 + $0x1e8] sm:$0xff] 0.0
    %95 = vst [vmem:[#allocation2 + $0x1f0] sm:$0xff] 0.0
    %96 = vst [vmem:[#allocation2 + $0x1f8] sm:$0xff] 0.0
  $region37: #{bottleneck_forward.5} parent=0 // pred_fallthru
    _
  %v97 = vld [vmem:[#allocation2] sm:$0xff]
  %v98 = vld [vmem:[#allocation2 + $0x8] sm:$0xff]
  %v99 = vld [vmem:[#allocation2 + $0x10] sm:$0xff]
  %v100 = vld [vmem:[#allocation2 + $0x18] sm:$0xff]
  %v101 = vld [vmem:[#allocation2 + $0x20] sm:$0xff]
  %v102 = vld [vmem:[#allocation2 + $0x28] sm:$0xff]
  %v103 = vld [vmem:[#allocation2 + $0x30] sm:$0xff]
  %v104 = vld [vmem:[#allocation2 + $0x38] sm:$0xff]
  %v105 = vld [vmem:[#allocation2 + $0x40] sm:$0xff]
  %v106 = vld [vmem:[#allocation2 + $0x48] sm:$0xff]
  %v107 = vld [vmem:[#allocation2 + $0x50] sm:$0xff]
  %v108 = vld [vmem:[#allocation2 + $0x58] sm:$0xff]
  %v109 = vld [vmem:[#allocation2 + $0x60] sm:$0xff]
  %v110 = vld [vmem:[#allocation2 + $0x68] sm:$0xff]
  %v111 = vld [vmem:[#allocation2 + $0x70] sm:$0xff]
  %v112 = vld [vmem:[#allocation2 + $0x78] sm:$0xff]
  %v113 = vld [vmem:[#allocation2 + $0x80] sm:$0xff]
  %v114 = vld [vmem:[#allocation2 + $0x88] sm:$0xff]
  %v115 = vld [vmem:[#allocation2 + $0x90] sm:$0xff]
  %v116 = vld [vmem:[#allocation2 + $0x98] sm:$0xff]
  %v117 = vld [vmem:[#allocation2 + $0xa0] sm:$0xff]
  %v118 = vld [vmem:[#allocation2 + $0xa8] sm:$0xff]
  %v119 = vld [vmem:[#allocation2 + $0xb0] sm:$0xff]
  %v120 = vld [vmem:[#allocation2 + $0xb8] sm:$0xff]
  %v121 = vld [vmem:[#allocation2 + $0xc0] sm:$0xff]
  %v122 = vld [vmem:[#allocation2 + $0xc8] sm:$0xff]
  %v123 = vld [vmem:[#allocation2 + $0xd0] sm:$0xff]
  %v124 = vld [vmem:[#allocation2 + $0xd8] sm:$0xff]
  %v125 = vld [vmem:[#allocation2 + $0xe0] sm:$0xff]
  %v126 = vld [vmem:[#allocation2 + $0xe8] sm:$0xff]
  %v127 = vld [vmem:[#allocation2 + $0xf0] sm:$0xff]
  %v128 = vld [vmem:[#allocation2 + $0xf8] sm:$0xff]
  %v129 = vld [vmem:[#allocation2 + $0x100] sm:$0xff]
  %v130 = vld [vmem:[#allocation2 + $0x108] sm:$0xff]
  %v131 = vld [vmem:[#allocation2 + $0x110] sm:$0xff]
  %v132 = vld [vmem:[#allocation2 + $0x118] sm:$0xff]
  %v133 = vld [vmem:[#allocation2 + $0x120] sm:$0xff]
  %v134 = vld [vmem:[#allocation2 + $0x128] sm:$0xff]
  %v135 = vld [vmem:[#allocation2 + $0x130] sm:$0xff]
  %v136 = vld [vmem:[#allocation2 + $0x138] sm:$0xff]
  %v137 = vld [vmem:[#allocation2 + $0x140] sm:$0xff]
  %v138 = vld [vmem:[#allocation2 + $0x148] sm:$0xff]
  %v139 = vld [vmem:[#allocation2 + $0x150] sm:$0xff]
  %v140 = vld [vmem:[#allocation2 + $0x158] sm:$0xff]
  %v141 = vld [vmem:[#allocation2 + $0x160] sm:$0xff]
  %v142 = vld [vmem:[#allocation2 + $0x168] sm:$0xff]
  %v143 = vld [vmem:[#allocation2 + $0x170] sm:$0xff]
  %v144 = vld [vmem:[#allocation2 + $0x178] sm:$0xff]
  %v145 = vld [vmem:[#allocation2 + $0x180] sm:$0xff]
  %v146 = vld [vmem:[#allocation2 + $0x188] sm:$0xff]
  %v147 = vld [vmem:[#allocation2 + $0x190] sm:$0xff]
  %v148 = vld [vmem:[#allocation2 + $0x198] sm:$0xff]
  %v149 = vld [vmem:[#allocation2 + $0x1a0] sm:$0xff]
  %v150 = vld [vmem:[#allocation2 + $0x1a8] sm:$0xff]
  %v151 = vld [vmem:[#allocation2 + $0x1b0] sm:$0xff]
  %v152 = vld [vmem:[#allocation2 + $0x1b8] sm:$0xff]
  %v153 = vld [vmem:[#allocation2 + $0x1c0] sm:$0xff]
  %v154 = vld [vmem:[#allocation2 + $0x1c8] sm:$0xff]
  %v155 = vld [vmem:[#allocation2 + $0x1d0] sm:$0xff]
  %v156 = vld [vmem:[#allocation2 + $0x1d8] sm:$0xff]
  %v157 = vld [vmem:[#allocation2 + $0x1e0] sm:$0xff]
  %v158 = vld [vmem:[#allocation2 + $0x1e8] sm:$0xff]
  %v159 = vld [vmem:[#allocation2 + $0x1f0] sm:$0xff]
  %v160 = vld [vmem:[#allocation2 + $0x1f8] sm:$0xff]
  %v161 = vld [vmem:[%s0] sm:$0xf]
  %v162 = vld [vmem:[%s0 + $0x4] sm:$0xf]
  %v163 = vld [vmem:[%s0 + $0x8] sm:$0xf]
  %v164 = vld [vmem:[%s0 + $0xc] sm:$0xf]
  %v165 = vld [vmem:[%s0 + $0x10] sm:$0xf]
  %v166 = vld [vmem:[%s0 + $0x14] sm:$0xf]
  %v167 = vld [vmem:[%s0 + $0x18] sm:$0xf]
  %v168 = vld [vmem:[%s0 + $0x1c] sm:$0xf]
  %v169 = vld [vmem:[%s0 + $0x20] sm:$0xf]
  %v170 = vld [vmem:[%s0 + $0x24] sm:$0xf]
  %v171 = vld [vmem:[%s0 + $0x28] sm:$0xf]
  %v172 = vld [vmem:[%s0 + $0x2c] sm:$0xf]
  %v173 = vld [vmem:[%s0 + $0x30] sm:$0xf]
  %v174 = vld [vmem:[%s0 + $0x34] sm:$0xf]
  %v175 = vld [vmem:[%s0 + $0x38] sm:$0xf]
  %v176 = vld [vmem:[%s0 + $0x3c] sm:$0xf]
  %v177 = vld [vmem:[%s0 + $0x40] sm:$0xf]
  %v178 = vld [vmem:[%s0 + $0x44] sm:$0xf]
  %v179 = vld [vmem:[%s0 + $0x48] sm:$0xf]
  %v180 = vld [vmem:[%s0 + $0x4c] sm:$0xf]
  %v181 = vld [vmem:[%s0 + $0x50] sm:$0xf]
  %v182 = vld [vmem:[%s0 + $0x54] sm:$0xf]
  %v183 = vld [vmem:[%s0 + $0x58] sm:$0xf]
  %v184 = vld [vmem:[%s0 + $0x5c] sm:$0xf]
  %v185 = vld [vmem:[%s0 + $0x60] sm:$0xf]
  %v186 = vld [vmem:[%s0 + $0x64] sm:$0xf]
  %v187 = vld [vmem:[%s0 + $0x68] sm:$0xf]
  %v188 = vld [vmem:[%s0 + $0x6c] sm:$0xf]
  %v189 = vld [vmem:[%s0 + $0x70] sm:$0xf]
  %v190 = vld [vmem:[%s0 + $0x74] sm:$0xf]
  %v191 = vld [vmem:[%s0 + $0x78] sm:$0xf]
  %v192 = vld [vmem:[%s0 + $0x7c] sm:$0xf]
  %v193 = vld [vmem:[%s0 + $0x80] sm:$0xf]
  %v194 = vld [vmem:[%s0 + $0x84] sm:$0xf]
  %v195 = vld [vmem:[%s0 + $0x88] sm:$0xf]
  %v196 = vld [vmem:[%s0 + $0x8c] sm:$0xf]
  %v197 = vld [vmem:[%s0 + $0x90] sm:$0xf]
  %v198 = vld [vmem:[%s0 + $0x94] sm:$0xf]
  %v199 = vld [vmem:[%s0 + $0x98] sm:$0xf]
  %v200 = vld [vmem:[%s0 + $0x9c] sm:$0xf]
  %v201 = vld [vmem:[%s0 + $0xa0] sm:$0xf]
  %v202 = vld [vmem:[%s0 + $0xa4] sm:$0xf]
  %v203 = vld [vmem:[%s0 + $0xa8] sm:$0xf]
  %v204 = vld [vmem:[%s0 + $0xac] sm:$0xf]
  %v205 = vld [vmem:[%s0 + $0xb0] sm:$0xf]
  %v206 = vld [vmem:[%s0 + $0xb4] sm:$0xf]
  %v207 = vld [vmem:[%s0 + $0xb8] sm:$0xf]
  %v208 = vld [vmem:[%s0 + $0xbc] sm:$0xf]
  %v209 = vld [vmem:[%s0 + $0xc0] sm:$0xf]
  %v210 = vld [vmem:[%s0 + $0xc4] sm:$0xf]
  %v211 = vld [vmem:[%s0 + $0xc8] sm:$0xf]
  %v212 = vld [vmem:[%s0 + $0xcc] sm:$0xf]
  %v213 = vld [vmem:[%s0 + $0xd0] sm:$0xf]
  %v214 = vld [vmem:[%s0 + $0xd4] sm:$0xf]
  %v215 = vld [vmem:[%s0 + $0xd8] sm:$0xf]
  %v216 = vld [vmem:[%s0 + $0xdc] sm:$0xf]
  %v217 = vld [vmem:[%s0 + $0xe0] sm:$0xf]
  %v218 = vld [vmem:[%s0 + $0xe4] sm:$0xf]
  %v219 = vld [vmem:[%s0 + $0xe8] sm:$0xf]
  %v220 = vld [vmem:[%s0 + $0xec] sm:$0xf]
  %v221 = vld [vmem:[%s0 + $0xf0] sm:$0xf]
  %v222 = vld [vmem:[%s0 + $0xf4] sm:$0xf]
  %v223 = vld [vmem:[%s0 + $0xf8] sm:$0xf]
  %v224 = vld [vmem:[%s0 + $0xfc] sm:$0xf]
  %v225 = vld [vmem:[%s1] sm:$0xf]
  %v226 = vld [vmem:[%s1 + $0x4] sm:$0xf]
  %v227 = vld [vmem:[%s1 + $0x8] sm:$0xf]
  %v228 = vld [vmem:[%s1 + $0xc] sm:$0xf]
  %v229 = vld [vmem:[%s1 + $0x10] sm:$0xf]
  %v230 = vld [vmem:[%s1 + $0x14] sm:$0xf]
  %v231 = vld [vmem:[%s1 + $0x18] sm:$0xf]
  %v232 = vld [vmem:[%s1 + $0x1c] sm:$0xf]
  %v233 = vld [vmem:[%s1 + $0x20] sm:$0xf]
  %v234 = vld [vmem:[%s1 + $0x24] sm:$0xf]
  %v235 = vld [vmem:[%s1 + $0x28] sm:$0xf]
  %v236 = vld [vmem:[%s1 + $0x2c] sm:$0xf]
  %v237 = vld [vmem:[%s1 + $0x30] sm:$0xf]
  %v238 = vld [vmem:[%s1 + $0x34] sm:$0xf]
  %v239 = vld [vmem:[%s1 + $0x38] sm:$0xf]
  %v240 = vld [vmem:[%s1 + $0x3c] sm:$0xf]
  %v305 = vunpack.c.l.b16 %v161
  %v306 = vunpack.c.l.b16 %v162
  %v307 = vunpack.c.l.b16 %v163
  %v308 = vunpack.c.l.b16 %v164
  %v309 = vunpack.c.l.b16 %v165
  %v310 = vunpack.c.l.b16 %v166
  %v311 = vunpack.c.l.b16 %v167
  %v312 = vunpack.c.l.b16 %v168
  %v313 = vunpack.c.l.b16 %v169
  %v314 = vunpack.c.l.b16 %v170
  %v315 = vunpack.c.l.b16 %v171
  %v316 = vunpack.c.l.b16 %v172
  %v317 = vunpack.c.l.b16 %v173
  %v318 = vunpack.c.l.b16 %v174
  %v319 = vunpack.c.l.b16 %v175
  %v320 = vunpack.c.l.b16 %v176
  %v321 = vunpack.c.l.b16 %v177
  %v322 = vunpack.c.l.b16 %v178
  %v323 = vunpack.c.l.b16 %v179
  %v324 = vunpack.c.l.b16 %v180
  %v325 = vunpack.c.l.b16 %v181
  %v326 = vunpack.c.l.b16 %v182
  %v327 = vunpack.c.l.b16 %v183
  %v328 = vunpack.c.l.b16 %v184
  %v329 = vunpack.c.l.b16 %v185
  %v330 = vunpack.c.l.b16 %v186
  %v331 = vunpack.c.l.b16 %v187
  %v332 = vunpack.c.l.b16 %v188
  %v333 = vunpack.c.l.b16 %v189
  %v334 = vunpack.c.l.b16 %v190
  %v335 = vunpack.c.l.b16 %v191
  %v336 = vunpack.c.l.b16 %v192
  %v337 = vunpack.c.l.b16 %v193
  %v338 = vunpack.c.l.b16 %v194
  %v339 = vunpack.c.l.b16 %v195
  %v340 = vunpack.c.l.b16 %v196
  %v341 = vunpack.c.l.b16 %v197
  %v342 = vunpack.c.l.b16 %v198
  %v343 = vunpack.c.l.b16 %v199
  %v344 = vunpack.c.l.b16 %v200
  %v345 = vunpack.c.l.b16 %v201
  %v346 = vunpack.c.l.b16 %v202
  %v347 = vunpack.c.l.b16 %v203
  %v348 = vunpack.c.l.b16 %v204
  %v349 = vunpack.c.l.b16 %v205
  %v350 = vunpack.c.l.b16 %v206
  %v351 = vunpack.c.l.b16 %v207
  %v352 = vunpack.c.l.b16 %v208
  %v353 = vunpack.c.l.b16 %v209
  %v354 = vunpack.c.l.b16 %v210
  %v355 = vunpack.c.l.b16 %v211
  %v356 = vunpack.c.l.b16 %v212
  %v357 = vunpack.c.l.b16 %v213
  %v358 = vunpack.c.l.b16 %v214
  %v359 = vunpack.c.l.b16 %v215
  %v360 = vunpack.c.l.b16 %v216
  %v361 = vunpack.c.l.b16 %v217
  %v362 = vunpack.c.l.b16 %v218
  %v363 = vunpack.c.l.b16 %v219
  %v364 = vunpack.c.l.b16 %v220
  %v365 = vunpack.c.l.b16 %v221
  %v366 = vunpack.c.l.b16 %v222
  %v367 = vunpack.c.l.b16 %v223
  %v368 = vunpack.c.l.b16 %v224
  %v369 = vpack.c.b16 %v306, %v305
  %v370 = vpack.c.b16 %v308, %v307
  %v371 = vpack.c.b16 %v310, %v309
  %v372 = vpack.c.b16 %v312, %v311
  %v373 = vpack.c.b16 %v314, %v313
  %v374 = vpack.c.b16 %v316, %v315
  %v375 = vpack.c.b16 %v318, %v317
  %v376 = vpack.c.b16 %v320, %v319
  %v377 = vpack.c.b16 %v322, %v321
  %v378 = vpack.c.b16 %v324, %v323
  %v379 = vpack.c.b16 %v326, %v325
  %v380 = vpack.c.b16 %v328, %v327
  %v381 = vpack.c.b16 %v330, %v329
  %v382 = vpack.c.b16 %v332, %v331
  %v383 = vpack.c.b16 %v334, %v333
  %v384 = vpack.c.b16 %v336, %v335
  %v385 = vpack.c.b16 %v338, %v337
  %v386 = vpack.c.b16 %v340, %v339
  %v387 = vpack.c.b16 %v342, %v341
  %v388 = vpack.c.b16 %v344, %v343
  %v389 = vpack.c.b16 %v346, %v345
  %v390 = vpack.c.b16 %v348, %v347
  %v391 = vpack.c.b16 %v350, %v349
  %v392 = vpack.c.b16 %v352, %v351
  %v393 = vpack.c.b16 %v354, %v353
  %v394 = vpack.c.b16 %v356, %v355
  %v395 = vpack.c.b16 %v358, %v357
  %v396 = vpack.c.b16 %v360, %v359
  %v397 = vpack.c.b16 %v362, %v361
  %v398 = vpack.c.b16 %v364, %v363
  %v399 = vpack.c.b16 %v366, %v365
  %v400 = vpack.c.b16 %v368, %v367
  %v449 = vunpack.c.l.b16 %v225
  %v450 = vunpack.c.l.b16 %v226
  %v451 = vunpack.c.l.b16 %v227
  %v452 = vunpack.c.l.b16 %v228
  %v453 = vunpack.c.l.b16 %v229
  %v454 = vunpack.c.l.b16 %v230
  %v455 = vunpack.c.l.b16 %v231
  %v456 = vunpack.c.l.b16 %v232
  %v457 = vunpack.c.l.b16 %v233
  %v458 = vunpack.c.l.b16 %v234
  %v459 = vunpack.c.l.b16 %v235
  %v460 = vunpack.c.l.b16 %v236
  %v461 = vunpack.c.l.b16 %v237
  %v462 = vunpack.c.l.b16 %v238
  %v463 = vunpack.c.l.b16 %v239
  %v464 = vunpack.c.l.b16 %v240
  %v465 = vpack.c.b16 %v450, %v449
  %v466 = vpack.c.b16 %v452, %v451
  %v467 = vpack.c.b16 %v454, %v453
  %v468 = vpack.c.b16 %v456, %v455
  %v469 = vpack.c.b16 %v458, %v457
  %v470 = vpack.c.b16 %v460, %v459
  %v471 = vpack.c.b16 %v462, %v461
  %v472 = vpack.c.b16 %v464, %v463
  %481 = vmatpush.bf16.msra.mxu0 %v472
  %482 = vmatpush.bf16.msra.mxu0 %v471
  %483 = vmatpush.bf16.msra.mxu0 %v470
  %484 = vmatpush.bf16.msra.mxu0 %v469
  %485 = vmatpush.bf16.msra.mxu0 %v468
  %486 = vmatpush.bf16.msra.mxu0 %v467
  %487 = vmatpush.bf16.msra.mxu0 %v466
  %488 = vmatpush.bf16.msra.mxu0 %v465
  %489 = vmatmul.bf16.gmra.mxu0 %v369
  %v490 = vpop.f32.mrf.mxu0
  %v491 = vadd.f32 0.0, %v490
  %v492 = vpop.f32.mrf.mxu0
  %v493 = vadd.f32 0.0, %v492
  %494 = vmatmul.bf16.gmra.mxu0 %v370
  %v495 = vpop.f32.mrf.mxu0
  %v496 = vadd.f32 0.0, %v495
  %v497 = vpop.f32.mrf.mxu0
  %v498 = vadd.f32 0.0, %v497
  %499 = vmatmul.bf16.gmra.mxu0 %v371
  %v500 = vpop.f32.mrf.mxu0
  %v501 = vadd.f32 0.0, %v500
  %v502 = vpop.f32.mrf.mxu0
  %v503 = vadd.f32 0.0, %v502
  %504 = vmatmul.bf16.gmra.mxu0 %v372
  %v505 = vpop.f32.mrf.mxu0
  %v506 = vadd.f32 0.0, %v505
  %v507 = vpop.f32.mrf.mxu0
  %v508 = vadd.f32 0.0, %v507
  %509 = vmatmul.bf16.gmra.mxu0 %v373
  %v510 = vpop.f32.mrf.mxu0
  %v511 = vadd.f32 0.0, %v510
  %v512 = vpop.f32.mrf.mxu0
  %v513 = vadd.f32 0.0, %v512
  %514 = vmatmul.bf16.gmra.mxu0 %v374
  %v515 = vpop.f32.mrf.mxu0
  %v516 = vadd.f32 0.0, %v515
  %v517 = vpop.f32.mrf.mxu0
  %v518 = vadd.f32 0.0, %v517
  %519 = vmatmul.bf16.gmra.mxu0 %v375
  %v520 = vpop.f32.mrf.mxu0
  %v521 = vadd.f32 0.0, %v520
  %v522 = vpop.f32.mrf.mxu0
  %v523 = vadd.f32 0.0, %v522
  %524 = vmatmul.bf16.gmra.mxu0 %v376
  %v525 = vpop.f32.mrf.mxu0
  %v526 = vadd.f32 0.0, %v525
  %v527 = vpop.f32.mrf.mxu0
  %v528 = vadd.f32 0.0, %v527
  %529 = vmatmul.bf16.gmra.mxu0 %v377
  %v530 = vpop.f32.mrf.mxu0
  %v531 = vadd.f32 0.0, %v530
  %v532 = vpop.f32.mrf.mxu0
  %v533 = vadd.f32 0.0, %v532
  %534 = vmatmul.bf16.gmra.mxu0 %v378
  %v535 = vpop.f32.mrf.mxu0
  %v536 = vadd.f32 0.0, %v535
  %v537 = vpop.f32.mrf.mxu0
  %v538 = vadd.f32 0.0, %v537
  %539 = vmatmul.bf16.gmra.mxu0 %v379
  %v540 = vpop.f32.mrf.mxu0
  %v541 = vadd.f32 0.0, %v540
  %v542 = vpop.f32.mrf.mxu0
  %v543 = vadd.f32 0.0, %v542
  %544 = vmatmul.bf16.gmra.mxu0 %v380
  %v545 = vpop.f32.mrf.mxu0
  %v546 = vadd.f32 0.0, %v545
  %v547 = vpop.f32.mrf.mxu0
  %v548 = vadd.f32 0.0, %v547
  %549 = vmatmul.bf16.gmra.mxu0 %v381
  %v550 = vpop.f32.mrf.mxu0
  %v551 = vadd.f32 0.0, %v550
  %v552 = vpop.f32.mrf.mxu0
  %v553 = vadd.f32 0.0, %v552
  %554 = vmatmul.bf16.gmra.mxu0 %v382
  %v555 = vpop.f32.mrf.mxu0
  %v556 = vadd.f32 0.0, %v555
  %v557 = vpop.f32.mrf.mxu0
  %v558 = vadd.f32 0.0, %v557
  %559 = vmatmul.bf16.gmra.mxu0 %v383
  %v560 = vpop.f32.mrf.mxu0
  %v561 = vadd.f32 0.0, %v560
  %v562 = vpop.f32.mrf.mxu0
  %v563 = vadd.f32 0.0, %v562
  %564 = vmatmul.bf16.gmra.mxu0 %v384
  %v565 = vpop.f32.mrf.mxu0
  %v566 = vadd.f32 0.0, %v565
  %v567 = vpop.f32.mrf.mxu0
  %v568 = vadd.f32 0.0, %v567
  %569 = vmatmul.bf16.gmra.mxu0 %v385
  %v570 = vpop.f32.mrf.mxu0
  %v571 = vadd.f32 0.0, %v570
  %v572 = vpop.f32.mrf.mxu0
  %v573 = vadd.f32 0.0, %v572
  %574 = vmatmul.bf16.gmra.mxu0 %v386
  %v575 = vpop.f32.mrf.mxu0
  %v576 = vadd.f32 0.0, %v575
  %v577 = vpop.f32.mrf.mxu0
  %v578 = vadd.f32 0.0, %v577
  %579 = vmatmul.bf16.gmra.mxu0 %v387
  %v580 = vpop.f32.mrf.mxu0
  %v581 = vadd.f32 0.0, %v580
  %v582 = vpop.f32.mrf.mxu0
  %v583 = vadd.f32 0.0, %v582
  %584 = vmatmul.bf16.gmra.mxu0 %v388
  %v585 = vpop.f32.mrf.mxu0
  %v586 = vadd.f32 0.0, %v585
  %v587 = vpop.f32.mrf.mxu0
  %v588 = vadd.f32 0.0, %v587
  %589 = vmatmul.bf16.gmra.mxu0 %v389
  %v590 = vpop.f32.mrf.mxu0
  %v591 = vadd.f32 0.0, %v590
  %v592 = vpop.f32.mrf.mxu0
  %v593 = vadd.f32 0.0, %v592
  %594 = vmatmul.bf16.gmra.mxu0 %v390
  %v595 = vpop.f32.mrf.mxu0
  %v596 = vadd.f32 0.0, %v595
  %v597 = vpop.f32.mrf.mxu0
  %v598 = vadd.f32 0.0, %v597
  %599 = vmatmul.bf16.gmra.mxu0 %v391
  %v600 = vpop.f32.mrf.mxu0
  %v601 = vadd.f32 0.0, %v600
  %v602 = vpop.f32.mrf.mxu0
  %v603 = vadd.f32 0.0, %v602
  %604 = vmatmul.bf16.gmra.mxu0 %v392
  %v605 = vpop.f32.mrf.mxu0
  %v606 = vadd.f32 0.0, %v605
  %v607 = vpop.f32.mrf.mxu0
  %v608 = vadd.f32 0.0, %v607
  %609 = vmatmul.bf16.gmra.mxu0 %v393
  %v610 = vpop.f32.mrf.mxu0
  %v611 = vadd.f32 0.0, %v610
  %v612 = vpop.f32.mrf.mxu0
  %v613 = vadd.f32 0.0, %v612
  %614 = vmatmul.bf16.gmra.mxu0 %v394
  %v615 = vpop.f32.mrf.mxu0
  %v616 = vadd.f32 0.0, %v615
  %v617 = vpop.f32.mrf.mxu0
  %v618 = vadd.f32 0.0, %v617
  %619 = vmatmul.bf16.gmra.mxu0 %v395
  %v620 = vpop.f32.mrf.mxu0
  %v621 = vadd.f32 0.0, %v620
  %v622 = vpop.f32.mrf.mxu0
  %v623 = vadd.f32 0.0, %v622
  %624 = vmatmul.bf16.gmra.mxu0 %v396
  %v625 = vpop.f32.mrf.mxu0
  %v626 = vadd.f32 0.0, %v625
  %v627 = vpop.f32.mrf.mxu0
  %v628 = vadd.f32 0.0, %v627
  %629 = vmatmul.bf16.gmra.mxu0 %v397
  %v630 = vpop.f32.mrf.mxu0
  %v631 = vadd.f32 0.0, %v630
  %v632 = vpop.f32.mrf.mxu0
  %v633 = vadd.f32 0.0, %v632
  %634 = vmatmul.bf16.gmra.mxu0 %v398
  %v635 = vpop.f32.mrf.mxu0
  %v636 = vadd.f32 0.0, %v635
  %v637 = vpop.f32.mrf.mxu0
  %v638 = vadd.f32 0.0, %v637
  %639 = vmatmul.bf16.gmra.mxu0 %v399
  %v640 = vpop.f32.mrf.mxu0
  %v641 = vadd.f32 0.0, %v640
  %v642 = vpop.f32.mrf.mxu0
  %v643 = vadd.f32 0.0, %v642
  %644 = vmatmul.bf16.gmra.mxu0 %v400
  %v645 = vpop.f32.mrf.mxu0
  %v646 = vadd.f32 0.0, %v645
  %v647 = vpop.f32.mrf.mxu0
  %v648 = vadd.f32 0.0, %v647
  %649 = vdwg.mxu0
  %v650 = vadd.f32 %v97, %v491
  %v651 = vadd.f32 %v98, %v493
  %v652 = vadd.f32 %v99, %v496
  %v653 = vadd.f32 %v100, %v498
  %v654 = vadd.f32 %v101, %v501
  %v655 = vadd.f32 %v102, %v503
  %v656 = vadd.f32 %v103, %v506
  %v657 = vadd.f32 %v104, %v508
  %v658 = vadd.f32 %v105, %v511
  %v659 = vadd.f32 %v106, %v513
  %v660 = vadd.f32 %v107, %v516
  %v661 = vadd.f32 %v108, %v518
  %v662 = vadd.f32 %v109, %v521
  %v663 = vadd.f32 %v110, %v523
  %v664 = vadd.f32 %v111, %v526
  %v665 = vadd.f32 %v112, %v528
  %v666 = vadd.f32 %v113, %v531
  %v667 = vadd.f32 %v114, %v533
  %v668 = vadd.f32 %v115, %v536
  %v669 = vadd.f32 %v116, %v538
  %v670 = vadd.f32 %v117, %v541
  %v671 = vadd.f32 %v118, %v543
  %v672 = vadd.f32 %v119, %v546
  %v673 = vadd.f32 %v120, %v548
  %v674 = vadd.f32 %v121, %v551
  %v675 = vadd.f32 %v122, %v553
  %v676 = vadd.f32 %v123, %v556
  %v677 = vadd.f32 %v124, %v558
  %v678 = vadd.f32 %v125, %v561
  %v679 = vadd.f32 %v126, %v563
  %v680 = vadd.f32 %v127, %v566
  %v681 = vadd.f32 %v128, %v568
  %v682 = vadd.f32 %v129, %v571
  %v683 = vadd.f32 %v130, %v573
  %v684 = vadd.f32 %v131, %v576
  %v685 = vadd.f32 %v132, %v578
  %v686 = vadd.f32 %v133, %v581
  %v687 = vadd.f32 %v134, %v583
  %v688 = vadd.f32 %v135, %v586
  %v689 = vadd.f32 %v136, %v588
  %v690 = vadd.f32 %v137, %v591
  %v691 = vadd.f32 %v138, %v593
  %v692 = vadd.f32 %v139, %v596
  %v693 = vadd.f32 %v140, %v598
  %v694 = vadd.f32 %v141, %v601
  %v695 = vadd.f32 %v142, %v603
  %v696 = vadd.f32 %v143, %v606
  %v697 = vadd.f32 %v144, %v608
  %v698 = vadd.f32 %v145, %v611
  %v699 = vadd.f32 %v146, %v613
  %v700 = vadd.f32 %v147, %v616
  %v701 = vadd.f32 %v148, %v618
  %v702 = vadd.f32 %v149, %v621
  %v703 = vadd.f32 %v150, %v623
  %v704 = vadd.f32 %v151, %v626
  %v705 = vadd.f32 %v152, %v628
  %v706 = vadd.f32 %v153, %v631
  %v707 = vadd.f32 %v154, %v633
  %v708 = vadd.f32 %v155, %v636
  %v709 = vadd.f32 %v156, %v638
  %v710 = vadd.f32 %v157, %v641
  %v711 = vadd.f32 %v158, %v643
  %v712 = vadd.f32 %v159, %v646
  %v713 = vadd.f32 %v160, %v648
  %714 = vst [vmem:[#allocation2] sm:$0xff] %v650
  %715 = vst [vmem:[#allocation2 + $0x8] sm:$0xff] %v651
  %716 = vst [vmem:[#allocation2 + $0x10] sm:$0xff] %v652
  %717 = vst [vmem:[#allocation2 + $0x18] sm:$0xff] %v653
  %718 = vst [vmem:[#allocation2 + $0x20] sm:$0xff] %v654
  %719 = vst [vmem:[#allocation2 + $0x28] sm:$0xff] %v655
  %720 = vst [vmem:[#allocation2 + $0x30] sm:$0xff] %v656
  %721 = vst [vmem:[#allocation2 + $0x38] sm:$0xff] %v657
  %722 = vst [vmem:[#allocation2 + $0x40] sm:$0xff] %v658
  %723 = vst [vmem:[#allocation2 + $0x48] sm:$0xff] %v659
  %724 = vst [vmem:[#allocation2 + $0x50] sm:$0xff] %v660
  %725 = vst [vmem:[#allocation2 + $0x58] sm:$0xff] %v661
  %726 = vst [vmem:[#allocation2 + $0x60] sm:$0xff] %v662
  %727 = vst [vmem:[#allocation2 + $0x68] sm:$0xff] %v663
  %728 = vst [vmem:[#allocation2 + $0x70] sm:$0xff] %v664
  %729 = vst [vmem:[#allocation2 + $0x78] sm:$0xff] %v665
  %730 = vst [vmem:[#allocation2 + $0x80] sm:$0xff] %v666
  %731 = vst [vmem:[#allocation2 + $0x88] sm:$0xff] %v667
  %732 = vst [vmem:[#allocation2 + $0x90] sm:$0xff] %v668
  %733 = vst [vmem:[#allocation2 + $0x98] sm:$0xff] %v669
  %734 = vst [vmem:[#allocation2 + $0xa0] sm:$0xff] %v670
  %735 = vst [vmem:[#allocation2 + $0xa8] sm:$0xff] %v671
  %736 = vst [vmem:[#allocation2 + $0xb0] sm:$0xff] %v672
  %737 = vst [vmem:[#allocation2 + $0xb8] sm:$0xff] %v673
  %738 = vst [vmem:[#allocation2 + $0xc0] sm:$0xff] %v674
  %739 = vst [vmem:[#allocation2 + $0xc8] sm:$0xff] %v675
  %740 = vst [vmem:[#allocation2 + $0xd0] sm:$0xff] %v676
  %741 = vst [vmem:[#allocation2 + $0xd8] sm:$0xff] %v677
  %742 = vst [vmem:[#allocation2 + $0xe0] sm:$0xff] %v678
  %743 = vst [vmem:[#allocation2 + $0xe8] sm:$0xff] %v679
  %744 = vst [vmem:[#allocation2 + $0xf0] sm:$0xff] %v680
  %745 = vst [vmem:[#allocation2 + $0xf8] sm:$0xff] %v681
  %746 = vst [vmem:[#allocation2 + $0x100] sm:$0xff] %v682
  %747 = vst [vmem:[#allocation2 + $0x108] sm:$0xff] %v683
  %748 = vst [vmem:[#allocation2 + $0x110] sm:$0xff] %v684
  %749 = vst [vmem:[#allocation2 + $0x118] sm:$0xff] %v685
  %750 = vst [vmem:[#allocation2 + $0x120] sm:$0xff] %v686
  %751 = vst [vmem:[#allocation2 + $0x128] sm:$0xff] %v687
  %752 = vst [vmem:[#allocation2 + $0x130] sm:$0xff] %v688
  %753 = vst [vmem:[#allocation2 + $0x138] sm:$0xff] %v689
  %754 = vst [vmem:[#allocation2 + $0x140] sm:$0xff] %v690
  %755 = vst [vmem:[#allocation2 + $0x148] sm:$0xff] %v691
  %756 = vst [vmem:[#allocation2 + $0x150] sm:$0xff] %v692
  %757 = vst [vmem:[#allocation2 + $0x158] sm:$0xff] %v693
  %758 = vst [vmem:[#allocation2 + $0x160] sm:$0xff] %v694
  %759 = vst [vmem:[#allocation2 + $0x168] sm:$0xff] %v695
  %760 = vst [vmem:[#allocation2 + $0x170] sm:$0xff] %v696
  %761 = vst [vmem:[#allocation2 + $0x178] sm:$0xff] %v697
  %762 = vst [vmem:[#allocation2 + $0x180] sm:$0xff] %v698
  %763 = vst [vmem:[#allocation2 + $0x188] sm:$0xff] %v699
  %764 = vst [vmem:[#allocation2 + $0x190] sm:$0xff] %v700
  %765 = vst [vmem:[#allocation2 + $0x198] sm:$0xff] %v701
  %766 = vst [vmem:[#allocation2 + $0x1a0] sm:$0xff] %v702
  %767 = vst [vmem:[#allocation2 + $0x1a8] sm:$0xff] %v703
  %768 = vst [vmem:[#allocation2 + $0x1b0] sm:$0xff] %v704
  %769 = vst [vmem:[#allocation2 + $0x1b8] sm:$0xff] %v705
  %770 = vst [vmem:[#allocation2 + $0x1c0] sm:$0xff] %v706
  %771 = vst [vmem:[#allocation2 + $0x1c8] sm:$0xff] %v707
  %772 = vst [vmem:[#allocation2 + $0x1d0] sm:$0xff] %v708
  %773 = vst [vmem:[#allocation2 + $0x1d8] sm:$0xff] %v709
  %774 = vst [vmem:[#allocation2 + $0x1e0] sm:$0xff] %v710
  %775 = vst [vmem:[#allocation2 + $0x1e8] sm:$0xff] %v711
  %776 = vst [vmem:[#allocation2 + $0x1f0] sm:$0xff] %v712
  %777 = vst [vmem:[#allocation2 + $0x1f8] sm:$0xff] %v713
  // Predicated region
  $region38: #{bottleneck_forward.5} parent=0 // pred_check
    %p778 = pneg %p29
  $region39: #{bottleneck_forward.5} parent=0 // pred_check_branch
    %780 = sbr.rel (%p778) target = $region41
  $region40: #{bottleneck_forward.5} parent=0 // pred_region
    %v781 = vld [vmem:[#allocation2] sm:$0xff]
    %v782 = vld [vmem:[#allocation2 + $0x8] sm:$0xff]
    %v783 = vld [vmem:[#allocation2 + $0x10] sm:$0xff]
    %v784 = vld [vmem:[#allocation2 + $0x18] sm:$0xff]
    %v785 = vld [vmem:[#allocation2 + $0x20] sm:$0xff]
    %v786 = vld [vmem:[#allocation2 + $0x28] sm:$0xff]
    %v787 = vld [vmem:[#allocation2 + $0x30] sm:$0xff]
    %v788 = vld [vmem:[#allocation2 + $0x38] sm:$0xff]
    %v789 = vld [vmem:[#allocation2 + $0x40] sm:$0xff]
    %v790 = vld [vmem:[#allocation2 + $0x48] sm:$0xff]
    %v791 = vld [vmem:[#allocation2 + $0x50] sm:$0xff]
    %v792 = vld [vmem:[#allocation2 + $0x58] sm:$0xff]
    %v793 = vld [vmem:[#allocation2 + $0x60] sm:$0xff]
    %v794 = vld [vmem:[#allocation2 + $0x68] sm:$0xff]
    %v795 = vld [vmem:[#allocation2 + $0x70] sm:$0xff]
    %v796 = vld [vmem:[#allocation2 + $0x78] sm:$0xff]
    %v797 = vld [vmem:[#allocation2 + $0x80] sm:$0xff]
    %v798 = vld [vmem:[#allocation2 + $0x88] sm:$0xff]
    %v799 = vld [vmem:[#allocation2 + $0x90] sm:$0xff]
    %v800 = vld [vmem:[#allocation2 + $0x98] sm:$0xff]
    %v801 = vld [vmem:[#allocation2 + $0xa0] sm:$0xff]
    %v802 = vld [vmem:[#allocation2 + $0xa8] sm:$0xff]
    %v803 = vld [vmem:[#allocation2 + $0xb0] sm:$0xff]
    %v804 = vld [vmem:[#allocation2 + $0xb8] sm:$0xff]
    %v805 = vld [vmem:[#allocation2 + $0xc0] sm:$0xff]
    %v806 = vld [vmem:[#allocation2 + $0xc8] sm:$0xff]
    %v807 = vld [vmem:[#allocation2 + $0xd0] sm:$0xff]
    %v808 = vld [vmem:[#allocation2 + $0xd8] sm:$0xff]
    %v809 = vld [vmem:[#allocation2 + $0xe0] sm:$0xff]
    %v810 = vld [vmem:[#allocation2 + $0xe8] sm:$0xff]
    %v811 = vld [vmem:[#allocation2 + $0xf0] sm:$0xff]
    %v812 = vld [vmem:[#allocation2 + $0xf8] sm:$0xff]
    %v813 = vld [vmem:[#allocation2 + $0x100] sm:$0xff]
    %v814 = vld [vmem:[#allocation2 + $0x108] sm:$0xff]
    %v815 = vld [vmem:[#allocation2 + $0x110] sm:$0xff]
    %v816 = vld [vmem:[#allocation2 + $0x118] sm:$0xff]
    %v817 = vld [vmem:[#allocation2 + $0x120] sm:$0xff]
    %v818 = vld [vmem:[#allocation2 + $0x128] sm:$0xff]
    %v819 = vld [vmem:[#allocation2 + $0x130] sm:$0xff]
    %v820 = vld [vmem:[#allocation2 + $0x138] sm:$0xff]
    %v821 = vld [vmem:[#allocation2 + $0x140] sm:$0xff]
    %v822 = vld [vmem:[#allocation2 + $0x148] sm:$0xff]
    %v823 = vld [vmem:[#allocation2 + $0x150] sm:$0xff]
    %v824 = vld [vmem:[#allocation2 + $0x158] sm:$0xff]
    %v825 = vld [vmem:[#allocation2 + $0x160] sm:$0xff]
    %v826 = vld [vmem:[#allocation2 + $0x168] sm:$0xff]
    %v827 = vld [vmem:[#allocation2 + $0x170] sm:$0xff]
    %v828 = vld [vmem:[#allocation2 + $0x178] sm:$0xff]
    %v829 = vld [vmem:[#allocation2 + $0x180] sm:$0xff]
    %v830 = vld [vmem:[#allocation2 + $0x188] sm:$0xff]
    %v831 = vld [vmem:[#allocation2 + $0x190] sm:$0xff]
    %v832 = vld [vmem:[#allocation2 + $0x198] sm:$0xff]
    %v833 = vld [vmem:[#allocation2 + $0x1a0] sm:$0xff]
    %v834 = vld [vmem:[#allocation2 + $0x1a8] sm:$0xff]
    %v835 = vld [vmem:[#allocation2 + $0x1b0] sm:$0xff]
    %v836 = vld [vmem:[#allocation2 + $0x1b8] sm:$0xff]
    %v837 = vld [vmem:[#allocation2 + $0x1c0] sm:$0xff]
    %v838 = vld [vmem:[#allocation2 + $0x1c8] sm:$0xff]
    %v839 = vld [vmem:[#allocation2 + $0x1d0] sm:$0xff]
    %v840 = vld [vmem:[#allocation2 + $0x1d8] sm:$0xff]
    %v841 = vld [vmem:[#allocation2 + $0x1e0] sm:$0xff]
    %v842 = vld [vmem:[#allocation2 + $0x1e8] sm:$0xff]
    %v843 = vld [vmem:[#allocation2 + $0x1f0] sm:$0xff]
    %v844 = vld [vmem:[#allocation2 + $0x1f8] sm:$0xff]
    %v845 = vld [vmem:[%s2] sm:$0x1]
    %v847 = vperm.slane %v845, 0
    %v849 = vmul.f32 %v781, %v847
    %v850 = vmul.f32 %v782, %v847
    %v851 = vmul.f32 %v783, %v847
    %v852 = vmul.f32 %v784, %v847
    %v853 = vmul.f32 %v785, %v847
    %v854 = vmul.f32 %v786, %v847
    %v855 = vmul.f32 %v787, %v847
    %v856 = vmul.f32 %v788, %v847
    %v857 = vmul.f32 %v789, %v847
    %v858 = vmul.f32 %v790, %v847
    %v859 = vmul.f32 %v791, %v847
    %v860 = vmul.f32 %v792, %v847
    %v861 = vmul.f32 %v793, %v847
    %v862 = vmul.f32 %v794, %v847
    %v863 = vmul.f32 %v795, %v847
    %v864 = vmul.f32 %v796, %v847
    %v865 = vmul.f32 %v797, %v847
    %v866 = vmul.f32 %v798, %v847
    %v867 = vmul.f32 %v799, %v847
    %v868 = vmul.f32 %v800, %v847
    %v869 = vmul.f32 %v801, %v847
    %v870 = vmul.f32 %v802, %v847
    %v871 = vmul.f32 %v803, %v847
    %v872 = vmul.f32 %v804, %v847
    %v873 = vmul.f32 %v805, %v847
    %v874 = vmul.f32 %v806, %v847
    %v875 = vmul.f32 %v807, %v847
    %v876 = vmul.f32 %v808, %v847
    %v877 = vmul.f32 %v809, %v847
    %v878 = vmul.f32 %v810, %v847
    %v879 = vmul.f32 %v811, %v847
    %v880 = vmul.f32 %v812, %v847
    %v881 = vmul.f32 %v813, %v847
    %v882 = vmul.f32 %v814, %v847
    %v883 = vmul.f32 %v815, %v847
    %v884 = vmul.f32 %v816, %v847
    %v885 = vmul.f32 %v817, %v847
    %v886 = vmul.f32 %v818, %v847
    %v887 = vmul.f32 %v819, %v847
    %v888 = vmul.f32 %v820, %v847
    %v889 = vmul.f32 %v821, %v847
    %v890 = vmul.f32 %v822, %v847
    %v891 = vmul.f32 %v823, %v847
    %v892 = vmul.f32 %v824, %v847
    %v893 = vmul.f32 %v825, %v847
    %v894 = vmul.f32 %v826, %v847
    %v895 = vmul.f32 %v827, %v847
    %v896 = vmul.f32 %v828, %v847
    %v897 = vmul.f32 %v829, %v847
    %v898 = vmul.f32 %v830, %v847
    %v899 = vmul.f32 %v831, %v847
    %v900 = vmul.f32 %v832, %v847
    %v901 = vmul.f32 %v833, %v847
    %v902 = vmul.f32 %v834, %v847
    %v903 = vmul.f32 %v835, %v847
    %v904 = vmul.f32 %v836, %v847
    %v905 = vmul.f32 %v837, %v847
    %v906 = vmul.f32 %v838, %v847
    %v907 = vmul.f32 %v839, %v847
    %v908 = vmul.f32 %v840, %v847
    %v909 = vmul.f32 %v841, %v847
    %v910 = vmul.f32 %v842, %v847
    %v911 = vmul.f32 %v843, %v847
    %v912 = vmul.f32 %v844, %v847
    %v913 = vld [vmem:[%s3] sm:$0x1]
    %v915 = vperm.slane %v913, 0
    %v917 = vadd.f32 %v849, %v915
    %v918 = vadd.f32 %v850, %v915
    %v919 = vadd.f32 %v851, %v915
    %v920 = vadd.f32 %v852, %v915
    %v921 = vadd.f32 %v853, %v915
    %v922 = vadd.f32 %v854, %v915
    %v923 = vadd.f32 %v855, %v915
    %v924 = vadd.f32 %v856, %v915
    %v925 = vadd.f32 %v857, %v915
    %v926 = vadd.f32 %v858, %v915
    %v927 = vadd.f32 %v859, %v915
    %v928 = vadd.f32 %v860, %v915
    %v929 = vadd.f32 %v861, %v915
    %v930 = vadd.f32 %v862, %v915
    %v931 = vadd.f32 %v863, %v915
    %v932 = vadd.f32 %v864, %v915
    %v933 = vadd.f32 %v865, %v915
    %v934 = vadd.f32 %v866, %v915
    %v935 = vadd.f32 %v867, %v915
    %v936 = vadd.f32 %v868, %v915
    %v937 = vadd.f32 %v869, %v915
    %v938 = vadd.f32 %v870, %v915
    %v939 = vadd.f32 %v871, %v915
    %v940 = vadd.f32 %v872, %v915
    %v941 = vadd.f32 %v873, %v915
    %v942 = vadd.f32 %v874, %v915
    %v943 = vadd.f32 %v875, %v915
    %v944 = vadd.f32 %v876, %v915
    %v945 = vadd.f32 %v877, %v915
    %v946 = vadd.f32 %v878, %v915
    %v947 = vadd.f32 %v879, %v915
    %v948 = vadd.f32 %v880, %v915
    %v949 = vadd.f32 %v881, %v915
    %v950 = vadd.f32 %v882, %v915
    %v951 = vadd.f32 %v883, %v915
    %v952 = vadd.f32 %v884, %v915
    %v953 = vadd.f32 %v885, %v915
    %v954 = vadd.f32 %v886, %v915
    %v955 = vadd.f32 %v887, %v915
    %v956 = vadd.f32 %v888, %v915
    %v957 = vadd.f32 %v889, %v915
    %v958 = vadd.f32 %v890, %v915
    %v959 = vadd.f32 %v891, %v915
    %v960 = vadd.f32 %v892, %v915
    %v961 = vadd.f32 %v893, %v915
    %v962 = vadd.f32 %v894, %v915
    %v963 = vadd.f32 %v895, %v915
    %v964 = vadd.f32 %v896, %v915
    %v965 = vadd.f32 %v897, %v915
    %v966 = vadd.f32 %v898, %v915
    %v967 = vadd.f32 %v899, %v915
    %v968 = vadd.f32 %v900, %v915
    %v969 = vadd.f32 %v901, %v915
    %v970 = vadd.f32 %v902, %v915
    %v971 = vadd.f32 %v903, %v915
    %v972 = vadd.f32 %v904, %v915
    %v973 = vadd.f32 %v905, %v915
    %v974 = vadd.f32 %v906, %v915
    %v975 = vadd.f32 %v907, %v915
    %v976 = vadd.f32 %v908, %v915
    %v977 = vadd.f32 %v909, %v915
    %v978 = vadd.f32 %v910, %v915
    %v979 = vadd.f32 %v911, %v915
    %v980 = vadd.f32 %v912, %v915
    %v981 = vld [vmem:[%s4] sm:$0xf]
    %v982 = vld [vmem:[%s4 + $0x4] sm:$0xf]
    %v983 = vld [vmem:[%s4 + $0x8] sm:$0xf]
    %v984 = vld [vmem:[%s4 + $0xc] sm:$0xf]
    %v985 = vld [vmem:[%s4 + $0x10] sm:$0xf]
    %v986 = vld [vmem:[%s4 + $0x14] sm:$0xf]
    %v987 = vld [vmem:[%s4 + $0x18] sm:$0xf]
    %v988 = vld [vmem:[%s4 + $0x1c] sm:$0xf]
    %v989 = vld [vmem:[%s4 + $0x20] sm:$0xf]
    %v990 = vld [vmem:[%s4 + $0x24] sm:$0xf]
    %v991 = vld [vmem:[%s4 + $0x28] sm:$0xf]
    %v992 = vld [vmem:[%s4 + $0x2c] sm:$0xf]
    %v993 = vld [vmem:[%s4 + $0x30] sm:$0xf]
    %v994 = vld [vmem:[%s4 + $0x34] sm:$0xf]
    %v995 = vld [vmem:[%s4 + $0x38] sm:$0xf]
    %v996 = vld [vmem:[%s4 + $0x3c] sm:$0xf]
    %v997 = vld [vmem:[%s4 + $0x40] sm:$0xf]
    %v998 = vld [vmem:[%s4 + $0x44] sm:$0xf]
    %v999 = vld [vmem:[%s4 + $0x48] sm:$0xf]
    %v1000 = vld [vmem:[%s4 + $0x4c] sm:$0xf]
    %v1001 = vld [vmem:[%s4 + $0x50] sm:$0xf]
    %v1002 = vld [vmem:[%s4 + $0x54] sm:$0xf]
    %v1003 = vld [vmem:[%s4 + $0x58] sm:$0xf]
    %v1004 = vld [vmem:[%s4 + $0x5c] sm:$0xf]
    %v1005 = vld [vmem:[%s4 + $0x60] sm:$0xf]
    %v1006 = vld [vmem:[%s4 + $0x64] sm:$0xf]
    %v1007 = vld [vmem:[%s4 + $0x68] sm:$0xf]
    %v1008 = vld [vmem:[%s4 + $0x6c] sm:$0xf]
    %v1009 = vld [vmem:[%s4 + $0x70] sm:$0xf]
    %v1010 = vld [vmem:[%s4 + $0x74] sm:$0xf]
    %v1011 = vld [vmem:[%s4 + $0x78] sm:$0xf]
    %v1012 = vld [vmem:[%s4 + $0x7c] sm:$0xf]
    %v1013 = vld [vmem:[%s4 + $0x80] sm:$0xf]
    %v1014 = vld [vmem:[%s4 + $0x84] sm:$0xf]
    %v1015 = vld [vmem:[%s4 + $0x88] sm:$0xf]
    %v1016 = vld [vmem:[%s4 + $0x8c] sm:$0xf]
    %v1017 = vld [vmem:[%s4 + $0x90] sm:$0xf]
    %v1018 = vld [vmem:[%s4 + $0x94] sm:$0xf]
    %v1019 = vld [vmem:[%s4 + $0x98] sm:$0xf]
    %v1020 = vld [vmem:[%s4 + $0x9c] sm:$0xf]
    %v1021 = vld [vmem:[%s4 + $0xa0] sm:$0xf]
    %v1022 = vld [vmem:[%s4 + $0xa4] sm:$0xf]
    %v1023 = vld [vmem:[%s4 + $0xa8] sm:$0xf]
    %v1024 = vld [vmem:[%s4 + $0xac] sm:$0xf]
    %v1025 = vld [vmem:[%s4 + $0xb0] sm:$0xf]
    %v1026 = vld [vmem:[%s4 + $0xb4] sm:$0xf]
    %v1027 = vld [vmem:[%s4 + $0xb8] sm:$0xf]
    %v1028 = vld [vmem:[%s4 + $0xbc] sm:$0xf]
    %v1029 = vld [vmem:[%s4 + $0xc0] sm:$0xf]
    %v1030 = vld [vmem:[%s4 + $0xc4] sm:$0xf]
    %v1031 = vld [vmem:[%s4 + $0xc8] sm:$0xf]
    %v1032 = vld [vmem:[%s4 + $0xcc] sm:$0xf]
    %v1033 = vld [vmem:[%s4 + $0xd0] sm:$0xf]
    %v1034 = vld [vmem:[%s4 + $0xd4] sm:$0xf]
    %v1035 = vld [vmem:[%s4 + $0xd8] sm:$0xf]
    %v1036 = vld [vmem:[%s4 + $0xdc] sm:$0xf]
    %v1037 = vld [vmem:[%s4 + $0xe0] sm:$0xf]
    %v1038 = vld [vmem:[%s4 + $0xe4] sm:$0xf]
    %v1039 = vld [vmem:[%s4 + $0xe8] sm:$0xf]
    %v1040 = vld [vmem:[%s4 + $0xec] sm:$0xf]
    %v1041 = vld [vmem:[%s4 + $0xf0] sm:$0xf]
    %v1042 = vld [vmem:[%s4 + $0xf4] sm:$0xf]
    %v1043 = vld [vmem:[%s4 + $0xf8] sm:$0xf]
    %v1044 = vld [vmem:[%s4 + $0xfc] sm:$0xf]
    %v1045 = vld [vmem:[%s5] sm:$0xf]
    %v1046 = vld [vmem:[%s5 + $0x4] sm:$0xf]
    %v1047 = vld [vmem:[%s5 + $0x8] sm:$0xf]
    %v1048 = vld [vmem:[%s5 + $0xc] sm:$0xf]
    %v1049 = vld [vmem:[%s5 + $0x10] sm:$0xf]
    %v1050 = vld [vmem:[%s5 + $0x14] sm:$0xf]
    %v1051 = vld [vmem:[%s5 + $0x18] sm:$0xf]
    %v1052 = vld [vmem:[%s5 + $0x1c] sm:$0xf]
    %v1053 = vld [vmem:[%s5 + $0x20] sm:$0xf]
    %v1054 = vld [vmem:[%s5 + $0x24] sm:$0xf]
    %v1055 = vld [vmem:[%s5 + $0x28] sm:$0xf]
    %v1056 = vld [vmem:[%s5 + $0x2c] sm:$0xf]
    %v1057 = vld [vmem:[%s5 + $0x30] sm:$0xf]
    %v1058 = vld [vmem:[%s5 + $0x34] sm:$0xf]
    %v1059 = vld [vmem:[%s5 + $0x38] sm:$0xf]
    %v1060 = vld [vmem:[%s5 + $0x3c] sm:$0xf]
    %v1125 = vunpack.c.l.b16 %v981
    %v1126 = vunpack.c.l.b16 %v982
    %v1127 = vunpack.c.l.b16 %v983
    %v1128 = vunpack.c.l.b16 %v984
    %v1129 = vunpack.c.l.b16 %v985
    %v1130 = vunpack.c.l.b16 %v986
    %v1131 = vunpack.c.l.b16 %v987
    %v1132 = vunpack.c.l.b16 %v988
    %v1133 = vunpack.c.l.b16 %v989
    %v1134 = vunpack.c.l.b16 %v990
    %v1135 = vunpack.c.l.b16 %v991
    %v1136 = vunpack.c.l.b16 %v992
    %v1137 = vunpack.c.l.b16 %v993
    %v1138 = vunpack.c.l.b16 %v994
    %v1139 = vunpack.c.l.b16 %v995
    %v1140 = vunpack.c.l.b16 %v996
    %v1141 = vunpack.c.l.b16 %v997
    %v1142 = vunpack.c.l.b16 %v998
    %v1143 = vunpack.c.l.b16 %v999
    %v1144 = vunpack.c.l.b16 %v1000
    %v1145 = vunpack.c.l.b16 %v1001
    %v1146 = vunpack.c.l.b16 %v1002
    %v1147 = vunpack.c.l.b16 %v1003
    %v1148 = vunpack.c.l.b16 %v1004
    %v1149 = vunpack.c.l.b16 %v1005
    %v1150 = vunpack.c.l.b16 %v1006
    %v1151 = vunpack.c.l.b16 %v1007
    %v1152 = vunpack.c.l.b16 %v1008
    %v1153 = vunpack.c.l.b16 %v1009
    %v1154 = vunpack.c.l.b16 %v1010
    %v1155 = vunpack.c.l.b16 %v1011
    %v1156 = vunpack.c.l.b16 %v1012
    %v1157 = vunpack.c.l.b16 %v1013
    %v1158 = vunpack.c.l.b16 %v1014
    %v1159 = vunpack.c.l.b16 %v1015
    %v1160 = vunpack.c.l.b16 %v1016
    %v1161 = vunpack.c.l.b16 %v1017
    %v1162 = vunpack.c.l.b16 %v1018
    %v1163 = vunpack.c.l.b16 %v1019
    %v1164 = vunpack.c.l.b16 %v1020
    %v1165 = vunpack.c.l.b16 %v1021
    %v1166 = vunpack.c.l.b16 %v1022
    %v1167 = vunpack.c.l.b16 %v1023
    %v1168 = vunpack.c.l.b16 %v1024
    %v1169 = vunpack.c.l.b16 %v1025
    %v1170 = vunpack.c.l.b16 %v1026
    %v1171 = vunpack.c.l.b16 %v1027
    %v1172 = vunpack.c.l.b16 %v1028
    %v1173 = vunpack.c.l.b16 %v1029
    %v1174 = vunpack.c.l.b16 %v1030
    %v1175 = vunpack.c.l.b16 %v1031
    %v1176 = vunpack.c.l.b16 %v1032
    %v1177 = vunpack.c.l.b16 %v1033
    %v1178 = vunpack.c.l.b16 %v1034
    %v1179 = vunpack.c.l.b16 %v1035
    %v1180 = vunpack.c.l.b16 %v1036
    %v1181 = vunpack.c.l.b16 %v1037
    %v1182 = vunpack.c.l.b16 %v1038
    %v1183 = vunpack.c.l.b16 %v1039
    %v1184 = vunpack.c.l.b16 %v1040
    %v1185 = vunpack.c.l.b16 %v1041
    %v1186 = vunpack.c.l.b16 %v1042
    %v1187 = vunpack.c.l.b16 %v1043
    %v1188 = vunpack.c.l.b16 %v1044
    %v1189 = vpack.c.b16 %v1126, %v1125
    %v1190 = vpack.c.b16 %v1128, %v1127
    %v1191 = vpack.c.b16 %v1130, %v1129
    %v1192 = vpack.c.b16 %v1132, %v1131
    %v1193 = vpack.c.b16 %v1134, %v1133
    %v1194 = vpack.c.b16 %v1136, %v1135
    %v1195 = vpack.c.b16 %v1138, %v1137
    %v1196 = vpack.c.b16 %v1140, %v1139
    %v1197 = vpack.c.b16 %v1142, %v1141
    %v1198 = vpack.c.b16 %v1144, %v1143
    %v1199 = vpack.c.b16 %v1146, %v1145
    %v1200 = vpack.c.b16 %v1148, %v1147
    %v1201 = vpack.c.b16 %v1150, %v1149
    %v1202 = vpack.c.b16 %v1152, %v1151
    %v1203 = vpack.c.b16 %v1154, %v1153
    %v1204 = vpack.c.b16 %v1156, %v1155
    %v1205 = vpack.c.b16 %v1158, %v1157
    %v1206 = vpack.c.b16 %v1160, %v1159
    %v1207 = vpack.c.b16 %v1162, %v1161
    %v1208 = vpack.c.b16 %v1164, %v1163
    %v1209 = vpack.c.b16 %v1166, %v1165
    %v1210 = vpack.c.b16 %v1168, %v1167
    %v1211 = vpack.c.b16 %v1170, %v1169
    %v1212 = vpack.c.b16 %v1172, %v1171
    %v1213 = vpack.c.b16 %v1174, %v1173
    %v1214 = vpack.c.b16 %v1176, %v1175
    %v1215 = vpack.c.b16 %v1178, %v1177
    %v1216 = vpack.c.b16 %v1180, %v1179
    %v1217 = vpack.c.b16 %v1182, %v1181
    %v1218 = vpack.c.b16 %v1184, %v1183
    %v1219 = vpack.c.b16 %v1186, %v1185
    %v1220 = vpack.c.b16 %v1188, %v1187
    %v1269 = vunpack.c.l.b16 %v1045
    %v1270 = vunpack.c.l.b16 %v1046
    %v1271 = vunpack.c.l.b16 %v1047
    %v1272 = vunpack.c.l.b16 %v1048
    %v1273 = vunpack.c.l.b16 %v1049
    %v1274 = vunpack.c.l.b16 %v1050
    %v1275 = vunpack.c.l.b16 %v1051
    %v1276 = vunpack.c.l.b16 %v1052
    %v1277 = vunpack.c.l.b16 %v1053
    %v1278 = vunpack.c.l.b16 %v1054
    %v1279 = vunpack.c.l.b16 %v1055
    %v1280 = vunpack.c.l.b16 %v1056
    %v1281 = vunpack.c.l.b16 %v1057
    %v1282 = vunpack.c.l.b16 %v1058
    %v1283 = vunpack.c.l.b16 %v1059
    %v1284 = vunpack.c.l.b16 %v1060
    %v1285 = vpack.c.b16 %v1270, %v1269
    %v1286 = vpack.c.b16 %v1272, %v1271
    %v1287 = vpack.c.b16 %v1274, %v1273
    %v1288 = vpack.c.b16 %v1276, %v1275
    %v1289 = vpack.c.b16 %v1278, %v1277
    %v1290 = vpack.c.b16 %v1280, %v1279
    %v1291 = vpack.c.b16 %v1282, %v1281
    %v1292 = vpack.c.b16 %v1284, %v1283
    %1301 = vmatpush.bf16.msra.mxu0 %v1292
    %1302 = vmatpush.bf16.msra.mxu0 %v1291
    %1303 = vmatpush.bf16.msra.mxu0 %v1290
    %1304 = vmatpush.bf16.msra.mxu0 %v1289
    %1305 = vmatpush.bf16.msra.mxu0 %v1288
    %1306 = vmatpush.bf16.msra.mxu0 %v1287
    %1307 = vmatpush.bf16.msra.mxu0 %v1286
    %1308 = vmatpush.bf16.msra.mxu0 %v1285
    %1309 = vmatmul.bf16.gmra.mxu0 %v1189
    %v1310 = vpop.f32.mrf.mxu0
    %v1311 = vadd.f32 0.0, %v1310
    %v1312 = vpop.f32.mrf.mxu0
    %v1313 = vadd.f32 0.0, %v1312
    %1314 = vmatmul.bf16.gmra.mxu0 %v1190
    %v1315 = vpop.f32.mrf.mxu0
    %v1316 = vadd.f32 0.0, %v1315
    %v1317 = vpop.f32.mrf.mxu0
    %v1318 = vadd.f32 0.0, %v1317
    %1319 = vmatmul.bf16.gmra.mxu0 %v1191
    %v1320 = vpop.f32.mrf.mxu0
    %v1321 = vadd.f32 0.0, %v1320
    %v1322 = vpop.f32.mrf.mxu0
    %v1323 = vadd.f32 0.0, %v1322
    %1324 = vmatmul.bf16.gmra.mxu0 %v1192
    %v1325 = vpop.f32.mrf.mxu0
    %v1326 = vadd.f32 0.0, %v1325
    %v1327 = vpop.f32.mrf.mxu0
    %v1328 = vadd.f32 0.0, %v1327
    %1329 = vmatmul.bf16.gmra.mxu0 %v1193
    %v1330 = vpop.f32.mrf.mxu0
    %v1331 = vadd.f32 0.0, %v1330
    %v1332 = vpop.f32.mrf.mxu0
    %v1333 = vadd.f32 0.0, %v1332
    %1334 = vmatmul.bf16.gmra.mxu0 %v1194
    %v1335 = vpop.f32.mrf.mxu0
    %v1336 = vadd.f32 0.0, %v1335
    %v1337 = vpop.f32.mrf.mxu0
    %v1338 = vadd.f32 0.0, %v1337
    %1339 = vmatmul.bf16.gmra.mxu0 %v1195
    %v1340 = vpop.f32.mrf.mxu0
    %v1341 = vadd.f32 0.0, %v1340
    %v1342 = vpop.f32.mrf.mxu0
    %v1343 = vadd.f32 0.0, %v1342
    %1344 = vmatmul.bf16.gmra.mxu0 %v1196
    %v1345 = vpop.f32.mrf.mxu0
    %v1346 = vadd.f32 0.0, %v1345
    %v1347 = vpop.f32.mrf.mxu0
    %v1348 = vadd.f32 0.0, %v1347
    %1349 = vmatmul.bf16.gmra.mxu0 %v1197
    %v1350 = vpop.f32.mrf.mxu0
    %v1351 = vadd.f32 0.0, %v1350
    %v1352 = vpop.f32.mrf.mxu0
    %v1353 = vadd.f32 0.0, %v1352
    %1354 = vmatmul.bf16.gmra.mxu0 %v1198
    %v1355 = vpop.f32.mrf.mxu0
    %v1356 = vadd.f32 0.0, %v1355
    %v1357 = vpop.f32.mrf.mxu0
    %v1358 = vadd.f32 0.0, %v1357
    %1359 = vmatmul.bf16.gmra.mxu0 %v1199
    %v1360 = vpop.f32.mrf.mxu0
    %v1361 = vadd.f32 0.0, %v1360
    %v1362 = vpop.f32.mrf.mxu0
    %v1363 = vadd.f32 0.0, %v1362
    %1364 = vmatmul.bf16.gmra.mxu0 %v1200
    %v1365 = vpop.f32.mrf.mxu0
    %v1366 = vadd.f32 0.0, %v1365
    %v1367 = vpop.f32.mrf.mxu0
    %v1368 = vadd.f32 0.0, %v1367
    %1369 = vmatmul.bf16.gmra.mxu0 %v1201
    %v1370 = vpop.f32.mrf.mxu0
    %v1371 = vadd.f32 0.0, %v1370
    %v1372 = vpop.f32.mrf.mxu0
    %v1373 = vadd.f32 0.0, %v1372
    %1374 = vmatmul.bf16.gmra.mxu0 %v1202
    %v1375 = vpop.f32.mrf.mxu0
    %v1376 = vadd.f32 0.0, %v1375
    %v1377 = vpop.f32.mrf.mxu0
    %v1378 = vadd.f32 0.0, %v1377
    %1379 = vmatmul.bf16.gmra.mxu0 %v1203
    %v1380 = vpop.f32.mrf.mxu0
    %v1381 = vadd.f32 0.0, %v1380
    %v1382 = vpop.f32.mrf.mxu0
    %v1383 = vadd.f32 0.0, %v1382
    %1384 = vmatmul.bf16.gmra.mxu0 %v1204
    %v1385 = vpop.f32.mrf.mxu0
    %v1386 = vadd.f32 0.0, %v1385
    %v1387 = vpop.f32.mrf.mxu0
    %v1388 = vadd.f32 0.0, %v1387
    %1389 = vmatmul.bf16.gmra.mxu0 %v1205
    %v1390 = vpop.f32.mrf.mxu0
    %v1391 = vadd.f32 0.0, %v1390
    %v1392 = vpop.f32.mrf.mxu0
    %v1393 = vadd.f32 0.0, %v1392
    %1394 = vmatmul.bf16.gmra.mxu0 %v1206
    %v1395 = vpop.f32.mrf.mxu0
    %v1396 = vadd.f32 0.0, %v1395
    %v1397 = vpop.f32.mrf.mxu0
    %v1398 = vadd.f32 0.0, %v1397
    %1399 = vmatmul.bf16.gmra.mxu0 %v1207
    %v1400 = vpop.f32.mrf.mxu0
    %v1401 = vadd.f32 0.0, %v1400
    %v1402 = vpop.f32.mrf.mxu0
    %v1403 = vadd.f32 0.0, %v1402
    %1404 = vmatmul.bf16.gmra.mxu0 %v1208
    %v1405 = vpop.f32.mrf.mxu0
    %v1406 = vadd.f32 0.0, %v1405
    %v1407 = vpop.f32.mrf.mxu0
    %v1408 = vadd.f32 0.0, %v1407
    %1409 = vmatmul.bf16.gmra.mxu0 %v1209
    %v1410 = vpop.f32.mrf.mxu0
    %v1411 = vadd.f32 0.0, %v1410
    %v1412 = vpop.f32.mrf.mxu0
    %v1413 = vadd.f32 0.0, %v1412
    %1414 = vmatmul.bf16.gmra.mxu0 %v1210
    %v1415 = vpop.f32.mrf.mxu0
    %v1416 = vadd.f32 0.0, %v1415
    %v1417 = vpop.f32.mrf.mxu0
    %v1418 = vadd.f32 0.0, %v1417
    %1419 = vmatmul.bf16.gmra.mxu0 %v1211
    %v1420 = vpop.f32.mrf.mxu0
    %v1421 = vadd.f32 0.0, %v1420
    %v1422 = vpop.f32.mrf.mxu0
    %v1423 = vadd.f32 0.0, %v1422
    %1424 = vmatmul.bf16.gmra.mxu0 %v1212
    %v1425 = vpop.f32.mrf.mxu0
    %v1426 = vadd.f32 0.0, %v1425
    %v1427 = vpop.f32.mrf.mxu0
    %v1428 = vadd.f32 0.0, %v1427
    %1429 = vmatmul.bf16.gmra.mxu0 %v1213
    %v1430 = vpop.f32.mrf.mxu0
    %v1431 = vadd.f32 0.0, %v1430
    %v1432 = vpop.f32.mrf.mxu0
    %v1433 = vadd.f32 0.0, %v1432
    %1434 = vmatmul.bf16.gmra.mxu0 %v1214
    %v1435 = vpop.f32.mrf.mxu0
    %v1436 = vadd.f32 0.0, %v1435
    %v1437 = vpop.f32.mrf.mxu0
    %v1438 = vadd.f32 0.0, %v1437
    %1439 = vmatmul.bf16.gmra.mxu0 %v1215
    %v1440 = vpop.f32.mrf.mxu0
    %v1441 = vadd.f32 0.0, %v1440
    %v1442 = vpop.f32.mrf.mxu0
    %v1443 = vadd.f32 0.0, %v1442
    %1444 = vmatmul.bf16.gmra.mxu0 %v1216
    %v1445 = vpop.f32.mrf.mxu0
    %v1446 = vadd.f32 0.0, %v1445
    %v1447 = vpop.f32.mrf.mxu0
    %v1448 = vadd.f32 0.0, %v1447
    %1449 = vmatmul.bf16.gmra.mxu0 %v1217
    %v1450 = vpop.f32.mrf.mxu0
    %v1451 = vadd.f32 0.0, %v1450
    %v1452 = vpop.f32.mrf.mxu0
    %v1453 = vadd.f32 0.0, %v1452
    %1454 = vmatmul.bf16.gmra.mxu0 %v1218
    %v1455 = vpop.f32.mrf.mxu0
    %v1456 = vadd.f32 0.0, %v1455
    %v1457 = vpop.f32.mrf.mxu0
    %v1458 = vadd.f32 0.0, %v1457
    %1459 = vmatmul.bf16.gmra.mxu0 %v1219
    %v1460 = vpop.f32.mrf.mxu0
    %v1461 = vadd.f32 0.0, %v1460
    %v1462 = vpop.f32.mrf.mxu0
    %v1463 = vadd.f32 0.0, %v1462
    %1464 = vmatmul.bf16.gmra.mxu0 %v1220
    %v1465 = vpop.f32.mrf.mxu0
    %v1466 = vadd.f32 0.0, %v1465
    %v1467 = vpop.f32.mrf.mxu0
    %v1468 = vadd.f32 0.0, %v1467
    %1469 = vdwg.mxu0
    %v1470 = vld [vmem:[%s6] sm:$0x1]
    %v1472 = vperm.slane %v1470, 0
    %v1474 = vmul.f32 %v1311, %v1472
    %v1475 = vmul.f32 %v1313, %v1472
    %v1476 = vmul.f32 %v1316, %v1472
    %v1477 = vmul.f32 %v1318, %v1472
    %v1478 = vmul.f32 %v1321, %v1472
    %v1479 = vmul.f32 %v1323, %v1472
    %v1480 = vmul.f32 %v1326, %v1472
    %v1481 = vmul.f32 %v1328, %v1472
    %v1482 = vmul.f32 %v1331, %v1472
    %v1483 = vmul.f32 %v1333, %v1472
    %v1484 = vmul.f32 %v1336, %v1472
    %v1485 = vmul.f32 %v1338, %v1472
    %v1486 = vmul.f32 %v1341, %v1472
    %v1487 = vmul.f32 %v1343, %v1472
    %v1488 = vmul.f32 %v1346, %v1472
    %v1489 = vmul.f32 %v1348, %v1472
    %v1490 = vmul.f32 %v1351, %v1472
    %v1491 = vmul.f32 %v1353, %v1472
    %v1492 = vmul.f32 %v1356, %v1472
    %v1493 = vmul.f32 %v1358, %v1472
    %v1494 = vmul.f32 %v1361, %v1472
    %v1495 = vmul.f32 %v1363, %v1472
    %v1496 = vmul.f32 %v1366, %v1472
    %v1497 = vmul.f32 %v1368, %v1472
    %v1498 = vmul.f32 %v1371, %v1472
    %v1499 = vmul.f32 %v1373, %v1472
    %v1500 = vmul.f32 %v1376, %v1472
    %v1501 = vmul.f32 %v1378, %v1472
    %v1502 = vmul.f32 %v1381, %v1472
    %v1503 = vmul.f32 %v1383, %v1472
    %v1504 = vmul.f32 %v1386, %v1472
    %v1505 = vmul.f32 %v1388, %v1472
    %v1506 = vmul.f32 %v1391, %v1472
    %v1507 = vmul.f32 %v1393, %v1472
    %v1508 = vmul.f32 %v1396, %v1472
    %v1509 = vmul.f32 %v1398, %v1472
    %v1510 = vmul.f32 %v1401, %v1472
    %v1511 = vmul.f32 %v1403, %v1472
    %v1512 = vmul.f32 %v1406, %v1472
    %v1513 = vmul.f32 %v1408, %v1472
    %v1514 = vmul.f32 %v1411, %v1472
    %v1515 = vmul.f32 %v1413, %v1472
    %v1516 = vmul.f32 %v1416, %v1472
    %v1517 = vmul.f32 %v1418, %v1472
    %v1518 = vmul.f32 %v1421, %v1472
    %v1519 = vmul.f32 %v1423, %v1472
    %v1520 = vmul.f32 %v1426, %v1472
    %v1521 = vmul.f32 %v1428, %v1472
    %v1522 = vmul.f32 %v1431, %v1472
    %v1523 = vmul.f32 %v1433, %v1472
    %v1524 = vmul.f32 %v1436, %v1472
    %v1525 = vmul.f32 %v1438, %v1472
    %v1526 = vmul.f32 %v1441, %v1472
    %v1527 = vmul.f32 %v1443, %v1472
    %v1528 = vmul.f32 %v1446, %v1472
    %v1529 = vmul.f32 %v1448, %v1472
    %v1530 = vmul.f32 %v1451, %v1472
    %v1531 = vmul.f32 %v1453, %v1472
    %v1532 = vmul.f32 %v1456, %v1472
    %v1533 = vmul.f32 %v1458, %v1472
    %v1534 = vmul.f32 %v1461, %v1472
    %v1535 = vmul.f32 %v1463, %v1472
    %v1536 = vmul.f32 %v1466, %v1472
    %v1537 = vmul.f32 %v1468, %v1472
    %v1538 = vadd.f32 %v917, %v1474
    %v1539 = vadd.f32 %v918, %v1475
    %v1540 = vadd.f32 %v919, %v1476
    %v1541 = vadd.f32 %v920, %v1477
    %v1542 = vadd.f32 %v921, %v1478
    %v1543 = vadd.f32 %v922, %v1479
    %v1544 = vadd.f32 %v923, %v1480
    %v1545 = vadd.f32 %v924, %v1481
    %v1546 = vadd.f32 %v925, %v1482
    %v1547 = vadd.f32 %v926, %v1483
    %v1548 = vadd.f32 %v927, %v1484
    %v1549 = vadd.f32 %v928, %v1485
    %v1550 = vadd.f32 %v929, %v1486
    %v1551 = vadd.f32 %v930, %v1487
    %v1552 = vadd.f32 %v931, %v1488
    %v1553 = vadd.f32 %v932, %v1489
    %v1554 = vadd.f32 %v933, %v1490
    %v1555 = vadd.f32 %v934, %v1491
    %v1556 = vadd.f32 %v935, %v1492
    %v1557 = vadd.f32 %v936, %v1493
    %v1558 = vadd.f32 %v937, %v1494
    %v1559 = vadd.f32 %v938, %v1495
    %v1560 = vadd.f32 %v939, %v1496
    %v1561 = vadd.f32 %v940, %v1497
    %v1562 = vadd.f32 %v941, %v1498
    %v1563 = vadd.f32 %v942, %v1499
    %v1564 = vadd.f32 %v943, %v1500
    %v1565 = vadd.f32 %v944, %v1501
    %v1566 = vadd.f32 %v945, %v1502
    %v1567 = vadd.f32 %v946, %v1503
    %v1568 = vadd.f32 %v947, %v1504
    %v1569 = vadd.f32 %v948, %v1505
    %v1570 = vadd.f32 %v949, %v1506
    %v1571 = vadd.f32 %v950, %v1507
    %v1572 = vadd.f32 %v951, %v1508
    %v1573 = vadd.f32 %v952, %v1509
    %v1574 = vadd.f32 %v953, %v1510
    %v1575 = vadd.f32 %v954, %v1511
    %v1576 = vadd.f32 %v955, %v1512
    %v1577 = vadd.f32 %v956, %v1513
    %v1578 = vadd.f32 %v957, %v1514
    %v1579 = vadd.f32 %v958, %v1515
    %v1580 = vadd.f32 %v959, %v1516
    %v1581 = vadd.f32 %v960, %v1517
    %v1582 = vadd.f32 %v961, %v1518
    %v1583 = vadd.f32 %v962, %v1519
    %v1584 = vadd.f32 %v963, %v1520
    %v1585 = vadd.f32 %v964, %v1521
    %v1586 = vadd.f32 %v965, %v1522
    %v1587 = vadd.f32 %v966, %v1523
    %v1588 = vadd.f32 %v967, %v1524
    %v1589 = vadd.f32 %v968, %v1525
    %v1590 = vadd.f32 %v969, %v1526
    %v1591 = vadd.f32 %v970, %v1527
    %v1592 = vadd.f32 %v971, %v1528
    %v1593 = vadd.f32 %v972, %v1529
    %v1594 = vadd.f32 %v973, %v1530
    %v1595 = vadd.f32 %v974, %v1531
    %v1596 = vadd.f32 %v975, %v1532
    %v1597 = vadd.f32 %v976, %v1533
    %v1598 = vadd.f32 %v977, %v1534
    %v1599 = vadd.f32 %v978, %v1535
    %v1600 = vadd.f32 %v979, %v1536
    %v1601 = vadd.f32 %v980, %v1537
    %v1602 = vld [vmem:[%s7] sm:$0x1]
    %v1604 = vperm.slane %v1602, 0
    %v1606 = vadd.f32 %v1538, %v1604
    %v1607 = vadd.f32 %v1539, %v1604
    %v1608 = vadd.f32 %v1540, %v1604
    %v1609 = vadd.f32 %v1541, %v1604
    %v1610 = vadd.f32 %v1542, %v1604
    %v1611 = vadd.f32 %v1543, %v1604
    %v1612 = vadd.f32 %v1544, %v1604
    %v1613 = vadd.f32 %v1545, %v1604
    %v1614 = vadd.f32 %v1546, %v1604
    %v1615 = vadd.f32 %v1547, %v1604
    %v1616 = vadd.f32 %v1548, %v1604
    %v1617 = vadd.f32 %v1549, %v1604
    %v1618 = vadd.f32 %v1550, %v1604
    %v1619 = vadd.f32 %v1551, %v1604
    %v1620 = vadd.f32 %v1552, %v1604
    %v1621 = vadd.f32 %v1553, %v1604
    %v1622 = vadd.f32 %v1554, %v1604
    %v1623 = vadd.f32 %v1555, %v1604
    %v1624 = vadd.f32 %v1556, %v1604
    %v1625 = vadd.f32 %v1557, %v1604
    %v1626 = vadd.f32 %v1558, %v1604
    %v1627 = vadd.f32 %v1559, %v1604
    %v1628 = vadd.f32 %v1560, %v1604
    %v1629 = vadd.f32 %v1561, %v1604
    %v1630 = vadd.f32 %v1562, %v1604
    %v1631 = vadd.f32 %v1563, %v1604
    %v1632 = vadd.f32 %v1564, %v1604
    %v1633 = vadd.f32 %v1565, %v1604
    %v1634 = vadd.f32 %v1566, %v1604
    %v1635 = vadd.f32 %v1567, %v1604
    %v1636 = vadd.f32 %v1568, %v1604
    %v1637 = vadd.f32 %v1569, %v1604
    %v1638 = vadd.f32 %v1570, %v1604
    %v1639 = vadd.f32 %v1571, %v1604
    %v1640 = vadd.f32 %v1572, %v1604
    %v1641 = vadd.f32 %v1573, %v1604
    %v1642 = vadd.f32 %v1574, %v1604
    %v1643 = vadd.f32 %v1575, %v1604
    %v1644 = vadd.f32 %v1576, %v1604
    %v1645 = vadd.f32 %v1577, %v1604
    %v1646 = vadd.f32 %v1578, %v1604
    %v1647 = vadd.f32 %v1579, %v1604
    %v1648 = vadd.f32 %v1580, %v1604
    %v1649 = vadd.f32 %v1581, %v1604
    %v1650 = vadd.f32 %v1582, %v1604
    %v1651 = vadd.f32 %v1583, %v1604
    %v1652 = vadd.f32 %v1584, %v1604
    %v1653 = vadd.f32 %v1585, %v1604
    %v1654 = vadd.f32 %v1586, %v1604
    %v1655 = vadd.f32 %v1587, %v1604
    %v1656 = vadd.f32 %v1588, %v1604
    %v1657 = vadd.f32 %v1589, %v1604
    %v1658 = vadd.f32 %v1590, %v1604
    %v1659 = vadd.f32 %v1591, %v1604
    %v1660 = vadd.f32 %v1592, %v1604
    %v1661 = vadd.f32 %v1593, %v1604
    %v1662 = vadd.f32 %v1594, %v1604
    %v1663 = vadd.f32 %v1595, %v1604
    %v1664 = vadd.f32 %v1596, %v1604
    %v1665 = vadd.f32 %v1597, %v1604
    %v1666 = vadd.f32 %v1598, %v1604
    %v1667 = vadd.f32 %v1599, %v1604
    %v1668 = vadd.f32 %v1600, %v1604
    %v1669 = vadd.f32 %v1601, %v1604
    %v1670 = vmax.f32 %v1606, 0.0
    %v1671 = vmax.f32 %v1607, 0.0
    %v1672 = vmax.f32 %v1608, 0.0
    %v1673 = vmax.f32 %v1609, 0.0
    %v1674 = vmax.f32 %v1610, 0.0
    %v1675 = vmax.f32 %v1611, 0.0
    %v1676 = vmax.f32 %v1612, 0.0
    %v1677 = vmax.f32 %v1613, 0.0
    %v1678 = vmax.f32 %v1614, 0.0
    %v1679 = vmax.f32 %v1615, 0.0
    %v1680 = vmax.f32 %v1616, 0.0
    %v1681 = vmax.f32 %v1617, 0.0
    %v1682 = vmax.f32 %v1618, 0.0
    %v1683 = vmax.f32 %v1619, 0.0
    %v1684 = vmax.f32 %v1620, 0.0
    %v1685 = vmax.f32 %v1621, 0.0
    %v1686 = vmax.f32 %v1622, 0.0
    %v1687 = vmax.f32 %v1623, 0.0
    %v1688 = vmax.f32 %v1624, 0.0
    %v1689 = vmax.f32 %v1625, 0.0
    %v1690 = vmax.f32 %v1626, 0.0
    %v1691 = vmax.f32 %v1627, 0.0
    %v1692 = vmax.f32 %v1628, 0.0
    %v1693 = vmax.f32 %v1629, 0.0
    %v1694 = vmax.f32 %v1630, 0.0
    %v1695 = vmax.f32 %v1631, 0.0
    %v1696 = vmax.f32 %v1632, 0.0
    %v1697 = vmax.f32 %v1633, 0.0
    %v1698 = vmax.f32 %v1634, 0.0
    %v1699 = vmax.f32 %v1635, 0.0
    %v1700 = vmax.f32 %v1636, 0.0
    %v1701 = vmax.f32 %v1637, 0.0
    %v1702 = vmax.f32 %v1638, 0.0
    %v1703 = vmax.f32 %v1639, 0.0
    %v1704 = vmax.f32 %v1640, 0.0
    %v1705 = vmax.f32 %v1641, 0.0
    %v1706 = vmax.f32 %v1642, 0.0
    %v1707 = vmax.f32 %v1643, 0.0
    %v1708 = vmax.f32 %v1644, 0.0
    %v1709 = vmax.f32 %v1645, 0.0
    %v1710 = vmax.f32 %v1646, 0.0
    %v1711 = vmax.f32 %v1647, 0.0
    %v1712 = vmax.f32 %v1648, 0.0
    %v1713 = vmax.f32 %v1649, 0.0
    %v1714 = vmax.f32 %v1650, 0.0
    %v1715 = vmax.f32 %v1651, 0.0
    %v1716 = vmax.f32 %v1652, 0.0
    %v1717 = vmax.f32 %v1653, 0.0
    %v1718 = vmax.f32 %v1654, 0.0
    %v1719 = vmax.f32 %v1655, 0.0
    %v1720 = vmax.f32 %v1656, 0.0
    %v1721 = vmax.f32 %v1657, 0.0
    %v1722 = vmax.f32 %v1658, 0.0
    %v1723 = vmax.f32 %v1659, 0.0
    %v1724 = vmax.f32 %v1660, 0.0
    %v1725 = vmax.f32 %v1661, 0.0
    %v1726 = vmax.f32 %v1662, 0.0
    %v1727 = vmax.f32 %v1663, 0.0
    %v1728 = vmax.f32 %v1664, 0.0
    %v1729 = vmax.f32 %v1665, 0.0
    %v1730 = vmax.f32 %v1666, 0.0
    %v1731 = vmax.f32 %v1667, 0.0
    %v1732 = vmax.f32 %v1668, 0.0
    %v1733 = vmax.f32 %v1669, 0.0
    %v1734 = vpack.c.bf16 %v1670, %v1670
    %v1735 = vpack.c.bf16 %v1671, %v1671
    %v1736 = vpack.c.bf16 %v1672, %v1672
    %v1737 = vpack.c.bf16 %v1673, %v1673
    %v1738 = vpack.c.bf16 %v1674, %v1674
    %v1739 = vpack.c.bf16 %v1675, %v1675
    %v1740 = vpack.c.bf16 %v1676, %v1676
    %v1741 = vpack.c.bf16 %v1677, %v1677
    %v1742 = vpack.c.bf16 %v1678, %v1678
    %v1743 = vpack.c.bf16 %v1679, %v1679
    %v1744 = vpack.c.bf16 %v1680, %v1680
    %v1745 = vpack.c.bf16 %v1681, %v1681
    %v1746 = vpack.c.bf16 %v1682, %v1682
    %v1747 = vpack.c.bf16 %v1683, %v1683
    %v1748 = vpack.c.bf16 %v1684, %v1684
    %v1749 = vpack.c.bf16 %v1685, %v1685
    %v1750 = vpack.c.bf16 %v1686, %v1686
    %v1751 = vpack.c.bf16 %v1687, %v1687
    %v1752 = vpack.c.bf16 %v1688, %v1688
    %v1753 = vpack.c.bf16 %v1689, %v1689
    %v1754 = vpack.c.bf16 %v1690, %v1690
    %v1755 = vpack.c.bf16 %v1691, %v1691
    %v1756 = vpack.c.bf16 %v1692, %v1692
    %v1757 = vpack.c.bf16 %v1693, %v1693
    %v1758 = vpack.c.bf16 %v1694, %v1694
    %v1759 = vpack.c.bf16 %v1695, %v1695
    %v1760 = vpack.c.bf16 %v1696, %v1696
    %v1761 = vpack.c.bf16 %v1697, %v1697
    %v1762 = vpack.c.bf16 %v1698, %v1698
    %v1763 = vpack.c.bf16 %v1699, %v1699
    %v1764 = vpack.c.bf16 %v1700, %v1700
    %v1765 = vpack.c.bf16 %v1701, %v1701
    %v1766 = vpack.c.bf16 %v1702, %v1702
    %v1767 = vpack.c.bf16 %v1703, %v1703
    %v1768 = vpack.c.bf16 %v1704, %v1704
    %v1769 = vpack.c.bf16 %v1705, %v1705
    %v1770 = vpack.c.bf16 %v1706, %v1706
    %v1771 = vpack.c.bf16 %v1707, %v1707
    %v1772 = vpack.c.bf16 %v1708, %v1708
    %v1773 = vpack.c.bf16 %v1709, %v1709
    %v1774 = vpack.c.bf16 %v1710, %v1710
    %v1775 = vpack.c.bf16 %v1711, %v1711
    %v1776 = vpack.c.bf16 %v1712, %v1712
    %v1777 = vpack.c.bf16 %v1713, %v1713
    %v1778 = vpack.c.bf16 %v1714, %v1714
    %v1779 = vpack.c.bf16 %v1715, %v1715
    %v1780 = vpack.c.bf16 %v1716, %v1716
    %v1781 = vpack.c.bf16 %v1717, %v1717
    %v1782 = vpack.c.bf16 %v1718, %v1718
    %v1783 = vpack.c.bf16 %v1719, %v1719
    %v1784 = vpack.c.bf16 %v1720, %v1720
    %v1785 = vpack.c.bf16 %v1721, %v1721
    %v1786 = vpack.c.bf16 %v1722, %v1722
    %v1787 = vpack.c.bf16 %v1723, %v1723
    %v1788 = vpack.c.bf16 %v1724, %v1724
    %v1789 = vpack.c.bf16 %v1725, %v1725
    %v1790 = vpack.c.bf16 %v1726, %v1726
    %v1791 = vpack.c.bf16 %v1727, %v1727
    %v1792 = vpack.c.bf16 %v1728, %v1728
    %v1793 = vpack.c.bf16 %v1729, %v1729
    %v1794 = vpack.c.bf16 %v1730, %v1730
    %v1795 = vpack.c.bf16 %v1731, %v1731
    %v1796 = vpack.c.bf16 %v1732, %v1732
    %v1797 = vpack.c.bf16 %v1733, %v1733
    %1798 = vst [vmem:[%s8] sm:$0xf] %v1734
    %1799 = vst [vmem:[%s8 + $0x4] sm:$0xf] %v1735
    %1800 = vst [vmem:[%s8 + $0x8] sm:$0xf] %v1736
    %1801 = vst [vmem:[%s8 + $0xc] sm:$0xf] %v1737
    %1802 = vst [vmem:[%s8 + $0x10] sm:$0xf] %v1738
    %1803 = vst [vmem:[%s8 + $0x14] sm:$0xf] %v1739
    %1804 = vst [vmem:[%s8 + $0x18] sm:$0xf] %v1740
    %1805 = vst [vmem:[%s8 + $0x1c] sm:$0xf] %v1741
    %1806 = vst [vmem:[%s8 + $0x20] sm:$0xf] %v1742
    %1807 = vst [vmem:[%s8 + $0x24] sm:$0xf] %v1743
    %1808 = vst [vmem:[%s8 + $0x28] sm:$0xf] %v1744
    %1809 = vst [vmem:[%s8 + $0x2c] sm:$0xf] %v1745
    %1810 = vst [vmem:[%s8 + $0x30] sm:$0xf] %v1746
    %1811 = vst [vmem:[%s8 + $0x34] sm:$0xf] %v1747
    %1812 = vst [vmem:[%s8 + $0x38] sm:$0xf] %v1748
    %1813 = vst [vmem:[%s8 + $0x3c] sm:$0xf] %v1749
    %1814 = vst [vmem:[%s8 + $0x40] sm:$0xf] %v1750
    %1815 = vst [vmem:[%s8 + $0x44] sm:$0xf] %v1751
    %1816 = vst [vmem:[%s8 + $0x48] sm:$0xf] %v1752
    %1817 = vst [vmem:[%s8 + $0x4c] sm:$0xf] %v1753
    %1818 = vst [vmem:[%s8 + $0x50] sm:$0xf] %v1754
    %1819 = vst [vmem:[%s8 + $0x54] sm:$0xf] %v1755
    %1820 = vst [vmem:[%s8 + $0x58] sm:$0xf] %v1756
    %1821 = vst [vmem:[%s8 + $0x5c] sm:$0xf] %v1757
    %1822 = vst [vmem:[%s8 + $0x60] sm:$0xf] %v1758
    %1823 = vst [vmem:[%s8 + $0x64] sm:$0xf] %v1759
    %1824 = vst [vmem:[%s8 + $0x68] sm:$0xf] %v1760
    %1825 = vst [vmem:[%s8 + $0x6c] sm:$0xf] %v1761
    %1826 = vst [vmem:[%s8 + $0x70] sm:$0xf] %v1762
    %1827 = vst [vmem:[%s8 + $0x74] sm:$0xf] %v1763
    %1828 = vst [vmem:[%s8 + $0x78] sm:$0xf] %v1764
    %1829 = vst [vmem:[%s8 + $0x7c] sm:$0xf] %v1765
    %1830 = vst [vmem:[%s8 + $0x80] sm:$0xf] %v1766
    %1831 = vst [vmem:[%s8 + $0x84] sm:$0xf] %v1767
    %1832 = vst [vmem:[%s8 + $0x88] sm:$0xf] %v1768
    %1833 = vst [vmem:[%s8 + $0x8c] sm:$0xf] %v1769
    %1834 = vst [vmem:[%s8 + $0x90] sm:$0xf] %v1770
    %1835 = vst [vmem:[%s8 + $0x94] sm:$0xf] %v1771
    %1836 = vst [vmem:[%s8 + $0x98] sm:$0xf] %v1772
    %1837 = vst [vmem:[%s8 + $0x9c] sm:$0xf] %v1773
    %1838 = vst [vmem:[%s8 + $0xa0] sm:$0xf] %v1774
    %1839 = vst [vmem:[%s8 + $0xa4] sm:$0xf] %v1775
    %1840 = vst [vmem:[%s8 + $0xa8] sm:$0xf] %v1776
    %1841 = vst [vmem:[%s8 + $0xac] sm:$0xf] %v1777
    %1842 = vst [vmem:[%s8 + $0xb0] sm:$0xf] %v1778
    %1843 = vst [vmem:[%s8 + $0xb4] sm:$0xf] %v1779
    %1844 = vst [vmem:[%s8 + $0xb8] sm:$0xf] %v1780
    %1845 = vst [vmem:[%s8 + $0xbc] sm:$0xf] %v1781
    %1846 = vst [vmem:[%s8 + $0xc0] sm:$0xf] %v1782
    %1847 = vst [vmem:[%s8 + $0xc4] sm:$0xf] %v1783
    %1848 = vst [vmem:[%s8 + $0xc8] sm:$0xf] %v1784
    %1849 = vst [vmem:[%s8 + $0xcc] sm:$0xf] %v1785
    %1850 = vst [vmem:[%s8 + $0xd0] sm:$0xf] %v1786
    %1851 = vst [vmem:[%s8 + $0xd4] sm:$0xf] %v1787
    %1852 = vst [vmem:[%s8 + $0xd8] sm:$0xf] %v1788
    %1853 = vst [vmem:[%s8 + $0xdc] sm:$0xf] %v1789
    %1854 = vst [vmem:[%s8 + $0xe0] sm:$0xf] %v1790
    %1855 = vst [vmem:[%s8 + $0xe4] sm:$0xf] %v1791
    %1856 = vst [vmem:[%s8 + $0xe8] sm:$0xf] %v1792
    %1857 = vst [vmem:[%s8 + $0xec] sm:$0xf] %v1793
    %1858 = vst [vmem:[%s8 + $0xf0] sm:$0xf] %v1794
    %1859 = vst [vmem:[%s8 + $0xf4] sm:$0xf] %v1795
    %1860 = vst [vmem:[%s8 + $0xf8] sm:$0xf] %v1796
    %1861 = vst [vmem:[%s8 + $0xfc] sm:$0xf] %v1797
  $region41: #{bottleneck_forward.5} parent=0 // pred_fallthru
    _
  // Predicated region
  $region42: #{bottleneck_forward.5} parent=0 // pred_check
    _
  $region43: #{bottleneck_forward.5} parent=0 // pred_check_branch
    %1863 = sbr.rel (0) target = $region45
  $region44: #{bottleneck_forward.5} parent=0 // pred_region
    _
  $region45: #{bottleneck_forward.5} parent=0 // pred_fallthru
    _
  // Predicated region
  $region46: #{bottleneck_forward.5} parent=0 // pred_check
    _
  $region47: #{bottleneck_forward.5} parent=0 // pred_check_branch
    %1865 = sbr.rel (0) target = $region49
  $region48: #{bottleneck_forward.5} parent=0 // pred_region
    _
  $region49: #{bottleneck_forward.5} parent=0 // pred_fallthru
    _

// kernel: bottleneck_forward.4
$region0: #{bottleneck_forward.4}
  #allocation0 [shape = 'u32[]', space=smem, size = 0x4, offset = 0x4, fixed_abs, tag = 'smem constant byte address 0x4 - core index']
  #allocation1 [shape = 'u32[72,128]{1,0:T(1,128)}', space=vmem, size = 0x9000, scoped, tag = 'internal scratch']
  #allocation2 [shape = 'bf16[18,18,128]{2,1,0:T(8,128)(2,1)}', space=vmem, size = 0x1b000, scoped, tag = 'scratch operand']
  #allocation3 [shape = 'f32[256,128]{1,0:T(8,128)}', space=vmem, size = 0x20000, scoped, tag = 'scratch operand']
  %s0 = inlined_call_operand.vmem [shape: bf16[2,16,16,128], index: 0, kind: input, shape index: {}]
  %s1 = inlined_call_operand.vmem [shape: bf16[9,128,128], index: 1, kind: input, shape index: {}]
  %s2 = inlined_call_operand.vmem [shape: f32[1,128], index: 2, kind: input, shape index: {}]
  %s3 = inlined_call_operand.vmem [shape: f32[1,128], index: 3, kind: input, shape index: {}]
  %s4 = inlined_call_operand.vmem [shape: bf16[2,16,16,128], index: 4, kind: output, shape index: {}]
  %s5 = sld [smem:[#allocation0]]
  $region53: #{bottleneck_forward.4} parent=0
    _
  %s7 = ssub.s32 1, %s5
  %s8 = scalar_select 0, %s7, %s5
  loop: start=0, step=1, limit=4
  $region2: #{bottleneck_forward.4} parent=0 // loop_pre_header
    _
  $region3: #{bottleneck_forward.4} parent=0 // loop_header
    %s10 = sphi 0, %s14
    %p11 = scmp.ge.s32.totalorder %s10, 4
    %s17 = sphi 0, %s36
    %s18 = sphi 0, %s32
    %s19 = sphi 0, %s28
    %s20 = sphi 0, %s17
    %s21 = sphi 0, %s18
    %s22 = sphi 0, %s19
    %s23 = sphi 0, %s20
    %s24 = sphi 0, %s21
    %s25 = sphi 0, %s22
    %s39 = sphi 0, %s41
    %s42 = sphi 0, %s39
    %s43 = sphi 0, %s42
    %s59 = sphi 0, %s43
    %s65 = sphi 0, %s67
    %s68 = sphi 0, %s65
    %s69 = sphi 0, %s68
    %s85 = sphi 0, %s69
    %s91 = sphi 0, %s93
    %s94 = sphi 0, %s91
    %s95 = sphi 0, %s94
    %s111 = sphi 0, %s95
    %s117 = sphi 0, %s119
    %s120 = sphi 0, %s117
    %s121 = sphi 0, %s120
    %s137 = sphi 0, %s121
    %s147 = sphi 0, %s149
    %s150 = sphi 0, %s147
    %s151 = sphi 0, %s150
    %s167 = sphi 0, %s151
  $region4: #{bottleneck_forward.4} parent=0 // loop_header_branch
    %13 = sbr.rel (%p11) target = $region8
  $region5: #{bottleneck_forward.4} parent=0 // loop_body
    %s15 = ssub.s32 %s10, 1
    %s16 = ssub.s32 %s10, 2
    %s26 = sadd.s32 1, %s19
    %p27 = scmp.ge.s32.totalorder %s26, 1
    %s28 = scalar_select %p27, 0, %s26
    %s29 = sadd.s32 1, %s18
    %s30 = scalar_select %p27, %s29, %s18
    %p31 = scmp.ge.s32.totalorder %s30, 1
    %s32 = scalar_select %p31, 0, %s30
    %s33 = sadd.s32 1, %s17
    %s34 = scalar_select %p31, %s33, %s17
    %p35 = scmp.ge.s32.totalorder %s34, 2
    %s36 = scalar_select %p35, 0, %s34
    %s37 = ssub.s32 %s17, %s36
    %p38 = scmp.eq.s32.totalorder %s37, 0
    %s40 = sadd.s32 %s39, 1
    %s41 = scalar_select %p38, %s39, %s40
    %p44 = pneg %p38
    %p45 = scmp.eq.s32.totalorder %s10, 1
    %p46 = por %p44, %p45
    %p47 = scmp.ne.s32.totalorder %s39, %s42
    %p48 = scmp.eq.s32.totalorder %s10, 0
    %p49 = por %p47, %p48
    %p50 = scmp.ne.s32.totalorder %s39, %s42
    %p51 = scmp.eq.s32.totalorder %s15, 1
    %p52 = por %p50, %p51
    %p53 = scmp.ne.s32.totalorder %s42, %s43
    %p54 = scmp.eq.s32.totalorder %s15, 0
    %p55 = por %p53, %p54
    %p56 = scmp.ne.s32.totalorder %s42, %s43
    %p57 = scmp.eq.s32.totalorder %s16, 1
    %p58 = por %p56, %p57
    %p60 = scmp.ne.s32.totalorder %s43, %s59
    %p61 = scmp.eq.s32.totalorder %s16, 0
    %p62 = por %p60, %p61
    %s63 = ssub.s32 %s19, %s28
    %p64 = scmp.eq.s32.totalorder %s63, 0
    %s66 = sadd.s32 %s65, 1
    %s67 = scalar_select %p64, %s65, %s66
    %p70 = pneg %p64
    %p71 = scmp.eq.s32.totalorder %s10, 1
    %p72 = por %p70, %p71
    %p73 = scmp.ne.s32.totalorder %s65, %s68
    %p74 = scmp.eq.s32.totalorder %s10, 0
    %p75 = por %p73, %p74
    %p76 = scmp.ne.s32.totalorder %s65, %s68
    %p77 = scmp.eq.s32.totalorder %s15, 1
    %p78 = por %p76, %p77
    %p79 = scmp.ne.s32.totalorder %s68, %s69
    %p80 = scmp.eq.s32.totalorder %s15, 0
    %p81 = por %p79, %p80
    %p82 = scmp.ne.s32.totalorder %s68, %s69
    %p83 = scmp.eq.s32.totalorder %s16, 1
    %p84 = por %p82, %p83
    %p86 = scmp.ne.s32.totalorder %s69, %s85
    %p87 = scmp.eq.s32.totalorder %s16, 0
    %p88 = por %p86, %p87
    %s89 = ssub.s32 %s19, %s28
    %p90 = scmp.eq.s32.totalorder %s89, 0
    %s92 = sadd.s32 %s91, 1
    %s93 = scalar_select %p90, %s91, %s92
    %p96 = pneg %p90
    %p97 = scmp.eq.s32.totalorder %s10, 1
    %p98 = por %p96, %p97
    %p99 = scmp.ne.s32.totalorder %s91, %s94
    %p100 = scmp.eq.s32.totalorder %s10, 0
    %p101 = por %p99, %p100
    %p102 = scmp.ne.s32.totalorder %s91, %s94
    %p103 = scmp.eq.s32.totalorder %s15, 1
    %p104 = por %p102, %p103
    %p105 = scmp.ne.s32.totalorder %s94, %s95
    %p106 = scmp.eq.s32.totalorder %s15, 0
    %p107 = por %p105, %p106
    %p108 = scmp.ne.s32.totalorder %s94, %s95
    %p109 = scmp.eq.s32.totalorder %s16, 1
    %p110 = por %p108, %p109
    %p112 = scmp.ne.s32.totalorder %s95, %s111
    %p113 = scmp.eq.s32.totalorder %s16, 0
    %p114 = por %p112, %p113
    %s115 = ssub.s32 %s19, %s28
    %p116 = scmp.eq.s32.totalorder %s115, 0
    %s118 = sadd.s32 %s117, 1
    %s119 = scalar_select %p116, %s117, %s118
    %p122 = pneg %p116
    %p123 = scmp.eq.s32.totalorder %s10, 1
    %p124 = por %p122, %p123
    %p125 = scmp.ne.s32.totalorder %s117, %s120
    %p126 = scmp.eq.s32.totalorder %s10, 0
    %p127 = por %p125, %p126
    %p128 = scmp.ne.s32.totalorder %s117, %s120
    %p129 = scmp.eq.s32.totalorder %s15, 1
    %p130 = por %p128, %p129
    %p131 = scmp.ne.s32.totalorder %s120, %s121
    %p132 = scmp.eq.s32.totalorder %s15, 0
    %p133 = por %p131, %p132
    %p134 = scmp.ne.s32.totalorder %s120, %s121
    %p135 = scmp.eq.s32.totalorder %s16, 1
    %p136 = por %p134, %p135
    %p138 = scmp.ne.s32.totalorder %s121, %s137
    %p139 = scmp.eq.s32.totalorder %s16, 0
    %p140 = por %p138, %p139
    %s141 = ssub.s32 %s17, %s36
    %s142 = ssub.s32 %s18, %s32
    %s143 = sor.u32 %s141, %s142
    %s144 = ssub.s32 %s19, %s28
    %s145 = sor.u32 %s143, %s144
    %p146 = scmp.eq.s32.totalorder %s145, 0
    %s148 = sadd.s32 %s147, 1
    %s149 = scalar_select %p146, %s147, %s148
    %p152 = pneg %p146
    %p153 = scmp.eq.s32.totalorder %s10, 1
    %p154 = por %p152, %p153
    %p155 = scmp.ne.s32.totalorder %s147, %s150
    %p156 = scmp.eq.s32.totalorder %s10, 0
    %p157 = por %p155, %p156
    %p158 = scmp.ne.s32.totalorder %s147, %s150
    %p159 = scmp.eq.s32.totalorder %s15, 1
    %p160 = por %p158, %p159
    %p161 = scmp.ne.s32.totalorder %s150, %s151
    %p162 = scmp.eq.s32.totalorder %s15, 0
    %p163 = por %p161, %p162
    %p164 = scmp.ne.s32.totalorder %s150, %s151
    %p165 = scmp.eq.s32.totalorder %s16, 1
    %p166 = por %p164, %p165
    %p168 = scmp.ne.s32.totalorder %s151, %s167
    %p169 = scmp.eq.s32.totalorder %s16, 0
    %p170 = por %p168, %p169
    %p171 = scmp.le.s32.totalorder 1, %s10
    %p172 = scmp.lt.s32.totalorder %s10, 3
    %p173 = pnand %p171, %p172
    %p174 = pneg %p173
    // Predicated region
    $region9: #{bottleneck_forward.4} parent=5 // pred_check
      _
    $region10: #{bottleneck_forward.4} parent=5 // pred_check_branch
      %176 = sbr.rel (%p173) target = $region12
    $region11: #{bottleneck_forward.4} parent=5 // pred_region
      %s177 = ssub.s32 %s10, 1
      // Predicated region
      $region13: #{bottleneck_forward.4} parent=11 // pred_check
        %p178 = pneg %p81
      $region14: #{bottleneck_forward.4} parent=11 // pred_check_branch
        %180 = sbr.rel (%p178) target = $region16
      $region15: #{bottleneck_forward.4} parent=11 // pred_region
        %p181 = scmp.lt.s32.totalorder %s22, 0
        %s182 = scalar_select %p181, %s22, 0
        %s183 = smul.addr %s182, 4
        %s184 = scalar_lea.vmem %s1, %s183
      $region16: #{bottleneck_forward.4} parent=11 // pred_fallthru
        _
      // Predicated region
      $region17: #{bottleneck_forward.4} parent=11 // pred_check
        %p185 = pneg %p107
      $region18: #{bottleneck_forward.4} parent=11 // pred_check_branch
        %187 = sbr.rel (%p185) target = $region20
      $region19: #{bottleneck_forward.4} parent=11 // pred_region
        %p188 = scmp.lt.s32.totalorder %s22, 0
        %s189 = scalar_select %p188, %s22, 0
        %s190 = scalar_lea.vmem %s2, %s189
      $region20: #{bottleneck_forward.4} parent=11 // pred_fallthru
        _
      // Predicated region
      $region21: #{bottleneck_forward.4} parent=11 // pred_check
        %p191 = pneg %p133
      $region22: #{bottleneck_forward.4} parent=11 // pred_check_branch
        %193 = sbr.rel (%p191) target = $region24
      $region23: #{bottleneck_forward.4} parent=11 // pred_region
        %p194 = scmp.lt.s32.totalorder %s22, 0
        %s195 = scalar_select %p194, %s22, 0
        %s196 = scalar_lea.vmem %s3, %s195
      $region24: #{bottleneck_forward.4} parent=11 // pred_fallthru
        _
    $region12: #{bottleneck_forward.4} parent=5 // pred_fallthru
      _
    %p197 = scmp.lt.s32.totalorder %s10, 2
    // Predicated region
    $region25: #{bottleneck_forward.4} parent=5 // pred_check
      %p198 = pneg %p197
    $region26: #{bottleneck_forward.4} parent=5 // pred_check_branch
      %200 = sbr.rel (%p198) target = $region28
    $region27: #{bottleneck_forward.4} parent=5 // pred_region
      // Predicated region
      $region29: #{bottleneck_forward.4} parent=27 // pred_check
        %p201 = pneg %p49
      $region30: #{bottleneck_forward.4} parent=27 // pred_check_branch
        %203 = sbr.rel (%p201) target = $region32
      $region31: #{bottleneck_forward.4} parent=27 // pred_region
        %p204 = scmp.lt.s32.totalorder %s17, 1
        %s205 = scalar_select %p204, %s17, 1
        %s206 = smul.addr %s205, 32
        %s207 = smul.addr %s206, 4
        %s208 = scalar_lea.vmem %s0, %s207
      $region32: #{bottleneck_forward.4} parent=27 // pred_fallthru
        _
    $region28: #{bottleneck_forward.4} parent=5 // pred_fallthru
      _
    %p209 = scmp.le.s32.totalorder 1, %s10
    %p210 = scmp.lt.s32.totalorder %s10, 3
    %p211 = pnand %p209, %p210
    %p212 = pneg %p211
    // Predicated region
    $region33: #{bottleneck_forward.4} parent=5 // pred_check
      _
    $region34: #{bottleneck_forward.4} parent=5 // pred_check_branch
      %214 = sbr.rel (%p211) target = $region36
    $region35: #{bottleneck_forward.4} parent=5 // pred_region
      %s215 = ssub.s32 %s10, 1
      %p216 = scmp.lt.s32.totalorder %s20, 1
      %s217 = scalar_select %p216, %s20, 1
      %s218 = smul.addr %s217, 32
      %s219 = smul.addr %s218, 4
      %s220 = scalar_lea.vmem %s0, %s219
      %p221 = pneg %p55
      %p222 = pneg %p52
      %p223 = scmp.lt.s32.totalorder %s22, 0
      %s224 = scalar_select %p223, %s22, 0
      %s225 = smul.addr %s224, 4
      %s226 = scalar_lea.vmem %s1, %s225
      %p227 = pneg %p81
      %p228 = pneg %p78
      %p229 = scmp.lt.s32.totalorder %s22, 0
      %s230 = scalar_select %p229, %s22, 0
      %s231 = scalar_lea.vmem %s2, %s230
      %p232 = pneg %p107
      %p233 = pneg %p104
      %p234 = scmp.lt.s32.totalorder %s22, 0
      %s235 = scalar_select %p234, %s22, 0
      %s236 = scalar_lea.vmem %s3, %s235
      %p237 = pneg %p133
      %p238 = pneg %p130
      %p239 = pneg %p163
      %p240 = pneg %p160
      %s241 = smul.u32 16, %s21
      %p242 = scmp.lt.s32.totalorder %s20, 1
      %s243 = scalar_select %p242, %s20, 1
      %p244 = scmp.lt.s32.totalorder %s241, 15
      %s245 = scalar_select %p244, %s241, 15
      %p246 = scmp.lt.s32.totalorder %s22, 0
      %s247 = scalar_select %p246, %s22, 0
      %s248 = smul.addr %s245, 2
      %s249 = sadd.s32 %s247, %s248
      %s250 = smul.addr %s243, 32
      %s251 = sadd.s32 %s249, %s250
      %s252 = smul.addr %s251, 4
      %s253 = scalar_lea.vmem %s4, %s252
      %p254 = scmp.lt.s32.totalorder %s20, 1
      %s255 = scalar_select %p254, %s20, 1
      %s256 = smul.addr %s255, 32
      %s257 = smul.addr %s256, 4
      %s258 = scalar_lea.vmem %s0, %s257
      %p259 = scmp.lt.s32.totalorder %s22, 0
      %s260 = scalar_select %p259, %s22, 0
      %s261 = smul.addr %s260, 4
      %s262 = scalar_lea.vmem %s1, %s261
      %p263 = scmp.lt.s32.totalorder %s22, 0
      %s264 = scalar_select %p263, %s22, 0
      %s265 = scalar_lea.vmem %s2, %s264
      %p266 = scmp.lt.s32.totalorder %s22, 0
      %s267 = scalar_select %p266, %s22, 0
      %s268 = scalar_lea.vmem %s3, %s267
      %s269 = smul.u32 16, %s21
      %p270 = scmp.lt.s32.totalorder %s20, 1
      %s271 = scalar_select %p270, %s20, 1
      %p272 = scmp.lt.s32.totalorder %s269, 15
      %s273 = scalar_select %p272, %s269, 15
      %p274 = scmp.lt.s32.totalorder %s22, 0
      %s275 = scalar_select %p274, %s22, 0
      %s276 = smul.addr %s273, 2
      %s277 = sadd.s32 %s275, %s276
      %s278 = smul.addr %s271, 32
      %s279 = sadd.s32 %s277, %s278
      %s280 = smul.addr %s279, 4
      %s281 = scalar_lea.vmem %s4, %s280
      %s282 = smul.u32 16, %s21
      %p284 = scmp.eq.s32.totalorder %s21, 0
      %p285 = scmp.eq.s32.totalorder %s22, 0
      %p286 = pnand %p284, %p285
      %p287 = pneg %p286
      // Predicated region
      $region37: #{bottleneck_forward.4} parent=35 // pred_check
        _
      $region38: #{bottleneck_forward.4} parent=35 // pred_check_branch
        %289 = sbr.rel (%p286) target = $region40
      $region39: #{bottleneck_forward.4} parent=35 // pred_region
        %290 = vst [vmem:[#allocation2] sm:$0xf] 0
        %291 = vst [vmem:[#allocation2 + $0x4] sm:$0xf] 0
        %292 = vst [vmem:[#allocation2 + $0x8] sm:$0x1] 0
        %293 = vst [vmem:[#allocation2 + $0xc] sm:$0xf] 0
        %294 = vst [vmem:[#allocation2 + $0x10] sm:$0xf] 0
        %295 = vst [vmem:[#allocation2 + $0x14] sm:$0x1] 0
        %296 = vst [vmem:[#allocation2 + $0x18] sm:$0xf] 0
        %297 = vst [vmem:[#allocation2 + $0x1c] sm:$0xf] 0
        %298 = vst [vmem:[#allocation2 + $0x20] sm:$0x1] 0
        %299 = vst [vmem:[#allocation2 + $0x24] sm:$0xf] 0
        %300 = vst [vmem:[#allocation2 + $0x28] sm:$0xf] 0
        %301 = vst [vmem:[#allocation2 + $0x2c] sm:$0x1] 0
        %302 = vst [vmem:[#allocation2 + $0x30] sm:$0xf] 0
        %303 = vst [vmem:[#allocation2 + $0x34] sm:$0xf] 0
        %304 = vst [vmem:[#allocation2 + $0x38] sm:$0x1] 0
        %305 = vst [vmem:[#allocation2 + $0x3c] sm:$0xf] 0
        %306 = vst [vmem:[#allocation2 + $0x40] sm:$0xf] 0
        %307 = vst [vmem:[#allocation2 + $0x44] sm:$0x1] 0
        %308 = vst [vmem:[#allocation2 + $0x48] sm:$0xf] 0
        %309 = vst [vmem:[#allocation2 + $0x4c] sm:$0xf] 0
        %310 = vst [vmem:[#allocation2 + $0x50] sm:$0x1] 0
        %311 = vst [vmem:[#allocation2 + $0x54] sm:$0xf] 0
        %312 = vst [vmem:[#allocation2 + $0x58] sm:$0xf] 0
        %313 = vst [vmem:[#allocation2 + $0x5c] sm:$0x1] 0
        %314 = vst [vmem:[#allocation2 + $0x60] sm:$0xf] 0
        %315 = vst [vmem:[#allocation2 + $0x64] sm:$0xf] 0
        %316 = vst [vmem:[#allocation2 + $0x68] sm:$0x1] 0
        %317 = vst [vmem:[#allocation2 + $0x6c] sm:$0xf] 0
        %318 = vst [vmem:[#allocation2 + $0x70] sm:$0xf] 0
        %319 = vst [vmem:[#allocation2 + $0x74] sm:$0x1] 0
        %320 = vst [vmem:[#allocation2 + $0x78] sm:$0xf] 0
        %321 = vst [vmem:[#allocation2 + $0x7c] sm:$0xf] 0
        %322 = vst [vmem:[#allocation2 + $0x80] sm:$0x1] 0
        %323 = vst [vmem:[#allocation2 + $0x84] sm:$0xf] 0
        %324 = vst [vmem:[#allocation2 + $0x88] sm:$0xf] 0
        %325 = vst [vmem:[#allocation2 + $0x8c] sm:$0x1] 0
        %326 = vst [vmem:[#allocation2 + $0x90] sm:$0xf] 0
        %327 = vst [vmem:[#allocation2 + $0x94] sm:$0xf] 0
        %328 = vst [vmem:[#allocation2 + $0x98] sm:$0x1] 0
        %329 = vst [vmem:[#allocation2 + $0x9c] sm:$0xf] 0
        %330 = vst [vmem:[#allocation2 + $0xa0] sm:$0xf] 0
        %331 = vst [vmem:[#allocation2 + $0xa4] sm:$0x1] 0
        %332 = vst [vmem:[#allocation2 + $0xa8] sm:$0xf] 0
        %333 = vst [vmem:[#allocation2 + $0xac] sm:$0xf] 0
        %334 = vst [vmem:[#allocation2 + $0xb0] sm:$0x1] 0
        %335 = vst [vmem:[#allocation2 + $0xb4] sm:$0xf] 0
        %336 = vst [vmem:[#allocation2 + $0xb8] sm:$0xf] 0
        %337 = vst [vmem:[#allocation2 + $0xbc] sm:$0x1] 0
        %338 = vst [vmem:[#allocation2 + $0xc0] sm:$0xf] 0
        %339 = vst [vmem:[#allocation2 + $0xc4] sm:$0xf] 0
        %340 = vst [vmem:[#allocation2 + $0xc8] sm:$0x1] 0
        %341 = vst [vmem:[#allocation2 + $0xcc] sm:$0xf] 0
        %342 = vst [vmem:[#allocation2 + $0xd0] sm:$0xf] 0
        %343 = vst [vmem:[#allocation2 + $0xd4] sm:$0x1] 0
        %v344 = vld [vmem:[%s258] sm:$0xf]
        %v345 = vld [vmem:[%s258 + $0x4] sm:$0xf]
        %v346 = vld [vmem:[%s258 + $0x8] sm:$0xf]
        %v347 = vld [vmem:[%s258 + $0xc] sm:$0xf]
        %v348 = vld [vmem:[%s258 + $0x10] sm:$0xf]
        %v349 = vld [vmem:[%s258 + $0x14] sm:$0xf]
        %v350 = vld [vmem:[%s258 + $0x18] sm:$0xf]
        %v351 = vld [vmem:[%s258 + $0x1c] sm:$0xf]
        %v352 = vld [vmem:[%s258 + $0x20] sm:$0xf]
        %v353 = vld [vmem:[%s258 + $0x24] sm:$0xf]
        %v354 = vld [vmem:[%s258 + $0x28] sm:$0xf]
        %v355 = vld [vmem:[%s258 + $0x2c] sm:$0xf]
        %v356 = vld [vmem:[%s258 + $0x30] sm:$0xf]
        %v357 = vld [vmem:[%s258 + $0x34] sm:$0xf]
        %v358 = vld [vmem:[%s258 + $0x38] sm:$0xf]
        %v359 = vld [vmem:[%s258 + $0x3c] sm:$0xf]
        %v360 = vld [vmem:[%s258 + $0x40] sm:$0xf]
        %v361 = vld [vmem:[%s258 + $0x44] sm:$0xf]
        %v362 = vld [vmem:[%s258 + $0x48] sm:$0xf]
        %v363 = vld [vmem:[%s258 + $0x4c] sm:$0xf]
        %v364 = vld [vmem:[%s258 + $0x50] sm:$0xf]
        %v365 = vld [vmem:[%s258 + $0x54] sm:$0xf]
        %v366 = vld [vmem:[%s258 + $0x58] sm:$0xf]
        %v367 = vld [vmem:[%s258 + $0x5c] sm:$0xf]
        %v368 = vld [vmem:[%s258 + $0x60] sm:$0xf]
        %v369 = vld [vmem:[%s258 + $0x64] sm:$0xf]
        %v370 = vld [vmem:[%s258 + $0x68] sm:$0xf]
        %v371 = vld [vmem:[%s258 + $0x6c] sm:$0xf]
        %v372 = vld [vmem:[%s258 + $0x70] sm:$0xf]
        %v373 = vld [vmem:[%s258 + $0x74] sm:$0xf]
        %v374 = vld [vmem:[%s258 + $0x78] sm:$0xf]
        %v375 = vld [vmem:[%s258 + $0x7c] sm:$0xf]
        %vm376 = vsmask.f32 256
        %vm377 = vsmask.f32 4368
        %vm378 = vmor %vm376, %vm377
        %v380 = vshrl.u32 %v344, 16
        %v382 = vrot.slane %v380, 7
        %v383 = vshll.u32 %v344, 16
        %v385 = vor.u32 %v382, %v383
        %v386 = vrot.slane %v382, 4
        %v388 = vshrl.u32 %v345, 16
        %v390 = vrot.slane %v388, 7
        %v391 = vshll.u32 %v345, 16
        %v393 = vor.u32 %v390, %v391
        %v394 = vsel %vm378, %v386, %v393
        %v395 = vrot.slane %v390, 4
        %v397 = vshrl.u32 %v346, 16
        %v399 = vrot.slane %v397, 7
        %v400 = vshll.u32 %v346, 16
        %v402 = vor.u32 %v399, %v400
        %v403 = vrot.slane %v399, 4
        %v405 = vshrl.u32 %v347, 16
        %v407 = vrot.slane %v405, 7
        %v408 = vshll.u32 %v347, 16
        %v410 = vor.u32 %v407, %v408
        %v411 = vsel %vm378, %v403, %v410
        %v412 = vrot.slane %v407, 4
        %v414 = vshrl.u32 %v348, 16
        %v416 = vrot.slane %v414, 7
        %v417 = vshll.u32 %v348, 16
        %v419 = vor.u32 %v416, %v417
        %v420 = vrot.slane %v416, 4
        %v422 = vshrl.u32 %v349, 16
        %v424 = vrot.slane %v422, 7
        %v425 = vshll.u32 %v349, 16
        %v427 = vor.u32 %v424, %v425
        %v428 = vsel %vm378, %v420, %v427
        %v429 = vrot.slane %v424, 4
        %v431 = vshrl.u32 %v350, 16
        %v433 = vrot.slane %v431, 7
        %v434 = vshll.u32 %v350, 16
        %v436 = vor.u32 %v433, %v434
        %v437 = vrot.slane %v433, 4
        %v439 = vshrl.u32 %v351, 16
        %v441 = vrot.slane %v439, 7
        %v442 = vshll.u32 %v351, 16
        %v444 = vor.u32 %v441, %v442
        %v445 = vsel %vm378, %v437, %v444
        %v446 = vrot.slane %v441, 4
        %v448 = vshrl.u32 %v352, 16
        %v450 = vrot.slane %v448, 7
        %v451 = vshll.u32 %v352, 16
        %v453 = vor.u32 %v450, %v451
        %v454 = vrot.slane %v450, 4
        %v456 = vshrl.u32 %v353, 16
        %v458 = vrot.slane %v456, 7
        %v459 = vshll.u32 %v353, 16
        %v461 = vor.u32 %v458, %v459
        %v462 = vsel %vm378, %v454, %v461
        %v463 = vrot.slane %v458, 4
        %v465 = vshrl.u32 %v354, 16
        %v467 = vrot.slane %v465, 7
        %v468 = vshll.u32 %v354, 16
        %v470 = vor.u32 %v467, %v468
        %v471 = vrot.slane %v467, 4
        %v473 = vshrl.u32 %v355, 16
        %v475 = vrot.slane %v473, 7
        %v476 = vshll.u32 %v355, 16
        %v478 = vor.u32 %v475, %v476
        %v479 = vsel %vm378, %v471, %v478
        %v480 = vrot.slane %v475, 4
        %v482 = vshrl.u32 %v356, 16
        %v484 = vrot.slane %v482, 7
        %v485 = vshll.u32 %v356, 16
        %v487 = vor.u32 %v484, %v485
        %v488 = vrot.slane %v484, 4
        %v490 = vshrl.u32 %v357, 16
        %v492 = vrot.slane %v490, 7
        %v493 = vshll.u32 %v357, 16
        %v495 = vor.u32 %v492, %v493
        %v496 = vsel %vm378, %v488, %v495
        %v497 = vrot.slane %v492, 4
        %v499 = vshrl.u32 %v358, 16
        %v501 = vrot.slane %v499, 7
        %v502 = vshll.u32 %v358, 16
        %v504 = vor.u32 %v501, %v502
        %v505 = vrot.slane %v501, 4
        %v507 = vshrl.u32 %v359, 16
        %v509 = vrot.slane %v507, 7
        %v510 = vshll.u32 %v359, 16
        %v512 = vor.u32 %v509, %v510
        %v513 = vsel %vm378, %v505, %v512
        %v514 = vrot.slane %v509, 4
        %v516 = vshrl.u32 %v360, 16
        %v518 = vrot.slane %v516, 7
        %v519 = vshll.u32 %v360, 16
        %v521 = vor.u32 %v518, %v519
        %v522 = vrot.slane %v518, 4
        %v524 = vshrl.u32 %v361, 16
        %v526 = vrot.slane %v524, 7
        %v527 = vshll.u32 %v361, 16
        %v529 = vor.u32 %v526, %v527
        %v530 = vsel %vm378, %v522, %v529
        %v531 = vrot.slane %v526, 4
        %v533 = vshrl.u32 %v362, 16
        %v535 = vrot.slane %v533, 7
        %v536 = vshll.u32 %v362, 16
        %v538 = vor.u32 %v535, %v536
        %v539 = vrot.slane %v535, 4
        %v541 = vshrl.u32 %v363, 16
        %v543 = vrot.slane %v541, 7
        %v544 = vshll.u32 %v363, 16
        %v546 = vor.u32 %v543, %v544
        %v547 = vsel %vm378, %v539, %v546
        %v548 = vrot.slane %v543, 4
        %v550 = vshrl.u32 %v364, 16
        %v552 = vrot.slane %v550, 7
        %v553 = vshll.u32 %v364, 16
        %v555 = vor.u32 %v552, %v553
        %v556 = vrot.slane %v552, 4
        %v558 = vshrl.u32 %v365, 16
        %v560 = vrot.slane %v558, 7
        %v561 = vshll.u32 %v365, 16
        %v563 = vor.u32 %v560, %v561
        %v564 = vsel %vm378, %v556, %v563
        %v565 = vrot.slane %v560, 4
        %v567 = vshrl.u32 %v366, 16
        %v569 = vrot.slane %v567, 7
        %v570 = vshll.u32 %v366, 16
        %v572 = vor.u32 %v569, %v570
        %v573 = vrot.slane %v569, 4
        %v575 = vshrl.u32 %v367, 16
        %v577 = vrot.slane %v575, 7
        %v578 = vshll.u32 %v367, 16
        %v580 = vor.u32 %v577, %v578
        %v581 = vsel %vm378, %v573, %v580
        %v582 = vrot.slane %v577, 4
        %v584 = vshrl.u32 %v368, 16
        %v586 = vrot.slane %v584, 7
        %v587 = vshll.u32 %v368, 16
        %v589 = vor.u32 %v586, %v587
        %v590 = vrot.slane %v586, 4
        %v592 = vshrl.u32 %v369, 16
        %v594 = vrot.slane %v592, 7
        %v595 = vshll.u32 %v369, 16
        %v597 = vor.u32 %v594, %v595
        %v598 = vsel %vm378, %v590, %v597
        %v599 = vrot.slane %v594, 4
        %v601 = vshrl.u32 %v370, 16
        %v603 = vrot.slane %v601, 7
        %v604 = vshll.u32 %v370, 16
        %v606 = vor.u32 %v603, %v604
        %v607 = vrot.slane %v603, 4
        %v609 = vshrl.u32 %v371, 16
        %v611 = vrot.slane %v609, 7
        %v612 = vshll.u32 %v371, 16
        %v614 = vor.u32 %v611, %v612
        %v615 = vsel %vm378, %v607, %v614
        %v616 = vrot.slane %v611, 4
        %v618 = vshrl.u32 %v372, 16
        %v620 = vrot.slane %v618, 7
        %v621 = vshll.u32 %v372, 16
        %v623 = vor.u32 %v620, %v621
        %v624 = vrot.slane %v620, 4
        %v626 = vshrl.u32 %v373, 16
        %v628 = vrot.slane %v626, 7
        %v629 = vshll.u32 %v373, 16
        %v631 = vor.u32 %v628, %v629
        %v632 = vsel %vm378, %v624, %v631
        %v633 = vrot.slane %v628, 4
        %v635 = vshrl.u32 %v374, 16
        %v637 = vrot.slane %v635, 7
        %v638 = vshll.u32 %v374, 16
        %v640 = vor.u32 %v637, %v638
        %v641 = vrot.slane %v637, 4
        %v643 = vshrl.u32 %v375, 16
        %v645 = vrot.slane %v643, 7
        %v646 = vshll.u32 %v375, 16
        %v648 = vor.u32 %v645, %v646
        %v649 = vsel %vm378, %v641, %v648
        %v650 = vrot.slane %v645, 4
        %s699 = scalar_lea.vmem [#allocation2], 12
        %vm700 = vcmask 1043456
        %vm701 = vsmask.f32 7938
        %vm702 = vmand %vm700, %vm701
        %v703 = vld [vmem:[%s699] sm:$0xf]
        %v704 = vsel %vm702, %v385, %v703
        %705 = vst [vmem:[%s699] sm:$0xf] %v704
        %706 = vst [vmem:[%s699 + $0x4] sm:$0xf] %v394
        %vm707 = vcmask 1040384
        %vm708 = vmand %vm707, %vm376
        %v709 = vld [vmem:[%s699 + $0x8] sm:$0x1]
        %v710 = vsel %vm708, %v395, %v709
        %711 = vst [vmem:[%s699 + $0x8] sm:$0x1] %v710
        %v712 = vld [vmem:[%s699 + $0xc] sm:$0xf]
        %v713 = vsel %vm702, %v402, %v712
        %714 = vst [vmem:[%s699 + $0xc] sm:$0xf] %v713
        %715 = vst [vmem:[%s699 + $0x10] sm:$0xf] %v411
        %v716 = vld [vmem:[%s699 + $0x14] sm:$0x1]
        %v717 = vsel %vm708, %v412, %v716
        %718 = vst [vmem:[%s699 + $0x14] sm:$0x1] %v717
        %v719 = vld [vmem:[%s699 + $0x18] sm:$0xf]
        %v720 = vsel %vm702, %v419, %v719
        %721 = vst [vmem:[%s699 + $0x18] sm:$0xf] %v720
        %722 = vst [vmem:[%s699 + $0x1c] sm:$0xf] %v428
        %v723 = vld [vmem:[%s699 + $0x20] sm:$0x1]
        %v724 = vsel %vm708, %v429, %v723
        %725 = vst [vmem:[%s699 + $0x20] sm:$0x1] %v724
        %v726 = vld [vmem:[%s699 + $0x24] sm:$0xf]
        %v727 = vsel %vm702, %v436, %v726
        %728 = vst [vmem:[%s699 + $0x24] sm:$0xf] %v727
        %729 = vst [vmem:[%s699 + $0x28] sm:$0xf] %v445
        %v730 = vld [vmem:[%s699 + $0x2c] sm:$0x1]
        %v731 = vsel %vm708, %v446, %v730
        %732 = vst [vmem:[%s699 + $0x2c] sm:$0x1] %v731
        %v733 = vld [vmem:[%s699 + $0x30] sm:$0xf]
        %v734 = vsel %vm702, %v453, %v733
        %735 = vst [vmem:[%s699 + $0x30] sm:$0xf] %v734
        %736 = vst [vmem:[%s699 + $0x34] sm:$0xf] %v462
        %v737 = vld [vmem:[%s699 + $0x38] sm:$0x1]
        %v738 = vsel %vm708, %v463, %v737
        %739 = vst [vmem:[%s699 + $0x38] sm:$0x1] %v738
        %v740 = vld [vmem:[%s699 + $0x3c] sm:$0xf]
        %v741 = vsel %vm702, %v470, %v740
        %742 = vst [vmem:[%s699 + $0x3c] sm:$0xf] %v741
        %743 = vst [vmem:[%s699 + $0x40] sm:$0xf] %v479
        %v744 = vld [vmem:[%s699 + $0x44] sm:$0x1]
        %v745 = vsel %vm708, %v480, %v744
        %746 = vst [vmem:[%s699 + $0x44] sm:$0x1] %v745
        %v747 = vld [vmem:[%s699 + $0x48] sm:$0xf]
        %v748 = vsel %vm702, %v487, %v747
        %749 = vst [vmem:[%s699 + $0x48] sm:$0xf] %v748
        %750 = vst [vmem:[%s699 + $0x4c] sm:$0xf] %v496
        %v751 = vld [vmem:[%s699 + $0x50] sm:$0x1]
        %v752 = vsel %vm708, %v497, %v751
        %753 = vst [vmem:[%s699 + $0x50] sm:$0x1] %v752
        %v754 = vld [vmem:[%s699 + $0x54] sm:$0xf]
        %v755 = vsel %vm702, %v504, %v754
        %756 = vst [vmem:[%s699 + $0x54] sm:$0xf] %v755
        %757 = vst [vmem:[%s699 + $0x58] sm:$0xf] %v513
        %v758 = vld [vmem:[%s699 + $0x5c] sm:$0x1]
        %v759 = vsel %vm708, %v514, %v758
        %760 = vst [vmem:[%s699 + $0x5c] sm:$0x1] %v759
        %v761 = vld [vmem:[%s699 + $0x60] sm:$0xf]
        %v762 = vsel %vm702, %v521, %v761
        %763 = vst [vmem:[%s699 + $0x60] sm:$0xf] %v762
        %764 = vst [vmem:[%s699 + $0x64] sm:$0xf] %v530
        %v765 = vld [vmem:[%s699 + $0x68] sm:$0x1]
        %v766 = vsel %vm708, %v531, %v765
        %767 = vst [vmem:[%s699 + $0x68] sm:$0x1] %v766
        %v768 = vld [vmem:[%s699 + $0x6c] sm:$0xf]
        %v769 = vsel %vm702, %v538, %v768
        %770 = vst [vmem:[%s699 + $0x6c] sm:$0xf] %v769
        %771 = vst [vmem:[%s699 + $0x70] sm:$0xf] %v547
        %v772 = vld [vmem:[%s699 + $0x74] sm:$0x1]
        %v773 = vsel %vm708, %v548, %v772
        %774 = vst [vmem:[%s699 + $0x74] sm:$0x1] %v773
        %v775 = vld [vmem:[%s699 + $0x78] sm:$0xf]
        %v776 = vsel %vm702, %v555, %v775
        %777 = vst [vmem:[%s699 + $0x78] sm:$0xf] %v776
        %778 = vst [vmem:[%s699 + $0x7c] sm:$0xf] %v564
        %v779 = vld [vmem:[%s699 + $0x80] sm:$0x1]
        %v780 = vsel %vm708, %v565, %v779
        %781 = vst [vmem:[%s699 + $0x80] sm:$0x1] %v780
        %v782 = vld [vmem:[%s699 + $0x84] sm:$0xf]
        %v783 = vsel %vm702, %v572, %v782
        %784 = vst [vmem:[%s699 + $0x84] sm:$0xf] %v783
        %785 = vst [vmem:[%s699 + $0x88] sm:$0xf] %v581
        %v786 = vld [vmem:[%s699 + $0x8c] sm:$0x1]
        %v787 = vsel %vm708, %v582, %v786
        %788 = vst [vmem:[%s699 + $0x8c] sm:$0x1] %v787
        %v789 = vld [vmem:[%s699 + $0x90] sm:$0xf]
        %v790 = vsel %vm702, %v589, %v789
        %791 = vst [vmem:[%s699 + $0x90] sm:$0xf] %v790
        %792 = vst [vmem:[%s699 + $0x94] sm:$0xf] %v598
        %v793 = vld [vmem:[%s699 + $0x98] sm:$0x1]
        %v794 = vsel %vm708, %v599, %v793
        %795 = vst [vmem:[%s699 + $0x98] sm:$0x1] %v794
        %v796 = vld [vmem:[%s699 + $0x9c] sm:$0xf]
        %v797 = vsel %vm702, %v606, %v796
        %798 = vst [vmem:[%s699 + $0x9c] sm:$0xf] %v797
        %799 = vst [vmem:[%s699 + $0xa0] sm:$0xf] %v615
        %v800 = vld [vmem:[%s699 + $0xa4] sm:$0x1]
        %v801 = vsel %vm708, %v616, %v800
        %802 = vst [vmem:[%s699 + $0xa4] sm:$0x1] %v801
        %v803 = vld [vmem:[%s699 + $0xa8] sm:$0xf]
        %v804 = vsel %vm702, %v623, %v803
        %805 = vst [vmem:[%s699 + $0xa8] sm:$0xf] %v804
        %806 = vst [vmem:[%s699 + $0xac] sm:$0xf] %v632
        %v807 = vld [vmem:[%s699 + $0xb0] sm:$0x1]
        %v808 = vsel %vm708, %v633, %v807
        %809 = vst [vmem:[%s699 + $0xb0] sm:$0x1] %v808
        %v810 = vld [vmem:[%s699 + $0xb4] sm:$0xf]
        %v811 = vsel %vm702, %v640, %v810
        %812 = vst [vmem:[%s699 + $0xb4] sm:$0xf] %v811
        %813 = vst [vmem:[%s699 + $0xb8] sm:$0xf] %v649
        %v814 = vld [vmem:[%s699 + $0xbc] sm:$0x1]
        %v815 = vsel %vm708, %v650, %v814
        %816 = vst [vmem:[%s699 + $0xbc] sm:$0x1] %v815
      $region40: #{bottleneck_forward.4} parent=35 // pred_fallthru
        _
      %s817 = smul.u32 %s21, 16
      %s818 = smul.u32 %s817, 3
      %s819 = smul.addr %s818, 4
      %s820 = scalar_lea.vmem [#allocation2], %s819
      %v821 = vld [vmem:[%s820] sm:$0xf]
      %v822 = vld [vmem:[%s820 + $0x4] sm:$0xf]
      %v823 = vld [vmem:[%s820 + $0xc] sm:$0xf]
      %v824 = vld [vmem:[%s820 + $0x10] sm:$0xf]
      %v825 = vld [vmem:[%s820 + $0x18] sm:$0xf]
      %v826 = vld [vmem:[%s820 + $0x1c] sm:$0xf]
      %v827 = vld [vmem:[%s820 + $0x24] sm:$0xf]
      %v828 = vld [vmem:[%s820 + $0x28] sm:$0xf]
      %v829 = vld [vmem:[%s820 + $0x30] sm:$0xf]
      %v830 = vld [vmem:[%s820 + $0x34] sm:$0xf]
      %v831 = vld [vmem:[%s820 + $0x3c] sm:$0xf]
      %v832 = vld [vmem:[%s820 + $0x40] sm:$0xf]
      %v833 = vld [vmem:[%s820 + $0x48] sm:$0xf]
      %v834 = vld [vmem:[%s820 + $0x4c] sm:$0xf]
      %v835 = vld [vmem:[%s820 + $0x54] sm:$0xf]
      %v836 = vld [vmem:[%s820 + $0x58] sm:$0xf]
      %v837 = vld [vmem:[%s820 + $0x60] sm:$0xf]
      %v838 = vld [vmem:[%s820 + $0x64] sm:$0xf]
      %v839 = vld [vmem:[%s820 + $0x6c] sm:$0xf]
      %v840 = vld [vmem:[%s820 + $0x70] sm:$0xf]
      %v841 = vld [vmem:[%s820 + $0x78] sm:$0xf]
      %v842 = vld [vmem:[%s820 + $0x7c] sm:$0xf]
      %v843 = vld [vmem:[%s820 + $0x84] sm:$0xf]
      %v844 = vld [vmem:[%s820 + $0x88] sm:$0xf]
      %v845 = vld [vmem:[%s820 + $0x90] sm:$0xf]
      %v846 = vld [vmem:[%s820 + $0x94] sm:$0xf]
      %v847 = vld [vmem:[%s820 + $0x9c] sm:$0xf]
      %v848 = vld [vmem:[%s820 + $0xa0] sm:$0xf]
      %v849 = vld [vmem:[%s820 + $0xa8] sm:$0xf]
      %v850 = vld [vmem:[%s820 + $0xac] sm:$0xf]
      %v851 = vld [vmem:[%s820 + $0xb4] sm:$0xf]
      %v852 = vld [vmem:[%s820 + $0xb8] sm:$0xf]
      %v853 = vld [vmem:[%s262] sm:$0xf]
      %v854 = vld [vmem:[%s262 + $0x4] sm:$0xf]
      %v855 = vld [vmem:[%s262 + $0x8] sm:$0xf]
      %v856 = vld [vmem:[%s262 + $0xc] sm:$0xf]
      %v857 = vld [vmem:[%s262 + $0x10] sm:$0xf]
      %v858 = vld [vmem:[%s262 + $0x14] sm:$0xf]
      %v859 = vld [vmem:[%s262 + $0x18] sm:$0xf]
      %v860 = vld [vmem:[%s262 + $0x1c] sm:$0xf]
      %v861 = vld [vmem:[%s262 + $0x20] sm:$0xf]
      %v862 = vld [vmem:[%s262 + $0x24] sm:$0xf]
      %v863 = vld [vmem:[%s262 + $0x28] sm:$0xf]
      %v864 = vld [vmem:[%s262 + $0x2c] sm:$0xf]
      %v865 = vld [vmem:[%s262 + $0x30] sm:$0xf]
      %v866 = vld [vmem:[%s262 + $0x34] sm:$0xf]
      %v867 = vld [vmem:[%s262 + $0x38] sm:$0xf]
      %v868 = vld [vmem:[%s262 + $0x3c] sm:$0xf]
      %v901 = vunpack.c.l.b16 %v821
      %v902 = vunpack.c.l.b16 %v822
      %v903 = vunpack.c.l.b16 %v823
      %v904 = vunpack.c.l.b16 %v824
      %v905 = vunpack.c.l.b16 %v825
      %v906 = vunpack.c.l.b16 %v826
      %v907 = vunpack.c.l.b16 %v827
      %v908 = vunpack.c.l.b16 %v828
      %v909 = vunpack.c.l.b16 %v829
      %v910 = vunpack.c.l.b16 %v830
      %v911 = vunpack.c.l.b16 %v831
      %v912 = vunpack.c.l.b16 %v832
      %v913 = vunpack.c.l.b16 %v833
      %v914 = vunpack.c.l.b16 %v834
      %v915 = vunpack.c.l.b16 %v835
      %v916 = vunpack.c.l.b16 %v836
      %v917 = vunpack.c.l.b16 %v837
      %v918 = vunpack.c.l.b16 %v838
      %v919 = vunpack.c.l.b16 %v839
      %v920 = vunpack.c.l.b16 %v840
      %v921 = vunpack.c.l.b16 %v841
      %v922 = vunpack.c.l.b16 %v842
      %v923 = vunpack.c.l.b16 %v843
      %v924 = vunpack.c.l.b16 %v844
      %v925 = vunpack.c.l.b16 %v845
      %v926 = vunpack.c.l.b16 %v846
      %v927 = vunpack.c.l.b16 %v847
      %v928 = vunpack.c.l.b16 %v848
      %v929 = vunpack.c.l.b16 %v849
      %v930 = vunpack.c.l.b16 %v850
      %v931 = vunpack.c.l.b16 %v851
      %v932 = vunpack.c.l.b16 %v852
      %v933 = vpack.c.b16 %v902, %v901
      %v934 = vpack.c.b16 %v904, %v903
      %v935 = vpack.c.b16 %v906, %v905
      %v936 = vpack.c.b16 %v908, %v907
      %v937 = vpack.c.b16 %v910, %v909
      %v938 = vpack.c.b16 %v912, %v911
      %v939 = vpack.c.b16 %v914, %v913
      %v940 = vpack.c.b16 %v916, %v915
      %v941 = vpack.c.b16 %v918, %v917
      %v942 = vpack.c.b16 %v920, %v919
      %v943 = vpack.c.b16 %v922, %v921
      %v944 = vpack.c.b16 %v924, %v923
      %v945 = vpack.c.b16 %v926, %v925
      %v946 = vpack.c.b16 %v928, %v927
      %v947 = vpack.c.b16 %v930, %v929
      %v948 = vpack.c.b16 %v932, %v931
      %v981 = vunpack.c.l.b16 %v853
      %v982 = vunpack.c.l.b16 %v854
      %v983 = vunpack.c.l.b16 %v855
      %v984 = vunpack.c.l.b16 %v856
      %v985 = vunpack.c.l.b16 %v857
      %v986 = vunpack.c.l.b16 %v858
      %v987 = vunpack.c.l.b16 %v859
      %v988 = vunpack.c.l.b16 %v860
      %v989 = vunpack.c.l.b16 %v861
      %v990 = vunpack.c.l.b16 %v862
      %v991 = vunpack.c.l.b16 %v863
      %v992 = vunpack.c.l.b16 %v864
      %v993 = vunpack.c.l.b16 %v865
      %v994 = vunpack.c.l.b16 %v866
      %v995 = vunpack.c.l.b16 %v867
      %v996 = vunpack.c.l.b16 %v868
      %v997 = vpack.c.b16 %v982, %v981
      %v998 = vpack.c.b16 %v984, %v983
      %v999 = vpack.c.b16 %v986, %v985
      %v1000 = vpack.c.b16 %v988, %v987
      %v1001 = vpack.c.b16 %v990, %v989
      %v1002 = vpack.c.b16 %v992, %v991
      %v1003 = vpack.c.b16 %v994, %v993
      %v1004 = vpack.c.b16 %v996, %v995
      %1013 = vmatpush.bf16.msra.mxu0 %v1004
      %1014 = vmatpush.bf16.msra.mxu0 %v1003
      %1015 = vmatpush.bf16.msra.mxu0 %v1002
      %1016 = vmatpush.bf16.msra.mxu0 %v1001
      %1017 = vmatpush.bf16.msra.mxu0 %v1000
      %1018 = vmatpush.bf16.msra.mxu0 %v999
      %1019 = vmatpush.bf16.msra.mxu0 %v998
      %1020 = vmatpush.bf16.msra.mxu0 %v997
      %1021 = vmatmul.bf16.gmra.mxu0 %v933
      %v1022 = vpop.f32.mrf.mxu0
      %v1023 = vadd.f32 0.0, %v1022
      %v1024 = vpop.f32.mrf.mxu0
      %v1025 = vadd.f32 0.0, %v1024
      %1026 = vmatmul.bf16.gmra.mxu0 %v934
      %v1027 = vpop.f32.mrf.mxu0
      %v1028 = vadd.f32 0.0, %v1027
      %v1029 = vpop.f32.mrf.mxu0
      %v1030 = vadd.f32 0.0, %v1029
      %1031 = vmatmul.bf16.gmra.mxu0 %v935
      %v1032 = vpop.f32.mrf.mxu0
      %v1033 = vadd.f32 0.0, %v1032
      %v1034 = vpop.f32.mrf.mxu0
      %v1035 = vadd.f32 0.0, %v1034
      %1036 = vmatmul.bf16.gmra.mxu0 %v936
      %v1037 = vpop.f32.mrf.mxu0
      %v1038 = vadd.f32 0.0, %v1037
      %v1039 = vpop.f32.mrf.mxu0
      %v1040 = vadd.f32 0.0, %v1039
      %1041 = vmatmul.bf16.gmra.mxu0 %v937
      %v1042 = vpop.f32.mrf.mxu0
      %v1043 = vadd.f32 0.0, %v1042
      %v1044 = vpop.f32.mrf.mxu0
      %v1045 = vadd.f32 0.0, %v1044
      %1046 = vmatmul.bf16.gmra.mxu0 %v938
      %v1047 = vpop.f32.mrf.mxu0
      %v1048 = vadd.f32 0.0, %v1047
      %v1049 = vpop.f32.mrf.mxu0
      %v1050 = vadd.f32 0.0, %v1049
      %1051 = vmatmul.bf16.gmra.mxu0 %v939
      %v1052 = vpop.f32.mrf.mxu0
      %v1053 = vadd.f32 0.0, %v1052
      %v1054 = vpop.f32.mrf.mxu0
      %v1055 = vadd.f32 0.0, %v1054
      %1056 = vmatmul.bf16.gmra.mxu0 %v940
      %v1057 = vpop.f32.mrf.mxu0
      %v1058 = vadd.f32 0.0, %v1057
      %v1059 = vpop.f32.mrf.mxu0
      %v1060 = vadd.f32 0.0, %v1059
      %1061 = vmatmul.bf16.gmra.mxu0 %v941
      %v1062 = vpop.f32.mrf.mxu0
      %v1063 = vadd.f32 0.0, %v1062
      %v1064 = vpop.f32.mrf.mxu0
      %v1065 = vadd.f32 0.0, %v1064
      %1066 = vmatmul.bf16.gmra.mxu0 %v942
      %v1067 = vpop.f32.mrf.mxu0
      %v1068 = vadd.f32 0.0, %v1067
      %v1069 = vpop.f32.mrf.mxu0
      %v1070 = vadd.f32 0.0, %v1069
      %1071 = vmatmul.bf16.gmra.mxu0 %v943
      %v1072 = vpop.f32.mrf.mxu0
      %v1073 = vadd.f32 0.0, %v1072
      %v1074 = vpop.f32.mrf.mxu0
      %v1075 = vadd.f32 0.0, %v1074
      %1076 = vmatmul.bf16.gmra.mxu0 %v944
      %v1077 = vpop.f32.mrf.mxu0
      %v1078 = vadd.f32 0.0, %v1077
      %v1079 = vpop.f32.mrf.mxu0
      %v1080 = vadd.f32 0.0, %v1079
      %1081 = vmatmul.bf16.gmra.mxu0 %v945
      %v1082 = vpop.f32.mrf.mxu0
      %v1083 = vadd.f32 0.0, %v1082
      %v1084 = vpop.f32.mrf.mxu0
      %v1085 = vadd.f32 0.0, %v1084
      %1086 = vmatmul.bf16.gmra.mxu0 %v946
      %v1087 = vpop.f32.mrf.mxu0
      %v1088 = vadd.f32 0.0, %v1087
      %v1089 = vpop.f32.mrf.mxu0
      %v1090 = vadd.f32 0.0, %v1089
      %1091 = vmatmul.bf16.gmra.mxu0 %v947
      %v1092 = vpop.f32.mrf.mxu0
      %v1093 = vadd.f32 0.0, %v1092
      %v1094 = vpop.f32.mrf.mxu0
      %v1095 = vadd.f32 0.0, %v1094
      %1096 = vmatmul.bf16.gmra.mxu0 %v948
      %v1097 = vpop.f32.mrf.mxu0
      %v1098 = vadd.f32 0.0, %v1097
      %v1099 = vpop.f32.mrf.mxu0
      %v1100 = vadd.f32 0.0, %v1099
      %1101 = vdwg.mxu0
      %1102 = vst [vmem:[#allocation3] sm:$0xff] %v1023
      %1103 = vst [vmem:[#allocation3 + $0x8] sm:$0xff] %v1025
      %1104 = vst [vmem:[#allocation3 + $0x10] sm:$0xff] %v1028
      %1105 = vst [vmem:[#allocation3 + $0x18] sm:$0xff] %v1030
      %1106 = vst [vmem:[#allocation3 + $0x20] sm:$0xff] %v1033
      %1107 = vst [vmem:[#allocation3 + $0x28] sm:$0xff] %v1035
      %1108 = vst [vmem:[#allocation3 + $0x30] sm:$0xff] %v1038
      %1109 = vst [vmem:[#allocation3 + $0x38] sm:$0xff] %v1040
      %1110 = vst [vmem:[#allocation3 + $0x40] sm:$0xff] %v1043
      %1111 = vst [vmem:[#allocation3 + $0x48] sm:$0xff] %v1045
      %1112 = vst [vmem:[#allocation3 + $0x50] sm:$0xff] %v1048
      %1113 = vst [vmem:[#allocation3 + $0x58] sm:$0xff] %v1050
      %1114 = vst [vmem:[#allocation3 + $0x60] sm:$0xff] %v1053
      %1115 = vst [vmem:[#allocation3 + $0x68] sm:$0xff] %v1055
      %1116 = vst [vmem:[#allocation3 + $0x70] sm:$0xff] %v1058
      %1117 = vst [vmem:[#allocation3 + $0x78] sm:$0xff] %v1060
      %1118 = vst [vmem:[#allocation3 + $0x80] sm:$0xff] %v1063
      %1119 = vst [vmem:[#allocation3 + $0x88] sm:$0xff] %v1065
      %1120 = vst [vmem:[#allocation3 + $0x90] sm:$0xff] %v1068
      %1121 = vst [vmem:[#allocation3 + $0x98] sm:$0xff] %v1070
      %1122 = vst [vmem:[#allocation3 + $0xa0] sm:$0xff] %v1073
      %1123 = vst [vmem:[#allocation3 + $0xa8] sm:$0xff] %v1075
      %1124 = vst [vmem:[#allocation3 + $0xb0] sm:$0xff] %v1078
      %1125 = vst [vmem:[#allocation3 + $0xb8] sm:$0xff] %v1080
      %1126 = vst [vmem:[#allocation3 + $0xc0] sm:$0xff] %v1083
      %1127 = vst [vmem:[#allocation3 + $0xc8] sm:$0xff] %v1085
      %1128 = vst [vmem:[#allocation3 + $0xd0] sm:$0xff] %v1088
      %1129 = vst [vmem:[#allocation3 + $0xd8] sm:$0xff] %v1090
      %1130 = vst [vmem:[#allocation3 + $0xe0] sm:$0xff] %v1093
      %1131 = vst [vmem:[#allocation3 + $0xe8] sm:$0xff] %v1095
      %1132 = vst [vmem:[#allocation3 + $0xf0] sm:$0xff] %v1098
      %1133 = vst [vmem:[#allocation3 + $0xf8] sm:$0xff] %v1100
      %v1134 = vld [vmem:[#allocation3] sm:$0xff]
      %v1135 = vld [vmem:[#allocation3 + $0x8] sm:$0xff]
      %v1136 = vld [vmem:[#allocation3 + $0x10] sm:$0xff]
      %v1137 = vld [vmem:[#allocation3 + $0x18] sm:$0xff]
      %v1138 = vld [vmem:[#allocation3 + $0x20] sm:$0xff]
      %v1139 = vld [vmem:[#allocation3 + $0x28] sm:$0xff]
      %v1140 = vld [vmem:[#allocation3 + $0x30] sm:$0xff]
      %v1141 = vld [vmem:[#allocation3 + $0x38] sm:$0xff]
      %v1142 = vld [vmem:[#allocation3 + $0x40] sm:$0xff]
      %v1143 = vld [vmem:[#allocation3 + $0x48] sm:$0xff]
      %v1144 = vld [vmem:[#allocation3 + $0x50] sm:$0xff]
      %v1145 = vld [vmem:[#allocation3 + $0x58] sm:$0xff]
      %v1146 = vld [vmem:[#allocation3 + $0x60] sm:$0xff]
      %v1147 = vld [vmem:[#allocation3 + $0x68] sm:$0xff]
      %v1148 = vld [vmem:[#allocation3 + $0x70] sm:$0xff]
      %v1149 = vld [vmem:[#allocation3 + $0x78] sm:$0xff]
      %v1150 = vld [vmem:[#allocation3 + $0x80] sm:$0xff]
      %v1151 = vld [vmem:[#allocation3 + $0x88] sm:$0xff]
      %v1152 = vld [vmem:[#allocation3 + $0x90] sm:$0xff]
      %v1153 = vld [vmem:[#allocation3 + $0x98] sm:$0xff]
      %v1154 = vld [vmem:[#allocation3 + $0xa0] sm:$0xff]
      %v1155 = vld [vmem:[#allocation3 + $0xa8] sm:$0xff]
      %v1156 = vld [vmem:[#allocation3 + $0xb0] sm:$0xff]
      %v1157 = vld [vmem:[#allocation3 + $0xb8] sm:$0xff]
      %v1158 = vld [vmem:[#allocation3 + $0xc0] sm:$0xff]
      %v1159 = vld [vmem:[#allocation3 + $0xc8] sm:$0xff]
      %v1160 = vld [vmem:[#allocation3 + $0xd0] sm:$0xff]
      %v1161 = vld [vmem:[#allocation3 + $0xd8] sm:$0xff]
      %v1162 = vld [vmem:[#allocation3 + $0xe0] sm:$0xff]
      %v1163 = vld [vmem:[#allocation3 + $0xe8] sm:$0xff]
      %v1164 = vld [vmem:[#allocation3 + $0xf0] sm:$0xff]
      %v1165 = vld [vmem:[#allocation3 + $0xf8] sm:$0xff]
      %v1166 = vld [vmem:[%s820] sm:$0xf]
      %v1167 = vld [vmem:[%s820 + $0x4] sm:$0xf]
      %v1168 = vld [vmem:[%s820 + $0x8] sm:$0x1]
      %v1169 = vld [vmem:[%s820 + $0xc] sm:$0xf]
      %v1170 = vld [vmem:[%s820 + $0x10] sm:$0xf]
      %v1171 = vld [vmem:[%s820 + $0x14] sm:$0x1]
      %v1172 = vld [vmem:[%s820 + $0x18] sm:$0xf]
      %v1173 = vld [vmem:[%s820 + $0x1c] sm:$0xf]
      %v1174 = vld [vmem:[%s820 + $0x20] sm:$0x1]
      %v1175 = vld [vmem:[%s820 + $0x24] sm:$0xf]
      %v1176 = vld [vmem:[%s820 + $0x28] sm:$0xf]
      %v1177 = vld [vmem:[%s820 + $0x2c] sm:$0x1]
      %v1178 = vld [vmem:[%s820 + $0x30] sm:$0xf]
      %v1179 = vld [vmem:[%s820 + $0x34] sm:$0xf]
      %v1180 = vld [vmem:[%s820 + $0x38] sm:$0x1]
      %v1181 = vld [vmem:[%s820 + $0x3c] sm:$0xf]
      %v1182 = vld [vmem:[%s820 + $0x40] sm:$0xf]
      %v1183 = vld [vmem:[%s820 + $0x44] sm:$0x1]
      %v1184 = vld [vmem:[%s820 + $0x48] sm:$0xf]
      %v1185 = vld [vmem:[%s820 + $0x4c] sm:$0xf]
      %v1186 = vld [vmem:[%s820 + $0x50] sm:$0x1]
      %v1187 = vld [vmem:[%s820 + $0x54] sm:$0xf]
      %v1188 = vld [vmem:[%s820 + $0x58] sm:$0xf]
      %v1189 = vld [vmem:[%s820 + $0x5c] sm:$0x1]
      %v1190 = vld [vmem:[%s820 + $0x60] sm:$0xf]
      %v1191 = vld [vmem:[%s820 + $0x64] sm:$0xf]
      %v1192 = vld [vmem:[%s820 + $0x68] sm:$0x1]
      %v1193 = vld [vmem:[%s820 + $0x6c] sm:$0xf]
      %v1194 = vld [vmem:[%s820 + $0x70] sm:$0xf]
      %v1195 = vld [vmem:[%s820 + $0x74] sm:$0x1]
      %v1196 = vld [vmem:[%s820 + $0x78] sm:$0xf]
      %v1197 = vld [vmem:[%s820 + $0x7c] sm:$0xf]
      %v1198 = vld [vmem:[%s820 + $0x80] sm:$0x1]
      %v1199 = vld [vmem:[%s820 + $0x84] sm:$0xf]
      %v1200 = vld [vmem:[%s820 + $0x88] sm:$0xf]
      %v1201 = vld [vmem:[%s820 + $0x8c] sm:$0x1]
      %v1202 = vld [vmem:[%s820 + $0x90] sm:$0xf]
      %v1203 = vld [vmem:[%s820 + $0x94] sm:$0xf]
      %v1204 = vld [vmem:[%s820 + $0x98] sm:$0x1]
      %v1205 = vld [vmem:[%s820 + $0x9c] sm:$0xf]
      %v1206 = vld [vmem:[%s820 + $0xa0] sm:$0xf]
      %v1207 = vld [vmem:[%s820 + $0xa4] sm:$0x1]
      %v1208 = vld [vmem:[%s820 + $0xa8] sm:$0xf]
      %v1209 = vld [vmem:[%s820 + $0xac] sm:$0xf]
      %v1210 = vld [vmem:[%s820 + $0xb0] sm:$0x1]
      %v1211 = vld [vmem:[%s820 + $0xb4] sm:$0xf]
      %v1212 = vld [vmem:[%s820 + $0xb8] sm:$0xf]
      %v1213 = vld [vmem:[%s820 + $0xbc] sm:$0x1]
      %vm1214 = vsmask.f32 3328
      %vm1215 = vsmask.f32 7440
      %vm1216 = vmor %vm1214, %vm1215
      %v1218 = vshrl.u32 %v1166, 16
      %v1220 = vrot.slane %v1218, 4
      %v1221 = vshll.u32 %v1166, 16
      %v1223 = vrot.slane %v1221, 5
      %v1224 = vor.u32 %v1220, %v1223
      %v1225 = vrot.slane %v1224, 4
      %v1227 = vshll.u32 %v1167, 16
      %v1229 = vrot.slane %v1227, 5
      %v1230 = vsel %vm1216, %v1225, %v1229
      %v1231 = vshrl.u32 %v1167, 16
      %v1233 = vrot.slane %v1231, 4
      %v1234 = vor.u32 %v1233, %v1229
      %v1235 = vrot.slane %v1234, 4
      %v1237 = vshll.u32 %v1168, 16
      %v1239 = vrot.slane %v1237, 5
      %v1240 = vsel %vm1216, %v1235, %v1239
      %v1242 = vshrl.u32 %v1169, 16
      %v1244 = vrot.slane %v1242, 4
      %v1245 = vshll.u32 %v1169, 16
      %v1247 = vrot.slane %v1245, 5
      %v1248 = vor.u32 %v1244, %v1247
      %v1249 = vrot.slane %v1248, 4
      %v1251 = vshll.u32 %v1170, 16
      %v1253 = vrot.slane %v1251, 5
      %v1254 = vsel %vm1216, %v1249, %v1253
      %v1255 = vshrl.u32 %v1170, 16
      %v1257 = vrot.slane %v1255, 4
      %v1258 = vor.u32 %v1257, %v1253
      %v1259 = vrot.slane %v1258, 4
      %v1261 = vshll.u32 %v1171, 16
      %v1263 = vrot.slane %v1261, 5
      %v1264 = vsel %vm1216, %v1259, %v1263
      %v1266 = vshrl.u32 %v1172, 16
      %v1268 = vrot.slane %v1266, 4
      %v1269 = vshll.u32 %v1172, 16
      %v1271 = vrot.slane %v1269, 5
      %v1272 = vor.u32 %v1268, %v1271
      %v1273 = vrot.slane %v1272, 4
      %v1275 = vshll.u32 %v1173, 16
      %v1277 = vrot.slane %v1275, 5
      %v1278 = vsel %vm1216, %v1273, %v1277
      %v1279 = vshrl.u32 %v1173, 16
      %v1281 = vrot.slane %v1279, 4
      %v1282 = vor.u32 %v1281, %v1277
      %v1283 = vrot.slane %v1282, 4
      %v1285 = vshll.u32 %v1174, 16
      %v1287 = vrot.slane %v1285, 5
      %v1288 = vsel %vm1216, %v1283, %v1287
      %v1290 = vshrl.u32 %v1175, 16
      %v1292 = vrot.slane %v1290, 4
      %v1293 = vshll.u32 %v1175, 16
      %v1295 = vrot.slane %v1293, 5
      %v1296 = vor.u32 %v1292, %v1295
      %v1297 = vrot.slane %v1296, 4
      %v1299 = vshll.u32 %v1176, 16
      %v1301 = vrot.slane %v1299, 5
      %v1302 = vsel %vm1216, %v1297, %v1301
      %v1303 = vshrl.u32 %v1176, 16
      %v1305 = vrot.slane %v1303, 4
      %v1306 = vor.u32 %v1305, %v1301
      %v1307 = vrot.slane %v1306, 4
      %v1309 = vshll.u32 %v1177, 16
      %v1311 = vrot.slane %v1309, 5
      %v1312 = vsel %vm1216, %v1307, %v1311
      %v1314 = vshrl.u32 %v1178, 16
      %v1316 = vrot.slane %v1314, 4
      %v1317 = vshll.u32 %v1178, 16
      %v1319 = vrot.slane %v1317, 5
      %v1320 = vor.u32 %v1316, %v1319
      %v1321 = vrot.slane %v1320, 4
      %v1323 = vshll.u32 %v1179, 16
      %v1325 = vrot.slane %v1323, 5
      %v1326 = vsel %vm1216, %v1321, %v1325
      %v1327 = vshrl.u32 %v1179, 16
      %v1329 = vrot.slane %v1327, 4
      %v1330 = vor.u32 %v1329, %v1325
      %v1331 = vrot.slane %v1330, 4
      %v1333 = vshll.u32 %v1180, 16
      %v1335 = vrot.slane %v1333, 5
      %v1336 = vsel %vm1216, %v1331, %v1335
      %v1338 = vshrl.u32 %v1181, 16
      %v1340 = vrot.slane %v1338, 4
      %v1341 = vshll.u32 %v1181, 16
      %v1343 = vrot.slane %v1341, 5
      %v1344 = vor.u32 %v1340, %v1343
      %v1345 = vrot.slane %v1344, 4
      %v1347 = vshll.u32 %v1182, 16
      %v1349 = vrot.slane %v1347, 5
      %v1350 = vsel %vm1216, %v1345, %v1349
      %v1351 = vshrl.u32 %v1182, 16
      %v1353 = vrot.slane %v1351, 4
      %v1354 = vor.u32 %v1353, %v1349
      %v1355 = vrot.slane %v1354, 4
      %v1357 = vshll.u32 %v1183, 16
      %v1359 = vrot.slane %v1357, 5
      %v1360 = vsel %vm1216, %v1355, %v1359
      %v1362 = vshrl.u32 %v1184, 16
      %v1364 = vrot.slane %v1362, 4
      %v1365 = vshll.u32 %v1184, 16
      %v1367 = vrot.slane %v1365, 5
      %v1368 = vor.u32 %v1364, %v1367
      %v1369 = vrot.slane %v1368, 4
      %v1371 = vshll.u32 %v1185, 16
      %v1373 = vrot.slane %v1371, 5
      %v1374 = vsel %vm1216, %v1369, %v1373
      %v1375 = vshrl.u32 %v1185, 16
      %v1377 = vrot.slane %v1375, 4
      %v1378 = vor.u32 %v1377, %v1373
      %v1379 = vrot.slane %v1378, 4
      %v1381 = vshll.u32 %v1186, 16
      %v1383 = vrot.slane %v1381, 5
      %v1384 = vsel %vm1216, %v1379, %v1383
      %v1386 = vshrl.u32 %v1187, 16
      %v1388 = vrot.slane %v1386, 4
      %v1389 = vshll.u32 %v1187, 16
      %v1391 = vrot.slane %v1389, 5
      %v1392 = vor.u32 %v1388, %v1391
      %v1393 = vrot.slane %v1392, 4
      %v1395 = vshll.u32 %v1188, 16
      %v1397 = vrot.slane %v1395, 5
      %v1398 = vsel %vm1216, %v1393, %v1397
      %v1399 = vshrl.u32 %v1188, 16
      %v1401 = vrot.slane %v1399, 4
      %v1402 = vor.u32 %v1401, %v1397
      %v1403 = vrot.slane %v1402, 4
      %v1405 = vshll.u32 %v1189, 16
      %v1407 = vrot.slane %v1405, 5
      %v1408 = vsel %vm1216, %v1403, %v1407
      %v1410 = vshrl.u32 %v1190, 16
      %v1412 = vrot.slane %v1410, 4
      %v1413 = vshll.u32 %v1190, 16
      %v1415 = vrot.slane %v1413, 5
      %v1416 = vor.u32 %v1412, %v1415
      %v1417 = vrot.slane %v1416, 4
      %v1419 = vshll.u32 %v1191, 16
      %v1421 = vrot.slane %v1419, 5
      %v1422 = vsel %vm1216, %v1417, %v1421
      %v1423 = vshrl.u32 %v1191, 16
      %v1425 = vrot.slane %v1423, 4
      %v1426 = vor.u32 %v1425, %v1421
      %v1427 = vrot.slane %v1426, 4
      %v1429 = vshll.u32 %v1192, 16
      %v1431 = vrot.slane %v1429, 5
      %v1432 = vsel %vm1216, %v1427, %v1431
      %v1434 = vshrl.u32 %v1193, 16
      %v1436 = vrot.slane %v1434, 4
      %v1437 = vshll.u32 %v1193, 16
      %v1439 = vrot.slane %v1437, 5
      %v1440 = vor.u32 %v1436, %v1439
      %v1441 = vrot.slane %v1440, 4
      %v1443 = vshll.u32 %v1194, 16
      %v1445 = vrot.slane %v1443, 5
      %v1446 = vsel %vm1216, %v1441, %v1445
      %v1447 = vshrl.u32 %v1194, 16
      %v1449 = vrot.slane %v1447, 4
      %v1450 = vor.u32 %v1449, %v1445
      %v1451 = vrot.slane %v1450, 4
      %v1453 = vshll.u32 %v1195, 16
      %v1455 = vrot.slane %v1453, 5
      %v1456 = vsel %vm1216, %v1451, %v1455
      %v1458 = vshrl.u32 %v1196, 16
      %v1460 = vrot.slane %v1458, 4
      %v1461 = vshll.u32 %v1196, 16
      %v1463 = vrot.slane %v1461, 5
      %v1464 = vor.u32 %v1460, %v1463
      %v1465 = vrot.slane %v1464, 4
      %v1467 = vshll.u32 %v1197, 16
      %v1469 = vrot.slane %v1467, 5
      %v1470 = vsel %vm1216, %v1465, %v1469
      %v1471 = vshrl.u32 %v1197, 16
      %v1473 = vrot.slane %v1471, 4
      %v1474 = vor.u32 %v1473, %v1469
      %v1475 = vrot.slane %v1474, 4
      %v1477 = vshll.u32 %v1198, 16
      %v1479 = vrot.slane %v1477, 5
      %v1480 = vsel %vm1216, %v1475, %v1479
      %v1482 = vshrl.u32 %v1199, 16
      %v1484 = vrot.slane %v1482, 4
      %v1485 = vshll.u32 %v1199, 16
      %v1487 = vrot.slane %v1485, 5
      %v1488 = vor.u32 %v1484, %v1487
      %v1489 = vrot.slane %v1488, 4
      %v1491 = vshll.u32 %v1200, 16
      %v1493 = vrot.slane %v1491, 5
      %v1494 = vsel %vm1216, %v1489, %v1493
      %v1495 = vshrl.u32 %v1200, 16
      %v1497 = vrot.slane %v1495, 4
      %v1498 = vor.u32 %v1497, %v1493
      %v1499 = vrot.slane %v1498, 4
      %v1501 = vshll.u32 %v1201, 16
      %v1503 = vrot.slane %v1501, 5
      %v1504 = vsel %vm1216, %v1499, %v1503
      %v1506 = vshrl.u32 %v1202, 16
      %v1508 = vrot.slane %v1506, 4
      %v1509 = vshll.u32 %v1202, 16
      %v1511 = vrot.slane %v1509, 5
      %v1512 = vor.u32 %v1508, %v1511
      %v1513 = vrot.slane %v1512, 4
      %v1515 = vshll.u32 %v1203, 16
      %v1517 = vrot.slane %v1515, 5
      %v1518 = vsel %vm1216, %v1513, %v1517
      %v1519 = vshrl.u32 %v1203, 16
      %v1521 = vrot.slane %v1519, 4
      %v1522 = vor.u32 %v1521, %v1517
      %v1523 = vrot.slane %v1522, 4
      %v1525 = vshll.u32 %v1204, 16
      %v1527 = vrot.slane %v1525, 5
      %v1528 = vsel %vm1216, %v1523, %v1527
      %v1530 = vshrl.u32 %v1205, 16
      %v1532 = vrot.slane %v1530, 4
      %v1533 = vshll.u32 %v1205, 16
      %v1535 = vrot.slane %v1533, 5
      %v1536 = vor.u32 %v1532, %v1535
      %v1537 = vrot.slane %v1536, 4
      %v1539 = vshll.u32 %v1206, 16
      %v1541 = vrot.slane %v1539, 5
      %v1542 = vsel %vm1216, %v1537, %v1541
      %v1543 = vshrl.u32 %v1206, 16
      %v1545 = vrot.slane %v1543, 4
      %v1546 = vor.u32 %v1545, %v1541
      %v1547 = vrot.slane %v1546, 4
      %v1549 = vshll.u32 %v1207, 16
      %v1551 = vrot.slane %v1549, 5
      %v1552 = vsel %vm1216, %v1547, %v1551
      %v1554 = vshrl.u32 %v1208, 16
      %v1556 = vrot.slane %v1554, 4
      %v1557 = vshll.u32 %v1208, 16
      %v1559 = vrot.slane %v1557, 5
      %v1560 = vor.u32 %v1556, %v1559
      %v1561 = vrot.slane %v1560, 4
      %v1563 = vshll.u32 %v1209, 16
      %v1565 = vrot.slane %v1563, 5
      %v1566 = vsel %vm1216, %v1561, %v1565
      %v1567 = vshrl.u32 %v1209, 16
      %v1569 = vrot.slane %v1567, 4
      %v1570 = vor.u32 %v1569, %v1565
      %v1571 = vrot.slane %v1570, 4
      %v1573 = vshll.u32 %v1210, 16
      %v1575 = vrot.slane %v1573, 5
      %v1576 = vsel %vm1216, %v1571, %v1575
      %v1578 = vshrl.u32 %v1211, 16
      %v1580 = vrot.slane %v1578, 4
      %v1581 = vshll.u32 %v1211, 16
      %v1583 = vrot.slane %v1581, 5
      %v1584 = vor.u32 %v1580, %v1583
      %v1585 = vrot.slane %v1584, 4
      %v1587 = vshll.u32 %v1212, 16
      %v1589 = vrot.slane %v1587, 5
      %v1590 = vsel %vm1216, %v1585, %v1589
      %v1591 = vshrl.u32 %v1212, 16
      %v1593 = vrot.slane %v1591, 4
      %v1594 = vor.u32 %v1593, %v1589
      %v1595 = vrot.slane %v1594, 4
      %v1597 = vshll.u32 %v1213, 16
      %v1599 = vrot.slane %v1597, 5
      %v1600 = vsel %vm1216, %v1595, %v1599
      %s1601 = scalar_lea.vmem %s262, 64
      %v1602 = vld [vmem:[%s1601] sm:$0xf]
      %v1603 = vld [vmem:[%s1601 + $0x4] sm:$0xf]
      %v1604 = vld [vmem:[%s1601 + $0x8] sm:$0xf]
      %v1605 = vld [vmem:[%s1601 + $0xc] sm:$0xf]
      %v1606 = vld [vmem:[%s1601 + $0x10] sm:$0xf]
      %v1607 = vld [vmem:[%s1601 + $0x14] sm:$0xf]
      %v1608 = vld [vmem:[%s1601 + $0x18] sm:$0xf]
      %v1609 = vld [vmem:[%s1601 + $0x1c] sm:$0xf]
      %v1610 = vld [vmem:[%s1601 + $0x20] sm:$0xf]
      %v1611 = vld [vmem:[%s1601 + $0x24] sm:$0xf]
      %v1612 = vld [vmem:[%s1601 + $0x28] sm:$0xf]
      %v1613 = vld [vmem:[%s1601 + $0x2c] sm:$0xf]
      %v1614 = vld [vmem:[%s1601 + $0x30] sm:$0xf]
      %v1615 = vld [vmem:[%s1601 + $0x34] sm:$0xf]
      %v1616 = vld [vmem:[%s1601 + $0x38] sm:$0xf]
      %v1617 = vld [vmem:[%s1601 + $0x3c] sm:$0xf]
      %v1618 = vunpack.c.l.b16 %v1230
      %v1619 = vunpack.c.l.b16 %v1240
      %v1620 = vunpack.c.l.b16 %v1254
      %v1621 = vunpack.c.l.b16 %v1264
      %v1622 = vunpack.c.l.b16 %v1278
      %v1623 = vunpack.c.l.b16 %v1288
      %v1624 = vunpack.c.l.b16 %v1302
      %v1625 = vunpack.c.l.b16 %v1312
      %v1626 = vunpack.c.l.b16 %v1326
      %v1627 = vunpack.c.l.b16 %v1336
      %v1628 = vunpack.c.l.b16 %v1350
      %v1629 = vunpack.c.l.b16 %v1360
      %v1630 = vunpack.c.l.b16 %v1374
      %v1631 = vunpack.c.l.b16 %v1384
      %v1632 = vunpack.c.l.b16 %v1398
      %v1633 = vunpack.c.l.b16 %v1408
      %v1634 = vunpack.c.l.b16 %v1422
      %v1635 = vunpack.c.l.b16 %v1432
      %v1636 = vunpack.c.l.b16 %v1446
      %v1637 = vunpack.c.l.b16 %v1456
      %v1638 = vunpack.c.l.b16 %v1470
      %v1639 = vunpack.c.l.b16 %v1480
      %v1640 = vunpack.c.l.b16 %v1494
      %v1641 = vunpack.c.l.b16 %v1504
      %v1642 = vunpack.c.l.b16 %v1518
      %v1643 = vunpack.c.l.b16 %v1528
      %v1644 = vunpack.c.l.b16 %v1542
      %v1645 = vunpack.c.l.b16 %v1552
      %v1646 = vunpack.c.l.b16 %v1566
      %v1647 = vunpack.c.l.b16 %v1576
      %v1648 = vunpack.c.l.b16 %v1590
      %v1649 = vunpack.c.l.b16 %v1600
      %v1650 = vpack.c.b16 %v1619, %v1618
      %v1651 = vpack.c.b16 %v1621, %v1620
      %v1652 = vpack.c.b16 %v1623, %v1622
      %v1653 = vpack.c.b16 %v1625, %v1624
      %v1654 = vpack.c.b16 %v1627, %v1626
      %v1655 = vpack.c.b16 %v1629, %v1628
      %v1656 = vpack.c.b16 %v1631, %v1630
      %v1657 = vpack.c.b16 %v1633, %v1632
      %v1658 = vpack.c.b16 %v1635, %v1634
      %v1659 = vpack.c.b16 %v1637, %v1636
      %v1660 = vpack.c.b16 %v1639, %v1638
      %v1661 = vpack.c.b16 %v1641, %v1640
      %v1662 = vpack.c.b16 %v1643, %v1642
      %v1663 = vpack.c.b16 %v1645, %v1644
      %v1664 = vpack.c.b16 %v1647, %v1646
      %v1665 = vpack.c.b16 %v1649, %v1648
      %v1698 = vunpack.c.l.b16 %v1602
      %v1699 = vunpack.c.l.b16 %v1603
      %v1700 = vunpack.c.l.b16 %v1604
      %v1701 = vunpack.c.l.b16 %v1605
      %v1702 = vunpack.c.l.b16 %v1606
      %v1703 = vunpack.c.l.b16 %v1607
      %v1704 = vunpack.c.l.b16 %v1608
      %v1705 = vunpack.c.l.b16 %v1609
      %v1706 = vunpack.c.l.b16 %v1610
      %v1707 = vunpack.c.l.b16 %v1611
      %v1708 = vunpack.c.l.b16 %v1612
      %v1709 = vunpack.c.l.b16 %v1613
      %v1710 = vunpack.c.l.b16 %v1614
      %v1711 = vunpack.c.l.b16 %v1615
      %v1712 = vunpack.c.l.b16 %v1616
      %v1713 = vunpack.c.l.b16 %v1617
      %v1714 = vpack.c.b16 %v1699, %v1698
      %v1715 = vpack.c.b16 %v1701, %v1700
      %v1716 = vpack.c.b16 %v1703, %v1702
      %v1717 = vpack.c.b16 %v1705, %v1704
      %v1718 = vpack.c.b16 %v1707, %v1706
      %v1719 = vpack.c.b16 %v1709, %v1708
      %v1720 = vpack.c.b16 %v1711, %v1710
      %v1721 = vpack.c.b16 %v1713, %v1712
      %1730 = vmatpush.bf16.msra.mxu0 %v1721
      %1731 = vmatpush.bf16.msra.mxu0 %v1720
      %1732 = vmatpush.bf16.msra.mxu0 %v1719
      %1733 = vmatpush.bf16.msra.mxu0 %v1718
      %1734 = vmatpush.bf16.msra.mxu0 %v1717
      %1735 = vmatpush.bf16.msra.mxu0 %v1716
      %1736 = vmatpush.bf16.msra.mxu0 %v1715
      %1737 = vmatpush.bf16.msra.mxu0 %v1714
      %1738 = vmatmul.bf16.gmra.mxu0 %v1650
      %v1739 = vpop.f32.mrf.mxu0
      %v1740 = vadd.f32 0.0, %v1739
      %v1741 = vpop.f32.mrf.mxu0
      %v1742 = vadd.f32 0.0, %v1741
      %1743 = vmatmul.bf16.gmra.mxu0 %v1651
      %v1744 = vpop.f32.mrf.mxu0
      %v1745 = vadd.f32 0.0, %v1744
      %v1746 = vpop.f32.mrf.mxu0
      %v1747 = vadd.f32 0.0, %v1746
      %1748 = vmatmul.bf16.gmra.mxu0 %v1652
      %v1749 = vpop.f32.mrf.mxu0
      %v1750 = vadd.f32 0.0, %v1749
      %v1751 = vpop.f32.mrf.mxu0
      %v1752 = vadd.f32 0.0, %v1751
      %1753 = vmatmul.bf16.gmra.mxu0 %v1653
      %v1754 = vpop.f32.mrf.mxu0
      %v1755 = vadd.f32 0.0, %v1754
      %v1756 = vpop.f32.mrf.mxu0
      %v1757 = vadd.f32 0.0, %v1756
      %1758 = vmatmul.bf16.gmra.mxu0 %v1654
      %v1759 = vpop.f32.mrf.mxu0
      %v1760 = vadd.f32 0.0, %v1759
      %v1761 = vpop.f32.mrf.mxu0
      %v1762 = vadd.f32 0.0, %v1761
      %1763 = vmatmul.bf16.gmra.mxu0 %v1655
      %v1764 = vpop.f32.mrf.mxu0
      %v1765 = vadd.f32 0.0, %v1764
      %v1766 = vpop.f32.mrf.mxu0
      %v1767 = vadd.f32 0.0, %v1766
      %1768 = vmatmul.bf16.gmra.mxu0 %v1656
      %v1769 = vpop.f32.mrf.mxu0
      %v1770 = vadd.f32 0.0, %v1769
      %v1771 = vpop.f32.mrf.mxu0
      %v1772 = vadd.f32 0.0, %v1771
      %1773 = vmatmul.bf16.gmra.mxu0 %v1657
      %v1774 = vpop.f32.mrf.mxu0
      %v1775 = vadd.f32 0.0, %v1774
      %v1776 = vpop.f32.mrf.mxu0
      %v1777 = vadd.f32 0.0, %v1776
      %1778 = vmatmul.bf16.gmra.mxu0 %v1658
      %v1779 = vpop.f32.mrf.mxu0
      %v1780 = vadd.f32 0.0, %v1779
      %v1781 = vpop.f32.mrf.mxu0
      %v1782 = vadd.f32 0.0, %v1781
      %1783 = vmatmul.bf16.gmra.mxu0 %v1659
      %v1784 = vpop.f32.mrf.mxu0
      %v1785 = vadd.f32 0.0, %v1784
      %v1786 = vpop.f32.mrf.mxu0
      %v1787 = vadd.f32 0.0, %v1786
      %1788 = vmatmul.bf16.gmra.mxu0 %v1660
      %v1789 = vpop.f32.mrf.mxu0
      %v1790 = vadd.f32 0.0, %v1789
      %v1791 = vpop.f32.mrf.mxu0
      %v1792 = vadd.f32 0.0, %v1791
      %1793 = vmatmul.bf16.gmra.mxu0 %v1661
      %v1794 = vpop.f32.mrf.mxu0
      %v1795 = vadd.f32 0.0, %v1794
      %v1796 = vpop.f32.mrf.mxu0
      %v1797 = vadd.f32 0.0, %v1796
      %1798 = vmatmul.bf16.gmra.mxu0 %v1662
      %v1799 = vpop.f32.mrf.mxu0
      %v1800 = vadd.f32 0.0, %v1799
      %v1801 = vpop.f32.mrf.mxu0
      %v1802 = vadd.f32 0.0, %v1801
      %1803 = vmatmul.bf16.gmra.mxu0 %v1663
      %v1804 = vpop.f32.mrf.mxu0
      %v1805 = vadd.f32 0.0, %v1804
      %v1806 = vpop.f32.mrf.mxu0
      %v1807 = vadd.f32 0.0, %v1806
      %1808 = vmatmul.bf16.gmra.mxu0 %v1664
      %v1809 = vpop.f32.mrf.mxu0
      %v1810 = vadd.f32 0.0, %v1809
      %v1811 = vpop.f32.mrf.mxu0
      %v1812 = vadd.f32 0.0, %v1811
      %1813 = vmatmul.bf16.gmra.mxu0 %v1665
      %v1814 = vpop.f32.mrf.mxu0
      %v1815 = vadd.f32 0.0, %v1814
      %v1816 = vpop.f32.mrf.mxu0
      %v1817 = vadd.f32 0.0, %v1816
      %1818 = vdwg.mxu0
      %v1819 = vadd.f32 %v1134, %v1740
      %v1820 = vadd.f32 %v1135, %v1742
      %v1821 = vadd.f32 %v1136, %v1745
      %v1822 = vadd.f32 %v1137, %v1747
      %v1823 = vadd.f32 %v1138, %v1750
      %v1824 = vadd.f32 %v1139, %v1752
      %v1825 = vadd.f32 %v1140, %v1755
      %v1826 = vadd.f32 %v1141, %v1757
      %v1827 = vadd.f32 %v1142, %v1760
      %v1828 = vadd.f32 %v1143, %v1762
      %v1829 = vadd.f32 %v1144, %v1765
      %v1830 = vadd.f32 %v1145, %v1767
      %v1831 = vadd.f32 %v1146, %v1770
      %v1832 = vadd.f32 %v1147, %v1772
      %v1833 = vadd.f32 %v1148, %v1775
      %v1834 = vadd.f32 %v1149, %v1777
      %v1835 = vadd.f32 %v1150, %v1780
      %v1836 = vadd.f32 %v1151, %v1782
      %v1837 = vadd.f32 %v1152, %v1785
      %v1838 = vadd.f32 %v1153, %v1787
      %v1839 = vadd.f32 %v1154, %v1790
      %v1840 = vadd.f32 %v1155, %v1792
      %v1841 = vadd.f32 %v1156, %v1795
      %v1842 = vadd.f32 %v1157, %v1797
      %v1843 = vadd.f32 %v1158, %v1800
      %v1844 = vadd.f32 %v1159, %v1802
      %v1845 = vadd.f32 %v1160, %v1805
      %v1846 = vadd.f32 %v1161, %v1807
      %v1847 = vadd.f32 %v1162, %v1810
      %v1848 = vadd.f32 %v1163, %v1812
      %v1849 = vadd.f32 %v1164, %v1815
      %v1850 = vadd.f32 %v1165, %v1817
      %1851 = vst [vmem:[#allocation3] sm:$0xff] %v1819
      %1852 = vst [vmem:[#allocation3 + $0x8] sm:$0xff] %v1820
      %1853 = vst [vmem:[#allocation3 + $0x10] sm:$0xff] %v1821
      %1854 = vst [vmem:[#allocation3 + $0x18] sm:$0xff] %v1822
      %1855 = vst [vmem:[#allocation3 + $0x20] sm:$0xff] %v1823
      %1856 = vst [vmem:[#allocation3 + $0x28] sm:$0xff] %v1824
      %1857 = vst [vmem:[#allocation3 + $0x30] sm:$0xff] %v1825
      %1858 = vst [vmem:[#allocation3 + $0x38] sm:$0xff] %v1826
      %1859 = vst [vmem:[#allocation3 + $0x40] sm:$0xff] %v1827
      %1860 = vst [vmem:[#allocation3 + $0x48] sm:$0xff] %v1828
      %1861 = vst [vmem:[#allocation3 + $0x50] sm:$0xff] %v1829
      %1862 = vst [vmem:[#allocation3 + $0x58] sm:$0xff] %v1830
      %1863 = vst [vmem:[#allocation3 + $0x60] sm:$0xff] %v1831
      %1864 = vst [vmem:[#allocation3 + $0x68] sm:$0xff] %v1832
      %1865 = vst [vmem:[#allocation3 + $0x70] sm:$0xff] %v1833
      %1866 = vst [vmem:[#allocation3 + $0x78] sm:$0xff] %v1834
      %1867 = vst [vmem:[#allocation3 + $0x80] sm:$0xff] %v1835
      %1868 = vst [vmem:[#allocation3 + $0x88] sm:$0xff] %v1836
      %1869 = vst [vmem:[#allocation3 + $0x90] sm:$0xff] %v1837
      %1870 = vst [vmem:[#allocation3 + $0x98] sm:$0xff] %v1838
      %1871 = vst [vmem:[#allocation3 + $0xa0] sm:$0xff] %v1839
      %1872 = vst [vmem:[#allocation3 + $0xa8] sm:$0xff] %v1840
      %1873 = vst [vmem:[#allocation3 + $0xb0] sm:$0xff] %v1841
      %1874 = vst [vmem:[#allocation3 + $0xb8] sm:$0xff] %v1842
      %1875 = vst [vmem:[#allocation3 + $0xc0] sm:$0xff] %v1843
      %1876 = vst [vmem:[#allocation3 + $0xc8] sm:$0xff] %v1844
      %1877 = vst [vmem:[#allocation3 + $0xd0] sm:$0xff] %v1845
      %1878 = vst [vmem:[#allocation3 + $0xd8] sm:$0xff] %v1846
      %1879 = vst [vmem:[#allocation3 + $0xe0] sm:$0xff] %v1847
      %1880 = vst [vmem:[#allocation3 + $0xe8] sm:$0xff] %v1848
      %1881 = vst [vmem:[#allocation3 + $0xf0] sm:$0xff] %v1849
      %1882 = vst [vmem:[#allocation3 + $0xf8] sm:$0xff] %v1850
      %v1883 = vld [vmem:[#allocation3] sm:$0xff]
      %v1884 = vld [vmem:[#allocation3 + $0x8] sm:$0xff]
      %v1885 = vld [vmem:[#allocation3 + $0x10] sm:$0xff]
      %v1886 = vld [vmem:[#allocation3 + $0x18] sm:$0xff]
      %v1887 = vld [vmem:[#allocation3 + $0x20] sm:$0xff]
      %v1888 = vld [vmem:[#allocation3 + $0x28] sm:$0xff]
      %v1889 = vld [vmem:[#allocation3 + $0x30] sm:$0xff]
      %v1890 = vld [vmem:[#allocation3 + $0x38] sm:$0xff]
      %v1891 = vld [vmem:[#allocation3 + $0x40] sm:$0xff]
      %v1892 = vld [vmem:[#allocation3 + $0x48] sm:$0xff]
      %v1893 = vld [vmem:[#allocation3 + $0x50] sm:$0xff]
      %v1894 = vld [vmem:[#allocation3 + $0x58] sm:$0xff]
      %v1895 = vld [vmem:[#allocation3 + $0x60] sm:$0xff]
      %v1896 = vld [vmem:[#allocation3 + $0x68] sm:$0xff]
      %v1897 = vld [vmem:[#allocation3 + $0x70] sm:$0xff]
      %v1898 = vld [vmem:[#allocation3 + $0x78] sm:$0xff]
      %v1899 = vld [vmem:[#allocation3 + $0x80] sm:$0xff]
      %v1900 = vld [vmem:[#allocation3 + $0x88] sm:$0xff]
      %v1901 = vld [vmem:[#allocation3 + $0x90] sm:$0xff]
      %v1902 = vld [vmem:[#allocation3 + $0x98] sm:$0xff]
      %v1903 = vld [vmem:[#allocation3 + $0xa0] sm:$0xff]
      %v1904 = vld [vmem:[#allocation3 + $0xa8] sm:$0xff]
      %v1905 = vld [vmem:[#allocation3 + $0xb0] sm:$0xff]
      %v1906 = vld [vmem:[#allocation3 + $0xb8] sm:$0xff]
      %v1907 = vld [vmem:[#allocation3 + $0xc0] sm:$0xff]
      %v1908 = vld [vmem:[#allocation3 + $0xc8] sm:$0xff]
      %v1909 = vld [vmem:[#allocation3 + $0xd0] sm:$0xff]
      %v1910 = vld [vmem:[#allocation3 + $0xd8] sm:$0xff]
      %v1911 = vld [vmem:[#allocation3 + $0xe0] sm:$0xff]
      %v1912 = vld [vmem:[#allocation3 + $0xe8] sm:$0xff]
      %v1913 = vld [vmem:[#allocation3 + $0xf0] sm:$0xff]
      %v1914 = vld [vmem:[#allocation3 + $0xf8] sm:$0xff]
      %v1915 = vld [vmem:[%s820] sm:$0xe]
      %v1916 = vld [vmem:[%s820 + $0x4] sm:$0xf]
      %v1917 = vld [vmem:[%s820 + $0x8] sm:$0x1]
      %v1918 = vld [vmem:[%s820 + $0xc] sm:$0xe]
      %v1919 = vld [vmem:[%s820 + $0x10] sm:$0xf]
      %v1920 = vld [vmem:[%s820 + $0x14] sm:$0x1]
      %v1921 = vld [vmem:[%s820 + $0x18] sm:$0xe]
      %v1922 = vld [vmem:[%s820 + $0x1c] sm:$0xf]
      %v1923 = vld [vmem:[%s820 + $0x20] sm:$0x1]
      %v1924 = vld [vmem:[%s820 + $0x24] sm:$0xe]
      %v1925 = vld [vmem:[%s820 + $0x28] sm:$0xf]
      %v1926 = vld [vmem:[%s820 + $0x2c] sm:$0x1]
      %v1927 = vld [vmem:[%s820 + $0x30] sm:$0xe]
      %v1928 = vld [vmem:[%s820 + $0x34] sm:$0xf]
      %v1929 = vld [vmem:[%s820 + $0x38] sm:$0x1]
      %v1930 = vld [vmem:[%s820 + $0x3c] sm:$0xe]
      %v1931 = vld [vmem:[%s820 + $0x40] sm:$0xf]
      %v1932 = vld [vmem:[%s820 + $0x44] sm:$0x1]
      %v1933 = vld [vmem:[%s820 + $0x48] sm:$0xe]
      %v1934 = vld [vmem:[%s820 + $0x4c] sm:$0xf]
      %v1935 = vld [vmem:[%s820 + $0x50] sm:$0x1]
      %v1936 = vld [vmem:[%s820 + $0x54] sm:$0xe]
      %v1937 = vld [vmem:[%s820 + $0x58] sm:$0xf]
      %v1938 = vld [vmem:[%s820 + $0x5c] sm:$0x1]
      %v1939 = vld [vmem:[%s820 + $0x60] sm:$0xe]
      %v1940 = vld [vmem:[%s820 + $0x64] sm:$0xf]
      %v1941 = vld [vmem:[%s820 + $0x68] sm:$0x1]
      %v1942 = vld [vmem:[%s820 + $0x6c] sm:$0xe]
      %v1943 = vld [vmem:[%s820 + $0x70] sm:$0xf]
      %v1944 = vld [vmem:[%s820 + $0x74] sm:$0x1]
      %v1945 = vld [vmem:[%s820 + $0x78] sm:$0xe]
      %v1946 = vld [vmem:[%s820 + $0x7c] sm:$0xf]
      %v1947 = vld [vmem:[%s820 + $0x80] sm:$0x1]
      %v1948 = vld [vmem:[%s820 + $0x84] sm:$0xe]
      %v1949 = vld [vmem:[%s820 + $0x88] sm:$0xf]
      %v1950 = vld [vmem:[%s820 + $0x8c] sm:$0x1]
      %v1951 = vld [vmem:[%s820 + $0x90] sm:$0xe]
      %v1952 = vld [vmem:[%s820 + $0x94] sm:$0xf]
      %v1953 = vld [vmem:[%s820 + $0x98] sm:$0x1]
      %v1954 = vld [vmem:[%s820 + $0x9c] sm:$0xe]
      %v1955 = vld [vmem:[%s820 + $0xa0] sm:$0xf]
      %v1956 = vld [vmem:[%s820 + $0xa4] sm:$0x1]
      %v1957 = vld [vmem:[%s820 + $0xa8] sm:$0xe]
      %v1958 = vld [vmem:[%s820 + $0xac] sm:$0xf]
      %v1959 = vld [vmem:[%s820 + $0xb0] sm:$0x1]
      %v1960 = vld [vmem:[%s820 + $0xb4] sm:$0xe]
      %v1961 = vld [vmem:[%s820 + $0xb8] sm:$0xf]
      %v1962 = vld [vmem:[%s820 + $0xbc] sm:$0x1]
      %vm2011 = vcmask 1042432
      %vm2012 = vcmask 1046532
      %vm2013 = vmor %vm2011, %vm2012
      %v2014 = vrot.slane %v1915, 5
      %v2015 = vrot.slane %v2014, 4
      %v2016 = vrot.slane %v1916, 5
      %v2017 = vsel %vm2013, %v2015, %v2016
      %v2018 = vrot.slane %v2016, 4
      %v2019 = vrot.slane %v1917, 5
      %v2020 = vsel %vm2013, %v2018, %v2019
      %v2021 = vrot.slane %v1918, 5
      %v2022 = vrot.slane %v2021, 4
      %v2023 = vrot.slane %v1919, 5
      %v2024 = vsel %vm2013, %v2022, %v2023
      %v2025 = vrot.slane %v2023, 4
      %v2026 = vrot.slane %v1920, 5
      %v2027 = vsel %vm2013, %v2025, %v2026
      %v2028 = vrot.slane %v1921, 5
      %v2029 = vrot.slane %v2028, 4
      %v2030 = vrot.slane %v1922, 5
      %v2031 = vsel %vm2013, %v2029, %v2030
      %v2032 = vrot.slane %v2030, 4
      %v2033 = vrot.slane %v1923, 5
      %v2034 = vsel %vm2013, %v2032, %v2033
      %v2035 = vrot.slane %v1924, 5
      %v2036 = vrot.slane %v2035, 4
      %v2037 = vrot.slane %v1925, 5
      %v2038 = vsel %vm2013, %v2036, %v2037
      %v2039 = vrot.slane %v2037, 4
      %v2040 = vrot.slane %v1926, 5
      %v2041 = vsel %vm2013, %v2039, %v2040
      %v2042 = vrot.slane %v1927, 5
      %v2043 = vrot.slane %v2042, 4
      %v2044 = vrot.slane %v1928, 5
      %v2045 = vsel %vm2013, %v2043, %v2044
      %v2046 = vrot.slane %v2044, 4
      %v2047 = vrot.slane %v1929, 5
      %v2048 = vsel %vm2013, %v2046, %v2047
      %v2049 = vrot.slane %v1930, 5
      %v2050 = vrot.slane %v2049, 4
      %v2051 = vrot.slane %v1931, 5
      %v2052 = vsel %vm2013, %v2050, %v2051
      %v2053 = vrot.slane %v2051, 4
      %v2054 = vrot.slane %v1932, 5
      %v2055 = vsel %vm2013, %v2053, %v2054
      %v2056 = vrot.slane %v1933, 5
      %v2057 = vrot.slane %v2056, 4
      %v2058 = vrot.slane %v1934, 5
      %v2059 = vsel %vm2013, %v2057, %v2058
      %v2060 = vrot.slane %v2058, 4
      %v2061 = vrot.slane %v1935, 5
      %v2062 = vsel %vm2013, %v2060, %v2061
      %v2063 = vrot.slane %v1936, 5
      %v2064 = vrot.slane %v2063, 4
      %v2065 = vrot.slane %v1937, 5
      %v2066 = vsel %vm2013, %v2064, %v2065
      %v2067 = vrot.slane %v2065, 4
      %v2068 = vrot.slane %v1938, 5
      %v2069 = vsel %vm2013, %v2067, %v2068
      %v2070 = vrot.slane %v1939, 5
      %v2071 = vrot.slane %v2070, 4
      %v2072 = vrot.slane %v1940, 5
      %v2073 = vsel %vm2013, %v2071, %v2072
      %v2074 = vrot.slane %v2072, 4
      %v2075 = vrot.slane %v1941, 5
      %v2076 = vsel %vm2013, %v2074, %v2075
      %v2077 = vrot.slane %v1942, 5
      %v2078 = vrot.slane %v2077, 4
      %v2079 = vrot.slane %v1943, 5
      %v2080 = vsel %vm2013, %v2078, %v2079
      %v2081 = vrot.slane %v2079, 4
      %v2082 = vrot.slane %v1944, 5
      %v2083 = vsel %vm2013, %v2081, %v2082
      %v2084 = vrot.slane %v1945, 5
      %v2085 = vrot.slane %v2084, 4
      %v2086 = vrot.slane %v1946, 5
      %v2087 = vsel %vm2013, %v2085, %v2086
      %v2088 = vrot.slane %v2086, 4
      %v2089 = vrot.slane %v1947, 5
      %v2090 = vsel %vm2013, %v2088, %v2089
      %v2091 = vrot.slane %v1948, 5
      %v2092 = vrot.slane %v2091, 4
      %v2093 = vrot.slane %v1949, 5
      %v2094 = vsel %vm2013, %v2092, %v2093
      %v2095 = vrot.slane %v2093, 4
      %v2096 = vrot.slane %v1950, 5
      %v2097 = vsel %vm2013, %v2095, %v2096
      %v2098 = vrot.slane %v1951, 5
      %v2099 = vrot.slane %v2098, 4
      %v2100 = vrot.slane %v1952, 5
      %v2101 = vsel %vm2013, %v2099, %v2100
      %v2102 = vrot.slane %v2100, 4
      %v2103 = vrot.slane %v1953, 5
      %v2104 = vsel %vm2013, %v2102, %v2103
      %v2105 = vrot.slane %v1954, 5
      %v2106 = vrot.slane %v2105, 4
      %v2107 = vrot.slane %v1955, 5
      %v2108 = vsel %vm2013, %v2106, %v2107
      %v2109 = vrot.slane %v2107, 4
      %v2110 = vrot.slane %v1956, 5
      %v2111 = vsel %vm2013, %v2109, %v2110
      %v2112 = vrot.slane %v1957, 5
      %v2113 = vrot.slane %v2112, 4
      %v2114 = vrot.slane %v1958, 5
      %v2115 = vsel %vm2013, %v2113, %v2114
      %v2116 = vrot.slane %v2114, 4
      %v2117 = vrot.slane %v1959, 5
      %v2118 = vsel %vm2013, %v2116, %v2117
      %v2119 = vrot.slane %v1960, 5
      %v2120 = vrot.slane %v2119, 4
      %v2121 = vrot.slane %v1961, 5
      %v2122 = vsel %vm2013, %v2120, %v2121
      %v2123 = vrot.slane %v2121, 4
      %v2124 = vrot.slane %v1962, 5
      %v2125 = vsel %vm2013, %v2123, %v2124
      %s2126 = scalar_lea.vmem %s262, 128
      %v2127 = vld [vmem:[%s2126] sm:$0xf]
      %v2128 = vld [vmem:[%s2126 + $0x4] sm:$0xf]
      %v2129 = vld [vmem:[%s2126 + $0x8] sm:$0xf]
      %v2130 = vld [vmem:[%s2126 + $0xc] sm:$0xf]
      %v2131 = vld [vmem:[%s2126 + $0x10] sm:$0xf]
      %v2132 = vld [vmem:[%s2126 + $0x14] sm:$0xf]
      %v2133 = vld [vmem:[%s2126 + $0x18] sm:$0xf]
      %v2134 = vld [vmem:[%s2126 + $0x1c] sm:$0xf]
      %v2135 = vld [vmem:[%s2126 + $0x20] sm:$0xf]
      %v2136 = vld [vmem:[%s2126 + $0x24] sm:$0xf]
      %v2137 = vld [vmem:[%s2126 + $0x28] sm:$0xf]
      %v2138 = vld [vmem:[%s2126 + $0x2c] sm:$0xf]
      %v2139 = vld [vmem:[%s2126 + $0x30] sm:$0xf]
      %v2140 = vld [vmem:[%s2126 + $0x34] sm:$0xf]
      %v2141 = vld [vmem:[%s2126 + $0x38] sm:$0xf]
      %v2142 = vld [vmem:[%s2126 + $0x3c] sm:$0xf]
      %v2143 = vunpack.c.l.b16 %v2017
      %v2144 = vunpack.c.l.b16 %v2020
      %v2145 = vunpack.c.l.b16 %v2024
      %v2146 = vunpack.c.l.b16 %v2027
      %v2147 = vunpack.c.l.b16 %v2031
      %v2148 = vunpack.c.l.b16 %v2034
      %v2149 = vunpack.c.l.b16 %v2038
      %v2150 = vunpack.c.l.b16 %v2041
      %v2151 = vunpack.c.l.b16 %v2045
      %v2152 = vunpack.c.l.b16 %v2048
      %v2153 = vunpack.c.l.b16 %v2052
      %v2154 = vunpack.c.l.b16 %v2055
      %v2155 = vunpack.c.l.b16 %v2059
      %v2156 = vunpack.c.l.b16 %v2062
      %v2157 = vunpack.c.l.b16 %v2066
      %v2158 = vunpack.c.l.b16 %v2069
      %v2159 = vunpack.c.l.b16 %v2073
      %v2160 = vunpack.c.l.b16 %v2076
      %v2161 = vunpack.c.l.b16 %v2080
      %v2162 = vunpack.c.l.b16 %v2083
      %v2163 = vunpack.c.l.b16 %v2087
      %v2164 = vunpack.c.l.b16 %v2090
      %v2165 = vunpack.c.l.b16 %v2094
      %v2166 = vunpack.c.l.b16 %v2097
      %v2167 = vunpack.c.l.b16 %v2101
      %v2168 = vunpack.c.l.b16 %v2104
      %v2169 = vunpack.c.l.b16 %v2108
      %v2170 = vunpack.c.l.b16 %v2111
      %v2171 = vunpack.c.l.b16 %v2115
      %v2172 = vunpack.c.l.b16 %v2118
      %v2173 = vunpack.c.l.b16 %v2122
      %v2174 = vunpack.c.l.b16 %v2125
      %v2175 = vpack.c.b16 %v2144, %v2143
      %v2176 = vpack.c.b16 %v2146, %v2145
      %v2177 = vpack.c.b16 %v2148, %v2147
      %v2178 = vpack.c.b16 %v2150, %v2149
      %v2179 = vpack.c.b16 %v2152, %v2151
      %v2180 = vpack.c.b16 %v2154, %v2153
      %v2181 = vpack.c.b16 %v2156, %v2155
      %v2182 = vpack.c.b16 %v2158, %v2157
      %v2183 = vpack.c.b16 %v2160, %v2159
      %v2184 = vpack.c.b16 %v2162, %v2161
      %v2185 = vpack.c.b16 %v2164, %v2163
      %v2186 = vpack.c.b16 %v2166, %v2165
      %v2187 = vpack.c.b16 %v2168, %v2167
      %v2188 = vpack.c.b16 %v2170, %v2169
      %v2189 = vpack.c.b16 %v2172, %v2171
      %v2190 = vpack.c.b16 %v2174, %v2173
      %v2223 = vunpack.c.l.b16 %v2127
      %v2224 = vunpack.c.l.b16 %v2128
      %v2225 = vunpack.c.l.b16 %v2129
      %v2226 = vunpack.c.l.b16 %v2130
      %v2227 = vunpack.c.l.b16 %v2131
      %v2228 = vunpack.c.l.b16 %v2132
      %v2229 = vunpack.c.l.b16 %v2133
      %v2230 = vunpack.c.l.b16 %v2134
      %v2231 = vunpack.c.l.b16 %v2135
      %v2232 = vunpack.c.l.b16 %v2136
      %v2233 = vunpack.c.l.b16 %v2137
      %v2234 = vunpack.c.l.b16 %v2138
      %v2235 = vunpack.c.l.b16 %v2139
      %v2236 = vunpack.c.l.b16 %v2140
      %v2237 = vunpack.c.l.b16 %v2141
      %v2238 = vunpack.c.l.b16 %v2142
      %v2239 = vpack.c.b16 %v2224, %v2223
      %v2240 = vpack.c.b16 %v2226, %v2225
      %v2241 = vpack.c.b16 %v2228, %v2227
      %v2242 = vpack.c.b16 %v2230, %v2229
      %v2243 = vpack.c.b16 %v2232, %v2231
      %v2244 = vpack.c.b16 %v2234, %v2233
      %v2245 = vpack.c.b16 %v2236, %v2235
      %v2246 = vpack.c.b16 %v2238, %v2237
      %2255 = vmatpush.bf16.msra.mxu0 %v2246
      %2256 = vmatpush.bf16.msra.mxu0 %v2245
      %2257 = vmatpush.bf16.msra.mxu0 %v2244
      %2258 = vmatpush.bf16.msra.mxu0 %v2243
      %2259 = vmatpush.bf16.msra.mxu0 %v2242
      %2260 = vmatpush.bf16.msra.mxu0 %v2241
      %2261 = vmatpush.bf16.msra.mxu0 %v2240
      %2262 = vmatpush.bf16.msra.mxu0 %v2239
      %2263 = vmatmul.bf16.gmra.mxu0 %v2175
      %v2264 = vpop.f32.mrf.mxu0
      %v2265 = vadd.f32 0.0, %v2264
      %v2266 = vpop.f32.mrf.mxu0
      %v2267 = vadd.f32 0.0, %v2266
      %2268 = vmatmul.bf16.gmra.mxu0 %v2176
      %v2269 = vpop.f32.mrf.mxu0
      %v2270 = vadd.f32 0.0, %v2269
      %v2271 = vpop.f32.mrf.mxu0
      %v2272 = vadd.f32 0.0, %v2271
      %2273 = vmatmul.bf16.gmra.mxu0 %v2177
      %v2274 = vpop.f32.mrf.mxu0
      %v2275 = vadd.f32 0.0, %v2274
      %v2276 = vpop.f32.mrf.mxu0
      %v2277 = vadd.f32 0.0, %v2276
      %2278 = vmatmul.bf16.gmra.mxu0 %v2178
      %v2279 = vpop.f32.mrf.mxu0
      %v2280 = vadd.f32 0.0, %v2279
      %v2281 = vpop.f32.mrf.mxu0
      %v2282 = vadd.f32 0.0, %v2281
      %2283 = vmatmul.bf16.gmra.mxu0 %v2179
      %v2284 = vpop.f32.mrf.mxu0
      %v2285 = vadd.f32 0.0, %v2284
      %v2286 = vpop.f32.mrf.mxu0
      %v2287 = vadd.f32 0.0, %v2286
      %2288 = vmatmul.bf16.gmra.mxu0 %v2180
      %v2289 = vpop.f32.mrf.mxu0
      %v2290 = vadd.f32 0.0, %v2289
      %v2291 = vpop.f32.mrf.mxu0
      %v2292 = vadd.f32 0.0, %v2291
      %2293 = vmatmul.bf16.gmra.mxu0 %v2181
      %v2294 = vpop.f32.mrf.mxu0
      %v2295 = vadd.f32 0.0, %v2294
      %v2296 = vpop.f32.mrf.mxu0
      %v2297 = vadd.f32 0.0, %v2296
      %2298 = vmatmul.bf16.gmra.mxu0 %v2182
      %v2299 = vpop.f32.mrf.mxu0
      %v2300 = vadd.f32 0.0, %v2299
      %v2301 = vpop.f32.mrf.mxu0
      %v2302 = vadd.f32 0.0, %v2301
      %2303 = vmatmul.bf16.gmra.mxu0 %v2183
      %v2304 = vpop.f32.mrf.mxu0
      %v2305 = vadd.f32 0.0, %v2304
      %v2306 = vpop.f32.mrf.mxu0
      %v2307 = vadd.f32 0.0, %v2306
      %2308 = vmatmul.bf16.gmra.mxu0 %v2184
      %v2309 = vpop.f32.mrf.mxu0
      %v2310 = vadd.f32 0.0, %v2309
      %v2311 = vpop.f32.mrf.mxu0
      %v2312 = vadd.f32 0.0, %v2311
      %2313 = vmatmul.bf16.gmra.mxu0 %v2185
      %v2314 = vpop.f32.mrf.mxu0
      %v2315 = vadd.f32 0.0, %v2314
      %v2316 = vpop.f32.mrf.mxu0
      %v2317 = vadd.f32 0.0, %v2316
      %2318 = vmatmul.bf16.gmra.mxu0 %v2186
      %v2319 = vpop.f32.mrf.mxu0
      %v2320 = vadd.f32 0.0, %v2319
      %v2321 = vpop.f32.mrf.mxu0
      %v2322 = vadd.f32 0.0, %v2321
      %2323 = vmatmul.bf16.gmra.mxu0 %v2187
      %v2324 = vpop.f32.mrf.mxu0
      %v2325 = vadd.f32 0.0, %v2324
      %v2326 = vpop.f32.mrf.mxu0
      %v2327 = vadd.f32 0.0, %v2326
      %2328 = vmatmul.bf16.gmra.mxu0 %v2188
      %v2329 = vpop.f32.mrf.mxu0
      %v2330 = vadd.f32 0.0, %v2329
      %v2331 = vpop.f32.mrf.mxu0
      %v2332 = vadd.f32 0.0, %v2331
      %2333 = vmatmul.bf16.gmra.mxu0 %v2189
      %v2334 = vpop.f32.mrf.mxu0
      %v2335 = vadd.f32 0.0, %v2334
      %v2336 = vpop.f32.mrf.mxu0
      %v2337 = vadd.f32 0.0, %v2336
      %2338 = vmatmul.bf16.gmra.mxu0 %v2190
      %v2339 = vpop.f32.mrf.mxu0
      %v2340 = vadd.f32 0.0, %v2339
      %v2341 = vpop.f32.mrf.mxu0
      %v2342 = vadd.f32 0.0, %v2341
      %2343 = vdwg.mxu0
      %v2344 = vadd.f32 %v1883, %v2265
      %v2345 = vadd.f32 %v1884, %v2267
      %v2346 = vadd.f32 %v1885, %v2270
      %v2347 = vadd.f32 %v1886, %v2272
      %v2348 = vadd.f32 %v1887, %v2275
      %v2349 = vadd.f32 %v1888, %v2277
      %v2350 = vadd.f32 %v1889, %v2280
      %v2351 = vadd.f32 %v1890, %v2282
      %v2352 = vadd.f32 %v1891, %v2285
      %v2353 = vadd.f32 %v1892, %v2287
      %v2354 = vadd.f32 %v1893, %v2290
      %v2355 = vadd.f32 %v1894, %v2292
      %v2356 = vadd.f32 %v1895, %v2295
      %v2357 = vadd.f32 %v1896, %v2297
      %v2358 = vadd.f32 %v1897, %v2300
      %v2359 = vadd.f32 %v1898, %v2302
      %v2360 = vadd.f32 %v1899, %v2305
      %v2361 = vadd.f32 %v1900, %v2307
      %v2362 = vadd.f32 %v1901, %v2310
      %v2363 = vadd.f32 %v1902, %v2312
      %v2364 = vadd.f32 %v1903, %v2315
      %v2365 = vadd.f32 %v1904, %v2317
      %v2366 = vadd.f32 %v1905, %v2320
      %v2367 = vadd.f32 %v1906, %v2322
      %v2368 = vadd.f32 %v1907, %v2325
      %v2369 = vadd.f32 %v1908, %v2327
      %v2370 = vadd.f32 %v1909, %v2330
      %v2371 = vadd.f32 %v1910, %v2332
      %v2372 = vadd.f32 %v1911, %v2335
      %v2373 = vadd.f32 %v1912, %v2337
      %v2374 = vadd.f32 %v1913, %v2340
      %v2375 = vadd.f32 %v1914, %v2342
      %2376 = vst [vmem:[#allocation3] sm:$0xff] %v2344
      %2377 = vst [vmem:[#allocation3 + $0x8] sm:$0xff] %v2345
      %2378 = vst [vmem:[#allocation3 + $0x10] sm:$0xff] %v2346
      %2379 = vst [vmem:[#allocation3 + $0x18] sm:$0xff] %v2347
      %2380 = vst [vmem:[#allocation3 + $0x20] sm:$0xff] %v2348
      %2381 = vst [vmem:[#allocation3 + $0x28] sm:$0xff] %v2349
      %2382 = vst [vmem:[#allocation3 + $0x30] sm:$0xff] %v2350
      %2383 = vst [vmem:[#allocation3 + $0x38] sm:$0xff] %v2351
      %2384 = vst [vmem:[#allocation3 + $0x40] sm:$0xff] %v2352
      %2385 = vst [vmem:[#allocation3 + $0x48] sm:$0xff] %v2353
      %2386 = vst [vmem:[#allocation3 + $0x50] sm:$0xff] %v2354
      %2387 = vst [vmem:[#allocation3 + $0x58] sm:$0xff] %v2355
      %2388 = vst [vmem:[#allocation3 + $0x60] sm:$0xff] %v2356
      %2389 = vst [vmem:[#allocation3 + $0x68] sm:$0xff] %v2357
      %2390 = vst [vmem:[#allocation3 + $0x70] sm:$0xff] %v2358
      %2391 = vst [vmem:[#allocation3 + $0x78] sm:$0xff] %v2359
      %2392 = vst [vmem:[#allocation3 + $0x80] sm:$0xff] %v2360
      %2393 = vst [vmem:[#allocation3 + $0x88] sm:$0xff] %v2361
      %2394 = vst [vmem:[#allocation3 + $0x90] sm:$0xff] %v2362
      %2395 = vst [vmem:[#allocation3 + $0x98] sm:$0xff] %v2363
      %2396 = vst [vmem:[#allocation3 + $0xa0] sm:$0xff] %v2364
      %2397 = vst [vmem:[#allocation3 + $0xa8] sm:$0xff] %v2365
      %2398 = vst [vmem:[#allocation3 + $0xb0] sm:$0xff] %v2366
      %2399 = vst [vmem:[#allocation3 + $0xb8] sm:$0xff] %v2367
      %2400 = vst [vmem:[#allocation3 + $0xc0] sm:$0xff] %v2368
      %2401 = vst [vmem:[#allocation3 + $0xc8] sm:$0xff] %v2369
      %2402 = vst [vmem:[#allocation3 + $0xd0] sm:$0xff] %v2370
      %2403 = vst [vmem:[#allocation3 + $0xd8] sm:$0xff] %v2371
      %2404 = vst [vmem:[#allocation3 + $0xe0] sm:$0xff] %v2372
      %2405 = vst [vmem:[#allocation3 + $0xe8] sm:$0xff] %v2373
      %2406 = vst [vmem:[#allocation3 + $0xf0] sm:$0xff] %v2374
      %2407 = vst [vmem:[#allocation3 + $0xf8] sm:$0xff] %v2375
      %v2408 = vld [vmem:[#allocation3] sm:$0xff]
      %v2409 = vld [vmem:[#allocation3 + $0x8] sm:$0xff]
      %v2410 = vld [vmem:[#allocation3 + $0x10] sm:$0xff]
      %v2411 = vld [vmem:[#allocation3 + $0x18] sm:$0xff]
      %v2412 = vld [vmem:[#allocation3 + $0x20] sm:$0xff]
      %v2413 = vld [vmem:[#allocation3 + $0x28] sm:$0xff]
      %v2414 = vld [vmem:[#allocation3 + $0x30] sm:$0xff]
      %v2415 = vld [vmem:[#allocation3 + $0x38] sm:$0xff]
      %v2416 = vld [vmem:[#allocation3 + $0x40] sm:$0xff]
      %v2417 = vld [vmem:[#allocation3 + $0x48] sm:$0xff]
      %v2418 = vld [vmem:[#allocation3 + $0x50] sm:$0xff]
      %v2419 = vld [vmem:[#allocation3 + $0x58] sm:$0xff]
      %v2420 = vld [vmem:[#allocation3 + $0x60] sm:$0xff]
      %v2421 = vld [vmem:[#allocation3 + $0x68] sm:$0xff]
      %v2422 = vld [vmem:[#allocation3 + $0x70] sm:$0xff]
      %v2423 = vld [vmem:[#allocation3 + $0x78] sm:$0xff]
      %v2424 = vld [vmem:[#allocation3 + $0x80] sm:$0xff]
      %v2425 = vld [vmem:[#allocation3 + $0x88] sm:$0xff]
      %v2426 = vld [vmem:[#allocation3 + $0x90] sm:$0xff]
      %v2427 = vld [vmem:[#allocation3 + $0x98] sm:$0xff]
      %v2428 = vld [vmem:[#allocation3 + $0xa0] sm:$0xff]
      %v2429 = vld [vmem:[#allocation3 + $0xa8] sm:$0xff]
      %v2430 = vld [vmem:[#allocation3 + $0xb0] sm:$0xff]
      %v2431 = vld [vmem:[#allocation3 + $0xb8] sm:$0xff]
      %v2432 = vld [vmem:[#allocation3 + $0xc0] sm:$0xff]
      %v2433 = vld [vmem:[#allocation3 + $0xc8] sm:$0xff]
      %v2434 = vld [vmem:[#allocation3 + $0xd0] sm:$0xff]
      %v2435 = vld [vmem:[#allocation3 + $0xd8] sm:$0xff]
      %v2436 = vld [vmem:[#allocation3 + $0xe0] sm:$0xff]
      %v2437 = vld [vmem:[#allocation3 + $0xe8] sm:$0xff]
      %v2438 = vld [vmem:[#allocation3 + $0xf0] sm:$0xff]
      %v2439 = vld [vmem:[#allocation3 + $0xf8] sm:$0xff]
      %s2440 = sadd.s32 %s817, 1
      %s2441 = smul.u32 %s2440, 3
      %s2442 = smul.addr %s2441, 4
      %s2443 = scalar_lea.vmem [#allocation2], %s2442
      %v2444 = vld [vmem:[%s2443] sm:$0xf]
      %v2445 = vld [vmem:[%s2443 + $0x4] sm:$0xf]
      %v2446 = vld [vmem:[%s2443 + $0xc] sm:$0xf]
      %v2447 = vld [vmem:[%s2443 + $0x10] sm:$0xf]
      %v2448 = vld [vmem:[%s2443 + $0x18] sm:$0xf]
      %v2449 = vld [vmem:[%s2443 + $0x1c] sm:$0xf]
      %v2450 = vld [vmem:[%s2443 + $0x24] sm:$0xf]
      %v2451 = vld [vmem:[%s2443 + $0x28] sm:$0xf]
      %v2452 = vld [vmem:[%s2443 + $0x30] sm:$0xf]
      %v2453 = vld [vmem:[%s2443 + $0x34] sm:$0xf]
      %v2454 = vld [vmem:[%s2443 + $0x3c] sm:$0xf]
      %v2455 = vld [vmem:[%s2443 + $0x40] sm:$0xf]
      %v2456 = vld [vmem:[%s2443 + $0x48] sm:$0xf]
      %v2457 = vld [vmem:[%s2443 + $0x4c] sm:$0xf]
      %v2458 = vld [vmem:[%s2443 + $0x54] sm:$0xf]
      %v2459 = vld [vmem:[%s2443 + $0x58] sm:$0xf]
      %v2460 = vld [vmem:[%s2443 + $0x60] sm:$0xf]
      %v2461 = vld [vmem:[%s2443 + $0x64] sm:$0xf]
      %v2462 = vld [vmem:[%s2443 + $0x6c] sm:$0xf]
      %v2463 = vld [vmem:[%s2443 + $0x70] sm:$0xf]
      %v2464 = vld [vmem:[%s2443 + $0x78] sm:$0xf]
      %v2465 = vld [vmem:[%s2443 + $0x7c] sm:$0xf]
      %v2466 = vld [vmem:[%s2443 + $0x84] sm:$0xf]
      %v2467 = vld [vmem:[%s2443 + $0x88] sm:$0xf]
      %v2468 = vld [vmem:[%s2443 + $0x90] sm:$0xf]
      %v2469 = vld [vmem:[%s2443 + $0x94] sm:$0xf]
      %v2470 = vld [vmem:[%s2443 + $0x9c] sm:$0xf]
      %v2471 = vld [vmem:[%s2443 + $0xa0] sm:$0xf]
      %v2472 = vld [vmem:[%s2443 + $0xa8] sm:$0xf]
      %v2473 = vld [vmem:[%s2443 + $0xac] sm:$0xf]
      %v2474 = vld [vmem:[%s2443 + $0xb4] sm:$0xf]
      %v2475 = vld [vmem:[%s2443 + $0xb8] sm:$0xf]
      %s2476 = scalar_lea.vmem %s262, 192
      %v2477 = vld [vmem:[%s2476] sm:$0xf]
      %v2478 = vld [vmem:[%s2476 + $0x4] sm:$0xf]
      %v2479 = vld [vmem:[%s2476 + $0x8] sm:$0xf]
      %v2480 = vld [vmem:[%s2476 + $0xc] sm:$0xf]
      %v2481 = vld [vmem:[%s2476 + $0x10] sm:$0xf]
      %v2482 = vld [vmem:[%s2476 + $0x14] sm:$0xf]
      %v2483 = vld [vmem:[%s2476 + $0x18] sm:$0xf]
      %v2484 = vld [vmem:[%s2476 + $0x1c] sm:$0xf]
      %v2485 = vld [vmem:[%s2476 + $0x20] sm:$0xf]
      %v2486 = vld [vmem:[%s2476 + $0x24] sm:$0xf]
      %v2487 = vld [vmem:[%s2476 + $0x28] sm:$0xf]
      %v2488 = vld [vmem:[%s2476 + $0x2c] sm:$0xf]
      %v2489 = vld [vmem:[%s2476 + $0x30] sm:$0xf]
      %v2490 = vld [vmem:[%s2476 + $0x34] sm:$0xf]
      %v2491 = vld [vmem:[%s2476 + $0x38] sm:$0xf]
      %v2492 = vld [vmem:[%s2476 + $0x3c] sm:$0xf]
      %v2525 = vunpack.c.l.b16 %v2444
      %v2526 = vunpack.c.l.b16 %v2445
      %v2527 = vunpack.c.l.b16 %v2446
      %v2528 = vunpack.c.l.b16 %v2447
      %v2529 = vunpack.c.l.b16 %v2448
      %v2530 = vunpack.c.l.b16 %v2449
      %v2531 = vunpack.c.l.b16 %v2450
      %v2532 = vunpack.c.l.b16 %v2451
      %v2533 = vunpack.c.l.b16 %v2452
      %v2534 = vunpack.c.l.b16 %v2453
      %v2535 = vunpack.c.l.b16 %v2454
      %v2536 = vunpack.c.l.b16 %v2455
      %v2537 = vunpack.c.l.b16 %v2456
      %v2538 = vunpack.c.l.b16 %v2457
      %v2539 = vunpack.c.l.b16 %v2458
      %v2540 = vunpack.c.l.b16 %v2459
      %v2541 = vunpack.c.l.b16 %v2460
      %v2542 = vunpack.c.l.b16 %v2461
      %v2543 = vunpack.c.l.b16 %v2462
      %v2544 = vunpack.c.l.b16 %v2463
      %v2545 = vunpack.c.l.b16 %v2464
      %v2546 = vunpack.c.l.b16 %v2465
      %v2547 = vunpack.c.l.b16 %v2466
      %v2548 = vunpack.c.l.b16 %v2467
      %v2549 = vunpack.c.l.b16 %v2468
      %v2550 = vunpack.c.l.b16 %v2469
      %v2551 = vunpack.c.l.b16 %v2470
      %v2552 = vunpack.c.l.b16 %v2471
      %v2553 = vunpack.c.l.b16 %v2472
      %v2554 = vunpack.c.l.b16 %v2473
      %v2555 = vunpack.c.l.b16 %v2474
      %v2556 = vunpack.c.l.b16 %v2475
      %v2557 = vpack.c.b16 %v2526, %v2525
      %v2558 = vpack.c.b16 %v2528, %v2527
      %v2559 = vpack.c.b16 %v2530, %v2529
      %v2560 = vpack.c.b16 %v2532, %v2531
      %v2561 = vpack.c.b16 %v2534, %v2533
      %v2562 = vpack.c.b16 %v2536, %v2535
      %v2563 = vpack.c.b16 %v2538, %v2537
      %v2564 = vpack.c.b16 %v2540, %v2539
      %v2565 = vpack.c.b16 %v2542, %v2541
      %v2566 = vpack.c.b16 %v2544, %v2543
      %v2567 = vpack.c.b16 %v2546, %v2545
      %v2568 = vpack.c.b16 %v2548, %v2547
      %v2569 = vpack.c.b16 %v2550, %v2549
      %v2570 = vpack.c.b16 %v2552, %v2551
      %v2571 = vpack.c.b16 %v2554, %v2553
      %v2572 = vpack.c.b16 %v2556, %v2555
      %v2605 = vunpack.c.l.b16 %v2477
      %v2606 = vunpack.c.l.b16 %v2478
      %v2607 = vunpack.c.l.b16 %v2479
      %v2608 = vunpack.c.l.b16 %v2480
      %v2609 = vunpack.c.l.b16 %v2481
      %v2610 = vunpack.c.l.b16 %v2482
      %v2611 = vunpack.c.l.b16 %v2483
      %v2612 = vunpack.c.l.b16 %v2484
      %v2613 = vunpack.c.l.b16 %v2485
      %v2614 = vunpack.c.l.b16 %v2486
      %v2615 = vunpack.c.l.b16 %v2487
      %v2616 = vunpack.c.l.b16 %v2488
      %v2617 = vunpack.c.l.b16 %v2489
      %v2618 = vunpack.c.l.b16 %v2490
      %v2619 = vunpack.c.l.b16 %v2491
      %v2620 = vunpack.c.l.b16 %v2492
      %v2621 = vpack.c.b16 %v2606, %v2605
      %v2622 = vpack.c.b16 %v2608, %v2607
      %v2623 = vpack.c.b16 %v2610, %v2609
      %v2624 = vpack.c.b16 %v2612, %v2611
      %v2625 = vpack.c.b16 %v2614, %v2613
      %v2626 = vpack.c.b16 %v2616, %v2615
      %v2627 = vpack.c.b16 %v2618, %v2617
      %v2628 = vpack.c.b16 %v2620, %v2619
      %2637 = vmatpush.bf16.msra.mxu0 %v2628
      %2638 = vmatpush.bf16.msra.mxu0 %v2627
      %2639 = vmatpush.bf16.msra.mxu0 %v2626
      %2640 = vmatpush.bf16.msra.mxu0 %v2625
      %2641 = vmatpush.bf16.msra.mxu0 %v2624
      %2642 = vmatpush.bf16.msra.mxu0 %v2623
      %2643 = vmatpush.bf16.msra.mxu0 %v2622
      %2644 = vmatpush.bf16.msra.mxu0 %v2621
      %2645 = vmatmul.bf16.gmra.mxu0 %v2557
      %v2646 = vpop.f32.mrf.mxu0
      %v2647 = vadd.f32 0.0, %v2646
      %v2648 = vpop.f32.mrf.mxu0
      %v2649 = vadd.f32 0.0, %v2648
      %2650 = vmatmul.bf16.gmra.mxu0 %v2558
      %v2651 = vpop.f32.mrf.mxu0
      %v2652 = vadd.f32 0.0, %v2651
      %v2653 = vpop.f32.mrf.mxu0
      %v2654 = vadd.f32 0.0, %v2653
      %2655 = vmatmul.bf16.gmra.mxu0 %v2559
      %v2656 = vpop.f32.mrf.mxu0
      %v2657 = vadd.f32 0.0, %v2656
      %v2658 = vpop.f32.mrf.mxu0
      %v2659 = vadd.f32 0.0, %v2658
      %2660 = vmatmul.bf16.gmra.mxu0 %v2560
      %v2661 = vpop.f32.mrf.mxu0
      %v2662 = vadd.f32 0.0, %v2661
      %v2663 = vpop.f32.mrf.mxu0
      %v2664 = vadd.f32 0.0, %v2663
      %2665 = vmatmul.bf16.gmra.mxu0 %v2561
      %v2666 = vpop.f32.mrf.mxu0
      %v2667 = vadd.f32 0.0, %v2666
      %v2668 = vpop.f32.mrf.mxu0
      %v2669 = vadd.f32 0.0, %v2668
      %2670 = vmatmul.bf16.gmra.mxu0 %v2562
      %v2671 = vpop.f32.mrf.mxu0
      %v2672 = vadd.f32 0.0, %v2671
      %v2673 = vpop.f32.mrf.mxu0
      %v2674 = vadd.f32 0.0, %v2673
      %2675 = vmatmul.bf16.gmra.mxu0 %v2563
      %v2676 = vpop.f32.mrf.mxu0
      %v2677 = vadd.f32 0.0, %v2676
      %v2678 = vpop.f32.mrf.mxu0
      %v2679 = vadd.f32 0.0, %v2678
      %2680 = vmatmul.bf16.gmra.mxu0 %v2564
      %v2681 = vpop.f32.mrf.mxu0
      %v2682 = vadd.f32 0.0, %v2681
      %v2683 = vpop.f32.mrf.mxu0
      %v2684 = vadd.f32 0.0, %v2683
      %2685 = vmatmul.bf16.gmra.mxu0 %v2565
      %v2686 = vpop.f32.mrf.mxu0
      %v2687 = vadd.f32 0.0, %v2686
      %v2688 = vpop.f32.mrf.mxu0
      %v2689 = vadd.f32 0.0, %v2688
      %2690 = vmatmul.bf16.gmra.mxu0 %v2566
      %v2691 = vpop.f32.mrf.mxu0
      %v2692 = vadd.f32 0.0, %v2691
      %v2693 = vpop.f32.mrf.mxu0
      %v2694 = vadd.f32 0.0, %v2693
      %2695 = vmatmul.bf16.gmra.mxu0 %v2567
      %v2696 = vpop.f32.mrf.mxu0
      %v2697 = vadd.f32 0.0, %v2696
      %v2698 = vpop.f32.mrf.mxu0
      %v2699 = vadd.f32 0.0, %v2698
      %2700 = vmatmul.bf16.gmra.mxu0 %v2568
      %v2701 = vpop.f32.mrf.mxu0
      %v2702 = vadd.f32 0.0, %v2701
      %v2703 = vpop.f32.mrf.mxu0
      %v2704 = vadd.f32 0.0, %v2703
      %2705 = vmatmul.bf16.gmra.mxu0 %v2569
      %v2706 = vpop.f32.mrf.mxu0
      %v2707 = vadd.f32 0.0, %v2706
      %v2708 = vpop.f32.mrf.mxu0
      %v2709 = vadd.f32 0.0, %v2708
      %2710 = vmatmul.bf16.gmra.mxu0 %v2570
      %v2711 = vpop.f32.mrf.mxu0
      %v2712 = vadd.f32 0.0, %v2711
      %v2713 = vpop.f32.mrf.mxu0
      %v2714 = vadd.f32 0.0, %v2713
      %2715 = vmatmul.bf16.gmra.mxu0 %v2571
      %v2716 = vpop.f32.mrf.mxu0
      %v2717 = vadd.f32 0.0, %v2716
      %v2718 = vpop.f32.mrf.mxu0
      %v2719 = vadd.f32 0.0, %v2718
      %2720 = vmatmul.bf16.gmra.mxu0 %v2572
      %v2721 = vpop.f32.mrf.mxu0
      %v2722 = vadd.f32 0.0, %v2721
      %v2723 = vpop.f32.mrf.mxu0
      %v2724 = vadd.f32 0.0, %v2723
      %2725 = vdwg.mxu0
      %v2726 = vadd.f32 %v2408, %v2647
      %v2727 = vadd.f32 %v2409, %v2649
      %v2728 = vadd.f32 %v2410, %v2652
      %v2729 = vadd.f32 %v2411, %v2654
      %v2730 = vadd.f32 %v2412, %v2657
      %v2731 = vadd.f32 %v2413, %v2659
      %v2732 = vadd.f32 %v2414, %v2662
      %v2733 = vadd.f32 %v2415, %v2664
      %v2734 = vadd.f32 %v2416, %v2667
      %v2735 = vadd.f32 %v2417, %v2669
      %v2736 = vadd.f32 %v2418, %v2672
      %v2737 = vadd.f32 %v2419, %v2674
      %v2738 = vadd.f32 %v2420, %v2677
      %v2739 = vadd.f32 %v2421, %v2679
      %v2740 = vadd.f32 %v2422, %v2682
      %v2741 = vadd.f32 %v2423, %v2684
      %v2742 = vadd.f32 %v2424, %v2687
      %v2743 = vadd.f32 %v2425, %v2689
      %v2744 = vadd.f32 %v2426, %v2692
      %v2745 = vadd.f32 %v2427, %v2694
      %v2746 = vadd.f32 %v2428, %v2697
      %v2747 = vadd.f32 %v2429, %v2699
      %v2748 = vadd.f32 %v2430, %v2702
      %v2749 = vadd.f32 %v2431, %v2704
      %v2750 = vadd.f32 %v2432, %v2707
      %v2751 = vadd.f32 %v2433, %v2709
      %v2752 = vadd.f32 %v2434, %v2712
      %v2753 = vadd.f32 %v2435, %v2714
      %v2754 = vadd.f32 %v2436, %v2717
      %v2755 = vadd.f32 %v2437, %v2719
      %v2756 = vadd.f32 %v2438, %v2722
      %v2757 = vadd.f32 %v2439, %v2724
      %2758 = vst [vmem:[#allocation3] sm:$0xff] %v2726
      %2759 = vst [vmem:[#allocation3 + $0x8] sm:$0xff] %v2727
      %2760 = vst [vmem:[#allocation3 + $0x10] sm:$0xff] %v2728
      %2761 = vst [vmem:[#allocation3 + $0x18] sm:$0xff] %v2729
      %2762 = vst [vmem:[#allocation3 + $0x20] sm:$0xff] %v2730
      %2763 = vst [vmem:[#allocation3 + $0x28] sm:$0xff] %v2731
      %2764 = vst [vmem:[#allocation3 + $0x30] sm:$0xff] %v2732
      %2765 = vst [vmem:[#allocation3 + $0x38] sm:$0xff] %v2733
      %2766 = vst [vmem:[#allocation3 + $0x40] sm:$0xff] %v2734
      %2767 = vst [vmem:[#allocation3 + $0x48] sm:$0xff] %v2735
      %2768 = vst [vmem:[#allocation3 + $0x50] sm:$0xff] %v2736
      %2769 = vst [vmem:[#allocation3 + $0x58] sm:$0xff] %v2737
      %2770 = vst [vmem:[#allocation3 + $0x60] sm:$0xff] %v2738
      %2771 = vst [vmem:[#allocation3 + $0x68] sm:$0xff] %v2739
      %2772 = vst [vmem:[#allocation3 + $0x70] sm:$0xff] %v2740
      %2773 = vst [vmem:[#allocation3 + $0x78] sm:$0xff] %v2741
      %2774 = vst [vmem:[#allocation3 + $0x80] sm:$0xff] %v2742
      %2775 = vst [vmem:[#allocation3 + $0x88] sm:$0xff] %v2743
      %2776 = vst [vmem:[#allocation3 + $0x90] sm:$0xff] %v2744
      %2777 = vst [vmem:[#allocation3 + $0x98] sm:$0xff] %v2745
      %2778 = vst [vmem:[#allocation3 + $0xa0] sm:$0xff] %v2746
      %2779 = vst [vmem:[#allocation3 + $0xa8] sm:$0xff] %v2747
      %2780 = vst [vmem:[#allocation3 + $0xb0] sm:$0xff] %v2748
      %2781 = vst [vmem:[#allocation3 + $0xb8] sm:$0xff] %v2749
      %2782 = vst [vmem:[#allocation3 + $0xc0] sm:$0xff] %v2750
      %2783 = vst [vmem:[#allocation3 + $0xc8] sm:$0xff] %v2751
      %2784 = vst [vmem:[#allocation3 + $0xd0] sm:$0xff] %v2752
      %2785 = vst [vmem:[#allocation3 + $0xd8] sm:$0xff] %v2753
      %2786 = vst [vmem:[#allocation3 + $0xe0] sm:$0xff] %v2754
      %2787 = vst [vmem:[#allocation3 + $0xe8] sm:$0xff] %v2755
      %2788 = vst [vmem:[#allocation3 + $0xf0] sm:$0xff] %v2756
      %2789 = vst [vmem:[#allocation3 + $0xf8] sm:$0xff] %v2757
      %v2790 = vld [vmem:[#allocation3] sm:$0xff]
      %v2791 = vld [vmem:[#allocation3 + $0x8] sm:$0xff]
      %v2792 = vld [vmem:[#allocation3 + $0x10] sm:$0xff]
      %v2793 = vld [vmem:[#allocation3 + $0x18] sm:$0xff]
      %v2794 = vld [vmem:[#allocation3 + $0x20] sm:$0xff]
      %v2795 = vld [vmem:[#allocation3 + $0x28] sm:$0xff]
      %v2796 = vld [vmem:[#allocation3 + $0x30] sm:$0xff]
      %v2797 = vld [vmem:[#allocation3 + $0x38] sm:$0xff]
      %v2798 = vld [vmem:[#allocation3 + $0x40] sm:$0xff]
      %v2799 = vld [vmem:[#allocation3 + $0x48] sm:$0xff]
      %v2800 = vld [vmem:[#allocation3 + $0x50] sm:$0xff]
      %v2801 = vld [vmem:[#allocation3 + $0x58] sm:$0xff]
      %v2802 = vld [vmem:[#allocation3 + $0x60] sm:$0xff]
      %v2803 = vld [vmem:[#allocation3 + $0x68] sm:$0xff]
      %v2804 = vld [vmem:[#allocation3 + $0x70] sm:$0xff]
      %v2805 = vld [vmem:[#allocation3 + $0x78] sm:$0xff]
      %v2806 = vld [vmem:[#allocation3 + $0x80] sm:$0xff]
      %v2807 = vld [vmem:[#allocation3 + $0x88] sm:$0xff]
      %v2808 = vld [vmem:[#allocation3 + $0x90] sm:$0xff]
      %v2809 = vld [vmem:[#allocation3 + $0x98] sm:$0xff]
      %v2810 = vld [vmem:[#allocation3 + $0xa0] sm:$0xff]
      %v2811 = vld [vmem:[#allocation3 + $0xa8] sm:$0xff]
      %v2812 = vld [vmem:[#allocation3 + $0xb0] sm:$0xff]
      %v2813 = vld [vmem:[#allocation3 + $0xb8] sm:$0xff]
      %v2814 = vld [vmem:[#allocation3 + $0xc0] sm:$0xff]
      %v2815 = vld [vmem:[#allocation3 + $0xc8] sm:$0xff]
      %v2816 = vld [vmem:[#allocation3 + $0xd0] sm:$0xff]
      %v2817 = vld [vmem:[#allocation3 + $0xd8] sm:$0xff]
      %v2818 = vld [vmem:[#allocation3 + $0xe0] sm:$0xff]
      %v2819 = vld [vmem:[#allocation3 + $0xe8] sm:$0xff]
      %v2820 = vld [vmem:[#allocation3 + $0xf0] sm:$0xff]
      %v2821 = vld [vmem:[#allocation3 + $0xf8] sm:$0xff]
      %v2822 = vld [vmem:[%s2443] sm:$0xf]
      %v2823 = vld [vmem:[%s2443 + $0x4] sm:$0xf]
      %v2824 = vld [vmem:[%s2443 + $0x8] sm:$0x1]
      %v2825 = vld [vmem:[%s2443 + $0xc] sm:$0xf]
      %v2826 = vld [vmem:[%s2443 + $0x10] sm:$0xf]
      %v2827 = vld [vmem:[%s2443 + $0x14] sm:$0x1]
      %v2828 = vld [vmem:[%s2443 + $0x18] sm:$0xf]
      %v2829 = vld [vmem:[%s2443 + $0x1c] sm:$0xf]
      %v2830 = vld [vmem:[%s2443 + $0x20] sm:$0x1]
      %v2831 = vld [vmem:[%s2443 + $0x24] sm:$0xf]
      %v2832 = vld [vmem:[%s2443 + $0x28] sm:$0xf]
      %v2833 = vld [vmem:[%s2443 + $0x2c] sm:$0x1]
      %v2834 = vld [vmem:[%s2443 + $0x30] sm:$0xf]
      %v2835 = vld [vmem:[%s2443 + $0x34] sm:$0xf]
      %v2836 = vld [vmem:[%s2443 + $0x38] sm:$0x1]
      %v2837 = vld [vmem:[%s2443 + $0x3c] sm:$0xf]
      %v2838 = vld [vmem:[%s2443 + $0x40] sm:$0xf]
      %v2839 = vld [vmem:[%s2443 + $0x44] sm:$0x1]
      %v2840 = vld [vmem:[%s2443 + $0x48] sm:$0xf]
      %v2841 = vld [vmem:[%s2443 + $0x4c] sm:$0xf]
      %v2842 = vld [vmem:[%s2443 + $0x50] sm:$0x1]
      %v2843 = vld [vmem:[%s2443 + $0x54] sm:$0xf]
      %v2844 = vld [vmem:[%s2443 + $0x58] sm:$0xf]
      %v2845 = vld [vmem:[%s2443 + $0x5c] sm:$0x1]
      %v2846 = vld [vmem:[%s2443 + $0x60] sm:$0xf]
      %v2847 = vld [vmem:[%s2443 + $0x64] sm:$0xf]
      %v2848 = vld [vmem:[%s2443 + $0x68] sm:$0x1]
      %v2849 = vld [vmem:[%s2443 + $0x6c] sm:$0xf]
      %v2850 = vld [vmem:[%s2443 + $0x70] sm:$0xf]
      %v2851 = vld [vmem:[%s2443 + $0x74] sm:$0x1]
      %v2852 = vld [vmem:[%s2443 + $0x78] sm:$0xf]
      %v2853 = vld [vmem:[%s2443 + $0x7c] sm:$0xf]
      %v2854 = vld [vmem:[%s2443 + $0x80] sm:$0x1]
      %v2855 = vld [vmem:[%s2443 + $0x84] sm:$0xf]
      %v2856 = vld [vmem:[%s2443 + $0x88] sm:$0xf]
      %v2857 = vld [vmem:[%s2443 + $0x8c] sm:$0x1]
      %v2858 = vld [vmem:[%s2443 + $0x90] sm:$0xf]
      %v2859 = vld [vmem:[%s2443 + $0x94] sm:$0xf]
      %v2860 = vld [vmem:[%s2443 + $0x98] sm:$0x1]
      %v2861 = vld [vmem:[%s2443 + $0x9c] sm:$0xf]
      %v2862 = vld [vmem:[%s2443 + $0xa0] sm:$0xf]
      %v2863 = vld [vmem:[%s2443 + $0xa4] sm:$0x1]
      %v2864 = vld [vmem:[%s2443 + $0xa8] sm:$0xf]
      %v2865 = vld [vmem:[%s2443 + $0xac] sm:$0xf]
      %v2866 = vld [vmem:[%s2443 + $0xb0] sm:$0x1]
      %v2867 = vld [vmem:[%s2443 + $0xb4] sm:$0xf]
      %v2868 = vld [vmem:[%s2443 + $0xb8] sm:$0xf]
      %v2869 = vld [vmem:[%s2443 + $0xbc] sm:$0x1]
      %v2871 = vshrl.u32 %v2822, 16
      %v2873 = vrot.slane %v2871, 4
      %v2874 = vshll.u32 %v2822, 16
      %v2876 = vrot.slane %v2874, 5
      %v2877 = vor.u32 %v2873, %v2876
      %v2878 = vrot.slane %v2877, 4
      %v2880 = vshll.u32 %v2823, 16
      %v2882 = vrot.slane %v2880, 5
      %v2883 = vsel %vm1216, %v2878, %v2882
      %v2884 = vshrl.u32 %v2823, 16
      %v2886 = vrot.slane %v2884, 4
      %v2887 = vor.u32 %v2886, %v2882
      %v2888 = vrot.slane %v2887, 4
      %v2890 = vshll.u32 %v2824, 16
      %v2892 = vrot.slane %v2890, 5
      %v2893 = vsel %vm1216, %v2888, %v2892
      %v2895 = vshrl.u32 %v2825, 16
      %v2897 = vrot.slane %v2895, 4
      %v2898 = vshll.u32 %v2825, 16
      %v2900 = vrot.slane %v2898, 5
      %v2901 = vor.u32 %v2897, %v2900
      %v2902 = vrot.slane %v2901, 4
      %v2904 = vshll.u32 %v2826, 16
      %v2906 = vrot.slane %v2904, 5
      %v2907 = vsel %vm1216, %v2902, %v2906
      %v2908 = vshrl.u32 %v2826, 16
      %v2910 = vrot.slane %v2908, 4
      %v2911 = vor.u32 %v2910, %v2906
      %v2912 = vrot.slane %v2911, 4
      %v2914 = vshll.u32 %v2827, 16
      %v2916 = vrot.slane %v2914, 5
      %v2917 = vsel %vm1216, %v2912, %v2916
      %v2919 = vshrl.u32 %v2828, 16
      %v2921 = vrot.slane %v2919, 4
      %v2922 = vshll.u32 %v2828, 16
      %v2924 = vrot.slane %v2922, 5
      %v2925 = vor.u32 %v2921, %v2924
      %v2926 = vrot.slane %v2925, 4
      %v2928 = vshll.u32 %v2829, 16
      %v2930 = vrot.slane %v2928, 5
      %v2931 = vsel %vm1216, %v2926, %v2930
      %v2932 = vshrl.u32 %v2829, 16
      %v2934 = vrot.slane %v2932, 4
      %v2935 = vor.u32 %v2934, %v2930
      %v2936 = vrot.slane %v2935, 4
      %v2938 = vshll.u32 %v2830, 16
      %v2940 = vrot.slane %v2938, 5
      %v2941 = vsel %vm1216, %v2936, %v2940
      %v2943 = vshrl.u32 %v2831, 16
      %v2945 = vrot.slane %v2943, 4
      %v2946 = vshll.u32 %v2831, 16
      %v2948 = vrot.slane %v2946, 5
      %v2949 = vor.u32 %v2945, %v2948
      %v2950 = vrot.slane %v2949, 4
      %v2952 = vshll.u32 %v2832, 16
      %v2954 = vrot.slane %v2952, 5
      %v2955 = vsel %vm1216, %v2950, %v2954
      %v2956 = vshrl.u32 %v2832, 16
      %v2958 = vrot.slane %v2956, 4
      %v2959 = vor.u32 %v2958, %v2954
      %v2960 = vrot.slane %v2959, 4
      %v2962 = vshll.u32 %v2833, 16
      %v2964 = vrot.slane %v2962, 5
      %v2965 = vsel %vm1216, %v2960, %v2964
      %v2967 = vshrl.u32 %v2834, 16
      %v2969 = vrot.slane %v2967, 4
      %v2970 = vshll.u32 %v2834, 16
      %v2972 = vrot.slane %v2970, 5
      %v2973 = vor.u32 %v2969, %v2972
      %v2974 = vrot.slane %v2973, 4
      %v2976 = vshll.u32 %v2835, 16
      %v2978 = vrot.slane %v2976, 5
      %v2979 = vsel %vm1216, %v2974, %v2978
      %v2980 = vshrl.u32 %v2835, 16
      %v2982 = vrot.slane %v2980, 4
      %v2983 = vor.u32 %v2982, %v2978
      %v2984 = vrot.slane %v2983, 4
      %v2986 = vshll.u32 %v2836, 16
      %v2988 = vrot.slane %v2986, 5
      %v2989 = vsel %vm1216, %v2984, %v2988
      %v2991 = vshrl.u32 %v2837, 16
      %v2993 = vrot.slane %v2991, 4
      %v2994 = vshll.u32 %v2837, 16
      %v2996 = vrot.slane %v2994, 5
      %v2997 = vor.u32 %v2993, %v2996
      %v2998 = vrot.slane %v2997, 4
      %v3000 = vshll.u32 %v2838, 16
      %v3002 = vrot.slane %v3000, 5
      %v3003 = vsel %vm1216, %v2998, %v3002
      %v3004 = vshrl.u32 %v2838, 16
      %v3006 = vrot.slane %v3004, 4
      %v3007 = vor.u32 %v3006, %v3002
      %v3008 = vrot.slane %v3007, 4
      %v3010 = vshll.u32 %v2839, 16
      %v3012 = vrot.slane %v3010, 5
      %v3013 = vsel %vm1216, %v3008, %v3012
      %v3015 = vshrl.u32 %v2840, 16
      %v3017 = vrot.slane %v3015, 4
      %v3018 = vshll.u32 %v2840, 16
      %v3020 = vrot.slane %v3018, 5
      %v3021 = vor.u32 %v3017, %v3020
      %v3022 = vrot.slane %v3021, 4
      %v3024 = vshll.u32 %v2841, 16
      %v3026 = vrot.slane %v3024, 5
      %v3027 = vsel %vm1216, %v3022, %v3026
      %v3028 = vshrl.u32 %v2841, 16
      %v3030 = vrot.slane %v3028, 4
      %v3031 = vor.u32 %v3030, %v3026
      %v3032 = vrot.slane %v3031, 4
      %v3034 = vshll.u32 %v2842, 16
      %v3036 = vrot.slane %v3034, 5
      %v3037 = vsel %vm1216, %v3032, %v3036
      %v3039 = vshrl.u32 %v2843, 16
      %v3041 = vrot.slane %v3039, 4
      %v3042 = vshll.u32 %v2843, 16
      %v3044 = vrot.slane %v3042, 5
      %v3045 = vor.u32 %v3041, %v3044
      %v3046 = vrot.slane %v3045, 4
      %v3048 = vshll.u32 %v2844, 16
      %v3050 = vrot.slane %v3048, 5
      %v3051 = vsel %vm1216, %v3046, %v3050
      %v3052 = vshrl.u32 %v2844, 16
      %v3054 = vrot.slane %v3052, 4
      %v3055 = vor.u32 %v3054, %v3050
      %v3056 = vrot.slane %v3055, 4
      %v3058 = vshll.u32 %v2845, 16
      %v3060 = vrot.slane %v3058, 5
      %v3061 = vsel %vm1216, %v3056, %v3060
      %v3063 = vshrl.u32 %v2846, 16
      %v3065 = vrot.slane %v3063, 4
      %v3066 = vshll.u32 %v2846, 16
      %v3068 = vrot.slane %v3066, 5
      %v3069 = vor.u32 %v3065, %v3068
      %v3070 = vrot.slane %v3069, 4
      %v3072 = vshll.u32 %v2847, 16
      %v3074 = vrot.slane %v3072, 5
      %v3075 = vsel %vm1216, %v3070, %v3074
      %v3076 = vshrl.u32 %v2847, 16
      %v3078 = vrot.slane %v3076, 4
      %v3079 = vor.u32 %v3078, %v3074
      %v3080 = vrot.slane %v3079, 4
      %v3082 = vshll.u32 %v2848, 16
      %v3084 = vrot.slane %v3082, 5
      %v3085 = vsel %vm1216, %v3080, %v3084
      %v3087 = vshrl.u32 %v2849, 16
      %v3089 = vrot.slane %v3087, 4
      %v3090 = vshll.u32 %v2849, 16
      %v3092 = vrot.slane %v3090, 5
      %v3093 = vor.u32 %v3089, %v3092
      %v3094 = vrot.slane %v3093, 4
      %v3096 = vshll.u32 %v2850, 16
      %v3098 = vrot.slane %v3096, 5
      %v3099 = vsel %vm1216, %v3094, %v3098
      %v3100 = vshrl.u32 %v2850, 16
      %v3102 = vrot.slane %v3100, 4
      %v3103 = vor.u32 %v3102, %v3098
      %v3104 = vrot.slane %v3103, 4
      %v3106 = vshll.u32 %v2851, 16
      %v3108 = vrot.slane %v3106, 5
      %v3109 = vsel %vm1216, %v3104, %v3108
      %v3111 = vshrl.u32 %v2852, 16
      %v3113 = vrot.slane %v3111, 4
      %v3114 = vshll.u32 %v2852, 16
      %v3116 = vrot.slane %v3114, 5
      %v3117 = vor.u32 %v3113, %v3116
      %v3118 = vrot.slane %v3117, 4
      %v3120 = vshll.u32 %v2853, 16
      %v3122 = vrot.slane %v3120, 5
      %v3123 = vsel %vm1216, %v3118, %v3122
      %v3124 = vshrl.u32 %v2853, 16
      %v3126 = vrot.slane %v3124, 4
      %v3127 = vor.u32 %v3126, %v3122
      %v3128 = vrot.slane %v3127, 4
      %v3130 = vshll.u32 %v2854, 16
      %v3132 = vrot.slane %v3130, 5
      %v3133 = vsel %vm1216, %v3128, %v3132
      %v3135 = vshrl.u32 %v2855, 16
      %v3137 = vrot.slane %v3135, 4
      %v3138 = vshll.u32 %v2855, 16
      %v3140 = vrot.slane %v3138, 5
      %v3141 = vor.u32 %v3137, %v3140
      %v3142 = vrot.slane %v3141, 4
      %v3144 = vshll.u32 %v2856, 16
      %v3146 = vrot.slane %v3144, 5
      %v3147 = vsel %vm1216, %v3142, %v3146
      %v3148 = vshrl.u32 %v2856, 16
      %v3150 = vrot.slane %v3148, 4
      %v3151 = vor.u32 %v3150, %v3146
      %v3152 = vrot.slane %v3151, 4
      %v3154 = vshll.u32 %v2857, 16
      %v3156 = vrot.slane %v3154, 5
      %v3157 = vsel %vm1216, %v3152, %v3156
      %v3159 = vshrl.u32 %v2858, 16
      %v3161 = vrot.slane %v3159, 4
      %v3162 = vshll.u32 %v2858, 16
      %v3164 = vrot.slane %v3162, 5
      %v3165 = vor.u32 %v3161, %v3164
      %v3166 = vrot.slane %v3165, 4
      %v3168 = vshll.u32 %v2859, 16
      %v3170 = vrot.slane %v3168, 5
      %v3171 = vsel %vm1216, %v3166, %v3170
      %v3172 = vshrl.u32 %v2859, 16
      %v3174 = vrot.slane %v3172, 4
      %v3175 = vor.u32 %v3174, %v3170
      %v3176 = vrot.slane %v3175, 4
      %v3178 = vshll.u32 %v2860, 16
      %v3180 = vrot.slane %v3178, 5
      %v3181 = vsel %vm1216, %v3176, %v3180
      %v3183 = vshrl.u32 %v2861, 16
      %v3185 = vrot.slane %v3183, 4
      %v3186 = vshll.u32 %v2861, 16
      %v3188 = vrot.slane %v3186, 5
      %v3189 = vor.u32 %v3185, %v3188
      %v3190 = vrot.slane %v3189, 4
      %v3192 = vshll.u32 %v2862, 16
      %v3194 = vrot.slane %v3192, 5
      %v3195 = vsel %vm1216, %v3190, %v3194
      %v3196 = vshrl.u32 %v2862, 16
      %v3198 = vrot.slane %v3196, 4
      %v3199 = vor.u32 %v3198, %v3194
      %v3200 = vrot.slane %v3199, 4
      %v3202 = vshll.u32 %v2863, 16
      %v3204 = vrot.slane %v3202, 5
      %v3205 = vsel %vm1216, %v3200, %v3204
      %v3207 = vshrl.u32 %v2864, 16
      %v3209 = vrot.slane %v3207, 4
      %v3210 = vshll.u32 %v2864, 16
      %v3212 = vrot.slane %v3210, 5
      %v3213 = vor.u32 %v3209, %v3212
      %v3214 = vrot.slane %v3213, 4
      %v3216 = vshll.u32 %v2865, 16
      %v3218 = vrot.slane %v3216, 5
      %v3219 = vsel %vm1216, %v3214, %v3218
      %v3220 = vshrl.u32 %v2865, 16
      %v3222 = vrot.slane %v3220, 4
      %v3223 = vor.u32 %v3222, %v3218
      %v3224 = vrot.slane %v3223, 4
      %v3226 = vshll.u32 %v2866, 16
      %v3228 = vrot.slane %v3226, 5
      %v3229 = vsel %vm1216, %v3224, %v3228
      %v3231 = vshrl.u32 %v2867, 16
      %v3233 = vrot.slane %v3231, 4
      %v3234 = vshll.u32 %v2867, 16
      %v3236 = vrot.slane %v3234, 5
      %v3237 = vor.u32 %v3233, %v3236
      %v3238 = vrot.slane %v3237, 4
      %v3240 = vshll.u32 %v2868, 16
      %v3242 = vrot.slane %v3240, 5
      %v3243 = vsel %vm1216, %v3238, %v3242
      %v3244 = vshrl.u32 %v2868, 16
      %v3246 = vrot.slane %v3244, 4
      %v3247 = vor.u32 %v3246, %v3242
      %v3248 = vrot.slane %v3247, 4
      %v3250 = vshll.u32 %v2869, 16
      %v3252 = vrot.slane %v3250, 5
      %v3253 = vsel %vm1216, %v3248, %v3252
      %s3254 = scalar_lea.vmem %s262, 256
      %v3255 = vld [vmem:[%s3254] sm:$0xf]
      %v3256 = vld [vmem:[%s3254 + $0x4] sm:$0xf]
      %v3257 = vld [vmem:[%s3254 + $0x8] sm:$0xf]
      %v3258 = vld [vmem:[%s3254 + $0xc] sm:$0xf]
      %v3259 = vld [vmem:[%s3254 + $0x10] sm:$0xf]
      %v3260 = vld [vmem:[%s3254 + $0x14] sm:$0xf]
      %v3261 = vld [vmem:[%s3254 + $0x18] sm:$0xf]
      %v3262 = vld [vmem:[%s3254 + $0x1c] sm:$0xf]
      %v3263 = vld [vmem:[%s3254 + $0x20] sm:$0xf]
      %v3264 = vld [vmem:[%s3254 + $0x24] sm:$0xf]
      %v3265 = vld [vmem:[%s3254 + $0x28] sm:$0xf]
      %v3266 = vld [vmem:[%s3254 + $0x2c] sm:$0xf]
      %v3267 = vld [vmem:[%s3254 + $0x30] sm:$0xf]
      %v3268 = vld [vmem:[%s3254 + $0x34] sm:$0xf]
      %v3269 = vld [vmem:[%s3254 + $0x38] sm:$0xf]
      %v3270 = vld [vmem:[%s3254 + $0x3c] sm:$0xf]
      %v3271 = vunpack.c.l.b16 %v2883
      %v3272 = vunpack.c.l.b16 %v2893
      %v3273 = vunpack.c.l.b16 %v2907
      %v3274 = vunpack.c.l.b16 %v2917
      %v3275 = vunpack.c.l.b16 %v2931
      %v3276 = vunpack.c.l.b16 %v2941
      %v3277 = vunpack.c.l.b16 %v2955
      %v3278 = vunpack.c.l.b16 %v2965
      %v3279 = vunpack.c.l.b16 %v2979
      %v3280 = vunpack.c.l.b16 %v2989
      %v3281 = vunpack.c.l.b16 %v3003
      %v3282 = vunpack.c.l.b16 %v3013
      %v3283 = vunpack.c.l.b16 %v3027
      %v3284 = vunpack.c.l.b16 %v3037
      %v3285 = vunpack.c.l.b16 %v3051
      %v3286 = vunpack.c.l.b16 %v3061
      %v3287 = vunpack.c.l.b16 %v3075
      %v3288 = vunpack.c.l.b16 %v3085
      %v3289 = vunpack.c.l.b16 %v3099
      %v3290 = vunpack.c.l.b16 %v3109
      %v3291 = vunpack.c.l.b16 %v3123
      %v3292 = vunpack.c.l.b16 %v3133
      %v3293 = vunpack.c.l.b16 %v3147
      %v3294 = vunpack.c.l.b16 %v3157
      %v3295 = vunpack.c.l.b16 %v3171
      %v3296 = vunpack.c.l.b16 %v3181
      %v3297 = vunpack.c.l.b16 %v3195
      %v3298 = vunpack.c.l.b16 %v3205
      %v3299 = vunpack.c.l.b16 %v3219
      %v3300 = vunpack.c.l.b16 %v3229
      %v3301 = vunpack.c.l.b16 %v3243
      %v3302 = vunpack.c.l.b16 %v3253
      %v3303 = vpack.c.b16 %v3272, %v3271
      %v3304 = vpack.c.b16 %v3274, %v3273
      %v3305 = vpack.c.b16 %v3276, %v3275
      %v3306 = vpack.c.b16 %v3278, %v3277
      %v3307 = vpack.c.b16 %v3280, %v3279
      %v3308 = vpack.c.b16 %v3282, %v3281
      %v3309 = vpack.c.b16 %v3284, %v3283
      %v3310 = vpack.c.b16 %v3286, %v3285
      %v3311 = vpack.c.b16 %v3288, %v3287
      %v3312 = vpack.c.b16 %v3290, %v3289
      %v3313 = vpack.c.b16 %v3292, %v3291
      %v3314 = vpack.c.b16 %v3294, %v3293
      %v3315 = vpack.c.b16 %v3296, %v3295
      %v3316 = vpack.c.b16 %v3298, %v3297
      %v3317 = vpack.c.b16 %v3300, %v3299
      %v3318 = vpack.c.b16 %v3302, %v3301
      %v3351 = vunpack.c.l.b16 %v3255
      %v3352 = vunpack.c.l.b16 %v3256
      %v3353 = vunpack.c.l.b16 %v3257
      %v3354 = vunpack.c.l.b16 %v3258
      %v3355 = vunpack.c.l.b16 %v3259
      %v3356 = vunpack.c.l.b16 %v3260
      %v3357 = vunpack.c.l.b16 %v3261
      %v3358 = vunpack.c.l.b16 %v3262
      %v3359 = vunpack.c.l.b16 %v3263
      %v3360 = vunpack.c.l.b16 %v3264
      %v3361 = vunpack.c.l.b16 %v3265
      %v3362 = vunpack.c.l.b16 %v3266
      %v3363 = vunpack.c.l.b16 %v3267
      %v3364 = vunpack.c.l.b16 %v3268
      %v3365 = vunpack.c.l.b16 %v3269
      %v3366 = vunpack.c.l.b16 %v3270
      %v3367 = vpack.c.b16 %v3352, %v3351
      %v3368 = vpack.c.b16 %v3354, %v3353
      %v3369 = vpack.c.b16 %v3356, %v3355
      %v3370 = vpack.c.b16 %v3358, %v3357
      %v3371 = vpack.c.b16 %v3360, %v3359
      %v3372 = vpack.c.b16 %v3362, %v3361
      %v3373 = vpack.c.b16 %v3364, %v3363
      %v3374 = vpack.c.b16 %v3366, %v3365
      %3383 = vmatpush.bf16.msra.mxu0 %v3374
      %3384 = vmatpush.bf16.msra.mxu0 %v3373
      %3385 = vmatpush.bf16.msra.mxu0 %v3372
      %3386 = vmatpush.bf16.msra.mxu0 %v3371
      %3387 = vmatpush.bf16.msra.mxu0 %v3370
      %3388 = vmatpush.bf16.msra.mxu0 %v3369
      %3389 = vmatpush.bf16.msra.mxu0 %v3368
      %3390 = vmatpush.bf16.msra.mxu0 %v3367
      %3391 = vmatmul.bf16.gmra.mxu0 %v3303
      %v3392 = vpop.f32.mrf.mxu0
      %v3393 = vadd.f32 0.0, %v3392
      %v3394 = vpop.f32.mrf.mxu0
      %v3395 = vadd.f32 0.0, %v3394
      %3396 = vmatmul.bf16.gmra.mxu0 %v3304
      %v3397 = vpop.f32.mrf.mxu0
      %v3398 = vadd.f32 0.0, %v3397
      %v3399 = vpop.f32.mrf.mxu0
      %v3400 = vadd.f32 0.0, %v3399
      %3401 = vmatmul.bf16.gmra.mxu0 %v3305
      %v3402 = vpop.f32.mrf.mxu0
      %v3403 = vadd.f32 0.0, %v3402
      %v3404 = vpop.f32.mrf.mxu0
      %v3405 = vadd.f32 0.0, %v3404
      %3406 = vmatmul.bf16.gmra.mxu0 %v3306
      %v3407 = vpop.f32.mrf.mxu0
      %v3408 = vadd.f32 0.0, %v3407
      %v3409 = vpop.f32.mrf.mxu0
      %v3410 = vadd.f32 0.0, %v3409
      %3411 = vmatmul.bf16.gmra.mxu0 %v3307
      %v3412 = vpop.f32.mrf.mxu0
      %v3413 = vadd.f32 0.0, %v3412
      %v3414 = vpop.f32.mrf.mxu0
      %v3415 = vadd.f32 0.0, %v3414
      %3416 = vmatmul.bf16.gmra.mxu0 %v3308
      %v3417 = vpop.f32.mrf.mxu0
      %v3418 = vadd.f32 0.0, %v3417
      %v3419 = vpop.f32.mrf.mxu0
      %v3420 = vadd.f32 0.0, %v3419
      %3421 = vmatmul.bf16.gmra.mxu0 %v3309
      %v3422 = vpop.f32.mrf.mxu0
      %v3423 = vadd.f32 0.0, %v3422
      %v3424 = vpop.f32.mrf.mxu0
      %v3425 = vadd.f32 0.0, %v3424
      %3426 = vmatmul.bf16.gmra.mxu0 %v3310
      %v3427 = vpop.f32.mrf.mxu0
      %v3428 = vadd.f32 0.0, %v3427
      %v3429 = vpop.f32.mrf.mxu0
      %v3430 = vadd.f32 0.0, %v3429
      %3431 = vmatmul.bf16.gmra.mxu0 %v3311
      %v3432 = vpop.f32.mrf.mxu0
      %v3433 = vadd.f32 0.0, %v3432
      %v3434 = vpop.f32.mrf.mxu0
      %v3435 = vadd.f32 0.0, %v3434
      %3436 = vmatmul.bf16.gmra.mxu0 %v3312
      %v3437 = vpop.f32.mrf.mxu0
      %v3438 = vadd.f32 0.0, %v3437
      %v3439 = vpop.f32.mrf.mxu0
      %v3440 = vadd.f32 0.0, %v3439
      %3441 = vmatmul.bf16.gmra.mxu0 %v3313
      %v3442 = vpop.f32.mrf.mxu0
      %v3443 = vadd.f32 0.0, %v3442
      %v3444 = vpop.f32.mrf.mxu0
      %v3445 = vadd.f32 0.0, %v3444
      %3446 = vmatmul.bf16.gmra.mxu0 %v3314
      %v3447 = vpop.f32.mrf.mxu0
      %v3448 = vadd.f32 0.0, %v3447
      %v3449 = vpop.f32.mrf.mxu0
      %v3450 = vadd.f32 0.0, %v3449
      %3451 = vmatmul.bf16.gmra.mxu0 %v3315
      %v3452 = vpop.f32.mrf.mxu0
      %v3453 = vadd.f32 0.0, %v3452
      %v3454 = vpop.f32.mrf.mxu0
      %v3455 = vadd.f32 0.0, %v3454
      %3456 = vmatmul.bf16.gmra.mxu0 %v3316
      %v3457 = vpop.f32.mrf.mxu0
      %v3458 = vadd.f32 0.0, %v3457
      %v3459 = vpop.f32.mrf.mxu0
      %v3460 = vadd.f32 0.0, %v3459
      %3461 = vmatmul.bf16.gmra.mxu0 %v3317
      %v3462 = vpop.f32.mrf.mxu0
      %v3463 = vadd.f32 0.0, %v3462
      %v3464 = vpop.f32.mrf.mxu0
      %v3465 = vadd.f32 0.0, %v3464
      %3466 = vmatmul.bf16.gmra.mxu0 %v3318
      %v3467 = vpop.f32.mrf.mxu0
      %v3468 = vadd.f32 0.0, %v3467
      %v3469 = vpop.f32.mrf.mxu0
      %v3470 = vadd.f32 0.0, %v3469
      %3471 = vdwg.mxu0
      %v3472 = vadd.f32 %v2790, %v3393
      %v3473 = vadd.f32 %v2791, %v3395
      %v3474 = vadd.f32 %v2792, %v3398
      %v3475 = vadd.f32 %v2793, %v3400
      %v3476 = vadd.f32 %v2794, %v3403
      %v3477 = vadd.f32 %v2795, %v3405
      %v3478 = vadd.f32 %v2796, %v3408
      %v3479 = vadd.f32 %v2797, %v3410
      %v3480 = vadd.f32 %v2798, %v3413
      %v3481 = vadd.f32 %v2799, %v3415
      %v3482 = vadd.f32 %v2800, %v3418
      %v3483 = vadd.f32 %v2801, %v3420
      %v3484 = vadd.f32 %v2802, %v3423
      %v3485 = vadd.f32 %v2803, %v3425
      %v3486 = vadd.f32 %v2804, %v3428
      %v3487 = vadd.f32 %v2805, %v3430
      %v3488 = vadd.f32 %v2806, %v3433
      %v3489 = vadd.f32 %v2807, %v3435
      %v3490 = vadd.f32 %v2808, %v3438
      %v3491 = vadd.f32 %v2809, %v3440
      %v3492 = vadd.f32 %v2810, %v3443
      %v3493 = vadd.f32 %v2811, %v3445
      %v3494 = vadd.f32 %v2812, %v3448
      %v3495 = vadd.f32 %v2813, %v3450
      %v3496 = vadd.f32 %v2814, %v3453
      %v3497 = vadd.f32 %v2815, %v3455
      %v3498 = vadd.f32 %v2816, %v3458
      %v3499 = vadd.f32 %v2817, %v3460
      %v3500 = vadd.f32 %v2818, %v3463
      %v3501 = vadd.f32 %v2819, %v3465
      %v3502 = vadd.f32 %v2820, %v3468
      %v3503 = vadd.f32 %v2821, %v3470
      %3504 = vst [vmem:[#allocation3] sm:$0xff] %v3472
      %3505 = vst [vmem:[#allocation3 + $0x8] sm:$0xff] %v3473
      %3506 = vst [vmem:[#allocation3 + $0x10] sm:$0xff] %v3474
      %3507 = vst [vmem:[#allocation3 + $0x18] sm:$0xff] %v3475
      %3508 = vst [vmem:[#allocation3 + $0x20] sm:$0xff] %v3476
      %3509 = vst [vmem:[#allocation3 + $0x28] sm:$0xff] %v3477
      %3510 = vst [vmem:[#allocation3 + $0x30] sm:$0xff] %v3478
      %3511 = vst [vmem:[#allocation3 + $0x38] sm:$0xff] %v3479
      %3512 = vst [vmem:[#allocation3 + $0x40] sm:$0xff] %v3480
      %3513 = vst [vmem:[#allocation3 + $0x48] sm:$0xff] %v3481
      %3514 = vst [vmem:[#allocation3 + $0x50] sm:$0xff] %v3482
      %3515 = vst [vmem:[#allocation3 + $0x58] sm:$0xff] %v3483
      %3516 = vst [vmem:[#allocation3 + $0x60] sm:$0xff] %v3484
      %3517 = vst [vmem:[#allocation3 + $0x68] sm:$0xff] %v3485
      %3518 = vst [vmem:[#allocation3 + $0x70] sm:$0xff] %v3486
      %3519 = vst [vmem:[#allocation3 + $0x78] sm:$0xff] %v3487
      %3520 = vst [vmem:[#allocation3 + $0x80] sm:$0xff] %v3488
      %3521 = vst [vmem:[#allocation3 + $0x88] sm:$0xff] %v3489
      %3522 = vst [vmem:[#allocation3 + $0x90] sm:$0xff] %v3490
      %3523 = vst [vmem:[#allocation3 + $0x98] sm:$0xff] %v3491
      %3524 = vst [vmem:[#allocation3 + $0xa0] sm:$0xff] %v3492
      %3525 = vst [vmem:[#allocation3 + $0xa8] sm:$0xff] %v3493
      %3526 = vst [vmem:[#allocation3 + $0xb0] sm:$0xff] %v3494
      %3527 = vst [vmem:[#allocation3 + $0xb8] sm:$0xff] %v3495
      %3528 = vst [vmem:[#allocation3 + $0xc0] sm:$0xff] %v3496
      %3529 = vst [vmem:[#allocation3 + $0xc8] sm:$0xff] %v3497
      %3530 = vst [vmem:[#allocation3 + $0xd0] sm:$0xff] %v3498
      %3531 = vst [vmem:[#allocation3 + $0xd8] sm:$0xff] %v3499
      %3532 = vst [vmem:[#allocation3 + $0xe0] sm:$0xff] %v3500
      %3533 = vst [vmem:[#allocation3 + $0xe8] sm:$0xff] %v3501
      %3534 = vst [vmem:[#allocation3 + $0xf0] sm:$0xff] %v3502
      %3535 = vst [vmem:[#allocation3 + $0xf8] sm:$0xff] %v3503
      %v3536 = vld [vmem:[#allocation3] sm:$0xff]
      %v3537 = vld [vmem:[#allocation3 + $0x8] sm:$0xff]
      %v3538 = vld [vmem:[#allocation3 + $0x10] sm:$0xff]
      %v3539 = vld [vmem:[#allocation3 + $0x18] sm:$0xff]
      %v3540 = vld [vmem:[#allocation3 + $0x20] sm:$0xff]
      %v3541 = vld [vmem:[#allocation3 + $0x28] sm:$0xff]
      %v3542 = vld [vmem:[#allocation3 + $0x30] sm:$0xff]
      %v3543 = vld [vmem:[#allocation3 + $0x38] sm:$0xff]
      %v3544 = vld [vmem:[#allocation3 + $0x40] sm:$0xff]
      %v3545 = vld [vmem:[#allocation3 + $0x48] sm:$0xff]
      %v3546 = vld [vmem:[#allocation3 + $0x50] sm:$0xff]
      %v3547 = vld [vmem:[#allocation3 + $0x58] sm:$0xff]
      %v3548 = vld [vmem:[#allocation3 + $0x60] sm:$0xff]
      %v3549 = vld [vmem:[#allocation3 + $0x68] sm:$0xff]
      %v3550 = vld [vmem:[#allocation3 + $0x70] sm:$0xff]
      %v3551 = vld [vmem:[#allocation3 + $0x78] sm:$0xff]
      %v3552 = vld [vmem:[#allocation3 + $0x80] sm:$0xff]
      %v3553 = vld [vmem:[#allocation3 + $0x88] sm:$0xff]
      %v3554 = vld [vmem:[#allocation3 + $0x90] sm:$0xff]
      %v3555 = vld [vmem:[#allocation3 + $0x98] sm:$0xff]
      %v3556 = vld [vmem:[#allocation3 + $0xa0] sm:$0xff]
      %v3557 = vld [vmem:[#allocation3 + $0xa8] sm:$0xff]
      %v3558 = vld [vmem:[#allocation3 + $0xb0] sm:$0xff]
      %v3559 = vld [vmem:[#allocation3 + $0xb8] sm:$0xff]
      %v3560 = vld [vmem:[#allocation3 + $0xc0] sm:$0xff]
      %v3561 = vld [vmem:[#allocation3 + $0xc8] sm:$0xff]
      %v3562 = vld [vmem:[#allocation3 + $0xd0] sm:$0xff]
      %v3563 = vld [vmem:[#allocation3 + $0xd8] sm:$0xff]
      %v3564 = vld [vmem:[#allocation3 + $0xe0] sm:$0xff]
      %v3565 = vld [vmem:[#allocation3 + $0xe8] sm:$0xff]
      %v3566 = vld [vmem:[#allocation3 + $0xf0] sm:$0xff]
      %v3567 = vld [vmem:[#allocation3 + $0xf8] sm:$0xff]
      %v3568 = vld [vmem:[%s2443] sm:$0xe]
      %v3569 = vld [vmem:[%s2443 + $0x4] sm:$0xf]
      %v3570 = vld [vmem:[%s2443 + $0x8] sm:$0x1]
      %v3571 = vld [vmem:[%s2443 + $0xc] sm:$0xe]
      %v3572 = vld [vmem:[%s2443 + $0x10] sm:$0xf]
      %v3573 = vld [vmem:[%s2443 + $0x14] sm:$0x1]
      %v3574 = vld [vmem:[%s2443 + $0x18] sm:$0xe]
      %v3575 = vld [vmem:[%s2443 + $0x1c] sm:$0xf]
      %v3576 = vld [vmem:[%s2443 + $0x20] sm:$0x1]
      %v3577 = vld [vmem:[%s2443 + $0x24] sm:$0xe]
      %v3578 = vld [vmem:[%s2443 + $0x28] sm:$0xf]
      %v3579 = vld [vmem:[%s2443 + $0x2c] sm:$0x1]
      %v3580 = vld [vmem:[%s2443 + $0x30] sm:$0xe]
      %v3581 = vld [vmem:[%s2443 + $0x34] sm:$0xf]
      %v3582 = vld [vmem:[%s2443 + $0x38] sm:$0x1]
      %v3583 = vld [vmem:[%s2443 + $0x3c] sm:$0xe]
      %v3584 = vld [vmem:[%s2443 + $0x40] sm:$0xf]
      %v3585 = vld [vmem:[%s2443 + $0x44] sm:$0x1]
      %v3586 = vld [vmem:[%s2443 + $0x48] sm:$0xe]
      %v3587 = vld [vmem:[%s2443 + $0x4c] sm:$0xf]
      %v3588 = vld [vmem:[%s2443 + $0x50] sm:$0x1]
      %v3589 = vld [vmem:[%s2443 + $0x54] sm:$0xe]
      %v3590 = vld [vmem:[%s2443 + $0x58] sm:$0xf]
      %v3591 = vld [vmem:[%s2443 + $0x5c] sm:$0x1]
      %v3592 = vld [vmem:[%s2443 + $0x60] sm:$0xe]
      %v3593 = vld [vmem:[%s2443 + $0x64] sm:$0xf]
      %v3594 = vld [vmem:[%s2443 + $0x68] sm:$0x1]
      %v3595 = vld [vmem:[%s2443 + $0x6c] sm:$0xe]
      %v3596 = vld [vmem:[%s2443 + $0x70] sm:$0xf]
      %v3597 = vld [vmem:[%s2443 + $0x74] sm:$0x1]
      %v3598 = vld [vmem:[%s2443 + $0x78] sm:$0xe]
      %v3599 = vld [vmem:[%s2443 + $0x7c] sm:$0xf]
      %v3600 = vld [vmem:[%s2443 + $0x80] sm:$0x1]
      %v3601 = vld [vmem:[%s2443 + $0x84] sm:$0xe]
      %v3602 = vld [vmem:[%s2443 + $0x88] sm:$0xf]
      %v3603 = vld [vmem:[%s2443 + $0x8c] sm:$0x1]
      %v3604 = vld [vmem:[%s2443 + $0x90] sm:$0xe]
      %v3605 = vld [vmem:[%s2443 + $0x94] sm:$0xf]
      %v3606 = vld [vmem:[%s2443 + $0x98] sm:$0x1]
      %v3607 = vld [vmem:[%s2443 + $0x9c] sm:$0xe]
      %v3608 = vld [vmem:[%s2443 + $0xa0] sm:$0xf]
      %v3609 = vld [vmem:[%s2443 + $0xa4] sm:$0x1]
      %v3610 = vld [vmem:[%s2443 + $0xa8] sm:$0xe]
      %v3611 = vld [vmem:[%s2443 + $0xac] sm:$0xf]
      %v3612 = vld [vmem:[%s2443 + $0xb0] sm:$0x1]
      %v3613 = vld [vmem:[%s2443 + $0xb4] sm:$0xe]
      %v3614 = vld [vmem:[%s2443 + $0xb8] sm:$0xf]
      %v3615 = vld [vmem:[%s2443 + $0xbc] sm:$0x1]
      %v3664 = vrot.slane %v3568, 5
      %v3665 = vrot.slane %v3664, 4
      %v3666 = vrot.slane %v3569, 5
      %v3667 = vsel %vm2013, %v3665, %v3666
      %v3668 = vrot.slane %v3666, 4
      %v3669 = vrot.slane %v3570, 5
      %v3670 = vsel %vm2013, %v3668, %v3669
      %v3671 = vrot.slane %v3571, 5
      %v3672 = vrot.slane %v3671, 4
      %v3673 = vrot.slane %v3572, 5
      %v3674 = vsel %vm2013, %v3672, %v3673
      %v3675 = vrot.slane %v3673, 4
      %v3676 = vrot.slane %v3573, 5
      %v3677 = vsel %vm2013, %v3675, %v3676
      %v3678 = vrot.slane %v3574, 5
      %v3679 = vrot.slane %v3678, 4
      %v3680 = vrot.slane %v3575, 5
      %v3681 = vsel %vm2013, %v3679, %v3680
      %v3682 = vrot.slane %v3680, 4
      %v3683 = vrot.slane %v3576, 5
      %v3684 = vsel %vm2013, %v3682, %v3683
      %v3685 = vrot.slane %v3577, 5
      %v3686 = vrot.slane %v3685, 4
      %v3687 = vrot.slane %v3578, 5
      %v3688 = vsel %vm2013, %v3686, %v3687
      %v3689 = vrot.slane %v3687, 4
      %v3690 = vrot.slane %v3579, 5
      %v3691 = vsel %vm2013, %v3689, %v3690
      %v3692 = vrot.slane %v3580, 5
      %v3693 = vrot.slane %v3692, 4
      %v3694 = vrot.slane %v3581, 5
      %v3695 = vsel %vm2013, %v3693, %v3694
      %v3696 = vrot.slane %v3694, 4
      %v3697 = vrot.slane %v3582, 5
      %v3698 = vsel %vm2013, %v3696, %v3697
      %v3699 = vrot.slane %v3583, 5
      %v3700 = vrot.slane %v3699, 4
      %v3701 = vrot.slane %v3584, 5
      %v3702 = vsel %vm2013, %v3700, %v3701
      %v3703 = vrot.slane %v3701, 4
      %v3704 = vrot.slane %v3585, 5
      %v3705 = vsel %vm2013, %v3703, %v3704
      %v3706 = vrot.slane %v3586, 5
      %v3707 = vrot.slane %v3706, 4
      %v3708 = vrot.slane %v3587, 5
      %v3709 = vsel %vm2013, %v3707, %v3708
      %v3710 = vrot.slane %v3708, 4
      %v3711 = vrot.slane %v3588, 5
      %v3712 = vsel %vm2013, %v3710, %v3711
      %v3713 = vrot.slane %v3589, 5
      %v3714 = vrot.slane %v3713, 4
      %v3715 = vrot.slane %v3590, 5
      %v3716 = vsel %vm2013, %v3714, %v3715
      %v3717 = vrot.slane %v3715, 4
      %v3718 = vrot.slane %v3591, 5
      %v3719 = vsel %vm2013, %v3717, %v3718
      %v3720 = vrot.slane %v3592, 5
      %v3721 = vrot.slane %v3720, 4
      %v3722 = vrot.slane %v3593, 5
      %v3723 = vsel %vm2013, %v3721, %v3722
      %v3724 = vrot.slane %v3722, 4
      %v3725 = vrot.slane %v3594, 5
      %v3726 = vsel %vm2013, %v3724, %v3725
      %v3727 = vrot.slane %v3595, 5
      %v3728 = vrot.slane %v3727, 4
      %v3729 = vrot.slane %v3596, 5
      %v3730 = vsel %vm2013, %v3728, %v3729
      %v3731 = vrot.slane %v3729, 4
      %v3732 = vrot.slane %v3597, 5
      %v3733 = vsel %vm2013, %v3731, %v3732
      %v3734 = vrot.slane %v3598, 5
      %v3735 = vrot.slane %v3734, 4
      %v3736 = vrot.slane %v3599, 5
      %v3737 = vsel %vm2013, %v3735, %v3736
      %v3738 = vrot.slane %v3736, 4
      %v3739 = vrot.slane %v3600, 5
      %v3740 = vsel %vm2013, %v3738, %v3739
      %v3741 = vrot.slane %v3601, 5
      %v3742 = vrot.slane %v3741, 4
      %v3743 = vrot.slane %v3602, 5
      %v3744 = vsel %vm2013, %v3742, %v3743
      %v3745 = vrot.slane %v3743, 4
      %v3746 = vrot.slane %v3603, 5
      %v3747 = vsel %vm2013, %v3745, %v3746
      %v3748 = vrot.slane %v3604, 5
      %v3749 = vrot.slane %v3748, 4
      %v3750 = vrot.slane %v3605, 5
      %v3751 = vsel %vm2013, %v3749, %v3750
      %v3752 = vrot.slane %v3750, 4
      %v3753 = vrot.slane %v3606, 5
      %v3754 = vsel %vm2013, %v3752, %v3753
      %v3755 = vrot.slane %v3607, 5
      %v3756 = vrot.slane %v3755, 4
      %v3757 = vrot.slane %v3608, 5
      %v3758 = vsel %vm2013, %v3756, %v3757
      %v3759 = vrot.slane %v3757, 4
      %v3760 = vrot.slane %v3609, 5
      %v3761 = vsel %vm2013, %v3759, %v3760
      %v3762 = vrot.slane %v3610, 5
      %v3763 = vrot.slane %v3762, 4
      %v3764 = vrot.slane %v3611, 5
      %v3765 = vsel %vm2013, %v3763, %v3764
      %v3766 = vrot.slane %v3764, 4
      %v3767 = vrot.slane %v3612, 5
      %v3768 = vsel %vm2013, %v3766, %v3767
      %v3769 = vrot.slane %v3613, 5
      %v3770 = vrot.slane %v3769, 4
      %v3771 = vrot.slane %v3614, 5
      %v3772 = vsel %vm2013, %v3770, %v3771
      %v3773 = vrot.slane %v3771, 4
      %v3774 = vrot.slane %v3615, 5
      %v3775 = vsel %vm2013, %v3773, %v3774
      %s3776 = scalar_lea.vmem %s262, 320
      %v3777 = vld [vmem:[%s3776] sm:$0xf]
      %v3778 = vld [vmem:[%s3776 + $0x4] sm:$0xf]
      %v3779 = vld [vmem:[%s3776 + $0x8] sm:$0xf]
      %v3780 = vld [vmem:[%s3776 + $0xc] sm:$0xf]
      %v3781 = vld [vmem:[%s3776 + $0x10] sm:$0xf]
      %v3782 = vld [vmem:[%s3776 + $0x14] sm:$0xf]
      %v3783 = vld [vmem:[%s3776 + $0x18] sm:$0xf]
      %v3784 = vld [vmem:[%s3776 + $0x1c] sm:$0xf]
      %v3785 = vld [vmem:[%s3776 + $0x20] sm:$0xf]
      %v3786 = vld [vmem:[%s3776 + $0x24] sm:$0xf]
      %v3787 = vld [vmem:[%s3776 + $0x28] sm:$0xf]
      %v3788 = vld [vmem:[%s3776 + $0x2c] sm:$0xf]
      %v3789 = vld [vmem:[%s3776 + $0x30] sm:$0xf]
      %v3790 = vld [vmem:[%s3776 + $0x34] sm:$0xf]
      %v3791 = vld [vmem:[%s3776 + $0x38] sm:$0xf]
      %v3792 = vld [vmem:[%s3776 + $0x3c] sm:$0xf]
      %v3793 = vunpack.c.l.b16 %v3667
      %v3794 = vunpack.c.l.b16 %v3670
      %v3795 = vunpack.c.l.b16 %v3674
      %v3796 = vunpack.c.l.b16 %v3677
      %v3797 = vunpack.c.l.b16 %v3681
      %v3798 = vunpack.c.l.b16 %v3684
      %v3799 = vunpack.c.l.b16 %v3688
      %v3800 = vunpack.c.l.b16 %v3691
      %v3801 = vunpack.c.l.b16 %v3695
      %v3802 = vunpack.c.l.b16 %v3698
      %v3803 = vunpack.c.l.b16 %v3702
      %v3804 = vunpack.c.l.b16 %v3705
      %v3805 = vunpack.c.l.b16 %v3709
      %v3806 = vunpack.c.l.b16 %v3712
      %v3807 = vunpack.c.l.b16 %v3716
      %v3808 = vunpack.c.l.b16 %v3719
      %v3809 = vunpack.c.l.b16 %v3723
      %v3810 = vunpack.c.l.b16 %v3726
      %v3811 = vunpack.c.l.b16 %v3730
      %v3812 = vunpack.c.l.b16 %v3733
      %v3813 = vunpack.c.l.b16 %v3737
      %v3814 = vunpack.c.l.b16 %v3740
      %v3815 = vunpack.c.l.b16 %v3744
      %v3816 = vunpack.c.l.b16 %v3747
      %v3817 = vunpack.c.l.b16 %v3751
      %v3818 = vunpack.c.l.b16 %v3754
      %v3819 = vunpack.c.l.b16 %v3758
      %v3820 = vunpack.c.l.b16 %v3761
      %v3821 = vunpack.c.l.b16 %v3765
      %v3822 = vunpack.c.l.b16 %v3768
      %v3823 = vunpack.c.l.b16 %v3772
      %v3824 = vunpack.c.l.b16 %v3775
      %v3825 = vpack.c.b16 %v3794, %v3793
      %v3826 = vpack.c.b16 %v3796, %v3795
      %v3827 = vpack.c.b16 %v3798, %v3797
      %v3828 = vpack.c.b16 %v3800, %v3799
      %v3829 = vpack.c.b16 %v3802, %v3801
      %v3830 = vpack.c.b16 %v3804, %v3803
      %v3831 = vpack.c.b16 %v3806, %v3805
      %v3832 = vpack.c.b16 %v3808, %v3807
      %v3833 = vpack.c.b16 %v3810, %v3809
      %v3834 = vpack.c.b16 %v3812, %v3811
      %v3835 = vpack.c.b16 %v3814, %v3813
      %v3836 = vpack.c.b16 %v3816, %v3815
      %v3837 = vpack.c.b16 %v3818, %v3817
      %v3838 = vpack.c.b16 %v3820, %v3819
      %v3839 = vpack.c.b16 %v3822, %v3821
      %v3840 = vpack.c.b16 %v3824, %v3823
      %v3873 = vunpack.c.l.b16 %v3777
      %v3874 = vunpack.c.l.b16 %v3778
      %v3875 = vunpack.c.l.b16 %v3779
      %v3876 = vunpack.c.l.b16 %v3780
      %v3877 = vunpack.c.l.b16 %v3781
      %v3878 = vunpack.c.l.b16 %v3782
      %v3879 = vunpack.c.l.b16 %v3783
      %v3880 = vunpack.c.l.b16 %v3784
      %v3881 = vunpack.c.l.b16 %v3785
      %v3882 = vunpack.c.l.b16 %v3786
      %v3883 = vunpack.c.l.b16 %v3787
      %v3884 = vunpack.c.l.b16 %v3788
      %v3885 = vunpack.c.l.b16 %v3789
      %v3886 = vunpack.c.l.b16 %v3790
      %v3887 = vunpack.c.l.b16 %v3791
      %v3888 = vunpack.c.l.b16 %v3792
      %v3889 = vpack.c.b16 %v3874, %v3873
      %v3890 = vpack.c.b16 %v3876, %v3875
      %v3891 = vpack.c.b16 %v3878, %v3877
      %v3892 = vpack.c.b16 %v3880, %v3879
      %v3893 = vpack.c.b16 %v3882, %v3881
      %v3894 = vpack.c.b16 %v3884, %v3883
      %v3895 = vpack.c.b16 %v3886, %v3885
      %v3896 = vpack.c.b16 %v3888, %v3887
      %3905 = vmatpush.bf16.msra.mxu0 %v3896
      %3906 = vmatpush.bf16.msra.mxu0 %v3895
      %3907 = vmatpush.bf16.msra.mxu0 %v3894
      %3908 = vmatpush.bf16.msra.mxu0 %v3893
      %3909 = vmatpush.bf16.msra.mxu0 %v3892
      %3910 = vmatpush.bf16.msra.mxu0 %v3891
      %3911 = vmatpush.bf16.msra.mxu0 %v3890
      %3912 = vmatpush.bf16.msra.mxu0 %v3889
      %3913 = vmatmul.bf16.gmra.mxu0 %v3825
      %v3914 = vpop.f32.mrf.mxu0
      %v3915 = vadd.f32 0.0, %v3914
      %v3916 = vpop.f32.mrf.mxu0
      %v3917 = vadd.f32 0.0, %v3916
      %3918 = vmatmul.bf16.gmra.mxu0 %v3826
      %v3919 = vpop.f32.mrf.mxu0
      %v3920 = vadd.f32 0.0, %v3919
      %v3921 = vpop.f32.mrf.mxu0
      %v3922 = vadd.f32 0.0, %v3921
      %3923 = vmatmul.bf16.gmra.mxu0 %v3827
      %v3924 = vpop.f32.mrf.mxu0
      %v3925 = vadd.f32 0.0, %v3924
      %v3926 = vpop.f32.mrf.mxu0
      %v3927 = vadd.f32 0.0, %v3926
      %3928 = vmatmul.bf16.gmra.mxu0 %v3828
      %v3929 = vpop.f32.mrf.mxu0
      %v3930 = vadd.f32 0.0, %v3929
      %v3931 = vpop.f32.mrf.mxu0
      %v3932 = vadd.f32 0.0, %v3931
      %3933 = vmatmul.bf16.gmra.mxu0 %v3829
      %v3934 = vpop.f32.mrf.mxu0
      %v3935 = vadd.f32 0.0, %v3934
      %v3936 = vpop.f32.mrf.mxu0
      %v3937 = vadd.f32 0.0, %v3936
      %3938 = vmatmul.bf16.gmra.mxu0 %v3830
      %v3939 = vpop.f32.mrf.mxu0
      %v3940 = vadd.f32 0.0, %v3939
      %v3941 = vpop.f32.mrf.mxu0
      %v3942 = vadd.f32 0.0, %v3941
      %3943 = vmatmul.bf16.gmra.mxu0 %v3831
      %v3944 = vpop.f32.mrf.mxu0
      %v3945 = vadd.f32 0.0, %v3944
      %v3946 = vpop.f32.mrf.mxu0
      %v3947 = vadd.f32 0.0, %v3946
      %3948 = vmatmul.bf16.gmra.mxu0 %v3832
      %v3949 = vpop.f32.mrf.mxu0
      %v3950 = vadd.f32 0.0, %v3949
      %v3951 = vpop.f32.mrf.mxu0
      %v3952 = vadd.f32 0.0, %v3951
      %3953 = vmatmul.bf16.gmra.mxu0 %v3833
      %v3954 = vpop.f32.mrf.mxu0
      %v3955 = vadd.f32 0.0, %v3954
      %v3956 = vpop.f32.mrf.mxu0
      %v3957 = vadd.f32 0.0, %v3956
      %3958 = vmatmul.bf16.gmra.mxu0 %v3834
      %v3959 = vpop.f32.mrf.mxu0
      %v3960 = vadd.f32 0.0, %v3959
      %v3961 = vpop.f32.mrf.mxu0
      %v3962 = vadd.f32 0.0, %v3961
      %3963 = vmatmul.bf16.gmra.mxu0 %v3835
      %v3964 = vpop.f32.mrf.mxu0
      %v3965 = vadd.f32 0.0, %v3964
      %v3966 = vpop.f32.mrf.mxu0
      %v3967 = vadd.f32 0.0, %v3966
      %3968 = vmatmul.bf16.gmra.mxu0 %v3836
      %v3969 = vpop.f32.mrf.mxu0
      %v3970 = vadd.f32 0.0, %v3969
      %v3971 = vpop.f32.mrf.mxu0
      %v3972 = vadd.f32 0.0, %v3971
      %3973 = vmatmul.bf16.gmra.mxu0 %v3837
      %v3974 = vpop.f32.mrf.mxu0
      %v3975 = vadd.f32 0.0, %v3974
      %v3976 = vpop.f32.mrf.mxu0
      %v3977 = vadd.f32 0.0, %v3976
      %3978 = vmatmul.bf16.gmra.mxu0 %v3838
      %v3979 = vpop.f32.mrf.mxu0
      %v3980 = vadd.f32 0.0, %v3979
      %v3981 = vpop.f32.mrf.mxu0
      %v3982 = vadd.f32 0.0, %v3981
      %3983 = vmatmul.bf16.gmra.mxu0 %v3839
      %v3984 = vpop.f32.mrf.mxu0
      %v3985 = vadd.f32 0.0, %v3984
      %v3986 = vpop.f32.mrf.mxu0
      %v3987 = vadd.f32 0.0, %v3986
      %3988 = vmatmul.bf16.gmra.mxu0 %v3840
      %v3989 = vpop.f32.mrf.mxu0
      %v3990 = vadd.f32 0.0, %v3989
      %v3991 = vpop.f32.mrf.mxu0
      %v3992 = vadd.f32 0.0, %v3991
      %3993 = vdwg.mxu0
      %v3994 = vadd.f32 %v3536, %v3915
      %v3995 = vadd.f32 %v3537, %v3917
      %v3996 = vadd.f32 %v3538, %v3920
      %v3997 = vadd.f32 %v3539, %v3922
      %v3998 = vadd.f32 %v3540, %v3925
      %v3999 = vadd.f32 %v3541, %v3927
      %v4000 = vadd.f32 %v3542, %v3930
      %v4001 = vadd.f32 %v3543, %v3932
      %v4002 = vadd.f32 %v3544, %v3935
      %v4003 = vadd.f32 %v3545, %v3937
      %v4004 = vadd.f32 %v3546, %v3940
      %v4005 = vadd.f32 %v3547, %v3942
      %v4006 = vadd.f32 %v3548, %v3945
      %v4007 = vadd.f32 %v3549, %v3947
      %v4008 = vadd.f32 %v3550, %v3950
      %v4009 = vadd.f32 %v3551, %v3952
      %v4010 = vadd.f32 %v3552, %v3955
      %v4011 = vadd.f32 %v3553, %v3957
      %v4012 = vadd.f32 %v3554, %v3960
      %v4013 = vadd.f32 %v3555, %v3962
      %v4014 = vadd.f32 %v3556, %v3965
      %v4015 = vadd.f32 %v3557, %v3967
      %v4016 = vadd.f32 %v3558, %v3970
      %v4017 = vadd.f32 %v3559, %v3972
      %v4018 = vadd.f32 %v3560, %v3975
      %v4019 = vadd.f32 %v3561, %v3977
      %v4020 = vadd.f32 %v3562, %v3980
      %v4021 = vadd.f32 %v3563, %v3982
      %v4022 = vadd.f32 %v3564, %v3985
      %v4023 = vadd.f32 %v3565, %v3987
      %v4024 = vadd.f32 %v3566, %v3990
      %v4025 = vadd.f32 %v3567, %v3992
      %4026 = vst [vmem:[#allocation3] sm:$0xff] %v3994
      %4027 = vst [vmem:[#allocation3 + $0x8] sm:$0xff] %v3995
      %4028 = vst [vmem:[#allocation3 + $0x10] sm:$0xff] %v3996
      %4029 = vst [vmem:[#allocation3 + $0x18] sm:$0xff] %v3997
      %4030 = vst [vmem:[#allocation3 + $0x20] sm:$0xff] %v3998
      %4031 = vst [vmem:[#allocation3 + $0x28] sm:$0xff] %v3999
      %4032 = vst [vmem:[#allocation3 + $0x30] sm:$0xff] %v4000
      %4033 = vst [vmem:[#allocation3 + $0x38] sm:$0xff] %v4001
      %4034 = vst [vmem:[#allocation3 + $0x40] sm:$0xff] %v4002
      %4035 = vst [vmem:[#allocation3 + $0x48] sm:$0xff] %v4003
      %4036 = vst [vmem:[#allocation3 + $0x50] sm:$0xff] %v4004
      %4037 = vst [vmem:[#allocation3 + $0x58] sm:$0xff] %v4005
      %4038 = vst [vmem:[#allocation3 + $0x60] sm:$0xff] %v4006
      %4039 = vst [vmem:[#allocation3 + $0x68] sm:$0xff] %v4007
      %4040 = vst [vmem:[#allocation3 + $0x70] sm:$0xff] %v4008
      %4041 = vst [vmem:[#allocation3 + $0x78] sm:$0xff] %v4009
      %4042 = vst [vmem:[#allocation3 + $0x80] sm:$0xff] %v4010
      %4043 = vst [vmem:[#allocation3 + $0x88] sm:$0xff] %v4011
      %4044 = vst [vmem:[#allocation3 + $0x90] sm:$0xff] %v4012
      %4045 = vst [vmem:[#allocation3 + $0x98] sm:$0xff] %v4013
      %4046 = vst [vmem:[#allocation3 + $0xa0] sm:$0xff] %v4014
      %4047 = vst [vmem:[#allocation3 + $0xa8] sm:$0xff] %v4015
      %4048 = vst [vmem:[#allocation3 + $0xb0] sm:$0xff] %v4016
      %4049 = vst [vmem:[#allocation3 + $0xb8] sm:$0xff] %v4017
      %4050 = vst [vmem:[#allocation3 + $0xc0] sm:$0xff] %v4018
      %4051 = vst [vmem:[#allocation3 + $0xc8] sm:$0xff] %v4019
      %4052 = vst [vmem:[#allocation3 + $0xd0] sm:$0xff] %v4020
      %4053 = vst [vmem:[#allocation3 + $0xd8] sm:$0xff] %v4021
      %4054 = vst [vmem:[#allocation3 + $0xe0] sm:$0xff] %v4022
      %4055 = vst [vmem:[#allocation3 + $0xe8] sm:$0xff] %v4023
      %4056 = vst [vmem:[#allocation3 + $0xf0] sm:$0xff] %v4024
      %4057 = vst [vmem:[#allocation3 + $0xf8] sm:$0xff] %v4025
      %v4058 = vld [vmem:[#allocation3] sm:$0xff]
      %v4059 = vld [vmem:[#allocation3 + $0x8] sm:$0xff]
      %v4060 = vld [vmem:[#allocation3 + $0x10] sm:$0xff]
      %v4061 = vld [vmem:[#allocation3 + $0x18] sm:$0xff]
      %v4062 = vld [vmem:[#allocation3 + $0x20] sm:$0xff]
      %v4063 = vld [vmem:[#allocation3 + $0x28] sm:$0xff]
      %v4064 = vld [vmem:[#allocation3 + $0x30] sm:$0xff]
      %v4065 = vld [vmem:[#allocation3 + $0x38] sm:$0xff]
      %v4066 = vld [vmem:[#allocation3 + $0x40] sm:$0xff]
      %v4067 = vld [vmem:[#allocation3 + $0x48] sm:$0xff]
      %v4068 = vld [vmem:[#allocation3 + $0x50] sm:$0xff]
      %v4069 = vld [vmem:[#allocation3 + $0x58] sm:$0xff]
      %v4070 = vld [vmem:[#allocation3 + $0x60] sm:$0xff]
      %v4071 = vld [vmem:[#allocation3 + $0x68] sm:$0xff]
      %v4072 = vld [vmem:[#allocation3 + $0x70] sm:$0xff]
      %v4073 = vld [vmem:[#allocation3 + $0x78] sm:$0xff]
      %v4074 = vld [vmem:[#allocation3 + $0x80] sm:$0xff]
      %v4075 = vld [vmem:[#allocation3 + $0x88] sm:$0xff]
      %v4076 = vld [vmem:[#allocation3 + $0x90] sm:$0xff]
      %v4077 = vld [vmem:[#allocation3 + $0x98] sm:$0xff]
      %v4078 = vld [vmem:[#allocation3 + $0xa0] sm:$0xff]
      %v4079 = vld [vmem:[#allocation3 + $0xa8] sm:$0xff]
      %v4080 = vld [vmem:[#allocation3 + $0xb0] sm:$0xff]
      %v4081 = vld [vmem:[#allocation3 + $0xb8] sm:$0xff]
      %v4082 = vld [vmem:[#allocation3 + $0xc0] sm:$0xff]
      %v4083 = vld [vmem:[#allocation3 + $0xc8] sm:$0xff]
      %v4084 = vld [vmem:[#allocation3 + $0xd0] sm:$0xff]
      %v4085 = vld [vmem:[#allocation3 + $0xd8] sm:$0xff]
      %v4086 = vld [vmem:[#allocation3 + $0xe0] sm:$0xff]
      %v4087 = vld [vmem:[#allocation3 + $0xe8] sm:$0xff]
      %v4088 = vld [vmem:[#allocation3 + $0xf0] sm:$0xff]
      %v4089 = vld [vmem:[#allocation3 + $0xf8] sm:$0xff]
      %s4090 = sadd.s32 %s817, 2
      %s4091 = smul.u32 %s4090, 3
      %s4092 = smul.addr %s4091, 4
      %s4093 = scalar_lea.vmem [#allocation2], %s4092
      %v4094 = vld [vmem:[%s4093] sm:$0xf]
      %v4095 = vld [vmem:[%s4093 + $0x4] sm:$0xf]
      %v4096 = vld [vmem:[%s4093 + $0xc] sm:$0xf]
      %v4097 = vld [vmem:[%s4093 + $0x10] sm:$0xf]
      %v4098 = vld [vmem:[%s4093 + $0x18] sm:$0xf]
      %v4099 = vld [vmem:[%s4093 + $0x1c] sm:$0xf]
      %v4100 = vld [vmem:[%s4093 + $0x24] sm:$0xf]
      %v4101 = vld [vmem:[%s4093 + $0x28] sm:$0xf]
      %v4102 = vld [vmem:[%s4093 + $0x30] sm:$0xf]
      %v4103 = vld [vmem:[%s4093 + $0x34] sm:$0xf]
      %v4104 = vld [vmem:[%s4093 + $0x3c] sm:$0xf]
      %v4105 = vld [vmem:[%s4093 + $0x40] sm:$0xf]
      %v4106 = vld [vmem:[%s4093 + $0x48] sm:$0xf]
      %v4107 = vld [vmem:[%s4093 + $0x4c] sm:$0xf]
      %v4108 = vld [vmem:[%s4093 + $0x54] sm:$0xf]
      %v4109 = vld [vmem:[%s4093 + $0x58] sm:$0xf]
      %v4110 = vld [vmem:[%s4093 + $0x60] sm:$0xf]
      %v4111 = vld [vmem:[%s4093 + $0x64] sm:$0xf]
      %v4112 = vld [vmem:[%s4093 + $0x6c] sm:$0xf]
      %v4113 = vld [vmem:[%s4093 + $0x70] sm:$0xf]
      %v4114 = vld [vmem:[%s4093 + $0x78] sm:$0xf]
      %v4115 = vld [vmem:[%s4093 + $0x7c] sm:$0xf]
      %v4116 = vld [vmem:[%s4093 + $0x84] sm:$0xf]
      %v4117 = vld [vmem:[%s4093 + $0x88] sm:$0xf]
      %v4118 = vld [vmem:[%s4093 + $0x90] sm:$0xf]
      %v4119 = vld [vmem:[%s4093 + $0x94] sm:$0xf]
      %v4120 = vld [vmem:[%s4093 + $0x9c] sm:$0xf]
      %v4121 = vld [vmem:[%s4093 + $0xa0] sm:$0xf]
      %v4122 = vld [vmem:[%s4093 + $0xa8] sm:$0xf]
      %v4123 = vld [vmem:[%s4093 + $0xac] sm:$0xf]
      %v4124 = vld [vmem:[%s4093 + $0xb4] sm:$0xf]
      %v4125 = vld [vmem:[%s4093 + $0xb8] sm:$0xf]
      %s4126 = scalar_lea.vmem %s262, 384
      %v4127 = vld [vmem:[%s4126] sm:$0xf]
      %v4128 = vld [vmem:[%s4126 + $0x4] sm:$0xf]
      %v4129 = vld [vmem:[%s4126 + $0x8] sm:$0xf]
      %v4130 = vld [vmem:[%s4126 + $0xc] sm:$0xf]
      %v4131 = vld [vmem:[%s4126 + $0x10] sm:$0xf]
      %v4132 = vld [vmem:[%s4126 + $0x14] sm:$0xf]
      %v4133 = vld [vmem:[%s4126 + $0x18] sm:$0xf]
      %v4134 = vld [vmem:[%s4126 + $0x1c] sm:$0xf]
      %v4135 = vld [vmem:[%s4126 + $0x20] sm:$0xf]
      %v4136 = vld [vmem:[%s4126 + $0x24] sm:$0xf]
      %v4137 = vld [vmem:[%s4126 + $0x28] sm:$0xf]
      %v4138 = vld [vmem:[%s4126 + $0x2c] sm:$0xf]
      %v4139 = vld [vmem:[%s4126 + $0x30] sm:$0xf]
      %v4140 = vld [vmem:[%s4126 + $0x34] sm:$0xf]
      %v4141 = vld [vmem:[%s4126 + $0x38] sm:$0xf]
      %v4142 = vld [vmem:[%s4126 + $0x3c] sm:$0xf]
      %v4175 = vunpack.c.l.b16 %v4094
      %v4176 = vunpack.c.l.b16 %v4095
      %v4177 = vunpack.c.l.b16 %v4096
      %v4178 = vunpack.c.l.b16 %v4097
      %v4179 = vunpack.c.l.b16 %v4098
      %v4180 = vunpack.c.l.b16 %v4099
      %v4181 = vunpack.c.l.b16 %v4100
      %v4182 = vunpack.c.l.b16 %v4101
      %v4183 = vunpack.c.l.b16 %v4102
      %v4184 = vunpack.c.l.b16 %v4103
      %v4185 = vunpack.c.l.b16 %v4104
      %v4186 = vunpack.c.l.b16 %v4105
      %v4187 = vunpack.c.l.b16 %v4106
      %v4188 = vunpack.c.l.b16 %v4107
      %v4189 = vunpack.c.l.b16 %v4108
      %v4190 = vunpack.c.l.b16 %v4109
      %v4191 = vunpack.c.l.b16 %v4110
      %v4192 = vunpack.c.l.b16 %v4111
      %v4193 = vunpack.c.l.b16 %v4112
      %v4194 = vunpack.c.l.b16 %v4113
      %v4195 = vunpack.c.l.b16 %v4114
      %v4196 = vunpack.c.l.b16 %v4115
      %v4197 = vunpack.c.l.b16 %v4116
      %v4198 = vunpack.c.l.b16 %v4117
      %v4199 = vunpack.c.l.b16 %v4118
      %v4200 = vunpack.c.l.b16 %v4119
      %v4201 = vunpack.c.l.b16 %v4120
      %v4202 = vunpack.c.l.b16 %v4121
      %v4203 = vunpack.c.l.b16 %v4122
      %v4204 = vunpack.c.l.b16 %v4123
      %v4205 = vunpack.c.l.b16 %v4124
      %v4206 = vunpack.c.l.b16 %v4125
      %v4207 = vpack.c.b16 %v4176, %v4175
      %v4208 = vpack.c.b16 %v4178, %v4177
      %v4209 = vpack.c.b16 %v4180, %v4179
      %v4210 = vpack.c.b16 %v4182, %v4181
      %v4211 = vpack.c.b16 %v4184, %v4183
      %v4212 = vpack.c.b16 %v4186, %v4185
      %v4213 = vpack.c.b16 %v4188, %v4187
      %v4214 = vpack.c.b16 %v4190, %v4189
      %v4215 = vpack.c.b16 %v4192, %v4191
      %v4216 = vpack.c.b16 %v4194, %v4193
      %v4217 = vpack.c.b16 %v4196, %v4195
      %v4218 = vpack.c.b16 %v4198, %v4197
      %v4219 = vpack.c.b16 %v4200, %v4199
      %v4220 = vpack.c.b16 %v4202, %v4201
      %v4221 = vpack.c.b16 %v4204, %v4203
      %v4222 = vpack.c.b16 %v4206, %v4205
      %v4255 = vunpack.c.l.b16 %v4127
      %v4256 = vunpack.c.l.b16 %v4128
      %v4257 = vunpack.c.l.b16 %v4129
      %v4258 = vunpack.c.l.b16 %v4130
      %v4259 = vunpack.c.l.b16 %v4131
      %v4260 = vunpack.c.l.b16 %v4132
      %v4261 = vunpack.c.l.b16 %v4133
      %v4262 = vunpack.c.l.b16 %v4134
      %v4263 = vunpack.c.l.b16 %v4135
      %v4264 = vunpack.c.l.b16 %v4136
      %v4265 = vunpack.c.l.b16 %v4137
      %v4266 = vunpack.c.l.b16 %v4138
      %v4267 = vunpack.c.l.b16 %v4139
      %v4268 = vunpack.c.l.b16 %v4140
      %v4269 = vunpack.c.l.b16 %v4141
      %v4270 = vunpack.c.l.b16 %v4142
      %v4271 = vpack.c.b16 %v4256, %v4255
      %v4272 = vpack.c.b16 %v4258, %v4257
      %v4273 = vpack.c.b16 %v4260, %v4259
      %v4274 = vpack.c.b16 %v4262, %v4261
      %v4275 = vpack.c.b16 %v4264, %v4263
      %v4276 = vpack.c.b16 %v4266, %v4265
      %v4277 = vpack.c.b16 %v4268, %v4267
      %v4278 = vpack.c.b16 %v4270, %v4269
      %4287 = vmatpush.bf16.msra.mxu0 %v4278
      %4288 = vmatpush.bf16.msra.mxu0 %v4277
      %4289 = vmatpush.bf16.msra.mxu0 %v4276
      %4290 = vmatpush.bf16.msra.mxu0 %v4275
      %4291 = vmatpush.bf16.msra.mxu0 %v4274
      %4292 = vmatpush.bf16.msra.mxu0 %v4273
      %4293 = vmatpush.bf16.msra.mxu0 %v4272
      %4294 = vmatpush.bf16.msra.mxu0 %v4271
      %4295 = vmatmul.bf16.gmra.mxu0 %v4207
      %v4296 = vpop.f32.mrf.mxu0
      %v4297 = vadd.f32 0.0, %v4296
      %v4298 = vpop.f32.mrf.mxu0
      %v4299 = vadd.f32 0.0, %v4298
      %4300 = vmatmul.bf16.gmra.mxu0 %v4208
      %v4301 = vpop.f32.mrf.mxu0
      %v4302 = vadd.f32 0.0, %v4301
      %v4303 = vpop.f32.mrf.mxu0
      %v4304 = vadd.f32 0.0, %v4303
      %4305 = vmatmul.bf16.gmra.mxu0 %v4209
      %v4306 = vpop.f32.mrf.mxu0
      %v4307 = vadd.f32 0.0, %v4306
      %v4308 = vpop.f32.mrf.mxu0
      %v4309 = vadd.f32 0.0, %v4308
      %4310 = vmatmul.bf16.gmra.mxu0 %v4210
      %v4311 = vpop.f32.mrf.mxu0
      %v4312 = vadd.f32 0.0, %v4311
      %v4313 = vpop.f32.mrf.mxu0
      %v4314 = vadd.f32 0.0, %v4313
      %4315 = vmatmul.bf16.gmra.mxu0 %v4211
      %v4316 = vpop.f32.mrf.mxu0
      %v4317 = vadd.f32 0.0, %v4316
      %v4318 = vpop.f32.mrf.mxu0
      %v4319 = vadd.f32 0.0, %v4318
      %4320 = vmatmul.bf16.gmra.mxu0 %v4212
      %v4321 = vpop.f32.mrf.mxu0
      %v4322 = vadd.f32 0.0, %v4321
      %v4323 = vpop.f32.mrf.mxu0
      %v4324 = vadd.f32 0.0, %v4323
      %4325 = vmatmul.bf16.gmra.mxu0 %v4213
      %v4326 = vpop.f32.mrf.mxu0
      %v4327 = vadd.f32 0.0, %v4326
      %v4328 = vpop.f32.mrf.mxu0
      %v4329 = vadd.f32 0.0, %v4328
      %4330 = vmatmul.bf16.gmra.mxu0 %v4214
      %v4331 = vpop.f32.mrf.mxu0
      %v4332 = vadd.f32 0.0, %v4331
      %v4333 = vpop.f32.mrf.mxu0
      %v4334 = vadd.f32 0.0, %v4333
      %4335 = vmatmul.bf16.gmra.mxu0 %v4215
      %v4336 = vpop.f32.mrf.mxu0
      %v4337 = vadd.f32 0.0, %v4336
      %v4338 = vpop.f32.mrf.mxu0
      %v4339 = vadd.f32 0.0, %v4338
      %4340 = vmatmul.bf16.gmra.mxu0 %v4216
      %v4341 = vpop.f32.mrf.mxu0
      %v4342 = vadd.f32 0.0, %v4341
      %v4343 = vpop.f32.mrf.mxu0
      %v4344 = vadd.f32 0.0, %v4343
      %4345 = vmatmul.bf16.gmra.mxu0 %v4217
      %v4346 = vpop.f32.mrf.mxu0
      %v4347 = vadd.f32 0.0, %v4346
      %v4348 = vpop.f32.mrf.mxu0
      %v4349 = vadd.f32 0.0, %v4348
      %4350 = vmatmul.bf16.gmra.mxu0 %v4218
      %v4351 = vpop.f32.mrf.mxu0
      %v4352 = vadd.f32 0.0, %v4351
      %v4353 = vpop.f32.mrf.mxu0
      %v4354 = vadd.f32 0.0, %v4353
      %4355 = vmatmul.bf16.gmra.mxu0 %v4219
      %v4356 = vpop.f32.mrf.mxu0
      %v4357 = vadd.f32 0.0, %v4356
      %v4358 = vpop.f32.mrf.mxu0
      %v4359 = vadd.f32 0.0, %v4358
      %4360 = vmatmul.bf16.gmra.mxu0 %v4220
      %v4361 = vpop.f32.mrf.mxu0
      %v4362 = vadd.f32 0.0, %v4361
      %v4363 = vpop.f32.mrf.mxu0
      %v4364 = vadd.f32 0.0, %v4363
      %4365 = vmatmul.bf16.gmra.mxu0 %v4221
      %v4366 = vpop.f32.mrf.mxu0
      %v4367 = vadd.f32 0.0, %v4366
      %v4368 = vpop.f32.mrf.mxu0
      %v4369 = vadd.f32 0.0, %v4368
      %4370 = vmatmul.bf16.gmra.mxu0 %v4222
      %v4371 = vpop.f32.mrf.mxu0
      %v4372 = vadd.f32 0.0, %v4371
      %v4373 = vpop.f32.mrf.mxu0
      %v4374 = vadd.f32 0.0, %v4373
      %4375 = vdwg.mxu0
      %v4376 = vadd.f32 %v4058, %v4297
      %v4377 = vadd.f32 %v4059, %v4299
      %v4378 = vadd.f32 %v4060, %v4302
      %v4379 = vadd.f32 %v4061, %v4304
      %v4380 = vadd.f32 %v4062, %v4307
      %v4381 = vadd.f32 %v4063, %v4309
      %v4382 = vadd.f32 %v4064, %v4312
      %v4383 = vadd.f32 %v4065, %v4314
      %v4384 = vadd.f32 %v4066, %v4317
      %v4385 = vadd.f32 %v4067, %v4319
      %v4386 = vadd.f32 %v4068, %v4322
      %v4387 = vadd.f32 %v4069, %v4324
      %v4388 = vadd.f32 %v4070, %v4327
      %v4389 = vadd.f32 %v4071, %v4329
      %v4390 = vadd.f32 %v4072, %v4332
      %v4391 = vadd.f32 %v4073, %v4334
      %v4392 = vadd.f32 %v4074, %v4337
      %v4393 = vadd.f32 %v4075, %v4339
      %v4394 = vadd.f32 %v4076, %v4342
      %v4395 = vadd.f32 %v4077, %v4344
      %v4396 = vadd.f32 %v4078, %v4347
      %v4397 = vadd.f32 %v4079, %v4349
      %v4398 = vadd.f32 %v4080, %v4352
      %v4399 = vadd.f32 %v4081, %v4354
      %v4400 = vadd.f32 %v4082, %v4357
      %v4401 = vadd.f32 %v4083, %v4359
      %v4402 = vadd.f32 %v4084, %v4362
      %v4403 = vadd.f32 %v4085, %v4364
      %v4404 = vadd.f32 %v4086, %v4367
      %v4405 = vadd.f32 %v4087, %v4369
      %v4406 = vadd.f32 %v4088, %v4372
      %v4407 = vadd.f32 %v4089, %v4374
      %4408 = vst [vmem:[#allocation3] sm:$0xff] %v4376
      %4409 = vst [vmem:[#allocation3 + $0x8] sm:$0xff] %v4377
      %4410 = vst [vmem:[#allocation3 + $0x10] sm:$0xff] %v4378
      %4411 = vst [vmem:[#allocation3 + $0x18] sm:$0xff] %v4379
      %4412 = vst [vmem:[#allocation3 + $0x20] sm:$0xff] %v4380
      %4413 = vst [vmem:[#allocation3 + $0x28] sm:$0xff] %v4381
      %4414 = vst [vmem:[#allocation3 + $0x30] sm:$0xff] %v4382
      %4415 = vst [vmem:[#allocation3 + $0x38] sm:$0xff] %v4383
      %4416 = vst [vmem:[#allocation3 + $0x40] sm:$0xff] %v4384
      %4417 = vst [vmem:[#allocation3 + $0x48] sm:$0xff] %v4385
      %4418 = vst [vmem:[#allocation3 + $0x50] sm:$0xff] %v4386
      %4419 = vst [vmem:[#allocation3 + $0x58] sm:$0xff] %v4387
      %4420 = vst [vmem:[#allocation3 + $0x60] sm:$0xff] %v4388
      %4421 = vst [vmem:[#allocation3 + $0x68] sm:$0xff] %v4389
      %4422 = vst [vmem:[#allocation3 + $0x70] sm:$0xff] %v4390
      %4423 = vst [vmem:[#allocation3 + $0x78] sm:$0xff] %v4391
      %4424 = vst [vmem:[#allocation3 + $0x80] sm:$0xff] %v4392
      %4425 = vst [vmem:[#allocation3 + $0x88] sm:$0xff] %v4393
      %4426 = vst [vmem:[#allocation3 + $0x90] sm:$0xff] %v4394
      %4427 = vst [vmem:[#allocation3 + $0x98] sm:$0xff] %v4395
      %4428 = vst [vmem:[#allocation3 + $0xa0] sm:$0xff] %v4396
      %4429 = vst [vmem:[#allocation3 + $0xa8] sm:$0xff] %v4397
      %4430 = vst [vmem:[#allocation3 + $0xb0] sm:$0xff] %v4398
      %4431 = vst [vmem:[#allocation3 + $0xb8] sm:$0xff] %v4399
      %4432 = vst [vmem:[#allocation3 + $0xc0] sm:$0xff] %v4400
      %4433 = vst [vmem:[#allocation3 + $0xc8] sm:$0xff] %v4401
      %4434 = vst [vmem:[#allocation3 + $0xd0] sm:$0xff] %v4402
      %4435 = vst [vmem:[#allocation3 + $0xd8] sm:$0xff] %v4403
      %4436 = vst [vmem:[#allocation3 + $0xe0] sm:$0xff] %v4404
      %4437 = vst [vmem:[#allocation3 + $0xe8] sm:$0xff] %v4405
      %4438 = vst [vmem:[#allocation3 + $0xf0] sm:$0xff] %v4406
      %4439 = vst [vmem:[#allocation3 + $0xf8] sm:$0xff] %v4407
      %v4440 = vld [vmem:[#allocation3] sm:$0xff]
      %v4441 = vld [vmem:[#allocation3 + $0x8] sm:$0xff]
      %v4442 = vld [vmem:[#allocation3 + $0x10] sm:$0xff]
      %v4443 = vld [vmem:[#allocation3 + $0x18] sm:$0xff]
      %v4444 = vld [vmem:[#allocation3 + $0x20] sm:$0xff]
      %v4445 = vld [vmem:[#allocation3 + $0x28] sm:$0xff]
      %v4446 = vld [vmem:[#allocation3 + $0x30] sm:$0xff]
      %v4447 = vld [vmem:[#allocation3 + $0x38] sm:$0xff]
      %v4448 = vld [vmem:[#allocation3 + $0x40] sm:$0xff]
      %v4449 = vld [vmem:[#allocation3 + $0x48] sm:$0xff]
      %v4450 = vld [vmem:[#allocation3 + $0x50] sm:$0xff]
      %v4451 = vld [vmem:[#allocation3 + $0x58] sm:$0xff]
      %v4452 = vld [vmem:[#allocation3 + $0x60] sm:$0xff]
      %v4453 = vld [vmem:[#allocation3 + $0x68] sm:$0xff]
      %v4454 = vld [vmem:[#allocation3 + $0x70] sm:$0xff]
      %v4455 = vld [vmem:[#allocation3 + $0x78] sm:$0xff]
      %v4456 = vld [vmem:[#allocation3 + $0x80] sm:$0xff]
      %v4457 = vld [vmem:[#allocation3 + $0x88] sm:$0xff]
      %v4458 = vld [vmem:[#allocation3 + $0x90] sm:$0xff]
      %v4459 = vld [vmem:[#allocation3 + $0x98] sm:$0xff]
      %v4460 = vld [vmem:[#allocation3 + $0xa0] sm:$0xff]
      %v4461 = vld [vmem:[#allocation3 + $0xa8] sm:$0xff]
      %v4462 = vld [vmem:[#allocation3 + $0xb0] sm:$0xff]
      %v4463 = vld [vmem:[#allocation3 + $0xb8] sm:$0xff]
      %v4464 = vld [vmem:[#allocation3 + $0xc0] sm:$0xff]
      %v4465 = vld [vmem:[#allocation3 + $0xc8] sm:$0xff]
      %v4466 = vld [vmem:[#allocation3 + $0xd0] sm:$0xff]
      %v4467 = vld [vmem:[#allocation3 + $0xd8] sm:$0xff]
      %v4468 = vld [vmem:[#allocation3 + $0xe0] sm:$0xff]
      %v4469 = vld [vmem:[#allocation3 + $0xe8] sm:$0xff]
      %v4470 = vld [vmem:[#allocation3 + $0xf0] sm:$0xff]
      %v4471 = vld [vmem:[#allocation3 + $0xf8] sm:$0xff]
      %v4472 = vld [vmem:[%s4093] sm:$0xf]
      %v4473 = vld [vmem:[%s4093 + $0x4] sm:$0xf]
      %v4474 = vld [vmem:[%s4093 + $0x8] sm:$0x1]
      %v4475 = vld [vmem:[%s4093 + $0xc] sm:$0xf]
      %v4476 = vld [vmem:[%s4093 + $0x10] sm:$0xf]
      %v4477 = vld [vmem:[%s4093 + $0x14] sm:$0x1]
      %v4478 = vld [vmem:[%s4093 + $0x18] sm:$0xf]
      %v4479 = vld [vmem:[%s4093 + $0x1c] sm:$0xf]
      %v4480 = vld [vmem:[%s4093 + $0x20] sm:$0x1]
      %v4481 = vld [vmem:[%s4093 + $0x24] sm:$0xf]
      %v4482 = vld [vmem:[%s4093 + $0x28] sm:$0xf]
      %v4483 = vld [vmem:[%s4093 + $0x2c] sm:$0x1]
      %v4484 = vld [vmem:[%s4093 + $0x30] sm:$0xf]
      %v4485 = vld [vmem:[%s4093 + $0x34] sm:$0xf]
      %v4486 = vld [vmem:[%s4093 + $0x38] sm:$0x1]
      %v4487 = vld [vmem:[%s4093 + $0x3c] sm:$0xf]
      %v4488 = vld [vmem:[%s4093 + $0x40] sm:$0xf]
      %v4489 = vld [vmem:[%s4093 + $0x44] sm:$0x1]
      %v4490 = vld [vmem:[%s4093 + $0x48] sm:$0xf]
      %v4491 = vld [vmem:[%s4093 + $0x4c] sm:$0xf]
      %v4492 = vld [vmem:[%s4093 + $0x50] sm:$0x1]
      %v4493 = vld [vmem:[%s4093 + $0x54] sm:$0xf]
      %v4494 = vld [vmem:[%s4093 + $0x58] sm:$0xf]
      %v4495 = vld [vmem:[%s4093 + $0x5c] sm:$0x1]
      %v4496 = vld [vmem:[%s4093 + $0x60] sm:$0xf]
      %v4497 = vld [vmem:[%s4093 + $0x64] sm:$0xf]
      %v4498 = vld [vmem:[%s4093 + $0x68] sm:$0x1]
      %v4499 = vld [vmem:[%s4093 + $0x6c] sm:$0xf]
      %v4500 = vld [vmem:[%s4093 + $0x70] sm:$0xf]
      %v4501 = vld [vmem:[%s4093 + $0x74] sm:$0x1]
      %v4502 = vld [vmem:[%s4093 + $0x78] sm:$0xf]
      %v4503 = vld [vmem:[%s4093 + $0x7c] sm:$0xf]
      %v4504 = vld [vmem:[%s4093 + $0x80] sm:$0x1]
      %v4505 = vld [vmem:[%s4093 + $0x84] sm:$0xf]
      %v4506 = vld [vmem:[%s4093 + $0x88] sm:$0xf]
      %v4507 = vld [vmem:[%s4093 + $0x8c] sm:$0x1]
      %v4508 = vld [vmem:[%s4093 + $0x90] sm:$0xf]
      %v4509 = vld [vmem:[%s4093 + $0x94] sm:$0xf]
      %v4510 = vld [vmem:[%s4093 + $0x98] sm:$0x1]
      %v4511 = vld [vmem:[%s4093 + $0x9c] sm:$0xf]
      %v4512 = vld [vmem:[%s4093 + $0xa0] sm:$0xf]
      %v4513 = vld [vmem:[%s4093 + $0xa4] sm:$0x1]
      %v4514 = vld [vmem:[%s4093 + $0xa8] sm:$0xf]
      %v4515 = vld [vmem:[%s4093 + $0xac] sm:$0xf]
      %v4516 = vld [vmem:[%s4093 + $0xb0] sm:$0x1]
      %v4517 = vld [vmem:[%s4093 + $0xb4] sm:$0xf]
      %v4518 = vld [vmem:[%s4093 + $0xb8] sm:$0xf]
      %v4519 = vld [vmem:[%s4093 + $0xbc] sm:$0x1]
      %v4521 = vshrl.u32 %v4472, 16
      %v4523 = vrot.slane %v4521, 4
      %v4524 = vshll.u32 %v4472, 16
      %v4526 = vrot.slane %v4524, 5
      %v4527 = vor.u32 %v4523, %v4526
      %v4528 = vrot.slane %v4527, 4
      %v4530 = vshll.u32 %v4473, 16
      %v4532 = vrot.slane %v4530, 5
      %v4533 = vsel %vm1216, %v4528, %v4532
      %v4534 = vshrl.u32 %v4473, 16
      %v4536 = vrot.slane %v4534, 4
      %v4537 = vor.u32 %v4536, %v4532
      %v4538 = vrot.slane %v4537, 4
      %v4540 = vshll.u32 %v4474, 16
      %v4542 = vrot.slane %v4540, 5
      %v4543 = vsel %vm1216, %v4538, %v4542
      %v4545 = vshrl.u32 %v4475, 16
      %v4547 = vrot.slane %v4545, 4
      %v4548 = vshll.u32 %v4475, 16
      %v4550 = vrot.slane %v4548, 5
      %v4551 = vor.u32 %v4547, %v4550
      %v4552 = vrot.slane %v4551, 4
      %v4554 = vshll.u32 %v4476, 16
      %v4556 = vrot.slane %v4554, 5
      %v4557 = vsel %vm1216, %v4552, %v4556
      %v4558 = vshrl.u32 %v4476, 16
      %v4560 = vrot.slane %v4558, 4
      %v4561 = vor.u32 %v4560, %v4556
      %v4562 = vrot.slane %v4561, 4
      %v4564 = vshll.u32 %v4477, 16
      %v4566 = vrot.slane %v4564, 5
      %v4567 = vsel %vm1216, %v4562, %v4566
      %v4569 = vshrl.u32 %v4478, 16
      %v4571 = vrot.slane %v4569, 4
      %v4572 = vshll.u32 %v4478, 16
      %v4574 = vrot.slane %v4572, 5
      %v4575 = vor.u32 %v4571, %v4574
      %v4576 = vrot.slane %v4575, 4
      %v4578 = vshll.u32 %v4479, 16
      %v4580 = vrot.slane %v4578, 5
      %v4581 = vsel %vm1216, %v4576, %v4580
      %v4582 = vshrl.u32 %v4479, 16
      %v4584 = vrot.slane %v4582, 4
      %v4585 = vor.u32 %v4584, %v4580
      %v4586 = vrot.slane %v4585, 4
      %v4588 = vshll.u32 %v4480, 16
      %v4590 = vrot.slane %v4588, 5
      %v4591 = vsel %vm1216, %v4586, %v4590
      %v4593 = vshrl.u32 %v4481, 16
      %v4595 = vrot.slane %v4593, 4
      %v4596 = vshll.u32 %v4481, 16
      %v4598 = vrot.slane %v4596, 5
      %v4599 = vor.u32 %v4595, %v4598
      %v4600 = vrot.slane %v4599, 4
      %v4602 = vshll.u32 %v4482, 16
      %v4604 = vrot.slane %v4602, 5
      %v4605 = vsel %vm1216, %v4600, %v4604
      %v4606 = vshrl.u32 %v4482, 16
      %v4608 = vrot.slane %v4606, 4
      %v4609 = vor.u32 %v4608, %v4604
      %v4610 = vrot.slane %v4609, 4
      %v4612 = vshll.u32 %v4483, 16
      %v4614 = vrot.slane %v4612, 5
      %v4615 = vsel %vm1216, %v4610, %v4614
      %v4617 = vshrl.u32 %v4484, 16
      %v4619 = vrot.slane %v4617, 4
      %v4620 = vshll.u32 %v4484, 16
      %v4622 = vrot.slane %v4620, 5
      %v4623 = vor.u32 %v4619, %v4622
      %v4624 = vrot.slane %v4623, 4
      %v4626 = vshll.u32 %v4485, 16
      %v4628 = vrot.slane %v4626, 5
      %v4629 = vsel %vm1216, %v4624, %v4628
      %v4630 = vshrl.u32 %v4485, 16
      %v4632 = vrot.slane %v4630, 4
      %v4633 = vor.u32 %v4632, %v4628
      %v4634 = vrot.slane %v4633, 4
      %v4636 = vshll.u32 %v4486, 16
      %v4638 = vrot.slane %v4636, 5
      %v4639 = vsel %vm1216, %v4634, %v4638
      %v4641 = vshrl.u32 %v4487, 16
      %v4643 = vrot.slane %v4641, 4
      %v4644 = vshll.u32 %v4487, 16
      %v4646 = vrot.slane %v4644, 5
      %v4647 = vor.u32 %v4643, %v4646
      %v4648 = vrot.slane %v4647, 4
      %v4650 = vshll.u32 %v4488, 16
      %v4652 = vrot.slane %v4650, 5
      %v4653 = vsel %vm1216, %v4648, %v4652
      %v4654 = vshrl.u32 %v4488, 16
      %v4656 = vrot.slane %v4654, 4
      %v4657 = vor.u32 %v4656, %v4652
      %v4658 = vrot.slane %v4657, 4
      %v4660 = vshll.u32 %v4489, 16
      %v4662 = vrot.slane %v4660, 5
      %v4663 = vsel %vm1216, %v4658, %v4662
      %v4665 = vshrl.u32 %v4490, 16
      %v4667 = vrot.slane %v4665, 4
      %v4668 = vshll.u32 %v4490, 16
      %v4670 = vrot.slane %v4668, 5
      %v4671 = vor.u32 %v4667, %v4670
      %v4672 = vrot.slane %v4671, 4
      %v4674 = vshll.u32 %v4491, 16
      %v4676 = vrot.slane %v4674, 5
      %v4677 = vsel %vm1216, %v4672, %v4676
      %v4678 = vshrl.u32 %v4491, 16
      %v4680 = vrot.slane %v4678, 4
      %v4681 = vor.u32 %v4680, %v4676
      %v4682 = vrot.slane %v4681, 4
      %v4684 = vshll.u32 %v4492, 16
      %v4686 = vrot.slane %v4684, 5
      %v4687 = vsel %vm1216, %v4682, %v4686
      %v4689 = vshrl.u32 %v4493, 16
      %v4691 = vrot.slane %v4689, 4
      %v4692 = vshll.u32 %v4493, 16
      %v4694 = vrot.slane %v4692, 5
      %v4695 = vor.u32 %v4691, %v4694
      %v4696 = vrot.slane %v4695, 4
      %v4698 = vshll.u32 %v4494, 16
      %v4700 = vrot.slane %v4698, 5
      %v4701 = vsel %vm1216, %v4696, %v4700
      %v4702 = vshrl.u32 %v4494, 16
      %v4704 = vrot.slane %v4702, 4
      %v4705 = vor.u32 %v4704, %v4700
      %v4706 = vrot.slane %v4705, 4
      %v4708 = vshll.u32 %v4495, 16
      %v4710 = vrot.slane %v4708, 5
      %v4711 = vsel %vm1216, %v4706, %v4710
      %v4713 = vshrl.u32 %v4496, 16
      %v4715 = vrot.slane %v4713, 4
      %v4716 = vshll.u32 %v4496, 16
      %v4718 = vrot.slane %v4716, 5
      %v4719 = vor.u32 %v4715, %v4718
      %v4720 = vrot.slane %v4719, 4
      %v4722 = vshll.u32 %v4497, 16
      %v4724 = vrot.slane %v4722, 5
      %v4725 = vsel %vm1216, %v4720, %v4724
      %v4726 = vshrl.u32 %v4497, 16
      %v4728 = vrot.slane %v4726, 4
      %v4729 = vor.u32 %v4728, %v4724
      %v4730 = vrot.slane %v4729, 4
      %v4732 = vshll.u32 %v4498, 16
      %v4734 = vrot.slane %v4732, 5
      %v4735 = vsel %vm1216, %v4730, %v4734
      %v4737 = vshrl.u32 %v4499, 16
      %v4739 = vrot.slane %v4737, 4
      %v4740 = vshll.u32 %v4499, 16
      %v4742 = vrot.slane %v4740, 5
      %v4743 = vor.u32 %v4739, %v4742
      %v4744 = vrot.slane %v4743, 4
      %v4746 = vshll.u32 %v4500, 16
      %v4748 = vrot.slane %v4746, 5
      %v4749 = vsel %vm1216, %v4744, %v4748
      %v4750 = vshrl.u32 %v4500, 16
      %v4752 = vrot.slane %v4750, 4
      %v4753 = vor.u32 %v4752, %v4748
      %v4754 = vrot.slane %v4753, 4
      %v4756 = vshll.u32 %v4501, 16
      %v4758 = vrot.slane %v4756, 5
      %v4759 = vsel %vm1216, %v4754, %v4758
      %v4761 = vshrl.u32 %v4502, 16
      %v4763 = vrot.slane %v4761, 4
      %v4764 = vshll.u32 %v4502, 16
      %v4766 = vrot.slane %v4764, 5
      %v4767 = vor.u32 %v4763, %v4766
      %v4768 = vrot.slane %v4767, 4
      %v4770 = vshll.u32 %v4503, 16
      %v4772 = vrot.slane %v4770, 5
      %v4773 = vsel %vm1216, %v4768, %v4772
      %v4774 = vshrl.u32 %v4503, 16
      %v4776 = vrot.slane %v4774, 4
      %v4777 = vor.u32 %v4776, %v4772
      %v4778 = vrot.slane %v4777, 4
      %v4780 = vshll.u32 %v4504, 16
      %v4782 = vrot.slane %v4780, 5
      %v4783 = vsel %vm1216, %v4778, %v4782
      %v4785 = vshrl.u32 %v4505, 16
      %v4787 = vrot.slane %v4785, 4
      %v4788 = vshll.u32 %v4505, 16
      %v4790 = vrot.slane %v4788, 5
      %v4791 = vor.u32 %v4787, %v4790
      %v4792 = vrot.slane %v4791, 4
      %v4794 = vshll.u32 %v4506, 16
      %v4796 = vrot.slane %v4794, 5
      %v4797 = vsel %vm1216, %v4792, %v4796
      %v4798 = vshrl.u32 %v4506, 16
      %v4800 = vrot.slane %v4798, 4
      %v4801 = vor.u32 %v4800, %v4796
      %v4802 = vrot.slane %v4801, 4
      %v4804 = vshll.u32 %v4507, 16
      %v4806 = vrot.slane %v4804, 5
      %v4807 = vsel %vm1216, %v4802, %v4806
      %v4809 = vshrl.u32 %v4508, 16
      %v4811 = vrot.slane %v4809, 4
      %v4812 = vshll.u32 %v4508, 16
      %v4814 = vrot.slane %v4812, 5
      %v4815 = vor.u32 %v4811, %v4814
      %v4816 = vrot.slane %v4815, 4
      %v4818 = vshll.u32 %v4509, 16
      %v4820 = vrot.slane %v4818, 5
      %v4821 = vsel %vm1216, %v4816, %v4820
      %v4822 = vshrl.u32 %v4509, 16
      %v4824 = vrot.slane %v4822, 4
      %v4825 = vor.u32 %v4824, %v4820
      %v4826 = vrot.slane %v4825, 4
      %v4828 = vshll.u32 %v4510, 16
      %v4830 = vrot.slane %v4828, 5
      %v4831 = vsel %vm1216, %v4826, %v4830
      %v4833 = vshrl.u32 %v4511, 16
      %v4835 = vrot.slane %v4833, 4
      %v4836 = vshll.u32 %v4511, 16
      %v4838 = vrot.slane %v4836, 5
      %v4839 = vor.u32 %v4835, %v4838
      %v4840 = vrot.slane %v4839, 4
      %v4842 = vshll.u32 %v4512, 16
      %v4844 = vrot.slane %v4842, 5
      %v4845 = vsel %vm1216, %v4840, %v4844
      %v4846 = vshrl.u32 %v4512, 16
      %v4848 = vrot.slane %v4846, 4
      %v4849 = vor.u32 %v4848, %v4844
      %v4850 = vrot.slane %v4849, 4
      %v4852 = vshll.u32 %v4513, 16
      %v4854 = vrot.slane %v4852, 5
      %v4855 = vsel %vm1216, %v4850, %v4854
      %v4857 = vshrl.u32 %v4514, 16
      %v4859 = vrot.slane %v4857, 4
      %v4860 = vshll.u32 %v4514, 16
      %v4862 = vrot.slane %v4860, 5
      %v4863 = vor.u32 %v4859, %v4862
      %v4864 = vrot.slane %v4863, 4
      %v4866 = vshll.u32 %v4515, 16
      %v4868 = vrot.slane %v4866, 5
      %v4869 = vsel %vm1216, %v4864, %v4868
      %v4870 = vshrl.u32 %v4515, 16
      %v4872 = vrot.slane %v4870, 4
      %v4873 = vor.u32 %v4872, %v4868
      %v4874 = vrot.slane %v4873, 4
      %v4876 = vshll.u32 %v4516, 16
      %v4878 = vrot.slane %v4876, 5
      %v4879 = vsel %vm1216, %v4874, %v4878
      %v4881 = vshrl.u32 %v4517, 16
      %v4883 = vrot.slane %v4881, 4
      %v4884 = vshll.u32 %v4517, 16
      %v4886 = vrot.slane %v4884, 5
      %v4887 = vor.u32 %v4883, %v4886
      %v4888 = vrot.slane %v4887, 4
      %v4890 = vshll.u32 %v4518, 16
      %v4892 = vrot.slane %v4890, 5
      %v4893 = vsel %vm1216, %v4888, %v4892
      %v4894 = vshrl.u32 %v4518, 16
      %v4896 = vrot.slane %v4894, 4
      %v4897 = vor.u32 %v4896, %v4892
      %v4898 = vrot.slane %v4897, 4
      %v4900 = vshll.u32 %v4519, 16
      %v4902 = vrot.slane %v4900, 5
      %v4903 = vsel %vm1216, %v4898, %v4902
      %s4904 = scalar_lea.vmem %s262, 448
      %v4905 = vld [vmem:[%s4904] sm:$0xf]
      %v4906 = vld [vmem:[%s4904 + $0x4] sm:$0xf]
      %v4907 = vld [vmem:[%s4904 + $0x8] sm:$0xf]
      %v4908 = vld [vmem:[%s4904 + $0xc] sm:$0xf]
      %v4909 = vld [vmem:[%s4904 + $0x10] sm:$0xf]
      %v4910 = vld [vmem:[%s4904 + $0x14] sm:$0xf]
      %v4911 = vld [vmem:[%s4904 + $0x18] sm:$0xf]
      %v4912 = vld [vmem:[%s4904 + $0x1c] sm:$0xf]
      %v4913 = vld [vmem:[%s4904 + $0x20] sm:$0xf]
      %v4914 = vld [vmem:[%s4904 + $0x24] sm:$0xf]
      %v4915 = vld [vmem:[%s4904 + $0x28] sm:$0xf]
      %v4916 = vld [vmem:[%s4904 + $0x2c] sm:$0xf]
      %v4917 = vld [vmem:[%s4904 + $0x30] sm:$0xf]
      %v4918 = vld [vmem:[%s4904 + $0x34] sm:$0xf]
      %v4919 = vld [vmem:[%s4904 + $0x38] sm:$0xf]
      %v4920 = vld [vmem:[%s4904 + $0x3c] sm:$0xf]
      %v4921 = vunpack.c.l.b16 %v4533
      %v4922 = vunpack.c.l.b16 %v4543
      %v4923 = vunpack.c.l.b16 %v4557
      %v4924 = vunpack.c.l.b16 %v4567
      %v4925 = vunpack.c.l.b16 %v4581
      %v4926 = vunpack.c.l.b16 %v4591
      %v4927 = vunpack.c.l.b16 %v4605
      %v4928 = vunpack.c.l.b16 %v4615
      %v4929 = vunpack.c.l.b16 %v4629
      %v4930 = vunpack.c.l.b16 %v4639
      %v4931 = vunpack.c.l.b16 %v4653
      %v4932 = vunpack.c.l.b16 %v4663
      %v4933 = vunpack.c.l.b16 %v4677
      %v4934 = vunpack.c.l.b16 %v4687
      %v4935 = vunpack.c.l.b16 %v4701
      %v4936 = vunpack.c.l.b16 %v4711
      %v4937 = vunpack.c.l.b16 %v4725
      %v4938 = vunpack.c.l.b16 %v4735
      %v4939 = vunpack.c.l.b16 %v4749
      %v4940 = vunpack.c.l.b16 %v4759
      %v4941 = vunpack.c.l.b16 %v4773
      %v4942 = vunpack.c.l.b16 %v4783
      %v4943 = vunpack.c.l.b16 %v4797
      %v4944 = vunpack.c.l.b16 %v4807
      %v4945 = vunpack.c.l.b16 %v4821
      %v4946 = vunpack.c.l.b16 %v4831
      %v4947 = vunpack.c.l.b16 %v4845
      %v4948 = vunpack.c.l.b16 %v4855
      %v4949 = vunpack.c.l.b16 %v4869
      %v4950 = vunpack.c.l.b16 %v4879
      %v4951 = vunpack.c.l.b16 %v4893
      %v4952 = vunpack.c.l.b16 %v4903
      %v4953 = vpack.c.b16 %v4922, %v4921
      %v4954 = vpack.c.b16 %v4924, %v4923
      %v4955 = vpack.c.b16 %v4926, %v4925
      %v4956 = vpack.c.b16 %v4928, %v4927
      %v4957 = vpack.c.b16 %v4930, %v4929
      %v4958 = vpack.c.b16 %v4932, %v4931
      %v4959 = vpack.c.b16 %v4934, %v4933
      %v4960 = vpack.c.b16 %v4936, %v4935
      %v4961 = vpack.c.b16 %v4938, %v4937
      %v4962 = vpack.c.b16 %v4940, %v4939
      %v4963 = vpack.c.b16 %v4942, %v4941
      %v4964 = vpack.c.b16 %v4944, %v4943
      %v4965 = vpack.c.b16 %v4946, %v4945
      %v4966 = vpack.c.b16 %v4948, %v4947
      %v4967 = vpack.c.b16 %v4950, %v4949
      %v4968 = vpack.c.b16 %v4952, %v4951
      %v5001 = vunpack.c.l.b16 %v4905
      %v5002 = vunpack.c.l.b16 %v4906
      %v5003 = vunpack.c.l.b16 %v4907
      %v5004 = vunpack.c.l.b16 %v4908
      %v5005 = vunpack.c.l.b16 %v4909
      %v5006 = vunpack.c.l.b16 %v4910
      %v5007 = vunpack.c.l.b16 %v4911
      %v5008 = vunpack.c.l.b16 %v4912
      %v5009 = vunpack.c.l.b16 %v4913
      %v5010 = vunpack.c.l.b16 %v4914
      %v5011 = vunpack.c.l.b16 %v4915
      %v5012 = vunpack.c.l.b16 %v4916
      %v5013 = vunpack.c.l.b16 %v4917
      %v5014 = vunpack.c.l.b16 %v4918
      %v5015 = vunpack.c.l.b16 %v4919
      %v5016 = vunpack.c.l.b16 %v4920
      %v5017 = vpack.c.b16 %v5002, %v5001
      %v5018 = vpack.c.b16 %v5004, %v5003
      %v5019 = vpack.c.b16 %v5006, %v5005
      %v5020 = vpack.c.b16 %v5008, %v5007
      %v5021 = vpack.c.b16 %v5010, %v5009
      %v5022 = vpack.c.b16 %v5012, %v5011
      %v5023 = vpack.c.b16 %v5014, %v5013
      %v5024 = vpack.c.b16 %v5016, %v5015
      %5033 = vmatpush.bf16.msra.mxu0 %v5024
      %5034 = vmatpush.bf16.msra.mxu0 %v5023
      %5035 = vmatpush.bf16.msra.mxu0 %v5022
      %5036 = vmatpush.bf16.msra.mxu0 %v5021
      %5037 = vmatpush.bf16.msra.mxu0 %v5020
      %5038 = vmatpush.bf16.msra.mxu0 %v5019
      %5039 = vmatpush.bf16.msra.mxu0 %v5018
      %5040 = vmatpush.bf16.msra.mxu0 %v5017
      %5041 = vmatmul.bf16.gmra.mxu0 %v4953
      %v5042 = vpop.f32.mrf.mxu0
      %v5043 = vadd.f32 0.0, %v5042
      %v5044 = vpop.f32.mrf.mxu0
      %v5045 = vadd.f32 0.0, %v5044
      %5046 = vmatmul.bf16.gmra.mxu0 %v4954
      %v5047 = vpop.f32.mrf.mxu0
      %v5048 = vadd.f32 0.0, %v5047
      %v5049 = vpop.f32.mrf.mxu0
      %v5050 = vadd.f32 0.0, %v5049
      %5051 = vmatmul.bf16.gmra.mxu0 %v4955
      %v5052 = vpop.f32.mrf.mxu0
      %v5053 = vadd.f32 0.0, %v5052
      %v5054 = vpop.f32.mrf.mxu0
      %v5055 = vadd.f32 0.0, %v5054
      %5056 = vmatmul.bf16.gmra.mxu0 %v4956
      %v5057 = vpop.f32.mrf.mxu0
      %v5058 = vadd.f32 0.0, %v5057
      %v5059 = vpop.f32.mrf.mxu0
      %v5060 = vadd.f32 0.0, %v5059
      %5061 = vmatmul.bf16.gmra.mxu0 %v4957
      %v5062 = vpop.f32.mrf.mxu0
      %v5063 = vadd.f32 0.0, %v5062
      %v5064 = vpop.f32.mrf.mxu0
      %v5065 = vadd.f32 0.0, %v5064
      %5066 = vmatmul.bf16.gmra.mxu0 %v4958
      %v5067 = vpop.f32.mrf.mxu0
      %v5068 = vadd.f32 0.0, %v5067
      %v5069 = vpop.f32.mrf.mxu0
      %v5070 = vadd.f32 0.0, %v5069
      %5071 = vmatmul.bf16.gmra.mxu0 %v4959
      %v5072 = vpop.f32.mrf.mxu0
      %v5073 = vadd.f32 0.0, %v5072
      %v5074 = vpop.f32.mrf.mxu0
      %v5075 = vadd.f32 0.0, %v5074
      %5076 = vmatmul.bf16.gmra.mxu0 %v4960
      %v5077 = vpop.f32.mrf.mxu0
      %v5078 = vadd.f32 0.0, %v5077
      %v5079 = vpop.f32.mrf.mxu0
      %v5080 = vadd.f32 0.0, %v5079
      %5081 = vmatmul.bf16.gmra.mxu0 %v4961
      %v5082 = vpop.f32.mrf.mxu0
      %v5083 = vadd.f32 0.0, %v5082
      %v5084 = vpop.f32.mrf.mxu0
      %v5085 = vadd.f32 0.0, %v5084
      %5086 = vmatmul.bf16.gmra.mxu0 %v4962
      %v5087 = vpop.f32.mrf.mxu0
      %v5088 = vadd.f32 0.0, %v5087
      %v5089 = vpop.f32.mrf.mxu0
      %v5090 = vadd.f32 0.0, %v5089
      %5091 = vmatmul.bf16.gmra.mxu0 %v4963
      %v5092 = vpop.f32.mrf.mxu0
      %v5093 = vadd.f32 0.0, %v5092
      %v5094 = vpop.f32.mrf.mxu0
      %v5095 = vadd.f32 0.0, %v5094
      %5096 = vmatmul.bf16.gmra.mxu0 %v4964
      %v5097 = vpop.f32.mrf.mxu0
      %v5098 = vadd.f32 0.0, %v5097
      %v5099 = vpop.f32.mrf.mxu0
      %v5100 = vadd.f32 0.0, %v5099
      %5101 = vmatmul.bf16.gmra.mxu0 %v4965
      %v5102 = vpop.f32.mrf.mxu0
      %v5103 = vadd.f32 0.0, %v5102
      %v5104 = vpop.f32.mrf.mxu0
      %v5105 = vadd.f32 0.0, %v5104
      %5106 = vmatmul.bf16.gmra.mxu0 %v4966
      %v5107 = vpop.f32.mrf.mxu0
      %v5108 = vadd.f32 0.0, %v5107
      %v5109 = vpop.f32.mrf.mxu0
      %v5110 = vadd.f32 0.0, %v5109
      %5111 = vmatmul.bf16.gmra.mxu0 %v4967
      %v5112 = vpop.f32.mrf.mxu0
      %v5113 = vadd.f32 0.0, %v5112
      %v5114 = vpop.f32.mrf.mxu0
      %v5115 = vadd.f32 0.0, %v5114
      %5116 = vmatmul.bf16.gmra.mxu0 %v4968
      %v5117 = vpop.f32.mrf.mxu0
      %v5118 = vadd.f32 0.0, %v5117
      %v5119 = vpop.f32.mrf.mxu0
      %v5120 = vadd.f32 0.0, %v5119
      %5121 = vdwg.mxu0
      %v5122 = vadd.f32 %v4440, %v5043
      %v5123 = vadd.f32 %v4441, %v5045
      %v5124 = vadd.f32 %v4442, %v5048
      %v5125 = vadd.f32 %v4443, %v5050
      %v5126 = vadd.f32 %v4444, %v5053
      %v5127 = vadd.f32 %v4445, %v5055
      %v5128 = vadd.f32 %v4446, %v5058
      %v5129 = vadd.f32 %v4447, %v5060
      %v5130 = vadd.f32 %v4448, %v5063
      %v5131 = vadd.f32 %v4449, %v5065
      %v5132 = vadd.f32 %v4450, %v5068
      %v5133 = vadd.f32 %v4451, %v5070
      %v5134 = vadd.f32 %v4452, %v5073
      %v5135 = vadd.f32 %v4453, %v5075
      %v5136 = vadd.f32 %v4454, %v5078
      %v5137 = vadd.f32 %v4455, %v5080
      %v5138 = vadd.f32 %v4456, %v5083
      %v5139 = vadd.f32 %v4457, %v5085
      %v5140 = vadd.f32 %v4458, %v5088
      %v5141 = vadd.f32 %v4459, %v5090
      %v5142 = vadd.f32 %v4460, %v5093
      %v5143 = vadd.f32 %v4461, %v5095
      %v5144 = vadd.f32 %v4462, %v5098
      %v5145 = vadd.f32 %v4463, %v5100
      %v5146 = vadd.f32 %v4464, %v5103
      %v5147 = vadd.f32 %v4465, %v5105
      %v5148 = vadd.f32 %v4466, %v5108
      %v5149 = vadd.f32 %v4467, %v5110
      %v5150 = vadd.f32 %v4468, %v5113
      %v5151 = vadd.f32 %v4469, %v5115
      %v5152 = vadd.f32 %v4470, %v5118
      %v5153 = vadd.f32 %v4471, %v5120
      %5154 = vst [vmem:[#allocation3] sm:$0xff] %v5122
      %5155 = vst [vmem:[#allocation3 + $0x8] sm:$0xff] %v5123
      %5156 = vst [vmem:[#allocation3 + $0x10] sm:$0xff] %v5124
      %5157 = vst [vmem:[#allocation3 + $0x18] sm:$0xff] %v5125
      %5158 = vst [vmem:[#allocation3 + $0x20] sm:$0xff] %v5126
      %5159 = vst [vmem:[#allocation3 + $0x28] sm:$0xff] %v5127
      %5160 = vst [vmem:[#allocation3 + $0x30] sm:$0xff] %v5128
      %5161 = vst [vmem:[#allocation3 + $0x38] sm:$0xff] %v5129
      %5162 = vst [vmem:[#allocation3 + $0x40] sm:$0xff] %v5130
      %5163 = vst [vmem:[#allocation3 + $0x48] sm:$0xff] %v5131
      %5164 = vst [vmem:[#allocation3 + $0x50] sm:$0xff] %v5132
      %5165 = vst [vmem:[#allocation3 + $0x58] sm:$0xff] %v5133
      %5166 = vst [vmem:[#allocation3 + $0x60] sm:$0xff] %v5134
      %5167 = vst [vmem:[#allocation3 + $0x68] sm:$0xff] %v5135
      %5168 = vst [vmem:[#allocation3 + $0x70] sm:$0xff] %v5136
      %5169 = vst [vmem:[#allocation3 + $0x78] sm:$0xff] %v5137
      %5170 = vst [vmem:[#allocation3 + $0x80] sm:$0xff] %v5138
      %5171 = vst [vmem:[#allocation3 + $0x88] sm:$0xff] %v5139
      %5172 = vst [vmem:[#allocation3 + $0x90] sm:$0xff] %v5140
      %5173 = vst [vmem:[#allocation3 + $0x98] sm:$0xff] %v5141
      %5174 = vst [vmem:[#allocation3 + $0xa0] sm:$0xff] %v5142
      %5175 = vst [vmem:[#allocation3 + $0xa8] sm:$0xff] %v5143
      %5176 = vst [vmem:[#allocation3 + $0xb0] sm:$0xff] %v5144
      %5177 = vst [vmem:[#allocation3 + $0xb8] sm:$0xff] %v5145
      %5178 = vst [vmem:[#allocation3 + $0xc0] sm:$0xff] %v5146
      %5179 = vst [vmem:[#allocation3 + $0xc8] sm:$0xff] %v5147
      %5180 = vst [vmem:[#allocation3 + $0xd0] sm:$0xff] %v5148
      %5181 = vst [vmem:[#allocation3 + $0xd8] sm:$0xff] %v5149
      %5182 = vst [vmem:[#allocation3 + $0xe0] sm:$0xff] %v5150
      %5183 = vst [vmem:[#allocation3 + $0xe8] sm:$0xff] %v5151
      %5184 = vst [vmem:[#allocation3 + $0xf0] sm:$0xff] %v5152
      %5185 = vst [vmem:[#allocation3 + $0xf8] sm:$0xff] %v5153
      %v5186 = vld [vmem:[#allocation3] sm:$0xff]
      %v5187 = vld [vmem:[#allocation3 + $0x8] sm:$0xff]
      %v5188 = vld [vmem:[#allocation3 + $0x10] sm:$0xff]
      %v5189 = vld [vmem:[#allocation3 + $0x18] sm:$0xff]
      %v5190 = vld [vmem:[#allocation3 + $0x20] sm:$0xff]
      %v5191 = vld [vmem:[#allocation3 + $0x28] sm:$0xff]
      %v5192 = vld [vmem:[#allocation3 + $0x30] sm:$0xff]
      %v5193 = vld [vmem:[#allocation3 + $0x38] sm:$0xff]
      %v5194 = vld [vmem:[#allocation3 + $0x40] sm:$0xff]
      %v5195 = vld [vmem:[#allocation3 + $0x48] sm:$0xff]
      %v5196 = vld [vmem:[#allocation3 + $0x50] sm:$0xff]
      %v5197 = vld [vmem:[#allocation3 + $0x58] sm:$0xff]
      %v5198 = vld [vmem:[#allocation3 + $0x60] sm:$0xff]
      %v5199 = vld [vmem:[#allocation3 + $0x68] sm:$0xff]
      %v5200 = vld [vmem:[#allocation3 + $0x70] sm:$0xff]
      %v5201 = vld [vmem:[#allocation3 + $0x78] sm:$0xff]
      %v5202 = vld [vmem:[#allocation3 + $0x80] sm:$0xff]
      %v5203 = vld [vmem:[#allocation3 + $0x88] sm:$0xff]
      %v5204 = vld [vmem:[#allocation3 + $0x90] sm:$0xff]
      %v5205 = vld [vmem:[#allocation3 + $0x98] sm:$0xff]
      %v5206 = vld [vmem:[#allocation3 + $0xa0] sm:$0xff]
      %v5207 = vld [vmem:[#allocation3 + $0xa8] sm:$0xff]
      %v5208 = vld [vmem:[#allocation3 + $0xb0] sm:$0xff]
      %v5209 = vld [vmem:[#allocation3 + $0xb8] sm:$0xff]
      %v5210 = vld [vmem:[#allocation3 + $0xc0] sm:$0xff]
      %v5211 = vld [vmem:[#allocation3 + $0xc8] sm:$0xff]
      %v5212 = vld [vmem:[#allocation3 + $0xd0] sm:$0xff]
      %v5213 = vld [vmem:[#allocation3 + $0xd8] sm:$0xff]
      %v5214 = vld [vmem:[#allocation3 + $0xe0] sm:$0xff]
      %v5215 = vld [vmem:[#allocation3 + $0xe8] sm:$0xff]
      %v5216 = vld [vmem:[#allocation3 + $0xf0] sm:$0xff]
      %v5217 = vld [vmem:[#allocation3 + $0xf8] sm:$0xff]
      %v5218 = vld [vmem:[%s4093] sm:$0xe]
      %v5219 = vld [vmem:[%s4093 + $0x4] sm:$0xf]
      %v5220 = vld [vmem:[%s4093 + $0x8] sm:$0x1]
      %v5221 = vld [vmem:[%s4093 + $0xc] sm:$0xe]
      %v5222 = vld [vmem:[%s4093 + $0x10] sm:$0xf]
      %v5223 = vld [vmem:[%s4093 + $0x14] sm:$0x1]
      %v5224 = vld [vmem:[%s4093 + $0x18] sm:$0xe]
      %v5225 = vld [vmem:[%s4093 + $0x1c] sm:$0xf]
      %v5226 = vld [vmem:[%s4093 + $0x20] sm:$0x1]
      %v5227 = vld [vmem:[%s4093 + $0x24] sm:$0xe]
      %v5228 = vld [vmem:[%s4093 + $0x28] sm:$0xf]
      %v5229 = vld [vmem:[%s4093 + $0x2c] sm:$0x1]
      %v5230 = vld [vmem:[%s4093 + $0x30] sm:$0xe]
      %v5231 = vld [vmem:[%s4093 + $0x34] sm:$0xf]
      %v5232 = vld [vmem:[%s4093 + $0x38] sm:$0x1]
      %v5233 = vld [vmem:[%s4093 + $0x3c] sm:$0xe]
      %v5234 = vld [vmem:[%s4093 + $0x40] sm:$0xf]
      %v5235 = vld [vmem:[%s4093 + $0x44] sm:$0x1]
      %v5236 = vld [vmem:[%s4093 + $0x48] sm:$0xe]
      %v5237 = vld [vmem:[%s4093 + $0x4c] sm:$0xf]
      %v5238 = vld [vmem:[%s4093 + $0x50] sm:$0x1]
      %v5239 = vld [vmem:[%s4093 + $0x54] sm:$0xe]
      %v5240 = vld [vmem:[%s4093 + $0x58] sm:$0xf]
      %v5241 = vld [vmem:[%s4093 + $0x5c] sm:$0x1]
      %v5242 = vld [vmem:[%s4093 + $0x60] sm:$0xe]
      %v5243 = vld [vmem:[%s4093 + $0x64] sm:$0xf]
      %v5244 = vld [vmem:[%s4093 + $0x68] sm:$0x1]
      %v5245 = vld [vmem:[%s4093 + $0x6c] sm:$0xe]
      %v5246 = vld [vmem:[%s4093 + $0x70] sm:$0xf]
      %v5247 = vld [vmem:[%s4093 + $0x74] sm:$0x1]
      %v5248 = vld [vmem:[%s4093 + $0x78] sm:$0xe]
      %v5249 = vld [vmem:[%s4093 + $0x7c] sm:$0xf]
      %v5250 = vld [vmem:[%s4093 + $0x80] sm:$0x1]
      %v5251 = vld [vmem:[%s4093 + $0x84] sm:$0xe]
      %v5252 = vld [vmem:[%s4093 + $0x88] sm:$0xf]
      %v5253 = vld [vmem:[%s4093 + $0x8c] sm:$0x1]
      %v5254 = vld [vmem:[%s4093 + $0x90] sm:$0xe]
      %v5255 = vld [vmem:[%s4093 + $0x94] sm:$0xf]
      %v5256 = vld [vmem:[%s4093 + $0x98] sm:$0x1]
      %v5257 = vld [vmem:[%s4093 + $0x9c] sm:$0xe]
      %v5258 = vld [vmem:[%s4093 + $0xa0] sm:$0xf]
      %v5259 = vld [vmem:[%s4093 + $0xa4] sm:$0x1]
      %v5260 = vld [vmem:[%s4093 + $0xa8] sm:$0xe]
      %v5261 = vld [vmem:[%s4093 + $0xac] sm:$0xf]
      %v5262 = vld [vmem:[%s4093 + $0xb0] sm:$0x1]
      %v5263 = vld [vmem:[%s4093 + $0xb4] sm:$0xe]
      %v5264 = vld [vmem:[%s4093 + $0xb8] sm:$0xf]
      %v5265 = vld [vmem:[%s4093 + $0xbc] sm:$0x1]
      %v5314 = vrot.slane %v5218, 5
      %v5315 = vrot.slane %v5314, 4
      %v5316 = vrot.slane %v5219, 5
      %v5317 = vsel %vm2013, %v5315, %v5316
      %v5318 = vrot.slane %v5316, 4
      %v5319 = vrot.slane %v5220, 5
      %v5320 = vsel %vm2013, %v5318, %v5319
      %v5321 = vrot.slane %v5221, 5
      %v5322 = vrot.slane %v5321, 4
      %v5323 = vrot.slane %v5222, 5
      %v5324 = vsel %vm2013, %v5322, %v5323
      %v5325 = vrot.slane %v5323, 4
      %v5326 = vrot.slane %v5223, 5
      %v5327 = vsel %vm2013, %v5325, %v5326
      %v5328 = vrot.slane %v5224, 5
      %v5329 = vrot.slane %v5328, 4
      %v5330 = vrot.slane %v5225, 5
      %v5331 = vsel %vm2013, %v5329, %v5330
      %v5332 = vrot.slane %v5330, 4
      %v5333 = vrot.slane %v5226, 5
      %v5334 = vsel %vm2013, %v5332, %v5333
      %v5335 = vrot.slane %v5227, 5
      %v5336 = vrot.slane %v5335, 4
      %v5337 = vrot.slane %v5228, 5
      %v5338 = vsel %vm2013, %v5336, %v5337
      %v5339 = vrot.slane %v5337, 4
      %v5340 = vrot.slane %v5229, 5
      %v5341 = vsel %vm2013, %v5339, %v5340
      %v5342 = vrot.slane %v5230, 5
      %v5343 = vrot.slane %v5342, 4
      %v5344 = vrot.slane %v5231, 5
      %v5345 = vsel %vm2013, %v5343, %v5344
      %v5346 = vrot.slane %v5344, 4
      %v5347 = vrot.slane %v5232, 5
      %v5348 = vsel %vm2013, %v5346, %v5347
      %v5349 = vrot.slane %v5233, 5
      %v5350 = vrot.slane %v5349, 4
      %v5351 = vrot.slane %v5234, 5
      %v5352 = vsel %vm2013, %v5350, %v5351
      %v5353 = vrot.slane %v5351, 4
      %v5354 = vrot.slane %v5235, 5
      %v5355 = vsel %vm2013, %v5353, %v5354
      %v5356 = vrot.slane %v5236, 5
      %v5357 = vrot.slane %v5356, 4
      %v5358 = vrot.slane %v5237, 5
      %v5359 = vsel %vm2013, %v5357, %v5358
      %v5360 = vrot.slane %v5358, 4
      %v5361 = vrot.slane %v5238, 5
      %v5362 = vsel %vm2013, %v5360, %v5361
      %v5363 = vrot.slane %v5239, 5
      %v5364 = vrot.slane %v5363, 4
      %v5365 = vrot.slane %v5240, 5
      %v5366 = vsel %vm2013, %v5364, %v5365
      %v5367 = vrot.slane %v5365, 4
      %v5368 = vrot.slane %v5241, 5
      %v5369 = vsel %vm2013, %v5367, %v5368
      %v5370 = vrot.slane %v5242, 5
      %v5371 = vrot.slane %v5370, 4
      %v5372 = vrot.slane %v5243, 5
      %v5373 = vsel %vm2013, %v5371, %v5372
      %v5374 = vrot.slane %v5372, 4
      %v5375 = vrot.slane %v5244, 5
      %v5376 = vsel %vm2013, %v5374, %v5375
      %v5377 = vrot.slane %v5245, 5
      %v5378 = vrot.slane %v5377, 4
      %v5379 = vrot.slane %v5246, 5
      %v5380 = vsel %vm2013, %v5378, %v5379
      %v5381 = vrot.slane %v5379, 4
      %v5382 = vrot.slane %v5247, 5
      %v5383 = vsel %vm2013, %v5381, %v5382
      %v5384 = vrot.slane %v5248, 5
      %v5385 = vrot.slane %v5384, 4
      %v5386 = vrot.slane %v5249, 5
      %v5387 = vsel %vm2013, %v5385, %v5386
      %v5388 = vrot.slane %v5386, 4
      %v5389 = vrot.slane %v5250, 5
      %v5390 = vsel %vm2013, %v5388, %v5389
      %v5391 = vrot.slane %v5251, 5
      %v5392 = vrot.slane %v5391, 4
      %v5393 = vrot.slane %v5252, 5
      %v5394 = vsel %vm2013, %v5392, %v5393
      %v5395 = vrot.slane %v5393, 4
      %v5396 = vrot.slane %v5253, 5
      %v5397 = vsel %vm2013, %v5395, %v5396
      %v5398 = vrot.slane %v5254, 5
      %v5399 = vrot.slane %v5398, 4
      %v5400 = vrot.slane %v5255, 5
      %v5401 = vsel %vm2013, %v5399, %v5400
      %v5402 = vrot.slane %v5400, 4
      %v5403 = vrot.slane %v5256, 5
      %v5404 = vsel %vm2013, %v5402, %v5403
      %v5405 = vrot.slane %v5257, 5
      %v5406 = vrot.slane %v5405, 4
      %v5407 = vrot.slane %v5258, 5
      %v5408 = vsel %vm2013, %v5406, %v5407
      %v5409 = vrot.slane %v5407, 4
      %v5410 = vrot.slane %v5259, 5
      %v5411 = vsel %vm2013, %v5409, %v5410
      %v5412 = vrot.slane %v5260, 5
      %v5413 = vrot.slane %v5412, 4
      %v5414 = vrot.slane %v5261, 5
      %v5415 = vsel %vm2013, %v5413, %v5414
      %v5416 = vrot.slane %v5414, 4
      %v5417 = vrot.slane %v5262, 5
      %v5418 = vsel %vm2013, %v5416, %v5417
      %v5419 = vrot.slane %v5263, 5
      %v5420 = vrot.slane %v5419, 4
      %v5421 = vrot.slane %v5264, 5
      %v5422 = vsel %vm2013, %v5420, %v5421
      %v5423 = vrot.slane %v5421, 4
      %v5424 = vrot.slane %v5265, 5
      %v5425 = vsel %vm2013, %v5423, %v5424
      %s5426 = scalar_lea.vmem %s262, 512
      %v5427 = vld [vmem:[%s5426] sm:$0xf]
      %v5428 = vld [vmem:[%s5426 + $0x4] sm:$0xf]
      %v5429 = vld [vmem:[%s5426 + $0x8] sm:$0xf]
      %v5430 = vld [vmem:[%s5426 + $0xc] sm:$0xf]
      %v5431 = vld [vmem:[%s5426 + $0x10] sm:$0xf]
      %v5432 = vld [vmem:[%s5426 + $0x14] sm:$0xf]
      %v5433 = vld [vmem:[%s5426 + $0x18] sm:$0xf]
      %v5434 = vld [vmem:[%s5426 + $0x1c] sm:$0xf]
      %v5435 = vld [vmem:[%s5426 + $0x20] sm:$0xf]
      %v5436 = vld [vmem:[%s5426 + $0x24] sm:$0xf]
      %v5437 = vld [vmem:[%s5426 + $0x28] sm:$0xf]
      %v5438 = vld [vmem:[%s5426 + $0x2c] sm:$0xf]
      %v5439 = vld [vmem:[%s5426 + $0x30] sm:$0xf]
      %v5440 = vld [vmem:[%s5426 + $0x34] sm:$0xf]
      %v5441 = vld [vmem:[%s5426 + $0x38] sm:$0xf]
      %v5442 = vld [vmem:[%s5426 + $0x3c] sm:$0xf]
      %v5443 = vunpack.c.l.b16 %v5317
      %v5444 = vunpack.c.l.b16 %v5320
      %v5445 = vunpack.c.l.b16 %v5324
      %v5446 = vunpack.c.l.b16 %v5327
      %v5447 = vunpack.c.l.b16 %v5331
      %v5448 = vunpack.c.l.b16 %v5334
      %v5449 = vunpack.c.l.b16 %v5338
      %v5450 = vunpack.c.l.b16 %v5341
      %v5451 = vunpack.c.l.b16 %v5345
      %v5452 = vunpack.c.l.b16 %v5348
      %v5453 = vunpack.c.l.b16 %v5352
      %v5454 = vunpack.c.l.b16 %v5355
      %v5455 = vunpack.c.l.b16 %v5359
      %v5456 = vunpack.c.l.b16 %v5362
      %v5457 = vunpack.c.l.b16 %v5366
      %v5458 = vunpack.c.l.b16 %v5369
      %v5459 = vunpack.c.l.b16 %v5373
      %v5460 = vunpack.c.l.b16 %v5376
      %v5461 = vunpack.c.l.b16 %v5380
      %v5462 = vunpack.c.l.b16 %v5383
      %v5463 = vunpack.c.l.b16 %v5387
      %v5464 = vunpack.c.l.b16 %v5390
      %v5465 = vunpack.c.l.b16 %v5394
      %v5466 = vunpack.c.l.b16 %v5397
      %v5467 = vunpack.c.l.b16 %v5401
      %v5468 = vunpack.c.l.b16 %v5404
      %v5469 = vunpack.c.l.b16 %v5408
      %v5470 = vunpack.c.l.b16 %v5411
      %v5471 = vunpack.c.l.b16 %v5415
      %v5472 = vunpack.c.l.b16 %v5418
      %v5473 = vunpack.c.l.b16 %v5422
      %v5474 = vunpack.c.l.b16 %v5425
      %v5475 = vpack.c.b16 %v5444, %v5443
      %v5476 = vpack.c.b16 %v5446, %v5445
      %v5477 = vpack.c.b16 %v5448, %v5447
      %v5478 = vpack.c.b16 %v5450, %v5449
      %v5479 = vpack.c.b16 %v5452, %v5451
      %v5480 = vpack.c.b16 %v5454, %v5453
      %v5481 = vpack.c.b16 %v5456, %v5455
      %v5482 = vpack.c.b16 %v5458, %v5457
      %v5483 = vpack.c.b16 %v5460, %v5459
      %v5484 = vpack.c.b16 %v5462, %v5461
      %v5485 = vpack.c.b16 %v5464, %v5463
      %v5486 = vpack.c.b16 %v5466, %v5465
      %v5487 = vpack.c.b16 %v5468, %v5467
      %v5488 = vpack.c.b16 %v5470, %v5469
      %v5489 = vpack.c.b16 %v5472, %v5471
      %v5490 = vpack.c.b16 %v5474, %v5473
      %v5523 = vunpack.c.l.b16 %v5427
      %v5524 = vunpack.c.l.b16 %v5428
      %v5525 = vunpack.c.l.b16 %v5429
      %v5526 = vunpack.c.l.b16 %v5430
      %v5527 = vunpack.c.l.b16 %v5431
      %v5528 = vunpack.c.l.b16 %v5432
      %v5529 = vunpack.c.l.b16 %v5433
      %v5530 = vunpack.c.l.b16 %v5434
      %v5531 = vunpack.c.l.b16 %v5435
      %v5532 = vunpack.c.l.b16 %v5436
      %v5533 = vunpack.c.l.b16 %v5437
      %v5534 = vunpack.c.l.b16 %v5438
      %v5535 = vunpack.c.l.b16 %v5439
      %v5536 = vunpack.c.l.b16 %v5440
      %v5537 = vunpack.c.l.b16 %v5441
      %v5538 = vunpack.c.l.b16 %v5442
      %v5539 = vpack.c.b16 %v5524, %v5523
      %v5540 = vpack.c.b16 %v5526, %v5525
      %v5541 = vpack.c.b16 %v5528, %v5527
      %v5542 = vpack.c.b16 %v5530, %v5529
      %v5543 = vpack.c.b16 %v5532, %v5531
      %v5544 = vpack.c.b16 %v5534, %v5533
      %v5545 = vpack.c.b16 %v5536, %v5535
      %v5546 = vpack.c.b16 %v5538, %v5537
      %5555 = vmatpush.bf16.msra.mxu0 %v5546
      %5556 = vmatpush.bf16.msra.mxu0 %v5545
      %5557 = vmatpush.bf16.msra.mxu0 %v5544
      %5558 = vmatpush.bf16.msra.mxu0 %v5543
      %5559 = vmatpush.bf16.msra.mxu0 %v5542
      %5560 = vmatpush.bf16.msra.mxu0 %v5541
      %5561 = vmatpush.bf16.msra.mxu0 %v5540
      %5562 = vmatpush.bf16.msra.mxu0 %v5539
      %5563 = vmatmul.bf16.gmra.mxu0 %v5475
      %v5564 = vpop.f32.mrf.mxu0
      %v5565 = vadd.f32 0.0, %v5564
      %v5566 = vpop.f32.mrf.mxu0
      %v5567 = vadd.f32 0.0, %v5566
      %5568 = vmatmul.bf16.gmra.mxu0 %v5476
      %v5569 = vpop.f32.mrf.mxu0
      %v5570 = vadd.f32 0.0, %v5569
      %v5571 = vpop.f32.mrf.mxu0
      %v5572 = vadd.f32 0.0, %v5571
      %5573 = vmatmul.bf16.gmra.mxu0 %v5477
      %v5574 = vpop.f32.mrf.mxu0
      %v5575 = vadd.f32 0.0, %v5574
      %v5576 = vpop.f32.mrf.mxu0
      %v5577 = vadd.f32 0.0, %v5576
      %5578 = vmatmul.bf16.gmra.mxu0 %v5478
      %v5579 = vpop.f32.mrf.mxu0
      %v5580 = vadd.f32 0.0, %v5579
      %v5581 = vpop.f32.mrf.mxu0
      %v5582 = vadd.f32 0.0, %v5581
      %5583 = vmatmul.bf16.gmra.mxu0 %v5479
      %v5584 = vpop.f32.mrf.mxu0
      %v5585 = vadd.f32 0.0, %v5584
      %v5586 = vpop.f32.mrf.mxu0
      %v5587 = vadd.f32 0.0, %v5586
      %5588 = vmatmul.bf16.gmra.mxu0 %v5480
      %v5589 = vpop.f32.mrf.mxu0
      %v5590 = vadd.f32 0.0, %v5589
      %v5591 = vpop.f32.mrf.mxu0
      %v5592 = vadd.f32 0.0, %v5591
      %5593 = vmatmul.bf16.gmra.mxu0 %v5481
      %v5594 = vpop.f32.mrf.mxu0
      %v5595 = vadd.f32 0.0, %v5594
      %v5596 = vpop.f32.mrf.mxu0
      %v5597 = vadd.f32 0.0, %v5596
      %5598 = vmatmul.bf16.gmra.mxu0 %v5482
      %v5599 = vpop.f32.mrf.mxu0
      %v5600 = vadd.f32 0.0, %v5599
      %v5601 = vpop.f32.mrf.mxu0
      %v5602 = vadd.f32 0.0, %v5601
      %5603 = vmatmul.bf16.gmra.mxu0 %v5483
      %v5604 = vpop.f32.mrf.mxu0
      %v5605 = vadd.f32 0.0, %v5604
      %v5606 = vpop.f32.mrf.mxu0
      %v5607 = vadd.f32 0.0, %v5606
      %5608 = vmatmul.bf16.gmra.mxu0 %v5484
      %v5609 = vpop.f32.mrf.mxu0
      %v5610 = vadd.f32 0.0, %v5609
      %v5611 = vpop.f32.mrf.mxu0
      %v5612 = vadd.f32 0.0, %v5611
      %5613 = vmatmul.bf16.gmra.mxu0 %v5485
      %v5614 = vpop.f32.mrf.mxu0
      %v5615 = vadd.f32 0.0, %v5614
      %v5616 = vpop.f32.mrf.mxu0
      %v5617 = vadd.f32 0.0, %v5616
      %5618 = vmatmul.bf16.gmra.mxu0 %v5486
      %v5619 = vpop.f32.mrf.mxu0
      %v5620 = vadd.f32 0.0, %v5619
      %v5621 = vpop.f32.mrf.mxu0
      %v5622 = vadd.f32 0.0, %v5621
      %5623 = vmatmul.bf16.gmra.mxu0 %v5487
      %v5624 = vpop.f32.mrf.mxu0
      %v5625 = vadd.f32 0.0, %v5624
      %v5626 = vpop.f32.mrf.mxu0
      %v5627 = vadd.f32 0.0, %v5626
      %5628 = vmatmul.bf16.gmra.mxu0 %v5488
      %v5629 = vpop.f32.mrf.mxu0
      %v5630 = vadd.f32 0.0, %v5629
      %v5631 = vpop.f32.mrf.mxu0
      %v5632 = vadd.f32 0.0, %v5631
      %5633 = vmatmul.bf16.gmra.mxu0 %v5489
      %v5634 = vpop.f32.mrf.mxu0
      %v5635 = vadd.f32 0.0, %v5634
      %v5636 = vpop.f32.mrf.mxu0
      %v5637 = vadd.f32 0.0, %v5636
      %5638 = vmatmul.bf16.gmra.mxu0 %v5490
      %v5639 = vpop.f32.mrf.mxu0
      %v5640 = vadd.f32 0.0, %v5639
      %v5641 = vpop.f32.mrf.mxu0
      %v5642 = vadd.f32 0.0, %v5641
      %5643 = vdwg.mxu0
      %v5644 = vadd.f32 %v5186, %v5565
      %v5645 = vadd.f32 %v5187, %v5567
      %v5646 = vadd.f32 %v5188, %v5570
      %v5647 = vadd.f32 %v5189, %v5572
      %v5648 = vadd.f32 %v5190, %v5575
      %v5649 = vadd.f32 %v5191, %v5577
      %v5650 = vadd.f32 %v5192, %v5580
      %v5651 = vadd.f32 %v5193, %v5582
      %v5652 = vadd.f32 %v5194, %v5585
      %v5653 = vadd.f32 %v5195, %v5587
      %v5654 = vadd.f32 %v5196, %v5590
      %v5655 = vadd.f32 %v5197, %v5592
      %v5656 = vadd.f32 %v5198, %v5595
      %v5657 = vadd.f32 %v5199, %v5597
      %v5658 = vadd.f32 %v5200, %v5600
      %v5659 = vadd.f32 %v5201, %v5602
      %v5660 = vadd.f32 %v5202, %v5605
      %v5661 = vadd.f32 %v5203, %v5607
      %v5662 = vadd.f32 %v5204, %v5610
      %v5663 = vadd.f32 %v5205, %v5612
      %v5664 = vadd.f32 %v5206, %v5615
      %v5665 = vadd.f32 %v5207, %v5617
      %v5666 = vadd.f32 %v5208, %v5620
      %v5667 = vadd.f32 %v5209, %v5622
      %v5668 = vadd.f32 %v5210, %v5625
      %v5669 = vadd.f32 %v5211, %v5627
      %v5670 = vadd.f32 %v5212, %v5630
      %v5671 = vadd.f32 %v5213, %v5632
      %v5672 = vadd.f32 %v5214, %v5635
      %v5673 = vadd.f32 %v5215, %v5637
      %v5674 = vadd.f32 %v5216, %v5640
      %v5675 = vadd.f32 %v5217, %v5642
      %5676 = vst [vmem:[#allocation3] sm:$0xff] %v5644
      %5677 = vst [vmem:[#allocation3 + $0x8] sm:$0xff] %v5645
      %5678 = vst [vmem:[#allocation3 + $0x10] sm:$0xff] %v5646
      %5679 = vst [vmem:[#allocation3 + $0x18] sm:$0xff] %v5647
      %5680 = vst [vmem:[#allocation3 + $0x20] sm:$0xff] %v5648
      %5681 = vst [vmem:[#allocation3 + $0x28] sm:$0xff] %v5649
      %5682 = vst [vmem:[#allocation3 + $0x30] sm:$0xff] %v5650
      %5683 = vst [vmem:[#allocation3 + $0x38] sm:$0xff] %v5651
      %5684 = vst [vmem:[#allocation3 + $0x40] sm:$0xff] %v5652
      %5685 = vst [vmem:[#allocation3 + $0x48] sm:$0xff] %v5653
      %5686 = vst [vmem:[#allocation3 + $0x50] sm:$0xff] %v5654
      %5687 = vst [vmem:[#allocation3 + $0x58] sm:$0xff] %v5655
      %5688 = vst [vmem:[#allocation3 + $0x60] sm:$0xff] %v5656
      %5689 = vst [vmem:[#allocation3 + $0x68] sm:$0xff] %v5657
      %5690 = vst [vmem:[#allocation3 + $0x70] sm:$0xff] %v5658
      %5691 = vst [vmem:[#allocation3 + $0x78] sm:$0xff] %v5659
      %5692 = vst [vmem:[#allocation3 + $0x80] sm:$0xff] %v5660
      %5693 = vst [vmem:[#allocation3 + $0x88] sm:$0xff] %v5661
      %5694 = vst [vmem:[#allocation3 + $0x90] sm:$0xff] %v5662
      %5695 = vst [vmem:[#allocation3 + $0x98] sm:$0xff] %v5663
      %5696 = vst [vmem:[#allocation3 + $0xa0] sm:$0xff] %v5664
      %5697 = vst [vmem:[#allocation3 + $0xa8] sm:$0xff] %v5665
      %5698 = vst [vmem:[#allocation3 + $0xb0] sm:$0xff] %v5666
      %5699 = vst [vmem:[#allocation3 + $0xb8] sm:$0xff] %v5667
      %5700 = vst [vmem:[#allocation3 + $0xc0] sm:$0xff] %v5668
      %5701 = vst [vmem:[#allocation3 + $0xc8] sm:$0xff] %v5669
      %5702 = vst [vmem:[#allocation3 + $0xd0] sm:$0xff] %v5670
      %5703 = vst [vmem:[#allocation3 + $0xd8] sm:$0xff] %v5671
      %5704 = vst [vmem:[#allocation3 + $0xe0] sm:$0xff] %v5672
      %5705 = vst [vmem:[#allocation3 + $0xe8] sm:$0xff] %v5673
      %5706 = vst [vmem:[#allocation3 + $0xf0] sm:$0xff] %v5674
      %5707 = vst [vmem:[#allocation3 + $0xf8] sm:$0xff] %v5675
      %v5708 = vld [vmem:[#allocation3] sm:$0xff]
      %v5709 = vld [vmem:[#allocation3 + $0x8] sm:$0xff]
      %v5710 = vld [vmem:[#allocation3 + $0x10] sm:$0xff]
      %v5711 = vld [vmem:[#allocation3 + $0x18] sm:$0xff]
      %v5712 = vld [vmem:[#allocation3 + $0x20] sm:$0xff]
      %v5713 = vld [vmem:[#allocation3 + $0x28] sm:$0xff]
      %v5714 = vld [vmem:[#allocation3 + $0x30] sm:$0xff]
      %v5715 = vld [vmem:[#allocation3 + $0x38] sm:$0xff]
      %v5716 = vld [vmem:[#allocation3 + $0x40] sm:$0xff]
      %v5717 = vld [vmem:[#allocation3 + $0x48] sm:$0xff]
      %v5718 = vld [vmem:[#allocation3 + $0x50] sm:$0xff]
      %v5719 = vld [vmem:[#allocation3 + $0x58] sm:$0xff]
      %v5720 = vld [vmem:[#allocation3 + $0x60] sm:$0xff]
      %v5721 = vld [vmem:[#allocation3 + $0x68] sm:$0xff]
      %v5722 = vld [vmem:[#allocation3 + $0x70] sm:$0xff]
      %v5723 = vld [vmem:[#allocation3 + $0x78] sm:$0xff]
      %v5724 = vld [vmem:[#allocation3 + $0x80] sm:$0xff]
      %v5725 = vld [vmem:[#allocation3 + $0x88] sm:$0xff]
      %v5726 = vld [vmem:[#allocation3 + $0x90] sm:$0xff]
      %v5727 = vld [vmem:[#allocation3 + $0x98] sm:$0xff]
      %v5728 = vld [vmem:[#allocation3 + $0xa0] sm:$0xff]
      %v5729 = vld [vmem:[#allocation3 + $0xa8] sm:$0xff]
      %v5730 = vld [vmem:[#allocation3 + $0xb0] sm:$0xff]
      %v5731 = vld [vmem:[#allocation3 + $0xb8] sm:$0xff]
      %v5732 = vld [vmem:[#allocation3 + $0xc0] sm:$0xff]
      %v5733 = vld [vmem:[#allocation3 + $0xc8] sm:$0xff]
      %v5734 = vld [vmem:[#allocation3 + $0xd0] sm:$0xff]
      %v5735 = vld [vmem:[#allocation3 + $0xd8] sm:$0xff]
      %v5736 = vld [vmem:[#allocation3 + $0xe0] sm:$0xff]
      %v5737 = vld [vmem:[#allocation3 + $0xe8] sm:$0xff]
      %v5738 = vld [vmem:[#allocation3 + $0xf0] sm:$0xff]
      %v5739 = vld [vmem:[#allocation3 + $0xf8] sm:$0xff]
      %v5740 = vld [vmem:[%s265] sm:$0x1]
      %v5742 = vperm.slane %v5740, 0
      %v5744 = vmul.f32 %v5708, %v5742
      %v5745 = vmul.f32 %v5709, %v5742
      %v5746 = vmul.f32 %v5710, %v5742
      %v5747 = vmul.f32 %v5711, %v5742
      %v5748 = vmul.f32 %v5712, %v5742
      %v5749 = vmul.f32 %v5713, %v5742
      %v5750 = vmul.f32 %v5714, %v5742
      %v5751 = vmul.f32 %v5715, %v5742
      %v5752 = vmul.f32 %v5716, %v5742
      %v5753 = vmul.f32 %v5717, %v5742
      %v5754 = vmul.f32 %v5718, %v5742
      %v5755 = vmul.f32 %v5719, %v5742
      %v5756 = vmul.f32 %v5720, %v5742
      %v5757 = vmul.f32 %v5721, %v5742
      %v5758 = vmul.f32 %v5722, %v5742
      %v5759 = vmul.f32 %v5723, %v5742
      %v5760 = vmul.f32 %v5724, %v5742
      %v5761 = vmul.f32 %v5725, %v5742
      %v5762 = vmul.f32 %v5726, %v5742
      %v5763 = vmul.f32 %v5727, %v5742
      %v5764 = vmul.f32 %v5728, %v5742
      %v5765 = vmul.f32 %v5729, %v5742
      %v5766 = vmul.f32 %v5730, %v5742
      %v5767 = vmul.f32 %v5731, %v5742
      %v5768 = vmul.f32 %v5732, %v5742
      %v5769 = vmul.f32 %v5733, %v5742
      %v5770 = vmul.f32 %v5734, %v5742
      %v5771 = vmul.f32 %v5735, %v5742
      %v5772 = vmul.f32 %v5736, %v5742
      %v5773 = vmul.f32 %v5737, %v5742
      %v5774 = vmul.f32 %v5738, %v5742
      %v5775 = vmul.f32 %v5739, %v5742
      %v5776 = vld [vmem:[%s268] sm:$0x1]
      %v5778 = vperm.slane %v5776, 0
      %v5780 = vadd.f32 %v5744, %v5778
      %v5781 = vadd.f32 %v5745, %v5778
      %v5782 = vadd.f32 %v5746, %v5778
      %v5783 = vadd.f32 %v5747, %v5778
      %v5784 = vadd.f32 %v5748, %v5778
      %v5785 = vadd.f32 %v5749, %v5778
      %v5786 = vadd.f32 %v5750, %v5778
      %v5787 = vadd.f32 %v5751, %v5778
      %v5788 = vadd.f32 %v5752, %v5778
      %v5789 = vadd.f32 %v5753, %v5778
      %v5790 = vadd.f32 %v5754, %v5778
      %v5791 = vadd.f32 %v5755, %v5778
      %v5792 = vadd.f32 %v5756, %v5778
      %v5793 = vadd.f32 %v5757, %v5778
      %v5794 = vadd.f32 %v5758, %v5778
      %v5795 = vadd.f32 %v5759, %v5778
      %v5796 = vadd.f32 %v5760, %v5778
      %v5797 = vadd.f32 %v5761, %v5778
      %v5798 = vadd.f32 %v5762, %v5778
      %v5799 = vadd.f32 %v5763, %v5778
      %v5800 = vadd.f32 %v5764, %v5778
      %v5801 = vadd.f32 %v5765, %v5778
      %v5802 = vadd.f32 %v5766, %v5778
      %v5803 = vadd.f32 %v5767, %v5778
      %v5804 = vadd.f32 %v5768, %v5778
      %v5805 = vadd.f32 %v5769, %v5778
      %v5806 = vadd.f32 %v5770, %v5778
      %v5807 = vadd.f32 %v5771, %v5778
      %v5808 = vadd.f32 %v5772, %v5778
      %v5809 = vadd.f32 %v5773, %v5778
      %v5810 = vadd.f32 %v5774, %v5778
      %v5811 = vadd.f32 %v5775, %v5778
      %v5812 = vmax.f32 %v5780, 0.0
      %v5813 = vmax.f32 %v5781, 0.0
      %v5814 = vmax.f32 %v5782, 0.0
      %v5815 = vmax.f32 %v5783, 0.0
      %v5816 = vmax.f32 %v5784, 0.0
      %v5817 = vmax.f32 %v5785, 0.0
      %v5818 = vmax.f32 %v5786, 0.0
      %v5819 = vmax.f32 %v5787, 0.0
      %v5820 = vmax.f32 %v5788, 0.0
      %v5821 = vmax.f32 %v5789, 0.0
      %v5822 = vmax.f32 %v5790, 0.0
      %v5823 = vmax.f32 %v5791, 0.0
      %v5824 = vmax.f32 %v5792, 0.0
      %v5825 = vmax.f32 %v5793, 0.0
      %v5826 = vmax.f32 %v5794, 0.0
      %v5827 = vmax.f32 %v5795, 0.0
      %v5828 = vmax.f32 %v5796, 0.0
      %v5829 = vmax.f32 %v5797, 0.0
      %v5830 = vmax.f32 %v5798, 0.0
      %v5831 = vmax.f32 %v5799, 0.0
      %v5832 = vmax.f32 %v5800, 0.0
      %v5833 = vmax.f32 %v5801, 0.0
      %v5834 = vmax.f32 %v5802, 0.0
      %v5835 = vmax.f32 %v5803, 0.0
      %v5836 = vmax.f32 %v5804, 0.0
      %v5837 = vmax.f32 %v5805, 0.0
      %v5838 = vmax.f32 %v5806, 0.0
      %v5839 = vmax.f32 %v5807, 0.0
      %v5840 = vmax.f32 %v5808, 0.0
      %v5841 = vmax.f32 %v5809, 0.0
      %v5842 = vmax.f32 %v5810, 0.0
      %v5843 = vmax.f32 %v5811, 0.0
      %v5844 = vpack.c.bf16 %v5812, %v5812
      %v5845 = vpack.c.bf16 %v5813, %v5813
      %v5846 = vpack.c.bf16 %v5814, %v5814
      %v5847 = vpack.c.bf16 %v5815, %v5815
      %v5848 = vpack.c.bf16 %v5816, %v5816
      %v5849 = vpack.c.bf16 %v5817, %v5817
      %v5850 = vpack.c.bf16 %v5818, %v5818
      %v5851 = vpack.c.bf16 %v5819, %v5819
      %v5852 = vpack.c.bf16 %v5820, %v5820
      %v5853 = vpack.c.bf16 %v5821, %v5821
      %v5854 = vpack.c.bf16 %v5822, %v5822
      %v5855 = vpack.c.bf16 %v5823, %v5823
      %v5856 = vpack.c.bf16 %v5824, %v5824
      %v5857 = vpack.c.bf16 %v5825, %v5825
      %v5858 = vpack.c.bf16 %v5826, %v5826
      %v5859 = vpack.c.bf16 %v5827, %v5827
      %v5860 = vpack.c.bf16 %v5828, %v5828
      %v5861 = vpack.c.bf16 %v5829, %v5829
      %v5862 = vpack.c.bf16 %v5830, %v5830
      %v5863 = vpack.c.bf16 %v5831, %v5831
      %v5864 = vpack.c.bf16 %v5832, %v5832
      %v5865 = vpack.c.bf16 %v5833, %v5833
      %v5866 = vpack.c.bf16 %v5834, %v5834
      %v5867 = vpack.c.bf16 %v5835, %v5835
      %v5868 = vpack.c.bf16 %v5836, %v5836
      %v5869 = vpack.c.bf16 %v5837, %v5837
      %v5870 = vpack.c.bf16 %v5838, %v5838
      %v5871 = vpack.c.bf16 %v5839, %v5839
      %v5872 = vpack.c.bf16 %v5840, %v5840
      %v5873 = vpack.c.bf16 %v5841, %v5841
      %v5874 = vpack.c.bf16 %v5842, %v5842
      %v5875 = vpack.c.bf16 %v5843, %v5843
      %5876 = vst [vmem:[%s281] sm:$0xf] %v5844
      %5877 = vst [vmem:[%s281 + $0x4] sm:$0xf] %v5845
      %5878 = vst [vmem:[%s281 + $0x8] sm:$0xf] %v5846
      %5879 = vst [vmem:[%s281 + $0xc] sm:$0xf] %v5847
      %5880 = vst [vmem:[%s281 + $0x10] sm:$0xf] %v5848
      %5881 = vst [vmem:[%s281 + $0x14] sm:$0xf] %v5849
      %5882 = vst [vmem:[%s281 + $0x18] sm:$0xf] %v5850
      %5883 = vst [vmem:[%s281 + $0x1c] sm:$0xf] %v5851
      %5884 = vst [vmem:[%s281 + $0x20] sm:$0xf] %v5852
      %5885 = vst [vmem:[%s281 + $0x24] sm:$0xf] %v5853
      %5886 = vst [vmem:[%s281 + $0x28] sm:$0xf] %v5854
      %5887 = vst [vmem:[%s281 + $0x2c] sm:$0xf] %v5855
      %5888 = vst [vmem:[%s281 + $0x30] sm:$0xf] %v5856
      %5889 = vst [vmem:[%s281 + $0x34] sm:$0xf] %v5857
      %5890 = vst [vmem:[%s281 + $0x38] sm:$0xf] %v5858
      %5891 = vst [vmem:[%s281 + $0x3c] sm:$0xf] %v5859
      %5892 = vst [vmem:[%s281 + $0x40] sm:$0xf] %v5860
      %5893 = vst [vmem:[%s281 + $0x44] sm:$0xf] %v5861
      %5894 = vst [vmem:[%s281 + $0x48] sm:$0xf] %v5862
      %5895 = vst [vmem:[%s281 + $0x4c] sm:$0xf] %v5863
      %5896 = vst [vmem:[%s281 + $0x50] sm:$0xf] %v5864
      %5897 = vst [vmem:[%s281 + $0x54] sm:$0xf] %v5865
      %5898 = vst [vmem:[%s281 + $0x58] sm:$0xf] %v5866
      %5899 = vst [vmem:[%s281 + $0x5c] sm:$0xf] %v5867
      %5900 = vst [vmem:[%s281 + $0x60] sm:$0xf] %v5868
      %5901 = vst [vmem:[%s281 + $0x64] sm:$0xf] %v5869
      %5902 = vst [vmem:[%s281 + $0x68] sm:$0xf] %v5870
      %5903 = vst [vmem:[%s281 + $0x6c] sm:$0xf] %v5871
      %5904 = vst [vmem:[%s281 + $0x70] sm:$0xf] %v5872
      %5905 = vst [vmem:[%s281 + $0x74] sm:$0xf] %v5873
      %5906 = vst [vmem:[%s281 + $0x78] sm:$0xf] %v5874
      %5907 = vst [vmem:[%s281 + $0x7c] sm:$0xf] %v5875
      %s5908 = smul.u32 16, %s21
      %p5909 = scmp.lt.s32.totalorder %s20, 1
      %s5910 = scalar_select %p5909, %s20, 1
      %p5911 = scmp.lt.s32.totalorder %s5908, 15
      %s5912 = scalar_select %p5911, %s5908, 15
      %p5913 = scmp.lt.s32.totalorder %s22, 0
      %s5914 = scalar_select %p5913, %s22, 0
      %s5915 = smul.addr %s5912, 2
      %s5916 = sadd.s32 %s5914, %s5915
      %s5917 = smul.addr %s5910, 32
      %s5918 = sadd.s32 %s5916, %s5917
      %s5919 = smul.addr %s5918, 4
      %s5920 = scalar_lea.vmem %s4, %s5919
      // Predicated region
      $region41: #{bottleneck_forward.4} parent=35 // pred_check
        %p5921 = pneg %p160
      $region42: #{bottleneck_forward.4} parent=35 // pred_check_branch
        %5923 = sbr.rel (%p5921) target = $region44
      $region43: #{bottleneck_forward.4} parent=35 // pred_region
        %s5924 = smul.u32 16, %s21
      $region44: #{bottleneck_forward.4} parent=35 // pred_fallthru
        _
    $region36: #{bottleneck_forward.4} parent=5 // pred_fallthru
      _
    %p5925 = scmp.le.s32.totalorder 2, %s10
    // Predicated region
    $region45: #{bottleneck_forward.4} parent=5 // pred_check
      %p5926 = pneg %p5925
    $region46: #{bottleneck_forward.4} parent=5 // pred_check_branch
      %5928 = sbr.rel (%p5926) target = $region48
    $region47: #{bottleneck_forward.4} parent=5 // pred_region
      %s5929 = ssub.s32 %s10, 2
      // Predicated region
      $region49: #{bottleneck_forward.4} parent=47 // pred_check
        %p5930 = pneg %p166
      $region50: #{bottleneck_forward.4} parent=47 // pred_check_branch
        %5932 = sbr.rel (%p5930) target = $region52
      $region51: #{bottleneck_forward.4} parent=47 // pred_region
        %s5933 = smul.u32 16, %s24
        %p5934 = scmp.lt.s32.totalorder %s23, 1
        %s5935 = scalar_select %p5934, %s23, 1
        %p5936 = scmp.lt.s32.totalorder %s5933, 15
        %s5937 = scalar_select %p5936, %s5933, 15
        %p5938 = scmp.lt.s32.totalorder %s25, 0
        %s5939 = scalar_select %p5938, %s25, 0
        %s5940 = smul.addr %s5937, 2
        %s5941 = sadd.s32 %s5939, %s5940
        %s5942 = smul.addr %s5935, 32
        %s5943 = sadd.s32 %s5941, %s5942
        %s5944 = smul.addr %s5943, 4
        %s5945 = scalar_lea.vmem %s4, %s5944
      $region52: #{bottleneck_forward.4} parent=47 // pred_fallthru
        _
    $region48: #{bottleneck_forward.4} parent=5 // pred_fallthru
      _
  $region6: #{bottleneck_forward.4} parent=0 // loop_footer
    %s14 = sadd.s32 1, %s10
  $region7: #{bottleneck_forward.4} parent=0 // loop_footer_branch
    %9 = sbr.rel target = $region3
  $region8: #{bottleneck_forward.4} parent=0 // loop_exit
    _

</llo_original>
